<compile_context>
chip_gen: v6e
topology: v6e:2x2x1
jax: 0.10.0
libtpu: 0.0.40
codegen_flags: <defaults>
</compile_context>

<pallas_src>
import jax
import jax.numpy as jnp
from jax import lax
from jax.experimental import pallas as pl
from jax.experimental.pallas import tpu as pltpu

IMAGE_SIZE = 224
PATCH = 32                        # total downsample of the (simplified) backbone
GRID = IMAGE_SIZE // PATCH        # 7  (forward hard-codes 7**2)
NUM_PATCHES = GRID * GRID         # 49
IN_CH = 3
EMBED = 64                        # backbone output channels (2048 in real RN101)
NUM_HEADS = 4
HEAD_DIM = EMBED // NUM_HEADS
OUT_DIM = 32                      # attnpool output_dim (512 in real RN101)
PATCH_DIM = IN_CH * PATCH * PATCH  # 3072

BATCH_BLOCK = 8                               # batch elements per grid step
TOKENS_PER_BLOCK = BATCH_BLOCK * NUM_PATCHES  # 392 token rows per tile (mult. of 8)


# ---------------------------------------------------------------------------
# Kernel 1: patchify conv as a matmul (+ bias + ReLU) on the MXU.
# Row-tiled: (tile_m, PATCH_DIM) @ (PATCH_DIM, EMBED) -> (tile_m, EMBED)
# ---------------------------------------------------------------------------
def patchify_kernel(p_ref, w_ref, b_ref, o_ref):
    acc = jnp.dot(p_ref[...], w_ref[...], preferred_element_type=jnp.float32)
    acc = acc + b_ref[...]
    o_ref[...] = jnp.maximum(acc, 0.0).astype(o_ref.dtype)


# ---------------------------------------------------------------------------
# Kernel 2: CLIP AttentionPool2d, one batch block (8 batch elements, 392
# spatial tokens) per grid step.
#   tokens = [mean(feat); feat] + pos_embed
#   q = token0 only; multi-head attention over all 50 tokens; c_proj to OUT_DIM
# The cls/mean token qkv is recovered by linearity from the projected spatial
# tokens (c0 = (pos0 - mean(posr)) @ Wqkv is precomputed from parameters), so
# the kernel never needs a (1+49) concatenate or an in-kernel reshape.
# Cross-batch scores are masked out with a one-hot (batch, token) mask so all
# 8 batch elements share one qkv matmul, one exp pass, and one prob@V matmul
# per head, with tokens on the lane axis.
# ---------------------------------------------------------------------------
def attnpool_kernel(feat_ref, posr_ref, c0_ref, wqkv_ref, bqkv_ref,
                    wo_ref, bo_ref, o_ref, heads_ref):
    nt = TOKENS_PER_BLOCK

    xr = feat_ref[...] + posr_ref[...]                           # (392, 64)
    qkvr = jnp.dot(xr, wqkv_ref[...],
                   preferred_element_type=jnp.float32) + bqkv_ref[...]   # (392, 192)

    # one-hot "token row belongs to batch b" mask, built from 2-D iota.
    tok = lax.broadcasted_iota(jnp.int32, (BATCH_BLOCK, nt), 1)
    bat = lax.broadcasted_iota(jnp.int32, (BATCH_BLOCK, nt), 0)
    own = (tok >= bat * NUM_PATCHES) & (tok < (bat + 1) * NUM_PATCHES)   # (8, 392)
    avg = jnp.where(own, 1.0 / NUM_PATCHES, 0.0)                 # (8, 392) f32

    # cls-token qkv via linearity:
    #   qkv(mean(feat)+pos0) = mean_t(qkvr) + (pos0 - mean(posr)) @ Wqkv
    qkv0 = jnp.dot(avg, qkvr, preferred_element_type=jnp.float32) + c0_ref[...]  # (8, 192)

    scale = HEAD_DIM ** -0.5
    q = qkv0[:, :EMBED] * scale                                  # (8, 64)
    k0 = qkv0[:, EMBED:2 * EMBED]                                # (8, 64)
    v0 = qkv0[:, 2 * EMBED:]                                     # (8, 64)
    kr = qkvr[:, EMBED:2 * EMBED]                                # (392, 64)
    vr = qkvr[:, 2 * EMBED:]                                     # (392, 64)

    for h in range(NUM_HEADS):                                   # static unroll, 4 heads
        sl = slice(h * HEAD_DIM, (h + 1) * HEAD_DIM)
        qh, k0h, v0h = q[:, sl], k0[:, sl], v0[:, sl]            # (8, 16)
        krh, vrh = kr[:, sl], vr[:, sl]                          # (392, 16)

        # scores of every spatial token vs every query; tokens on lanes: (8, 392)
        s_sp = lax.dot_general(qh, krh, (((1,), (1,)), ((), ())),
                               preferred_element_type=jnp.float32)
        s_sp = jnp.where(own, s_sp, -1e30)                       # mask cross-batch
        s0 = jnp.sum(qh * k0h, axis=-1, keepdims=True)           # (8, 1) cls score

        m = jnp.maximum(jnp.max(s_sp, axis=-1, keepdims=True), s0)   # (8, 1)
        p0 = jnp.exp(s0 - m)                                     # (8, 1)
        pr = jnp.exp(s_sp - m)                                   # (8, 392); masked -> 0
        denom = p0 + jnp.sum(pr, axis=-1, keepdims=True)         # (8, 1)

        o_sp = jnp.dot(pr, vrh, preferred_element_type=jnp.float32)  # (8, 16)
        heads_ref[:, sl] = (p0 * v0h + o_sp) / denom             # (8, 16)

    fc = jnp.dot(heads_ref[...], wo_ref[...],
                 preferred_element_type=jnp.float32) + bo_ref[...]    # (8, 32)
    o_ref[...] = fc.astype(o_ref.dtype)


# ---------------------------------------------------------------------------
# Glue (reshapes / parameter packing in plain JAX)
# ---------------------------------------------------------------------------
def image_to_patches(image):
    """NCHW image -> (B*49, PATCH_DIM) patch tokens, feature order (c, kh, kw)."""
    B = image.shape[0]
    x = image.reshape(B, IN_CH, GRID, PATCH, GRID, PATCH)
    x = x.transpose(0, 2, 4, 1, 3, 5)                    # (B, gh, gw, c, ph, pw)
    return x.reshape(B * NUM_PATCHES, PATCH_DIM)


def clip_vision_forward(image, params):
    B = image.shape[0]
    B_pad = pl.cdiv(B, BATCH_BLOCK) * BATCH_BLOCK
    n_blocks = B_pad // BATCH_BLOCK
    M = B_pad * NUM_PATCHES
    tile_m = TOKENS_PER_BLOCK

    patches = image_to_patches(image)                    # (B*49, 3072)
    patches = jnp.pad(patches, ((0, M - B * NUM_PATCHES), (0, 0)))

    feat_flat = pl.pallas_call(
        patchify_kernel,
        grid=(n_blocks,),
        in_specs=[
            pl.BlockSpec((tile_m, PATCH_DIM), lambda i: (i, 0)),
            pl.BlockSpec((PATCH_DIM, EMBED), lambda i: (0, 0)),   # resident weight
            pl.BlockSpec((1, EMBED), lambda i: (0, 0)),           # resident bias
        ],
        out_specs=pl.BlockSpec((tile_m, EMBED), lambda i: (i, 0)),
        out_shape=jax.ShapeDtypeStruct((M, EMBED), jnp.float32),
        compiler_params=pltpu.CompilerParams(
            dimension_semantics=("parallel",),
            vmem_limit_bytes=48 * 1024 * 1024),
    )(patches, params["w_patch"], params["b_patch"])

    # att == PyTorch's att.permute(0, 2, 3, 1).reshape(B, 7**2, -1)
    att = feat_flat.reshape(B_pad, NUM_PATCHES, EMBED)[:B]

    # Parameter-only packing (done once; constant-folded under jit).
    wqkv = jnp.concatenate([params["wq"], params["wk"], params["wv"]], axis=1)  # (64, 192)
    bqkv = jnp.concatenate([params["bq"], params["bk"], params["bv"]], axis=1)  # (1, 192)
    pos0 = params["pos_embed"][:, 0, :]                  # (1, EMBED)
    posr = params["pos_embed"][0, 1:, :]                 # (49, EMBED)
    posr_rep = jnp.tile(posr, (BATCH_BLOCK, 1))          # (392, EMBED)
    c0 = (pos0 - jnp.mean(posr, axis=0, keepdims=True)) @ wqkv                 # (1, 192)

    fc_pad = pl.pallas_call(
        attnpool_kernel,
        grid=(n_blocks,),
        in_specs=[
            pl.BlockSpec((tile_m, EMBED), lambda g: (g, 0)),      # feat tokens
            pl.BlockSpec((tile_m, EMBED), lambda g: (0, 0)),      # posr (tiled per block)
            pl.BlockSpec((1, 3 * EMBED), lambda g: (0, 0)),       # c0
            pl.BlockSpec((EMBED, 3 * EMBED), lambda g: (0, 0)),   # fused Wqkv
            pl.BlockSpec((1, 3 * EMBED), lambda g: (0, 0)),       # fused bqkv
            pl.BlockSpec((EMBED, OUT_DIM), lambda g: (0, 0)),     # Wo
            pl.BlockSpec((1, OUT_DIM), lambda g: (0, 0)),         # bo
        ],
        out_specs=pl.BlockSpec((BATCH_BLOCK, OUT_DIM), lambda g: (g, 0)),
        out_shape=jax.ShapeDtypeStruct((B_pad, OUT_DIM), jnp.float32),
        scratch_shapes=[pltpu.VMEM((BATCH_BLOCK, EMBED), jnp.float32)],
        compiler_params=pltpu.CompilerParams(
            dimension_semantics=("parallel",),
            vmem_limit_bytes=48 * 1024 * 1024),
    )(feat_flat, posr_rep, c0, wqkv, bqkv, params["wo"], params["bo"])

    return fc_pad[:B], att


def init_params(key):
    ks = jax.random.split(key, 11)
    w = lambda k, shape, s=0.02: (jax.random.normal(k, shape, jnp.float32) * s)
    return dict(
        w_patch=w(ks[0], (PATCH_DIM, EMBED)),
        b_patch=w(ks[1], (1, EMBED), 0.01),
        pos_embed=w(ks[2], (1, NUM_PATCHES + 1, EMBED)),
        wq=w(ks[3], (EMBED, EMBED)),
        bq=w(ks[4], (1, EMBED), 0.01),
        wk=w(ks[5], (EMBED, EMBED)),
        bk=w(ks[6], (1, EMBED), 0.01),
        wv=w(ks[7], (EMBED, EMBED)),
        bv=w(ks[8], (1, EMBED), 0.01),
        wo=w(ks[9], (EMBED, OUT_DIM)),
        bo=w(ks[10], (1, OUT_DIM), 0.01),
    )


def reference(image, params):
    """Pure-jnp reference of the same (simplified) forward, for validation."""
    B = image.shape[0]
    patches = image_to_patches(image)
    feat = jnp.maximum(patches @ params["w_patch"] + params["b_patch"], 0.0)
    feat = feat.reshape(B, NUM_PATCHES, EMBED)
    x = jnp.concatenate([feat.mean(axis=1, keepdims=True), feat], axis=1)
    x = x + params["pos_embed"]
    q = (x[:, :1] @ params["wq"] + params["bq"])
    k = (x @ params["wk"] + params["bk"])
    v = (x @ params["wv"] + params["bv"])
    q = q.reshape(B, 1, NUM_HEADS, HEAD_DIM).transpose(0, 2, 1, 3) * HEAD_DIM ** -0.5
    k = k.reshape(B, NUM_PATCHES + 1, NUM_HEADS, HEAD_DIM).transpose(0, 2, 1, 3)
    v = v.reshape(B, NUM_PATCHES + 1, NUM_HEADS, HEAD_DIM).transpose(0, 2, 1, 3)
    s = jnp.einsum("bhqd,bhkd->bhqk", q, k)
    p = jax.nn.softmax(s, axis=-1)
    o = jnp.einsum("bhqk,bhkd->bhqd", p, v)
    o = o.transpose(0, 2, 1, 3).reshape(B, EMBED)
    fc = o @ params["wo"] + params["bo"]
    return fc, feat


if __name__ == "__main__":
    key = jax.random.PRNGKey(0)
    pkey, ikey = jax.random.split(key)
    params = init_params(pkey)
    image = jax.random.normal(ikey, (2, IN_CH, IMAGE_SIZE, IMAGE_SIZE), jnp.float32)

    forward = jax.jit(clip_vision_forward)
    fc, att = forward(image, params)
    (fc, att) = jax.block_until_ready((fc, att))

    assert fc.shape == (2, OUT_DIM)
    assert att.shape == (2, NUM_PATCHES, EMBED)

    fc_ref, att_ref = reference(image, params)
    assert float(jnp.max(jnp.abs(att - att_ref))) < 1e-3
    assert float(jnp.max(jnp.abs(fc - fc_ref))) < 1e-3

    print("KERNEL_OK")
</pallas_src>

<mosaic_0001>
module attributes {stable_mosaic.version = 11 : i64} {
  func.func @patchify_kernel(%arg0: i32, %arg1: memref<392x3072xf32, #tpu.memory_space<vmem>>, %arg2: memref<3072x64xf32, #tpu.memory_space<vmem>>, %arg3: memref<1x64xf32, #tpu.memory_space<vmem>>, %arg4: memref<392x64xf32, #tpu.memory_space<vmem>>) attributes {dimension_semantics = [#tpu.dimension_semantics<parallel>], iteration_bounds = array<i64: 1>, scalar_prefetch = 0 : i64, scratch_operands = 0 : i64, tpu.core_type = #tpu.core_type<tc>, window_params = [{transform_indices = @transform_0, window_bounds = array<i64: 392, 3072>}, {pipeline_mode = #tpu.pipeline_mode<synchronous>, transform_indices = @transform_1, window_bounds = array<i64: 3072, 64>}, {pipeline_mode = #tpu.pipeline_mode<synchronous>, transform_indices = @transform_2, window_bounds = array<i64: 1, 64>}, {transform_indices = @transform_3, window_bounds = array<i64: 392, 64>}]} {
    %c0 = arith.constant 0 : index
    %c0_0 = arith.constant 0 : index
    %0 = vector.load %arg1[%c0, %c0_0] : memref<392x3072xf32, #tpu.memory_space<vmem>>, vector<392x3072xf32>
    %c0_1 = arith.constant 0 : index
    %c0_2 = arith.constant 0 : index
    %1 = vector.load %arg2[%c0_1, %c0_2] : memref<3072x64xf32, #tpu.memory_space<vmem>>, vector<3072x64xf32>
    %cst = arith.constant dense<0.000000e+00> : vector<392x64xf32>
    %2 = tpu.matmul %0, %1, %cst {dimension_numbers = #tpu.dot_dimension_numbers<[1], [0], [0], [1], [0, 0, 1, 1], [], []>} : vector<392x3072xf32>, vector<3072x64xf32>, vector<392x64xf32> -> vector<392x64xf32>
    %c0_3 = arith.constant 0 : index
    %c0_4 = arith.constant 0 : index
    %3 = vector.load %arg3[%c0_3, %c0_4] : memref<1x64xf32, #tpu.memory_space<vmem>>, vector<1x64xf32>
    %4 = vector.broadcast %3 : vector<1x64xf32> to vector<392x64xf32>
    %5 = arith.addf %2, %4 : vector<392x64xf32>
    %cst_5 = arith.constant 0.000000e+00 : f32
    %6 = vector.broadcast %cst_5 : f32 to vector<392x64xf32>
    %7 = arith.maximumf %5, %6 : vector<392x64xf32>
    %c0_6 = arith.constant 0 : index
    %c0_7 = arith.constant 0 : index
    %8 = vector.load %arg4[%c0_6, %c0_7] : memref<392x64xf32, #tpu.memory_space<vmem>>, vector<392x64xf32>
    tpu.vector_store %arg4[%c0_6, %c0_7], %7 {strides = array<i32>} : memref<392x64xf32, #tpu.memory_space<vmem>>, vector<392x64xf32>,
    return
  }
  func.func @transform_0(%arg0: i32) -> (i32, i32) {
    %c0_i32 = arith.constant 0 : i32
    %c0_i32_0 = arith.constant 0 : i32
    return %arg0, %c0_i32 : i32, i32
  }
  func.func @transform_1(%arg0: i32) -> (i32, i32) {
    %c0_i32 = arith.constant 0 : i32
    %c0_i32_0 = arith.constant 0 : i32
    %c0_i32_1 = arith.constant 0 : i32
    return %c0_i32, %c0_i32_0 : i32, i32
  }
  func.func @transform_2(%arg0: i32) -> (i32, i32) {
    %c0_i32 = arith.constant 0 : i32
    %c0_i32_0 = arith.constant 0 : i32
    %c0_i32_1 = arith.constant 0 : i32
    return %c0_i32, %c0_i32_0 : i32, i32
  }
  func.func @transform_3(%arg0: i32) -> (i32, i32) {
    %c0_i32 = arith.constant 0 : i32
    %c0_i32_0 = arith.constant 0 : i32
    return %arg0, %c0_i32 : i32, i32
  }
}

module attributes {stable_mosaic.version = 11 : i64} {
  func.func @attnpool_kernel(%arg0: i32, %arg1: memref<392x64xf32, #tpu.memory_space<vmem>>, %arg2: memref<392x64xf32, #tpu.memory_space<vmem>>, %arg3: memref<1x192xf32, #tpu.memory_space<vmem>>, %arg4: memref<64x192xf32, #tpu.memory_space<vmem>>, %arg5: memref<1x192xf32, #tpu.memory_space<vmem>>, %arg6: memref<64x32xf32, #tpu.memory_space<vmem>>, %arg7: memref<1x32xf32, #tpu.memory_space<vmem>>, %arg8: memref<8x32xf32, #tpu.memory_space<vmem>>, %arg9: memref<8x64xf32, #tpu.memory_space<vmem>>) attributes {dimension_semantics = [#tpu.dimension_semantics<parallel>], iteration_bounds = array<i64: 1>, scalar_prefetch = 0 : i64, scratch_operands = 1 : i64, tpu.core_type = #tpu.core_type<tc>, window_params = [{transform_indices = @transform_0, window_bounds = array<i64: 392, 64>}, {pipeline_mode = #tpu.pipeline_mode<synchronous>, transform_indices = @transform_1, window_bounds = array<i64: 392, 64>}, {pipeline_mode = #tpu.pipeline_mode<synchronous>, transform_indices = @transform_2, window_bounds = array<i64: 1, 192>}, {pipeline_mode = #tpu.pipeline_mode<synchronous>, transform_indices = @transform_3, window_bounds = array<i64: 64, 192>}, {pipeline_mode = #tpu.pipeline_mode<synchronous>, transform_indices = @transform_4, window_bounds = array<i64: 1, 192>}, {pipeline_mode = #tpu.pipeline_mode<synchronous>, transform_indices = @transform_5, window_bounds = array<i64: 64, 32>}, {pipeline_mode = #tpu.pipeline_mode<synchronous>, transform_indices = @transform_6, window_bounds = array<i64: 1, 32>}, {transform_indices = @transform_7, window_bounds = array<i64: 8, 32>}]} {
    %c0 = arith.constant 0 : index
    %c0_0 = arith.constant 0 : index
    %0 = vector.load %arg1[%c0, %c0_0] : memref<392x64xf32, #tpu.memory_space<vmem>>, vector<392x64xf32>
    %c0_1 = arith.constant 0 : index
    %c0_2 = arith.constant 0 : index
    %1 = vector.load %arg2[%c0_1, %c0_2] : memref<392x64xf32, #tpu.memory_space<vmem>>, vector<392x64xf32>
    %2 = arith.addf %0, %1 : vector<392x64xf32>
    %c0_3 = arith.constant 0 : index
    %c0_4 = arith.constant 0 : index
    %3 = vector.load %arg4[%c0_3, %c0_4] : memref<64x192xf32, #tpu.memory_space<vmem>>, vector<64x192xf32>
    %cst = arith.constant dense<0.000000e+00> : vector<392x192xf32>
    %4 = tpu.matmul %2, %3, %cst {dimension_numbers = #tpu.dot_dimension_numbers<[1], [0], [0], [1], [0, 0, 1, 1], [], []>} : vector<392x64xf32>, vector<64x192xf32>, vector<392x192xf32> -> vector<392x192xf32>
    %c0_5 = arith.constant 0 : index
    %c0_6 = arith.constant 0 : index
    %5 = vector.load %arg5[%c0_5, %c0_6] : memref<1x192xf32, #tpu.memory_space<vmem>>, vector<1x192xf32>
    %6 = vector.broadcast %5 : vector<1x192xf32> to vector<392x192xf32>
    %7 = arith.addf %4, %6 : vector<392x192xf32>
    %8 = tpu.iota {dimensions = array<i32: 1>} : vector<8x392xi32>
    %9 = tpu.iota {dimensions = array<i32: 0>} : vector<8x392xi32>
    %c49_i32 = arith.constant 49 : i32
    %10 = vector.broadcast %c49_i32 : i32 to vector<8x392xi32>
    %11 = arith.muli %9, %10 : vector<8x392xi32>
    %12 = arith.cmpi sge, %8, %11 : vector<8x392xi32>
    %c1_i32 = arith.constant 1 : i32
    %13 = vector.broadcast %c1_i32 : i32 to vector<8x392xi32>
    %14 = arith.addi %9, %13 : vector<8x392xi32>
    %c49_i32_7 = arith.constant 49 : i32
    %15 = vector.broadcast %c49_i32_7 : i32 to vector<8x392xi32>
    %16 = arith.muli %14, %15 : vector<8x392xi32>
    %17 = arith.cmpi slt, %8, %16 : vector<8x392xi32>
    %18 = arith.andi %12, %17 : vector<8x392xi1>
    %cst_8 = arith.constant 0.0204081628 : f32
    %cst_9 = arith.constant 0.000000e+00 : f32
    %19 = vector.broadcast %cst_8 : f32 to vector<8x392xf32>
    %20 = vector.broadcast %cst_9 : f32 to vector<8x392xf32>
    %21 = arith.select %18, %19, %20 : vector<8x392xi1>, vector<8x392xf32>
    %cst_10 = arith.constant dense<0.000000e+00> : vector<8x192xf32>
    %22 = tpu.matmul %21, %7, %cst_10 {dimension_numbers = #tpu.dot_dimension_numbers<[1], [0], [0], [1], [0, 0, 1, 1], [], []>} : vector<8x392xf32>, vector<392x192xf32>, vector<8x192xf32> -> vector<8x192xf32>
    %c0_11 = arith.constant 0 : index
    %c0_12 = arith.constant 0 : index
    %23 = vector.load %arg3[%c0_11, %c0_12] : memref<1x192xf32, #tpu.memory_space<vmem>>, vector<1x192xf32>
    %24 = vector.broadcast %23 : vector<1x192xf32> to vector<8x192xf32>
    %25 = arith.addf %22, %24 : vector<8x192xf32>
    %26 = vector.extract_strided_slice %25 {offsets = [0, 0], sizes = [8, 64], strides = [1, 1]} : vector<8x192xf32> to vector<8x64xf32>
    %cst_13 = arith.constant 2.500000e-01 : f32
    %27 = vector.broadcast %cst_13 : f32 to vector<8x64xf32>
    %28 = arith.mulf %26, %27 : vector<8x64xf32>
    %29 = vector.extract_strided_slice %25 {offsets = [0, 64], sizes = [8, 64], strides = [1, 1]} : vector<8x192xf32> to vector<8x64xf32>
    %30 = vector.extract_strided_slice %25 {offsets = [0, 128], sizes = [8, 64], strides = [1, 1]} : vector<8x192xf32> to vector<8x64xf32>
    %31 = vector.extract_strided_slice %7 {offsets = [0, 64], sizes = [392, 64], strides = [1, 1]} : vector<392x192xf32> to vector<392x64xf32>
    %32 = vector.extract_strided_slice %7 {offsets = [0, 128], sizes = [392, 64], strides = [1, 1]} : vector<392x192xf32> to vector<392x64xf32>
    %33 = vector.extract_strided_slice %28 {offsets = [0, 0], sizes = [8, 16], strides = [1, 1]} : vector<8x64xf32> to vector<8x16xf32>
    %34 = vector.extract_strided_slice %29 {offsets = [0, 0], sizes = [8, 16], strides = [1, 1]} : vector<8x64xf32> to vector<8x16xf32>
    %35 = vector.extract_strided_slice %30 {offsets = [0, 0], sizes = [8, 16], strides = [1, 1]} : vector<8x64xf32> to vector<8x16xf32>
    %36 = vector.extract_strided_slice %31 {offsets = [0, 0], sizes = [392, 16], strides = [1, 1]} : vector<392x64xf32> to vector<392x16xf32>
    %37 = vector.extract_strided_slice %32 {offsets = [0, 0], sizes = [392, 16], strides = [1, 1]} : vector<392x64xf32> to vector<392x16xf32>
    %cst_14 = arith.constant dense<0.000000e+00> : vector<8x392xf32>
    %38 = tpu.matmul %33, %36, %cst_14 {dimension_numbers = #tpu.dot_dimension_numbers<[1], [1], [0], [0], [0, 0, 1, 0], [], []>} : vector<8x16xf32>, vector<392x16xf32>, vector<8x392xf32> -> vector<8x392xf32>
    %cst_15 = arith.constant -1.000000e+30 : f32
    %39 = vector.broadcast %cst_15 : f32 to vector<8x392xf32>
    %40 = arith.select %18, %38, %39 : vector<8x392xi1>, vector<8x392xf32>
    %41 = arith.mulf %33, %34 : vector<8x16xf32>
    %cst_16 = arith.constant dense<0.000000e+00> : vector<8xf32>
    %42 = vector.multi_reduction <add>, %41, %cst_16 [1] : vector<8x16xf32> to vector<8xf32>
    %43 = vector.shape_cast %42 : vector<8xf32> to vector<8x1xf32>
    %cst_17 = arith.constant dense<0xFF800000> : vector<8xf32>
    %44 = vector.multi_reduction <maximumf>, %40, %cst_17 [1] : vector<8x392xf32> to vector<8xf32>
    %45 = vector.shape_cast %44 : vector<8xf32> to vector<8x1xf32>
    %46 = arith.maximumf %45, %43 : vector<8x1xf32>
    %47 = arith.subf %43, %46 : vector<8x1xf32>
    %48 = math.exp %47 : vector<8x1xf32>
    %49 = vector.broadcast %46 : vector<8x1xf32> to vector<8x392xf32>
    %50 = arith.subf %40, %49 : vector<8x392xf32>
    %51 = math.exp %50 : vector<8x392xf32>
    %cst_18 = arith.constant dense<0.000000e+00> : vector<8xf32>
    %52 = vector.multi_reduction <add>, %51, %cst_18 [1] : vector<8x392xf32> to vector<8xf32>
    %53 = vector.shape_cast %52 : vector<8xf32> to vector<8x1xf32>
    %54 = arith.addf %48, %53 : vector<8x1xf32>
    %cst_19 = arith.constant dense<0.000000e+00> : vector<8x16xf32>
    %55 = tpu.matmul %51, %37, %cst_19 {dimension_numbers = #tpu.dot_dimension_numbers<[1], [0], [0], [1], [0, 0, 1, 1], [], []>} : vector<8x392xf32>, vector<392x16xf32>, vector<8x16xf32> -> vector<8x16xf32>
    %56 = vector.broadcast %48 : vector<8x1xf32> to vector<8x16xf32>
    %57 = arith.mulf %56, %35 : vector<8x16xf32>
    %58 = arith.addf %57, %55 : vector<8x16xf32>
    %59 = vector.broadcast %54 : vector<8x1xf32> to vector<8x16xf32>
    %60 = arith.divf %58, %59 : vector<8x16xf32>
    %c0_20 = arith.constant 0 : index
    %c0_21 = arith.constant 0 : index
    %61 = vector.load %arg9[%c0_20, %c0_21] : memref<8x64xf32, #tpu.memory_space<vmem>>, vector<8x16xf32>
    tpu.vector_store %arg9[%c0_20, %c0_21], %60 {strides = array<i32>} : memref<8x64xf32, #tpu.memory_space<vmem>>, vector<8x16xf32>,
    %62 = vector.extract_strided_slice %28 {offsets = [0, 16], sizes = [8, 16], strides = [1, 1]} : vector<8x64xf32> to vector<8x16xf32>
    %63 = vector.extract_strided_slice %29 {offsets = [0, 16], sizes = [8, 16], strides = [1, 1]} : vector<8x64xf32> to vector<8x16xf32>
    %64 = vector.extract_strided_slice %30 {offsets = [0, 16], sizes = [8, 16], strides = [1, 1]} : vector<8x64xf32> to vector<8x16xf32>
    %65 = vector.extract_strided_slice %31 {offsets = [0, 16], sizes = [392, 16], strides = [1, 1]} : vector<392x64xf32> to vector<392x16xf32>
    %66 = vector.extract_strided_slice %32 {offsets = [0, 16], sizes = [392, 16], strides = [1, 1]} : vector<392x64xf32> to vector<392x16xf32>
    %cst_22 = arith.constant dense<0.000000e+00> : vector<8x392xf32>
    %67 = tpu.matmul %62, %65, %cst_22 {dimension_numbers = #tpu.dot_dimension_numbers<[1], [1], [0], [0], [0, 0, 1, 0], [], []>} : vector<8x16xf32>, vector<392x16xf32>, vector<8x392xf32> -> vector<8x392xf32>
    %cst_23 = arith.constant -1.000000e+30 : f32
    %68 = vector.broadcast %cst_23 : f32 to vector<8x392xf32>
    %69 = arith.select %18, %67, %68 : vector<8x392xi1>, vector<8x392xf32>
    %70 = arith.mulf %62, %63 : vector<8x16xf32>
    %cst_24 = arith.constant dense<0.000000e+00> : vector<8xf32>
    %71 = vector.multi_reduction <add>, %70, %cst_24 [1] : vector<8x16xf32> to vector<8xf32>
    %72 = vector.shape_cast %71 : vector<8xf32> to vector<8x1xf32>
    %cst_25 = arith.constant dense<0xFF800000> : vector<8xf32>
    %73 = vector.multi_reduction <maximumf>, %69, %cst_25 [1] : vector<8x392xf32> to vector<8xf32>
    %74 = vector.shape_cast %73 : vector<8xf32> to vector<8x1xf32>
    %75 = arith.maximumf %74, %72 : vector<8x1xf32>
    %76 = arith.subf %72, %75 : vector<8x1xf32>
    %77 = math.exp %76 : vector<8x1xf32>
    %78 = vector.broadcast %75 : vector<8x1xf32> to vector<8x392xf32>
    %79 = arith.subf %69, %78 : vector<8x392xf32>
    %80 = math.exp %79 : vector<8x392xf32>
    %cst_26 = arith.constant dense<0.000000e+00> : vector<8xf32>
    %81 = vector.multi_reduction <add>, %80, %cst_26 [1] : vector<8x392xf32> to vector<8xf32>
    %82 = vector.shape_cast %81 : vector<8xf32> to vector<8x1xf32>
    %83 = arith.addf %77, %82 : vector<8x1xf32>
    %cst_27 = arith.constant dense<0.000000e+00> : vector<8x16xf32>
    %84 = tpu.matmul %80, %66, %cst_27 {dimension_numbers = #tpu.dot_dimension_numbers<[1], [0], [0], [1], [0, 0, 1, 1], [], []>} : vector<8x392xf32>, vector<392x16xf32>, vector<8x16xf32> -> vector<8x16xf32>
    %85 = vector.broadcast %77 : vector<8x1xf32> to vector<8x16xf32>
    %86 = arith.mulf %85, %64 : vector<8x16xf32>
    %87 = arith.addf %86, %84 : vector<8x16xf32>
    %88 = vector.broadcast %83 : vector<8x1xf32> to vector<8x16xf32>
    %89 = arith.divf %87, %88 : vector<8x16xf32>
    %c0_28 = arith.constant 0 : index
    %c16 = arith.constant 16 : index
    %90 = vector.load %arg9[%c0_28, %c16] : memref<8x64xf32, #tpu.memory_space<vmem>>, vector<8x16xf32>
    tpu.vector_store %arg9[%c0_28, %c16], %89 {strides = array<i32>} : memref<8x64xf32, #tpu.memory_space<vmem>>, vector<8x16xf32>,
    %91 = vector.extract_strided_slice %28 {offsets = [0, 32], sizes = [8, 16], strides = [1, 1]} : vector<8x64xf32> to vector<8x16xf32>
    %92 = vector.extract_strided_slice %29 {offsets = [0, 32], sizes = [8, 16], strides = [1, 1]} : vector<8x64xf32> to vector<8x16xf32>
    %93 = vector.extract_strided_slice %30 {offsets = [0, 32], sizes = [8, 16], strides = [1, 1]} : vector<8x64xf32> to vector<8x16xf32>
    %94 = vector.extract_strided_slice %31 {offsets = [0, 32], sizes = [392, 16], strides = [1, 1]} : vector<392x64xf32> to vector<392x16xf32>
    %95 = vector.extract_strided_slice %32 {offsets = [0, 32], sizes = [392, 16], strides = [1, 1]} : vector<392x64xf32> to vector<392x16xf32>
    %cst_29 = arith.constant dense<0.000000e+00> : vector<8x392xf32>
    %96 = tpu.matmul %91, %94, %cst_29 {dimension_numbers = #tpu.dot_dimension_numbers<[1], [1], [0], [0], [0, 0, 1, 0], [], []>} : vector<8x16xf32>, vector<392x16xf32>, vector<8x392xf32> -> vector<8x392xf32>
    %cst_30 = arith.constant -1.000000e+30 : f32
    %97 = vector.broadcast %cst_30 : f32 to vector<8x392xf32>
    %98 = arith.select %18, %96, %97 : vector<8x392xi1>, vector<8x392xf32>
    %99 = arith.mulf %91, %92 : vector<8x16xf32>
    %cst_31 = arith.constant dense<0.000000e+00> : vector<8xf32>
    %100 = vector.multi_reduction <add>, %99, %cst_31 [1] : vector<8x16xf32> to vector<8xf32>
    %101 = vector.shape_cast %100 : vector<8xf32> to vector<8x1xf32>
    %cst_32 = arith.constant dense<0xFF800000> : vector<8xf32>
    %102 = vector.multi_reduction <maximumf>, %98, %cst_32 [1] : vector<8x392xf32> to vector<8xf32>
    %103 = vector.shape_cast %102 : vector<8xf32> to vector<8x1xf32>
    %104 = arith.maximumf %103, %101 : vector<8x1xf32>
    %105 = arith.subf %101, %104 : vector<8x1xf32>
    %106 = math.exp %105 : vector<8x1xf32>
    %107 = vector.broadcast %104 : vector<8x1xf32> to vector<8x392xf32>
    %108 = arith.subf %98, %107 : vector<8x392xf32>
    %109 = math.exp %108 : vector<8x392xf32>
    %cst_33 = arith.constant dense<0.000000e+00> : vector<8xf32>
    %110 = vector.multi_reduction <add>, %109, %cst_33 [1] : vector<8x392xf32> to vector<8xf32>
    %111 = vector.shape_cast %110 : vector<8xf32> to vector<8x1xf32>
    %112 = arith.addf %106, %111 : vector<8x1xf32>
    %cst_34 = arith.constant dense<0.000000e+00> : vector<8x16xf32>
    %113 = tpu.matmul %109, %95, %cst_34 {dimension_numbers = #tpu.dot_dimension_numbers<[1], [0], [0], [1], [0, 0, 1, 1], [], []>} : vector<8x392xf32>, vector<392x16xf32>, vector<8x16xf32> -> vector<8x16xf32>
    %114 = vector.broadcast %106 : vector<8x1xf32> to vector<8x16xf32>
    %115 = arith.mulf %114, %93 : vector<8x16xf32>
    %116 = arith.addf %115, %113 : vector<8x16xf32>
    %117 = vector.broadcast %112 : vector<8x1xf32> to vector<8x16xf32>
    %118 = arith.divf %116, %117 : vector<8x16xf32>
    %c0_35 = arith.constant 0 : index
    %c32 = arith.constant 32 : index
    %119 = vector.load %arg9[%c0_35, %c32] : memref<8x64xf32, #tpu.memory_space<vmem>>, vector<8x16xf32>
    tpu.vector_store %arg9[%c0_35, %c32], %118 {strides = array<i32>} : memref<8x64xf32, #tpu.memory_space<vmem>>, vector<8x16xf32>,
    %120 = vector.extract_strided_slice %28 {offsets = [0, 48], sizes = [8, 16], strides = [1, 1]} : vector<8x64xf32> to vector<8x16xf32>
    %121 = vector.extract_strided_slice %29 {offsets = [0, 48], sizes = [8, 16], strides = [1, 1]} : vector<8x64xf32> to vector<8x16xf32>
    %122 = vector.extract_strided_slice %30 {offsets = [0, 48], sizes = [8, 16], strides = [1, 1]} : vector<8x64xf32> to vector<8x16xf32>
    %123 = vector.extract_strided_slice %31 {offsets = [0, 48], sizes = [392, 16], strides = [1, 1]} : vector<392x64xf32> to vector<392x16xf32>
    %124 = vector.extract_strided_slice %32 {offsets = [0, 48], sizes = [392, 16], strides = [1, 1]} : vector<392x64xf32> to vector<392x16xf32>
    %cst_36 = arith.constant dense<0.000000e+00> : vector<8x392xf32>
    %125 = tpu.matmul %120, %123, %cst_36 {dimension_numbers = #tpu.dot_dimension_numbers<[1], [1], [0], [0], [0, 0, 1, 0], [], []>} : vector<8x16xf32>, vector<392x16xf32>, vector<8x392xf32> -> vector<8x392xf32>
    %cst_37 = arith.constant -1.000000e+30 : f32
    %126 = vector.broadcast %cst_37 : f32 to vector<8x392xf32>
    %127 = arith.select %18, %125, %126 : vector<8x392xi1>, vector<8x392xf32>
    %128 = arith.mulf %120, %121 : vector<8x16xf32>
    %cst_38 = arith.constant dense<0.000000e+00> : vector<8xf32>
    %129 = vector.multi_reduction <add>, %128, %cst_38 [1] : vector<8x16xf32> to vector<8xf32>
    %130 = vector.shape_cast %129 : vector<8xf32> to vector<8x1xf32>
    %cst_39 = arith.constant dense<0xFF800000> : vector<8xf32>
    %131 = vector.multi_reduction <maximumf>, %127, %cst_39 [1] : vector<8x392xf32> to vector<8xf32>
    %132 = vector.shape_cast %131 : vector<8xf32> to vector<8x1xf32>
    %133 = arith.maximumf %132, %130 : vector<8x1xf32>
    %134 = arith.subf %130, %133 : vector<8x1xf32>
    %135 = math.exp %134 : vector<8x1xf32>
    %136 = vector.broadcast %133 : vector<8x1xf32> to vector<8x392xf32>
    %137 = arith.subf %127, %136 : vector<8x392xf32>
    %138 = math.exp %137 : vector<8x392xf32>
    %cst_40 = arith.constant dense<0.000000e+00> : vector<8xf32>
    %139 = vector.multi_reduction <add>, %138, %cst_40 [1] : vector<8x392xf32> to vector<8xf32>
    %140 = vector.shape_cast %139 : vector<8xf32> to vector<8x1xf32>
    %141 = arith.addf %135, %140 : vector<8x1xf32>
    %cst_41 = arith.constant dense<0.000000e+00> : vector<8x16xf32>
    %142 = tpu.matmul %138, %124, %cst_41 {dimension_numbers = #tpu.dot_dimension_numbers<[1], [0], [0], [1], [0, 0, 1, 1], [], []>} : vector<8x392xf32>, vector<392x16xf32>, vector<8x16xf32> -> vector<8x16xf32>
    %143 = vector.broadcast %135 : vector<8x1xf32> to vector<8x16xf32>
    %144 = arith.mulf %143, %122 : vector<8x16xf32>
    %145 = arith.addf %144, %142 : vector<8x16xf32>
    %146 = vector.broadcast %141 : vector<8x1xf32> to vector<8x16xf32>
    %147 = arith.divf %145, %146 : vector<8x16xf32>
    %c0_42 = arith.constant 0 : index
    %c48 = arith.constant 48 : index
    %148 = vector.load %arg9[%c0_42, %c48] : memref<8x64xf32, #tpu.memory_space<vmem>>, vector<8x16xf32>
    tpu.vector_store %arg9[%c0_42, %c48], %147 {strides = array<i32>} : memref<8x64xf32, #tpu.memory_space<vmem>>, vector<8x16xf32>,
    %c0_43 = arith.constant 0 : index
    %c0_44 = arith.constant 0 : index
    %149 = vector.load %arg9[%c0_43, %c0_44] : memref<8x64xf32, #tpu.memory_space<vmem>>, vector<8x64xf32>
    %c0_45 = arith.constant 0 : index
    %c0_46 = arith.constant 0 : index
    %150 = vector.load %arg6[%c0_45, %c0_46] : memref<64x32xf32, #tpu.memory_space<vmem>>, vector<64x32xf32>
    %cst_47 = arith.constant dense<0.000000e+00> : vector<8x32xf32>
    %151 = tpu.matmul %149, %150, %cst_47 {dimension_numbers = #tpu.dot_dimension_numbers<[1], [0], [0], [1], [0, 0, 1, 1], [], []>} : vector<8x64xf32>, vector<64x32xf32>, vector<8x32xf32> -> vector<8x32xf32>
    %c0_48 = arith.constant 0 : index
    %c0_49 = arith.constant 0 : index
    %152 = vector.load %arg7[%c0_48, %c0_49] : memref<1x32xf32, #tpu.memory_space<vmem>>, vector<1x32xf32>
    %153 = vector.broadcast %152 : vector<1x32xf32> to vector<8x32xf32>
    %154 = arith.addf %151, %153 : vector<8x32xf32>
    %c0_50 = arith.constant 0 : index
    %c0_51 = arith.constant 0 : index
    %155 = vector.load %arg8[%c0_50, %c0_51] : memref<8x32xf32, #tpu.memory_space<vmem>>, vector<8x32xf32>
    tpu.vector_store %arg8[%c0_50, %c0_51], %154 {strides = array<i32>} : memref<8x32xf32, #tpu.memory_space<vmem>>, vector<8x32xf32>,
    return
  }
  func.func @transform_0(%arg0: i32) -> (i32, i32) {
    %c0_i32 = arith.constant 0 : i32
    %c0_i32_0 = arith.constant 0 : i32
    return %arg0, %c0_i32 : i32, i32
  }
  func.func @transform_1(%arg0: i32) -> (i32, i32) {
    %c0_i32 = arith.constant 0 : i32
    %c0_i32_0 = arith.constant 0 : i32
    %c0_i32_1 = arith.constant 0 : i32
    return %c0_i32, %c0_i32_0 : i32, i32
  }
  func.func @transform_2(%arg0: i32) -> (i32, i32) {
    %c0_i32 = arith.constant 0 : i32
    %c0_i32_0 = arith.constant 0 : i32
    %c0_i32_1 = arith.constant 0 : i32
    return %c0_i32, %c0_i32_0 : i32, i32
  }
  func.func @transform_3(%arg0: i32) -> (i32, i32) {
    %c0_i32 = arith.constant 0 : i32
    %c0_i32_0 = arith.constant 0 : i32
    %c0_i32_1 = arith.constant 0 : i32
    return %c0_i32, %c0_i32_0 : i32, i32
  }
  func.func @transform_4(%arg0: i32) -> (i32, i32) {
    %c0_i32 = arith.constant 0 : i32
    %c0_i32_0 = arith.constant 0 : i32
    %c0_i32_1 = arith.constant 0 : i32
    return %c0_i32, %c0_i32_0 : i32, i32
  }
  func.func @transform_5(%arg0: i32) -> (i32, i32) {
    %c0_i32 = arith.constant 0 : i32
    %c0_i32_0 = arith.constant 0 : i32
    %c0_i32_1 = arith.constant 0 : i32
    return %c0_i32, %c0_i32_0 : i32, i32
  }
  func.func @transform_6(%arg0: i32) -> (i32, i32) {
    %c0_i32 = arith.constant 0 : i32
    %c0_i32_0 = arith.constant 0 : i32
    %c0_i32_1 = arith.constant 0 : i32
    return %c0_i32, %c0_i32_0 : i32, i32
  }
  func.func @transform_7(%arg0: i32) -> (i32, i32) {
    %c0_i32 = arith.constant 0 : i32
    %c0_i32_0 = arith.constant 0 : i32
    return %arg0, %c0_i32 : i32, i32
  }
}

</mosaic_0001>

<llo_original>
// kernel: tile.7
$region0: #{tile.7}
  %s0 = inlined_call_operand.vmem [shape: f32[8,49,64], index: 0, kind: input, shape index: {}]
  %s1 = inlined_call_operand.vmem [shape: f32[392,64], index: 1, kind: output, shape index: {}]
  %v2 = vld [vmem:[%s0] ss:$8 sm:$0xf]
  %v3 = vld [vmem:[%s0] ss:$8 sm:$0xf0]
  %vm4 = vcmask 1047556
  %v5 = vsel %vm4, %v3, %v2
  %vm6 = vcmask 400384
  %7 = vst.msk [vmem:[%s1] sm:$0xff] %vm6, %v5
  %s8 = scalar_lea.vmem %s0, 64
  %v9 = vld [vmem:[%s8] ss:$8 sm:$0xf]
  %s10 = scalar_lea.vmem %s0, 64
  %v11 = vld [vmem:[%s10] ss:$8 sm:$0xf0]
  %vm12 = vcmask 1047556
  %v13 = vsel %vm12, %v11, %v9
  %vm14 = vcmask 400384
  %s15 = scalar_lea.vmem %s1, 32
  %16 = vst.msk [vmem:[%s15] sm:$0xff] %vm14, %v13
  %s17 = scalar_lea.vmem %s0, 128
  %v18 = vld [vmem:[%s17] ss:$8 sm:$0xf]
  %s19 = scalar_lea.vmem %s0, 128
  %v20 = vld [vmem:[%s19] ss:$8 sm:$0xf0]
  %vm21 = vcmask 1047556
  %v22 = vsel %vm21, %v20, %v18
  %vm23 = vcmask 400384
  %s24 = scalar_lea.vmem %s1, 64
  %25 = vst.msk [vmem:[%s24] sm:$0xff] %vm23, %v22
  %s26 = scalar_lea.vmem %s0, 192
  %v27 = vld [vmem:[%s26] ss:$8 sm:$0xf]
  %s28 = scalar_lea.vmem %s0, 192
  %v29 = vld [vmem:[%s28] ss:$8 sm:$0xf0]
  %vm30 = vcmask 1047556
  %v31 = vsel %vm30, %v29, %v27
  %vm32 = vcmask 400384
  %s33 = scalar_lea.vmem %s1, 96
  %34 = vst.msk [vmem:[%s33] sm:$0xff] %vm32, %v31
  %s35 = scalar_lea.vmem %s0, 256
  %v36 = vld [vmem:[%s35] ss:$8 sm:$0xf]
  %s37 = scalar_lea.vmem %s0, 256
  %v38 = vld [vmem:[%s37] ss:$8 sm:$0xf0]
  %vm39 = vcmask 1047556
  %v40 = vsel %vm39, %v38, %v36
  %vm41 = vcmask 400384
  %s42 = scalar_lea.vmem %s1, 128
  %43 = vst.msk [vmem:[%s42] sm:$0xff] %vm41, %v40
  %s44 = scalar_lea.vmem %s0, 320
  %v45 = vld [vmem:[%s44] ss:$8 sm:$0xf]
  %s46 = scalar_lea.vmem %s0, 320
  %v47 = vld [vmem:[%s46] ss:$8 sm:$0xf0]
  %vm48 = vcmask 1047556
  %v49 = vsel %vm48, %v47, %v45
  %vm50 = vcmask 400384
  %s51 = scalar_lea.vmem %s1, 160
  %52 = vst.msk [vmem:[%s51] sm:$0xff] %vm50, %v49
  %s53 = scalar_lea.vmem %s0, 384
  %v54 = vld [vmem:[%s53] ss:$8 sm:$0xf]
  %s55 = scalar_lea.vmem %s0, 384
  %v56 = vld [vmem:[%s55] ss:$8 sm:$0xf0]
  %vm57 = vcmask 1047556
  %v58 = vsel %vm57, %v56, %v54
  %vm59 = vcmask 400384
  %s60 = scalar_lea.vmem %s1, 192
  %61 = vst.msk [vmem:[%s60] sm:$0xff] %vm59, %v58
  %s62 = scalar_lea.vmem %s0, 448
  %v63 = vld [vmem:[%s62] ss:$8 sm:$0xf]
  %s64 = scalar_lea.vmem %s0, 448
  %v65 = vld [vmem:[%s64] ss:$8 sm:$0xf0]
  %vm66 = vcmask 1047556
  %v67 = vsel %vm66, %v65, %v63
  %vm68 = vcmask 400384
  %s69 = scalar_lea.vmem %s1, 224
  %70 = vst.msk [vmem:[%s69] sm:$0xff] %vm68, %v67
  %s71 = scalar_lea.vmem %s0, 5
  %v72 = vld [vmem:[%s71] ss:$8 sm:$0xf]
  %s73 = scalar_lea.vmem %s0, 5
  %v74 = vld [vmem:[%s73] ss:$8 sm:$0xf0]
  %vm75 = vcmask 1047556
  %v76 = vsel %vm75, %v74, %v72
  %s77 = scalar_lea.vmem %s0, 5
  %v78 = vld [vmem:[%s77] ss:$8 sm:$0xf]
  %s79 = scalar_lea.vmem %s0, 5
  %v80 = vld [vmem:[%s79] ss:$8 sm:$0xf0]
  %vm81 = vcmask 1047556
  %v82 = vsel %vm81, %v80, %v78
  %vm83 = vcmask 89088
  %v84 = vsel %vm83, %v82, %v76
  %85 = vrot.lane.b32.xlu0 %v84, 117
  %v86 = vpop.permute.xlu0 %85
  %vm87 = vcmask 310272
  %s88 = scalar_lea.vmem %s1, 16
  %89 = vst.msk [vmem:[%s88] sm:$0xff] %vm87, %v86
  %vm90 = vcmask 1048488
  %s91 = scalar_lea.vmem %s1, 8
  %92 = vst.msk [vmem:[%s91] sm:$0xff] %vm90, %v86
  %s93 = scalar_lea.vmem %s0, 69
  %v94 = vld [vmem:[%s93] ss:$8 sm:$0xf]
  %s95 = scalar_lea.vmem %s0, 69
  %v96 = vld [vmem:[%s95] ss:$8 sm:$0xf0]
  %vm97 = vcmask 1047556
  %v98 = vsel %vm97, %v96, %v94
  %s99 = scalar_lea.vmem %s0, 69
  %v100 = vld [vmem:[%s99] ss:$8 sm:$0xf]
  %s101 = scalar_lea.vmem %s0, 69
  %v102 = vld [vmem:[%s101] ss:$8 sm:$0xf0]
  %vm103 = vcmask 1047556
  %v104 = vsel %vm103, %v102, %v100
  %vm105 = vcmask 89088
  %v106 = vsel %vm105, %v104, %v98
  %107 = vrot.lane.b32.xlu0 %v106, 117
  %v108 = vpop.permute.xlu0 %107
  %vm109 = vcmask 310272
  %s110 = scalar_lea.vmem %s1, 48
  %111 = vst.msk [vmem:[%s110] sm:$0xff] %vm109, %v108
  %vm112 = vcmask 1048488
  %s113 = scalar_lea.vmem %s1, 40
  %114 = vst.msk [vmem:[%s113] sm:$0xff] %vm112, %v108
  %s115 = scalar_lea.vmem %s0, 133
  %v116 = vld [vmem:[%s115] ss:$8 sm:$0xf]
  %s117 = scalar_lea.vmem %s0, 133
  %v118 = vld [vmem:[%s117] ss:$8 sm:$0xf0]
  %vm119 = vcmask 1047556
  %v120 = vsel %vm119, %v118, %v116
  %s121 = scalar_lea.vmem %s0, 133
  %v122 = vld [vmem:[%s121] ss:$8 sm:$0xf]
  %s123 = scalar_lea.vmem %s0, 133
  %v124 = vld [vmem:[%s123] ss:$8 sm:$0xf0]
  %vm125 = vcmask 1047556
  %v126 = vsel %vm125, %v124, %v122
  %vm127 = vcmask 89088
  %v128 = vsel %vm127, %v126, %v120
  %129 = vrot.lane.b32.xlu0 %v128, 117
  %v130 = vpop.permute.xlu0 %129
  %vm131 = vcmask 310272
  %s132 = scalar_lea.vmem %s1, 80
  %133 = vst.msk [vmem:[%s132] sm:$0xff] %vm131, %v130
  %vm134 = vcmask 1048488
  %s135 = scalar_lea.vmem %s1, 72
  %136 = vst.msk [vmem:[%s135] sm:$0xff] %vm134, %v130
  %s137 = scalar_lea.vmem %s0, 197
  %v138 = vld [vmem:[%s137] ss:$8 sm:$0xf]
  %s139 = scalar_lea.vmem %s0, 197
  %v140 = vld [vmem:[%s139] ss:$8 sm:$0xf0]
  %vm141 = vcmask 1047556
  %v142 = vsel %vm141, %v140, %v138
  %s143 = scalar_lea.vmem %s0, 197
  %v144 = vld [vmem:[%s143] ss:$8 sm:$0xf]
  %s145 = scalar_lea.vmem %s0, 197
  %v146 = vld [vmem:[%s145] ss:$8 sm:$0xf0]
  %vm147 = vcmask 1047556
  %v148 = vsel %vm147, %v146, %v144
  %vm149 = vcmask 89088
  %v150 = vsel %vm149, %v148, %v142
  %151 = vrot.lane.b32.xlu0 %v150, 117
  %v152 = vpop.permute.xlu0 %151
  %vm153 = vcmask 310272
  %s154 = scalar_lea.vmem %s1, 112
  %155 = vst.msk [vmem:[%s154] sm:$0xff] %vm153, %v152
  %vm156 = vcmask 1048488
  %s157 = scalar_lea.vmem %s1, 104
  %158 = vst.msk [vmem:[%s157] sm:$0xff] %vm156, %v152
  %s159 = scalar_lea.vmem %s0, 261
  %v160 = vld [vmem:[%s159] ss:$8 sm:$0xf]
  %s161 = scalar_lea.vmem %s0, 261
  %v162 = vld [vmem:[%s161] ss:$8 sm:$0xf0]
  %vm163 = vcmask 1047556
  %v164 = vsel %vm163, %v162, %v160
  %s165 = scalar_lea.vmem %s0, 261
  %v166 = vld [vmem:[%s165] ss:$8 sm:$0xf]
  %s167 = scalar_lea.vmem %s0, 261
  %v168 = vld [vmem:[%s167] ss:$8 sm:$0xf0]
  %vm169 = vcmask 1047556
  %v170 = vsel %vm169, %v168, %v166
  %vm171 = vcmask 89088
  %v172 = vsel %vm171, %v170, %v164
  %173 = vrot.lane.b32.xlu0 %v172, 117
  %v174 = vpop.permute.xlu0 %173
  %vm175 = vcmask 310272
  %s176 = scalar_lea.vmem %s1, 144
  %177 = vst.msk [vmem:[%s176] sm:$0xff] %vm175, %v174
  %vm178 = vcmask 1048488
  %s179 = scalar_lea.vmem %s1, 136
  %180 = vst.msk [vmem:[%s179] sm:$0xff] %vm178, %v174
  %s181 = scalar_lea.vmem %s0, 325
  %v182 = vld [vmem:[%s181] ss:$8 sm:$0xf]
  %s183 = scalar_lea.vmem %s0, 325
  %v184 = vld [vmem:[%s183] ss:$8 sm:$0xf0]
  %vm185 = vcmask 1047556
  %v186 = vsel %vm185, %v184, %v182
  %s187 = scalar_lea.vmem %s0, 325
  %v188 = vld [vmem:[%s187] ss:$8 sm:$0xf]
  %s189 = scalar_lea.vmem %s0, 325
  %v190 = vld [vmem:[%s189] ss:$8 sm:$0xf0]
  %vm191 = vcmask 1047556
  %v192 = vsel %vm191, %v190, %v188
  %vm193 = vcmask 89088
  %v194 = vsel %vm193, %v192, %v186
  %195 = vrot.lane.b32.xlu0 %v194, 117
  %v196 = vpop.permute.xlu0 %195
  %vm197 = vcmask 310272
  %s198 = scalar_lea.vmem %s1, 176
  %199 = vst.msk [vmem:[%s198] sm:$0xff] %vm197, %v196
  %vm200 = vcmask 1048488
  %s201 = scalar_lea.vmem %s1, 168
  %202 = vst.msk [vmem:[%s201] sm:$0xff] %vm200, %v196
  %s203 = scalar_lea.vmem %s0, 389
  %v204 = vld [vmem:[%s203] ss:$8 sm:$0xf]
  %s205 = scalar_lea.vmem %s0, 389
  %v206 = vld [vmem:[%s205] ss:$8 sm:$0xf0]
  %vm207 = vcmask 1047556
  %v208 = vsel %vm207, %v206, %v204
  %s209 = scalar_lea.vmem %s0, 389
  %v210 = vld [vmem:[%s209] ss:$8 sm:$0xf]
  %s211 = scalar_lea.vmem %s0, 389
  %v212 = vld [vmem:[%s211] ss:$8 sm:$0xf0]
  %vm213 = vcmask 1047556
  %v214 = vsel %vm213, %v212, %v210
  %vm215 = vcmask 89088
  %v216 = vsel %vm215, %v214, %v208
  %217 = vrot.lane.b32.xlu0 %v216, 117
  %v218 = vpop.permute.xlu0 %217
  %vm219 = vcmask 310272
  %s220 = scalar_lea.vmem %s1, 208
  %221 = vst.msk [vmem:[%s220] sm:$0xff] %vm219, %v218
  %vm222 = vcmask 1048488
  %s223 = scalar_lea.vmem %s1, 200
  %224 = vst.msk [vmem:[%s223] sm:$0xff] %vm222, %v218
  %s225 = scalar_lea.vmem %s0, 453
  %v226 = vld [vmem:[%s225] ss:$8 sm:$0xf]
  %s227 = scalar_lea.vmem %s0, 453
  %v228 = vld [vmem:[%s227] ss:$8 sm:$0xf0]
  %vm229 = vcmask 1047556
  %v230 = vsel %vm229, %v228, %v226
  %s231 = scalar_lea.vmem %s0, 453
  %v232 = vld [vmem:[%s231] ss:$8 sm:$0xf]
  %s233 = scalar_lea.vmem %s0, 453
  %v234 = vld [vmem:[%s233] ss:$8 sm:$0xf0]
  %vm235 = vcmask 1047556
  %v236 = vsel %vm235, %v234, %v232
  %vm237 = vcmask 89088
  %v238 = vsel %vm237, %v236, %v230
  %239 = vrot.lane.b32.xlu0 %v238, 117
  %v240 = vpop.permute.xlu0 %239
  %vm241 = vcmask 310272
  %s242 = scalar_lea.vmem %s1, 240
  %243 = vst.msk [vmem:[%s242] sm:$0xff] %vm241, %v240
  %vm244 = vcmask 1048488
  %s245 = scalar_lea.vmem %s1, 232
  %246 = vst.msk [vmem:[%s245] sm:$0xff] %vm244, %v240
  %s247 = scalar_lea.vmem %s0, 2
  %v248 = vld [vmem:[%s247] ss:$8 sm:$0xf]
  %s249 = scalar_lea.vmem %s0, 2
  %v250 = vld [vmem:[%s249] ss:$8 sm:$0xf0]
  %vm251 = vcmask 1047556
  %v252 = vsel %vm251, %v250, %v248
  %s253 = scalar_lea.vmem %s0, 2
  %v254 = vld [vmem:[%s253] ss:$8 sm:$0xf]
  %s255 = scalar_lea.vmem %s0, 2
  %v256 = vld [vmem:[%s255] ss:$8 sm:$0xf0]
  %vm257 = vcmask 1047556
  %v258 = vsel %vm257, %v256, %v254
  %vm259 = vcmask 244736
  %v260 = vsel %vm259, %v258, %v252
  %261 = vrot.lane.b32.xlu0 %v260, 98
  %v262 = vpop.permute.xlu0 %261
  %vm263 = vcmask 154624
  %s264 = scalar_lea.vmem %s1, 8
  %265 = vst.msk [vmem:[%s264] sm:$0xff] %vm263, %v262
  %vm266 = vcmask 1048336
  %267 = vst.msk [vmem:[%s1] sm:$0xff] %vm266, %v262
  %s268 = scalar_lea.vmem %s0, 66
  %v269 = vld [vmem:[%s268] ss:$8 sm:$0xf]
  %s270 = scalar_lea.vmem %s0, 66
  %v271 = vld [vmem:[%s270] ss:$8 sm:$0xf0]
  %vm272 = vcmask 1047556
  %v273 = vsel %vm272, %v271, %v269
  %s274 = scalar_lea.vmem %s0, 66
  %v275 = vld [vmem:[%s274] ss:$8 sm:$0xf]
  %s276 = scalar_lea.vmem %s0, 66
  %v277 = vld [vmem:[%s276] ss:$8 sm:$0xf0]
  %vm278 = vcmask 1047556
  %v279 = vsel %vm278, %v277, %v275
  %vm280 = vcmask 244736
  %v281 = vsel %vm280, %v279, %v273
  %282 = vrot.lane.b32.xlu0 %v281, 98
  %v283 = vpop.permute.xlu0 %282
  %vm284 = vcmask 154624
  %s285 = scalar_lea.vmem %s1, 40
  %286 = vst.msk [vmem:[%s285] sm:$0xff] %vm284, %v283
  %vm287 = vcmask 1048336
  %s288 = scalar_lea.vmem %s1, 32
  %289 = vst.msk [vmem:[%s288] sm:$0xff] %vm287, %v283
  %s290 = scalar_lea.vmem %s0, 130
  %v291 = vld [vmem:[%s290] ss:$8 sm:$0xf]
  %s292 = scalar_lea.vmem %s0, 130
  %v293 = vld [vmem:[%s292] ss:$8 sm:$0xf0]
  %vm294 = vcmask 1047556
  %v295 = vsel %vm294, %v293, %v291
  %s296 = scalar_lea.vmem %s0, 130
  %v297 = vld [vmem:[%s296] ss:$8 sm:$0xf]
  %s298 = scalar_lea.vmem %s0, 130
  %v299 = vld [vmem:[%s298] ss:$8 sm:$0xf0]
  %vm300 = vcmask 1047556
  %v301 = vsel %vm300, %v299, %v297
  %vm302 = vcmask 244736
  %v303 = vsel %vm302, %v301, %v295
  %304 = vrot.lane.b32.xlu0 %v303, 98
  %v305 = vpop.permute.xlu0 %304
  %vm306 = vcmask 154624
  %s307 = scalar_lea.vmem %s1, 72
  %308 = vst.msk [vmem:[%s307] sm:$0xff] %vm306, %v305
  %vm309 = vcmask 1048336
  %s310 = scalar_lea.vmem %s1, 64
  %311 = vst.msk [vmem:[%s310] sm:$0xff] %vm309, %v305
  %s312 = scalar_lea.vmem %s0, 194
  %v313 = vld [vmem:[%s312] ss:$8 sm:$0xf]
  %s314 = scalar_lea.vmem %s0, 194
  %v315 = vld [vmem:[%s314] ss:$8 sm:$0xf0]
  %vm316 = vcmask 1047556
  %v317 = vsel %vm316, %v315, %v313
  %s318 = scalar_lea.vmem %s0, 194
  %v319 = vld [vmem:[%s318] ss:$8 sm:$0xf]
  %s320 = scalar_lea.vmem %s0, 194
  %v321 = vld [vmem:[%s320] ss:$8 sm:$0xf0]
  %vm322 = vcmask 1047556
  %v323 = vsel %vm322, %v321, %v319
  %vm324 = vcmask 244736
  %v325 = vsel %vm324, %v323, %v317
  %326 = vrot.lane.b32.xlu0 %v325, 98
  %v327 = vpop.permute.xlu0 %326
  %vm328 = vcmask 154624
  %s329 = scalar_lea.vmem %s1, 104
  %330 = vst.msk [vmem:[%s329] sm:$0xff] %vm328, %v327
  %vm331 = vcmask 1048336
  %s332 = scalar_lea.vmem %s1, 96
  %333 = vst.msk [vmem:[%s332] sm:$0xff] %vm331, %v327
  %s334 = scalar_lea.vmem %s0, 258
  %v335 = vld [vmem:[%s334] ss:$8 sm:$0xf]
  %s336 = scalar_lea.vmem %s0, 258
  %v337 = vld [vmem:[%s336] ss:$8 sm:$0xf0]
  %vm338 = vcmask 1047556
  %v339 = vsel %vm338, %v337, %v335
  %s340 = scalar_lea.vmem %s0, 258
  %v341 = vld [vmem:[%s340] ss:$8 sm:$0xf]
  %s342 = scalar_lea.vmem %s0, 258
  %v343 = vld [vmem:[%s342] ss:$8 sm:$0xf0]
  %vm344 = vcmask 1047556
  %v345 = vsel %vm344, %v343, %v341
  %vm346 = vcmask 244736
  %v347 = vsel %vm346, %v345, %v339
  %348 = vrot.lane.b32.xlu0 %v347, 98
  %v349 = vpop.permute.xlu0 %348
  %vm350 = vcmask 154624
  %s351 = scalar_lea.vmem %s1, 136
  %352 = vst.msk [vmem:[%s351] sm:$0xff] %vm350, %v349
  %vm353 = vcmask 1048336
  %s354 = scalar_lea.vmem %s1, 128
  %355 = vst.msk [vmem:[%s354] sm:$0xff] %vm353, %v349
  %s356 = scalar_lea.vmem %s0, 322
  %v357 = vld [vmem:[%s356] ss:$8 sm:$0xf]
  %s358 = scalar_lea.vmem %s0, 322
  %v359 = vld [vmem:[%s358] ss:$8 sm:$0xf0]
  %vm360 = vcmask 1047556
  %v361 = vsel %vm360, %v359, %v357
  %s362 = scalar_lea.vmem %s0, 322
  %v363 = vld [vmem:[%s362] ss:$8 sm:$0xf]
  %s364 = scalar_lea.vmem %s0, 322
  %v365 = vld [vmem:[%s364] ss:$8 sm:$0xf0]
  %vm366 = vcmask 1047556
  %v367 = vsel %vm366, %v365, %v363
  %vm368 = vcmask 244736
  %v369 = vsel %vm368, %v367, %v361
  %370 = vrot.lane.b32.xlu0 %v369, 98
  %v371 = vpop.permute.xlu0 %370
  %vm372 = vcmask 154624
  %s373 = scalar_lea.vmem %s1, 168
  %374 = vst.msk [vmem:[%s373] sm:$0xff] %vm372, %v371
  %vm375 = vcmask 1048336
  %s376 = scalar_lea.vmem %s1, 160
  %377 = vst.msk [vmem:[%s376] sm:$0xff] %vm375, %v371
  %s378 = scalar_lea.vmem %s0, 386
  %v379 = vld [vmem:[%s378] ss:$8 sm:$0xf]
  %s380 = scalar_lea.vmem %s0, 386
  %v381 = vld [vmem:[%s380] ss:$8 sm:$0xf0]
  %vm382 = vcmask 1047556
  %v383 = vsel %vm382, %v381, %v379
  %s384 = scalar_lea.vmem %s0, 386
  %v385 = vld [vmem:[%s384] ss:$8 sm:$0xf]
  %s386 = scalar_lea.vmem %s0, 386
  %v387 = vld [vmem:[%s386] ss:$8 sm:$0xf0]
  %vm388 = vcmask 1047556
  %v389 = vsel %vm388, %v387, %v385
  %vm390 = vcmask 244736
  %v391 = vsel %vm390, %v389, %v383
  %392 = vrot.lane.b32.xlu0 %v391, 98
  %v393 = vpop.permute.xlu0 %392
  %vm394 = vcmask 154624
  %s395 = scalar_lea.vmem %s1, 200
  %396 = vst.msk [vmem:[%s395] sm:$0xff] %vm394, %v393
  %vm397 = vcmask 1048336
  %s398 = scalar_lea.vmem %s1, 192
  %399 = vst.msk [vmem:[%s398] sm:$0xff] %vm397, %v393
  %s400 = scalar_lea.vmem %s0, 450
  %v401 = vld [vmem:[%s400] ss:$8 sm:$0xf]
  %s402 = scalar_lea.vmem %s0, 450
  %v403 = vld [vmem:[%s402] ss:$8 sm:$0xf0]
  %vm404 = vcmask 1047556
  %v405 = vsel %vm404, %v403, %v401
  %s406 = scalar_lea.vmem %s0, 450
  %v407 = vld [vmem:[%s406] ss:$8 sm:$0xf]
  %s408 = scalar_lea.vmem %s0, 450
  %v409 = vld [vmem:[%s408] ss:$8 sm:$0xf0]
  %vm410 = vcmask 1047556
  %v411 = vsel %vm410, %v409, %v407
  %vm412 = vcmask 244736
  %v413 = vsel %vm412, %v411, %v405
  %414 = vrot.lane.b32.xlu0 %v413, 98
  %v415 = vpop.permute.xlu0 %414
  %vm416 = vcmask 154624
  %s417 = scalar_lea.vmem %s1, 232
  %418 = vst.msk [vmem:[%s417] sm:$0xff] %vm416, %v415
  %vm419 = vcmask 1048336
  %s420 = scalar_lea.vmem %s1, 224
  %421 = vst.msk [vmem:[%s420] sm:$0xff] %vm419, %v415
  %s422 = scalar_lea.vmem %s0, 7
  %v423 = vld [vmem:[%s422] ss:$8 sm:$0xf]
  %s424 = scalar_lea.vmem %s0, 7
  %v425 = vld [vmem:[%s424] ss:$8 sm:$0xf0]
  %vm426 = vcmask 1047556
  %v427 = vsel %vm426, %v425, %v423
  %s428 = scalar_lea.vmem %s0, 7
  %v429 = vld [vmem:[%s428] ss:$8 sm:$0xf]
  %s430 = scalar_lea.vmem %s0, 7
  %v431 = vld [vmem:[%s430] ss:$8 sm:$0xf0]
  %vm432 = vcmask 1047556
  %v433 = vsel %vm432, %v431, %v429
  %vm434 = vcmask 334848
  %v435 = vsel %vm434, %v433, %v427
  %436 = vrot.lane.b32.xlu0 %v435, 87
  %v437 = vpop.permute.xlu0 %436
  %vm438 = vcmask 64512
  %s439 = scalar_lea.vmem %s1, 24
  %440 = vst.msk [vmem:[%s439] sm:$0xff] %vm438, %v437
  %vm441 = vcmask 1048248
  %s442 = scalar_lea.vmem %s1, 16
  %443 = vst.msk [vmem:[%s442] sm:$0xff] %vm441, %v437
  %s444 = scalar_lea.vmem %s0, 71
  %v445 = vld [vmem:[%s444] ss:$8 sm:$0xf]
  %s446 = scalar_lea.vmem %s0, 71
  %v447 = vld [vmem:[%s446] ss:$8 sm:$0xf0]
  %vm448 = vcmask 1047556
  %v449 = vsel %vm448, %v447, %v445
  %s450 = scalar_lea.vmem %s0, 71
  %v451 = vld [vmem:[%s450] ss:$8 sm:$0xf]
  %s452 = scalar_lea.vmem %s0, 71
  %v453 = vld [vmem:[%s452] ss:$8 sm:$0xf0]
  %vm454 = vcmask 1047556
  %v455 = vsel %vm454, %v453, %v451
  %vm456 = vcmask 334848
  %v457 = vsel %vm456, %v455, %v449
  %458 = vrot.lane.b32.xlu0 %v457, 87
  %v459 = vpop.permute.xlu0 %458
  %vm460 = vcmask 64512
  %s461 = scalar_lea.vmem %s1, 56
  %462 = vst.msk [vmem:[%s461] sm:$0xff] %vm460, %v459
  %vm463 = vcmask 1048248
  %s464 = scalar_lea.vmem %s1, 48
  %465 = vst.msk [vmem:[%s464] sm:$0xff] %vm463, %v459
  %s466 = scalar_lea.vmem %s0, 135
  %v467 = vld [vmem:[%s466] ss:$8 sm:$0xf]
  %s468 = scalar_lea.vmem %s0, 135
  %v469 = vld [vmem:[%s468] ss:$8 sm:$0xf0]
  %vm470 = vcmask 1047556
  %v471 = vsel %vm470, %v469, %v467
  %s472 = scalar_lea.vmem %s0, 135
  %v473 = vld [vmem:[%s472] ss:$8 sm:$0xf]
  %s474 = scalar_lea.vmem %s0, 135
  %v475 = vld [vmem:[%s474] ss:$8 sm:$0xf0]
  %vm476 = vcmask 1047556
  %v477 = vsel %vm476, %v475, %v473
  %vm478 = vcmask 334848
  %v479 = vsel %vm478, %v477, %v471
  %480 = vrot.lane.b32.xlu0 %v479, 87
  %v481 = vpop.permute.xlu0 %480
  %vm482 = vcmask 64512
  %s483 = scalar_lea.vmem %s1, 88
  %484 = vst.msk [vmem:[%s483] sm:$0xff] %vm482, %v481
  %vm485 = vcmask 1048248
  %s486 = scalar_lea.vmem %s1, 80
  %487 = vst.msk [vmem:[%s486] sm:$0xff] %vm485, %v481
  %s488 = scalar_lea.vmem %s0, 199
  %v489 = vld [vmem:[%s488] ss:$8 sm:$0xf]
  %s490 = scalar_lea.vmem %s0, 199
  %v491 = vld [vmem:[%s490] ss:$8 sm:$0xf0]
  %vm492 = vcmask 1047556
  %v493 = vsel %vm492, %v491, %v489
  %s494 = scalar_lea.vmem %s0, 199
  %v495 = vld [vmem:[%s494] ss:$8 sm:$0xf]
  %s496 = scalar_lea.vmem %s0, 199
  %v497 = vld [vmem:[%s496] ss:$8 sm:$0xf0]
  %vm498 = vcmask 1047556
  %v499 = vsel %vm498, %v497, %v495
  %vm500 = vcmask 334848
  %v501 = vsel %vm500, %v499, %v493
  %502 = vrot.lane.b32.xlu0 %v501, 87
  %v503 = vpop.permute.xlu0 %502
  %vm504 = vcmask 64512
  %s505 = scalar_lea.vmem %s1, 120
  %506 = vst.msk [vmem:[%s505] sm:$0xff] %vm504, %v503
  %vm507 = vcmask 1048248
  %s508 = scalar_lea.vmem %s1, 112
  %509 = vst.msk [vmem:[%s508] sm:$0xff] %vm507, %v503
  %s510 = scalar_lea.vmem %s0, 263
  %v511 = vld [vmem:[%s510] ss:$8 sm:$0xf]
  %s512 = scalar_lea.vmem %s0, 263
  %v513 = vld [vmem:[%s512] ss:$8 sm:$0xf0]
  %vm514 = vcmask 1047556
  %v515 = vsel %vm514, %v513, %v511
  %s516 = scalar_lea.vmem %s0, 263
  %v517 = vld [vmem:[%s516] ss:$8 sm:$0xf]
  %s518 = scalar_lea.vmem %s0, 263
  %v519 = vld [vmem:[%s518] ss:$8 sm:$0xf0]
  %vm520 = vcmask 1047556
  %v521 = vsel %vm520, %v519, %v517
  %vm522 = vcmask 334848
  %v523 = vsel %vm522, %v521, %v515
  %524 = vrot.lane.b32.xlu0 %v523, 87
  %v525 = vpop.permute.xlu0 %524
  %vm526 = vcmask 64512
  %s527 = scalar_lea.vmem %s1, 152
  %528 = vst.msk [vmem:[%s527] sm:$0xff] %vm526, %v525
  %vm529 = vcmask 1048248
  %s530 = scalar_lea.vmem %s1, 144
  %531 = vst.msk [vmem:[%s530] sm:$0xff] %vm529, %v525
  %s532 = scalar_lea.vmem %s0, 327
  %v533 = vld [vmem:[%s532] ss:$8 sm:$0xf]
  %s534 = scalar_lea.vmem %s0, 327
  %v535 = vld [vmem:[%s534] ss:$8 sm:$0xf0]
  %vm536 = vcmask 1047556
  %v537 = vsel %vm536, %v535, %v533
  %s538 = scalar_lea.vmem %s0, 327
  %v539 = vld [vmem:[%s538] ss:$8 sm:$0xf]
  %s540 = scalar_lea.vmem %s0, 327
  %v541 = vld [vmem:[%s540] ss:$8 sm:$0xf0]
  %vm542 = vcmask 1047556
  %v543 = vsel %vm542, %v541, %v539
  %vm544 = vcmask 334848
  %v545 = vsel %vm544, %v543, %v537
  %546 = vrot.lane.b32.xlu0 %v545, 87
  %v547 = vpop.permute.xlu0 %546
  %vm548 = vcmask 64512
  %s549 = scalar_lea.vmem %s1, 184
  %550 = vst.msk [vmem:[%s549] sm:$0xff] %vm548, %v547
  %vm551 = vcmask 1048248
  %s552 = scalar_lea.vmem %s1, 176
  %553 = vst.msk [vmem:[%s552] sm:$0xff] %vm551, %v547
  %s554 = scalar_lea.vmem %s0, 391
  %v555 = vld [vmem:[%s554] ss:$8 sm:$0xf]
  %s556 = scalar_lea.vmem %s0, 391
  %v557 = vld [vmem:[%s556] ss:$8 sm:$0xf0]
  %vm558 = vcmask 1047556
  %v559 = vsel %vm558, %v557, %v555
  %s560 = scalar_lea.vmem %s0, 391
  %v561 = vld [vmem:[%s560] ss:$8 sm:$0xf]
  %s562 = scalar_lea.vmem %s0, 391
  %v563 = vld [vmem:[%s562] ss:$8 sm:$0xf0]
  %vm564 = vcmask 1047556
  %v565 = vsel %vm564, %v563, %v561
  %vm566 = vcmask 334848
  %v567 = vsel %vm566, %v565, %v559
  %568 = vrot.lane.b32.xlu0 %v567, 87
  %v569 = vpop.permute.xlu0 %568
  %vm570 = vcmask 64512
  %s571 = scalar_lea.vmem %s1, 216
  %572 = vst.msk [vmem:[%s571] sm:$0xff] %vm570, %v569
  %vm573 = vcmask 1048248
  %s574 = scalar_lea.vmem %s1, 208
  %575 = vst.msk [vmem:[%s574] sm:$0xff] %vm573, %v569
  %s576 = scalar_lea.vmem %s0, 455
  %v577 = vld [vmem:[%s576] ss:$8 sm:$0xf]
  %s578 = scalar_lea.vmem %s0, 455
  %v579 = vld [vmem:[%s578] ss:$8 sm:$0xf0]
  %vm580 = vcmask 1047556
  %v581 = vsel %vm580, %v579, %v577
  %s582 = scalar_lea.vmem %s0, 455
  %v583 = vld [vmem:[%s582] ss:$8 sm:$0xf]
  %s584 = scalar_lea.vmem %s0, 455
  %v585 = vld [vmem:[%s584] ss:$8 sm:$0xf0]
  %vm586 = vcmask 1047556
  %v587 = vsel %vm586, %v585, %v583
  %vm588 = vcmask 334848
  %v589 = vsel %vm588, %v587, %v581
  %590 = vrot.lane.b32.xlu0 %v589, 87
  %v591 = vpop.permute.xlu0 %590
  %vm592 = vcmask 64512
  %s593 = scalar_lea.vmem %s1, 248
  %594 = vst.msk [vmem:[%s593] sm:$0xff] %vm592, %v591
  %vm595 = vcmask 1048248
  %s596 = scalar_lea.vmem %s1, 240
  %597 = vst.msk [vmem:[%s596] sm:$0xff] %vm595, %v591
  %s598 = scalar_lea.vmem %s0, 4
  %v599 = vld [vmem:[%s598] ss:$8 sm:$0xf]
  %s600 = scalar_lea.vmem %s0, 4
  %v601 = vld [vmem:[%s600] ss:$8 sm:$0xf0]
  %vm602 = vcmask 1047556
  %v603 = vsel %vm602, %v601, %v599
  %604 = vrot.lane.b32.xlu0 %v603, 68
  %v605 = vpop.permute.xlu0 %604
  %vm606 = vcmask 957984
  %s607 = scalar_lea.vmem %s1, 8
  %608 = vst.msk [vmem:[%s607] sm:$0xff] %vm606, %v605
  %s609 = scalar_lea.vmem %s0, 68
  %v610 = vld [vmem:[%s609] ss:$8 sm:$0xf]
  %s611 = scalar_lea.vmem %s0, 68
  %v612 = vld [vmem:[%s611] ss:$8 sm:$0xf0]
  %vm613 = vcmask 1047556
  %v614 = vsel %vm613, %v612, %v610
  %615 = vrot.lane.b32.xlu0 %v614, 68
  %v616 = vpop.permute.xlu0 %615
  %vm617 = vcmask 957984
  %s618 = scalar_lea.vmem %s1, 40
  %619 = vst.msk [vmem:[%s618] sm:$0xff] %vm617, %v616
  %s620 = scalar_lea.vmem %s0, 132
  %v621 = vld [vmem:[%s620] ss:$8 sm:$0xf]
  %s622 = scalar_lea.vmem %s0, 132
  %v623 = vld [vmem:[%s622] ss:$8 sm:$0xf0]
  %vm624 = vcmask 1047556
  %v625 = vsel %vm624, %v623, %v621
  %626 = vrot.lane.b32.xlu0 %v625, 68
  %v627 = vpop.permute.xlu0 %626
  %vm628 = vcmask 957984
  %s629 = scalar_lea.vmem %s1, 72
  %630 = vst.msk [vmem:[%s629] sm:$0xff] %vm628, %v627
  %s631 = scalar_lea.vmem %s0, 196
  %v632 = vld [vmem:[%s631] ss:$8 sm:$0xf]
  %s633 = scalar_lea.vmem %s0, 196
  %v634 = vld [vmem:[%s633] ss:$8 sm:$0xf0]
  %vm635 = vcmask 1047556
  %v636 = vsel %vm635, %v634, %v632
  %637 = vrot.lane.b32.xlu0 %v636, 68
  %v638 = vpop.permute.xlu0 %637
  %vm639 = vcmask 957984
  %s640 = scalar_lea.vmem %s1, 104
  %641 = vst.msk [vmem:[%s640] sm:$0xff] %vm639, %v638
  %s642 = scalar_lea.vmem %s0, 260
  %v643 = vld [vmem:[%s642] ss:$8 sm:$0xf]
  %s644 = scalar_lea.vmem %s0, 260
  %v645 = vld [vmem:[%s644] ss:$8 sm:$0xf0]
  %vm646 = vcmask 1047556
  %v647 = vsel %vm646, %v645, %v643
  %648 = vrot.lane.b32.xlu0 %v647, 68
  %v649 = vpop.permute.xlu0 %648
  %vm650 = vcmask 957984
  %s651 = scalar_lea.vmem %s1, 136
  %652 = vst.msk [vmem:[%s651] sm:$0xff] %vm650, %v649
  %s653 = scalar_lea.vmem %s0, 324
  %v654 = vld [vmem:[%s653] ss:$8 sm:$0xf]
  %s655 = scalar_lea.vmem %s0, 324
  %v656 = vld [vmem:[%s655] ss:$8 sm:$0xf0]
  %vm657 = vcmask 1047556
  %v658 = vsel %vm657, %v656, %v654
  %659 = vrot.lane.b32.xlu0 %v658, 68
  %v660 = vpop.permute.xlu0 %659
  %vm661 = vcmask 957984
  %s662 = scalar_lea.vmem %s1, 168
  %663 = vst.msk [vmem:[%s662] sm:$0xff] %vm661, %v660
  %s664 = scalar_lea.vmem %s0, 388
  %v665 = vld [vmem:[%s664] ss:$8 sm:$0xf]
  %s666 = scalar_lea.vmem %s0, 388
  %v667 = vld [vmem:[%s666] ss:$8 sm:$0xf0]
  %vm668 = vcmask 1047556
  %v669 = vsel %vm668, %v667, %v665
  %670 = vrot.lane.b32.xlu0 %v669, 68
  %v671 = vpop.permute.xlu0 %670
  %vm672 = vcmask 957984
  %s673 = scalar_lea.vmem %s1, 200
  %674 = vst.msk [vmem:[%s673] sm:$0xff] %vm672, %v671
  %s675 = scalar_lea.vmem %s0, 452
  %v676 = vld [vmem:[%s675] ss:$8 sm:$0xf]
  %s677 = scalar_lea.vmem %s0, 452
  %v678 = vld [vmem:[%s677] ss:$8 sm:$0xf0]
  %vm679 = vcmask 1047556
  %v680 = vsel %vm679, %v678, %v676
  %681 = vrot.lane.b32.xlu0 %v680, 68
  %v682 = vpop.permute.xlu0 %681
  %vm683 = vcmask 957984
  %s684 = scalar_lea.vmem %s1, 232
  %685 = vst.msk [vmem:[%s684] sm:$0xff] %vm683, %v682
  %s686 = scalar_lea.vmem %s0, 1
  %v687 = vld [vmem:[%s686] ss:$8 sm:$0xf]
  %s688 = scalar_lea.vmem %s0, 1
  %v689 = vld [vmem:[%s688] ss:$8 sm:$0xf0]
  %vm690 = vcmask 1047556
  %v691 = vsel %vm690, %v689, %v687
  %692 = vrot.lane.b32.xlu0 %v691, 49
  %v693 = vpop.permute.xlu0 %692
  %vm694 = vcmask 802184
  %695 = vst.msk [vmem:[%s1] sm:$0xff] %vm694, %v693
  %s696 = scalar_lea.vmem %s0, 65
  %v697 = vld [vmem:[%s696] ss:$8 sm:$0xf]
  %s698 = scalar_lea.vmem %s0, 65
  %v699 = vld [vmem:[%s698] ss:$8 sm:$0xf0]
  %vm700 = vcmask 1047556
  %v701 = vsel %vm700, %v699, %v697
  %702 = vrot.lane.b32.xlu0 %v701, 49
  %v703 = vpop.permute.xlu0 %702
  %vm704 = vcmask 802184
  %s705 = scalar_lea.vmem %s1, 32
  %706 = vst.msk [vmem:[%s705] sm:$0xff] %vm704, %v703
  %s707 = scalar_lea.vmem %s0, 129
  %v708 = vld [vmem:[%s707] ss:$8 sm:$0xf]
  %s709 = scalar_lea.vmem %s0, 129
  %v710 = vld [vmem:[%s709] ss:$8 sm:$0xf0]
  %vm711 = vcmask 1047556
  %v712 = vsel %vm711, %v710, %v708
  %713 = vrot.lane.b32.xlu0 %v712, 49
  %v714 = vpop.permute.xlu0 %713
  %vm715 = vcmask 802184
  %s716 = scalar_lea.vmem %s1, 64
  %717 = vst.msk [vmem:[%s716] sm:$0xff] %vm715, %v714
  %s718 = scalar_lea.vmem %s0, 193
  %v719 = vld [vmem:[%s718] ss:$8 sm:$0xf]
  %s720 = scalar_lea.vmem %s0, 193
  %v721 = vld [vmem:[%s720] ss:$8 sm:$0xf0]
  %vm722 = vcmask 1047556
  %v723 = vsel %vm722, %v721, %v719
  %724 = vrot.lane.b32.xlu0 %v723, 49
  %v725 = vpop.permute.xlu0 %724
  %vm726 = vcmask 802184
  %s727 = scalar_lea.vmem %s1, 96
  %728 = vst.msk [vmem:[%s727] sm:$0xff] %vm726, %v725
  %s729 = scalar_lea.vmem %s0, 257
  %v730 = vld [vmem:[%s729] ss:$8 sm:$0xf]
  %s731 = scalar_lea.vmem %s0, 257
  %v732 = vld [vmem:[%s731] ss:$8 sm:$0xf0]
  %vm733 = vcmask 1047556
  %v734 = vsel %vm733, %v732, %v730
  %735 = vrot.lane.b32.xlu0 %v734, 49
  %v736 = vpop.permute.xlu0 %735
  %vm737 = vcmask 802184
  %s738 = scalar_lea.vmem %s1, 128
  %739 = vst.msk [vmem:[%s738] sm:$0xff] %vm737, %v736
  %s740 = scalar_lea.vmem %s0, 321
  %v741 = vld [vmem:[%s740] ss:$8 sm:$0xf]
  %s742 = scalar_lea.vmem %s0, 321
  %v743 = vld [vmem:[%s742] ss:$8 sm:$0xf0]
  %vm744 = vcmask 1047556
  %v745 = vsel %vm744, %v743, %v741
  %746 = vrot.lane.b32.xlu0 %v745, 49
  %v747 = vpop.permute.xlu0 %746
  %vm748 = vcmask 802184
  %s749 = scalar_lea.vmem %s1, 160
  %750 = vst.msk [vmem:[%s749] sm:$0xff] %vm748, %v747
  %s751 = scalar_lea.vmem %s0, 385
  %v752 = vld [vmem:[%s751] ss:$8 sm:$0xf]
  %s753 = scalar_lea.vmem %s0, 385
  %v754 = vld [vmem:[%s753] ss:$8 sm:$0xf0]
  %vm755 = vcmask 1047556
  %v756 = vsel %vm755, %v754, %v752
  %757 = vrot.lane.b32.xlu0 %v756, 49
  %v758 = vpop.permute.xlu0 %757
  %vm759 = vcmask 802184
  %s760 = scalar_lea.vmem %s1, 192
  %761 = vst.msk [vmem:[%s760] sm:$0xff] %vm759, %v758
  %s762 = scalar_lea.vmem %s0, 449
  %v763 = vld [vmem:[%s762] ss:$8 sm:$0xf]
  %s764 = scalar_lea.vmem %s0, 449
  %v765 = vld [vmem:[%s764] ss:$8 sm:$0xf0]
  %vm766 = vcmask 1047556
  %v767 = vsel %vm766, %v765, %v763
  %768 = vrot.lane.b32.xlu0 %v767, 49
  %v769 = vpop.permute.xlu0 %768
  %vm770 = vcmask 802184
  %s771 = scalar_lea.vmem %s1, 224
  %772 = vst.msk [vmem:[%s771] sm:$0xff] %vm770, %v769
  %s773 = scalar_lea.vmem %s0, 6
  %v774 = vld [vmem:[%s773] ss:$8 sm:$0xf]
  %s775 = scalar_lea.vmem %s0, 6
  %v776 = vld [vmem:[%s775] ss:$8 sm:$0xf0]
  %vm777 = vcmask 1047556
  %v778 = vsel %vm777, %v776, %v774
  %779 = vrot.lane.b32.xlu0 %v778, 38
  %v780 = vpop.permute.xlu0 %779
  %vm781 = vcmask 711984
  %s782 = scalar_lea.vmem %s1, 16
  %783 = vst.msk [vmem:[%s782] sm:$0xff] %vm781, %v780
  %s784 = scalar_lea.vmem %s0, 70
  %v785 = vld [vmem:[%s784] ss:$8 sm:$0xf]
  %s786 = scalar_lea.vmem %s0, 70
  %v787 = vld [vmem:[%s786] ss:$8 sm:$0xf0]
  %vm788 = vcmask 1047556
  %v789 = vsel %vm788, %v787, %v785
  %790 = vrot.lane.b32.xlu0 %v789, 38
  %v791 = vpop.permute.xlu0 %790
  %vm792 = vcmask 711984
  %s793 = scalar_lea.vmem %s1, 48
  %794 = vst.msk [vmem:[%s793] sm:$0xff] %vm792, %v791
  %s795 = scalar_lea.vmem %s0, 134
  %v796 = vld [vmem:[%s795] ss:$8 sm:$0xf]
  %s797 = scalar_lea.vmem %s0, 134
  %v798 = vld [vmem:[%s797] ss:$8 sm:$0xf0]
  %vm799 = vcmask 1047556
  %v800 = vsel %vm799, %v798, %v796
  %801 = vrot.lane.b32.xlu0 %v800, 38
  %v802 = vpop.permute.xlu0 %801
  %vm803 = vcmask 711984
  %s804 = scalar_lea.vmem %s1, 80
  %805 = vst.msk [vmem:[%s804] sm:$0xff] %vm803, %v802
  %s806 = scalar_lea.vmem %s0, 198
  %v807 = vld [vmem:[%s806] ss:$8 sm:$0xf]
  %s808 = scalar_lea.vmem %s0, 198
  %v809 = vld [vmem:[%s808] ss:$8 sm:$0xf0]
  %vm810 = vcmask 1047556
  %v811 = vsel %vm810, %v809, %v807
  %812 = vrot.lane.b32.xlu0 %v811, 38
  %v813 = vpop.permute.xlu0 %812
  %vm814 = vcmask 711984
  %s815 = scalar_lea.vmem %s1, 112
  %816 = vst.msk [vmem:[%s815] sm:$0xff] %vm814, %v813
  %s817 = scalar_lea.vmem %s0, 262
  %v818 = vld [vmem:[%s817] ss:$8 sm:$0xf]
  %s819 = scalar_lea.vmem %s0, 262
  %v820 = vld [vmem:[%s819] ss:$8 sm:$0xf0]
  %vm821 = vcmask 1047556
  %v822 = vsel %vm821, %v820, %v818
  %823 = vrot.lane.b32.xlu0 %v822, 38
  %v824 = vpop.permute.xlu0 %823
  %vm825 = vcmask 711984
  %s826 = scalar_lea.vmem %s1, 144
  %827 = vst.msk [vmem:[%s826] sm:$0xff] %vm825, %v824
  %s828 = scalar_lea.vmem %s0, 326
  %v829 = vld [vmem:[%s828] ss:$8 sm:$0xf]
  %s830 = scalar_lea.vmem %s0, 326
  %v831 = vld [vmem:[%s830] ss:$8 sm:$0xf0]
  %vm832 = vcmask 1047556
  %v833 = vsel %vm832, %v831, %v829
  %834 = vrot.lane.b32.xlu0 %v833, 38
  %v835 = vpop.permute.xlu0 %834
  %vm836 = vcmask 711984
  %s837 = scalar_lea.vmem %s1, 176
  %838 = vst.msk [vmem:[%s837] sm:$0xff] %vm836, %v835
  %s839 = scalar_lea.vmem %s0, 390
  %v840 = vld [vmem:[%s839] ss:$8 sm:$0xf]
  %s841 = scalar_lea.vmem %s0, 390
  %v842 = vld [vmem:[%s841] ss:$8 sm:$0xf0]
  %vm843 = vcmask 1047556
  %v844 = vsel %vm843, %v842, %v840
  %845 = vrot.lane.b32.xlu0 %v844, 38
  %v846 = vpop.permute.xlu0 %845
  %vm847 = vcmask 711984
  %s848 = scalar_lea.vmem %s1, 208
  %849 = vst.msk [vmem:[%s848] sm:$0xff] %vm847, %v846
  %s850 = scalar_lea.vmem %s0, 454
  %v851 = vld [vmem:[%s850] ss:$8 sm:$0xf]
  %s852 = scalar_lea.vmem %s0, 454
  %v853 = vld [vmem:[%s852] ss:$8 sm:$0xf0]
  %vm854 = vcmask 1047556
  %v855 = vsel %vm854, %v853, %v851
  %856 = vrot.lane.b32.xlu0 %v855, 38
  %v857 = vpop.permute.xlu0 %856
  %vm858 = vcmask 711984
  %s859 = scalar_lea.vmem %s1, 240
  %860 = vst.msk [vmem:[%s859] sm:$0xff] %vm858, %v857
  %s861 = scalar_lea.vmem %s0, 3
  %v862 = vld [vmem:[%s861] ss:$8 sm:$0xf]
  %s863 = scalar_lea.vmem %s0, 3
  %v864 = vld [vmem:[%s863] ss:$8 sm:$0xf0]
  %vm865 = vcmask 1047556
  %v866 = vsel %vm865, %v864, %v862
  %867 = vrot.lane.b32.xlu0 %v866, 19
  %v868 = vpop.permute.xlu0 %867
  %vm869 = vcmask 556184
  %s870 = scalar_lea.vmem %s1, 8
  %871 = vst.msk [vmem:[%s870] sm:$0xff] %vm869, %v868
  %s872 = scalar_lea.vmem %s0, 67
  %v873 = vld [vmem:[%s872] ss:$8 sm:$0xf]
  %s874 = scalar_lea.vmem %s0, 67
  %v875 = vld [vmem:[%s874] ss:$8 sm:$0xf0]
  %vm876 = vcmask 1047556
  %v877 = vsel %vm876, %v875, %v873
  %878 = vrot.lane.b32.xlu0 %v877, 19
  %v879 = vpop.permute.xlu0 %878
  %vm880 = vcmask 556184
  %s881 = scalar_lea.vmem %s1, 40
  %882 = vst.msk [vmem:[%s881] sm:$0xff] %vm880, %v879
  %s883 = scalar_lea.vmem %s0, 131
  %v884 = vld [vmem:[%s883] ss:$8 sm:$0xf]
  %s885 = scalar_lea.vmem %s0, 131
  %v886 = vld [vmem:[%s885] ss:$8 sm:$0xf0]
  %vm887 = vcmask 1047556
  %v888 = vsel %vm887, %v886, %v884
  %889 = vrot.lane.b32.xlu0 %v888, 19
  %v890 = vpop.permute.xlu0 %889
  %vm891 = vcmask 556184
  %s892 = scalar_lea.vmem %s1, 72
  %893 = vst.msk [vmem:[%s892] sm:$0xff] %vm891, %v890
  %s894 = scalar_lea.vmem %s0, 195
  %v895 = vld [vmem:[%s894] ss:$8 sm:$0xf]
  %s896 = scalar_lea.vmem %s0, 195
  %v897 = vld [vmem:[%s896] ss:$8 sm:$0xf0]
  %vm898 = vcmask 1047556
  %v899 = vsel %vm898, %v897, %v895
  %900 = vrot.lane.b32.xlu0 %v899, 19
  %v901 = vpop.permute.xlu0 %900
  %vm902 = vcmask 556184
  %s903 = scalar_lea.vmem %s1, 104
  %904 = vst.msk [vmem:[%s903] sm:$0xff] %vm902, %v901
  %s905 = scalar_lea.vmem %s0, 259
  %v906 = vld [vmem:[%s905] ss:$8 sm:$0xf]
  %s907 = scalar_lea.vmem %s0, 259
  %v908 = vld [vmem:[%s907] ss:$8 sm:$0xf0]
  %vm909 = vcmask 1047556
  %v910 = vsel %vm909, %v908, %v906
  %911 = vrot.lane.b32.xlu0 %v910, 19
  %v912 = vpop.permute.xlu0 %911
  %vm913 = vcmask 556184
  %s914 = scalar_lea.vmem %s1, 136
  %915 = vst.msk [vmem:[%s914] sm:$0xff] %vm913, %v912
  %s916 = scalar_lea.vmem %s0, 323
  %v917 = vld [vmem:[%s916] ss:$8 sm:$0xf]
  %s918 = scalar_lea.vmem %s0, 323
  %v919 = vld [vmem:[%s918] ss:$8 sm:$0xf0]
  %vm920 = vcmask 1047556
  %v921 = vsel %vm920, %v919, %v917
  %922 = vrot.lane.b32.xlu0 %v921, 19
  %v923 = vpop.permute.xlu0 %922
  %vm924 = vcmask 556184
  %s925 = scalar_lea.vmem %s1, 168
  %926 = vst.msk [vmem:[%s925] sm:$0xff] %vm924, %v923
  %s927 = scalar_lea.vmem %s0, 387
  %v928 = vld [vmem:[%s927] ss:$8 sm:$0xf]
  %s929 = scalar_lea.vmem %s0, 387
  %v930 = vld [vmem:[%s929] ss:$8 sm:$0xf0]
  %vm931 = vcmask 1047556
  %v932 = vsel %vm931, %v930, %v928
  %933 = vrot.lane.b32.xlu0 %v932, 19
  %v934 = vpop.permute.xlu0 %933
  %vm935 = vcmask 556184
  %s936 = scalar_lea.vmem %s1, 200
  %937 = vst.msk [vmem:[%s936] sm:$0xff] %vm935, %v934
  %s938 = scalar_lea.vmem %s0, 451
  %v939 = vld [vmem:[%s938] ss:$8 sm:$0xf]
  %s940 = scalar_lea.vmem %s0, 451
  %v941 = vld [vmem:[%s940] ss:$8 sm:$0xf0]
  %vm942 = vcmask 1047556
  %v943 = vsel %vm942, %v941, %v939
  %944 = vrot.lane.b32.xlu0 %v943, 19
  %v945 = vpop.permute.xlu0 %944
  %vm946 = vcmask 556184
  %s947 = scalar_lea.vmem %s1, 232
  %948 = vst.msk [vmem:[%s947] sm:$0xff] %vm946, %v945

// kernel: clip_vision_forward.3
$region0: #{clip_vision_forward.3}
  #allocation0 [shape = 'u32[]', space=smem, size = 0x4, offset = 0x4, fixed_abs, tag = 'smem constant byte address 0x4 - core index']
  #allocation1 [shape = 'u32[144,128]{1,0:T(1,128)}', space=vmem, size = 0x12000, scoped, tag = 'internal scratch']
  #allocation2 [shape = 'f32[8,64]{1,0:T(8,128)}', space=vmem, size = 0x1000, scoped, tag = 'scratch operand']
  %s0 = inlined_call_operand.vmem [shape: f32[392,64], index: 0, kind: input, shape index: {}]
  %s1 = inlined_call_operand.vmem [shape: f32[392,64], index: 1, kind: input, shape index: {}]
  %s2 = inlined_call_operand.vmem [shape: f32[1,192], index: 2, kind: input, shape index: {}]
  %s3 = inlined_call_operand.vmem [shape: f32[64,192], index: 3, kind: input, shape index: {}]
  %s4 = inlined_call_operand.vmem [shape: f32[1,192], index: 4, kind: input, shape index: {}]
  %s5 = inlined_call_operand.vmem [shape: f32[64,32], index: 5, kind: input, shape index: {}]
  %s6 = inlined_call_operand.vmem [shape: f32[1,32], index: 6, kind: input, shape index: {}]
  %s7 = inlined_call_operand.vmem [shape: f32[8,32], index: 7, kind: output, shape index: {}]
  %s8 = sld [smem:[#allocation0]]
  $region38: #{clip_vision_forward.3} parent=0
    _
  %s10 = ssub.s32 1, %s8
  %s11 = scalar_select 0, %s10, %s8
  // Predicated region
  $region2: #{clip_vision_forward.3} parent=0 // pred_check
    _
  $region3: #{clip_vision_forward.3} parent=0 // pred_check_branch
    %13 = sbr.rel (0) target = $region5
  $region4: #{clip_vision_forward.3} parent=0 // pred_region
    _
  $region5: #{clip_vision_forward.3} parent=0 // pred_fallthru
    _
  // Predicated region
  $region6: #{clip_vision_forward.3} parent=0 // pred_check
    _
  $region7: #{clip_vision_forward.3} parent=0 // pred_check_branch
    %15 = sbr.rel (0) target = $region9
  $region8: #{clip_vision_forward.3} parent=0 // pred_region
    _
  $region9: #{clip_vision_forward.3} parent=0 // pred_fallthru
    _
  // Predicated region
  $region10: #{clip_vision_forward.3} parent=0 // pred_check
    _
  $region11: #{clip_vision_forward.3} parent=0 // pred_check_branch
    %17 = sbr.rel (0) target = $region13
  $region12: #{clip_vision_forward.3} parent=0 // pred_region
    _
  $region13: #{clip_vision_forward.3} parent=0 // pred_fallthru
    _
  // Predicated region
  $region14: #{clip_vision_forward.3} parent=0 // pred_check
    _
  $region15: #{clip_vision_forward.3} parent=0 // pred_check_branch
    %19 = sbr.rel (0) target = $region17
  $region16: #{clip_vision_forward.3} parent=0 // pred_region
    _
  $region17: #{clip_vision_forward.3} parent=0 // pred_fallthru
    _
  // Predicated region
  $region18: #{clip_vision_forward.3} parent=0 // pred_check
    _
  $region19: #{clip_vision_forward.3} parent=0 // pred_check_branch
    %21 = sbr.rel (0) target = $region21
  $region20: #{clip_vision_forward.3} parent=0 // pred_region
    _
  $region21: #{clip_vision_forward.3} parent=0 // pred_fallthru
    _
  // Predicated region
  $region22: #{clip_vision_forward.3} parent=0 // pred_check
    _
  $region23: #{clip_vision_forward.3} parent=0 // pred_check_branch
    %23 = sbr.rel (0) target = $region25
  $region24: #{clip_vision_forward.3} parent=0 // pred_region
    _
  $region25: #{clip_vision_forward.3} parent=0 // pred_fallthru
    _
  // Predicated region
  $region26: #{clip_vision_forward.3} parent=0 // pred_check
    _
  $region27: #{clip_vision_forward.3} parent=0 // pred_check_branch
    %25 = sbr.rel (0) target = $region29
  $region28: #{clip_vision_forward.3} parent=0 // pred_region
    _
  $region29: #{clip_vision_forward.3} parent=0 // pred_fallthru
    _
  %v26 = vld [vmem:[%s0] sm:$0xff]
  %v27 = vld [vmem:[%s0 + $0x8] sm:$0xff]
  %v28 = vld [vmem:[%s0 + $0x10] sm:$0xff]
  %v29 = vld [vmem:[%s0 + $0x18] sm:$0xff]
  %v30 = vld [vmem:[%s0 + $0x20] sm:$0xff]
  %v31 = vld [vmem:[%s0 + $0x28] sm:$0xff]
  %v32 = vld [vmem:[%s0 + $0x30] sm:$0xff]
  %v33 = vld [vmem:[%s0 + $0x38] sm:$0xff]
  %v34 = vld [vmem:[%s0 + $0x40] sm:$0xff]
  %v35 = vld [vmem:[%s0 + $0x48] sm:$0xff]
  %v36 = vld [vmem:[%s0 + $0x50] sm:$0xff]
  %v37 = vld [vmem:[%s0 + $0x58] sm:$0xff]
  %v38 = vld [vmem:[%s0 + $0x60] sm:$0xff]
  %v39 = vld [vmem:[%s0 + $0x68] sm:$0xff]
  %v40 = vld [vmem:[%s0 + $0x70] sm:$0xff]
  %v41 = vld [vmem:[%s0 + $0x78] sm:$0xff]
  %v42 = vld [vmem:[%s0 + $0x80] sm:$0xff]
  %v43 = vld [vmem:[%s0 + $0x88] sm:$0xff]
  %v44 = vld [vmem:[%s0 + $0x90] sm:$0xff]
  %v45 = vld [vmem:[%s0 + $0x98] sm:$0xff]
  %v46 = vld [vmem:[%s0 + $0xa0] sm:$0xff]
  %v47 = vld [vmem:[%s0 + $0xa8] sm:$0xff]
  %v48 = vld [vmem:[%s0 + $0xb0] sm:$0xff]
  %v49 = vld [vmem:[%s0 + $0xb8] sm:$0xff]
  %v50 = vld [vmem:[%s0 + $0xc0] sm:$0xff]
  %v51 = vld [vmem:[%s0 + $0xc8] sm:$0xff]
  %v52 = vld [vmem:[%s0 + $0xd0] sm:$0xff]
  %v53 = vld [vmem:[%s0 + $0xd8] sm:$0xff]
  %v54 = vld [vmem:[%s0 + $0xe0] sm:$0xff]
  %v55 = vld [vmem:[%s0 + $0xe8] sm:$0xff]
  %v56 = vld [vmem:[%s0 + $0xf0] sm:$0xff]
  %v57 = vld [vmem:[%s0 + $0xf8] sm:$0xff]
  %v58 = vld [vmem:[%s0 + $0x100] sm:$0xff]
  %v59 = vld [vmem:[%s0 + $0x108] sm:$0xff]
  %v60 = vld [vmem:[%s0 + $0x110] sm:$0xff]
  %v61 = vld [vmem:[%s0 + $0x118] sm:$0xff]
  %v62 = vld [vmem:[%s0 + $0x120] sm:$0xff]
  %v63 = vld [vmem:[%s0 + $0x128] sm:$0xff]
  %v64 = vld [vmem:[%s0 + $0x130] sm:$0xff]
  %v65 = vld [vmem:[%s0 + $0x138] sm:$0xff]
  %v66 = vld [vmem:[%s0 + $0x140] sm:$0xff]
  %v67 = vld [vmem:[%s0 + $0x148] sm:$0xff]
  %v68 = vld [vmem:[%s0 + $0x150] sm:$0xff]
  %v69 = vld [vmem:[%s0 + $0x158] sm:$0xff]
  %v70 = vld [vmem:[%s0 + $0x160] sm:$0xff]
  %v71 = vld [vmem:[%s0 + $0x168] sm:$0xff]
  %v72 = vld [vmem:[%s0 + $0x170] sm:$0xff]
  %v73 = vld [vmem:[%s0 + $0x178] sm:$0xff]
  %v74 = vld [vmem:[%s0 + $0x180] sm:$0xff]
  %v75 = vld [vmem:[%s1] sm:$0xff]
  %v76 = vld [vmem:[%s1 + $0x8] sm:$0xff]
  %v77 = vld [vmem:[%s1 + $0x10] sm:$0xff]
  %v78 = vld [vmem:[%s1 + $0x18] sm:$0xff]
  %v79 = vld [vmem:[%s1 + $0x20] sm:$0xff]
  %v80 = vld [vmem:[%s1 + $0x28] sm:$0xff]
  %v81 = vld [vmem:[%s1 + $0x30] sm:$0xff]
  %v82 = vld [vmem:[%s1 + $0x38] sm:$0xff]
  %v83 = vld [vmem:[%s1 + $0x40] sm:$0xff]
  %v84 = vld [vmem:[%s1 + $0x48] sm:$0xff]
  %v85 = vld [vmem:[%s1 + $0x50] sm:$0xff]
  %v86 = vld [vmem:[%s1 + $0x58] sm:$0xff]
  %v87 = vld [vmem:[%s1 + $0x60] sm:$0xff]
  %v88 = vld [vmem:[%s1 + $0x68] sm:$0xff]
  %v89 = vld [vmem:[%s1 + $0x70] sm:$0xff]
  %v90 = vld [vmem:[%s1 + $0x78] sm:$0xff]
  %v91 = vld [vmem:[%s1 + $0x80] sm:$0xff]
  %v92 = vld [vmem:[%s1 + $0x88] sm:$0xff]
  %v93 = vld [vmem:[%s1 + $0x90] sm:$0xff]
  %v94 = vld [vmem:[%s1 + $0x98] sm:$0xff]
  %v95 = vld [vmem:[%s1 + $0xa0] sm:$0xff]
  %v96 = vld [vmem:[%s1 + $0xa8] sm:$0xff]
  %v97 = vld [vmem:[%s1 + $0xb0] sm:$0xff]
  %v98 = vld [vmem:[%s1 + $0xb8] sm:$0xff]
  %v99 = vld [vmem:[%s1 + $0xc0] sm:$0xff]
  %v100 = vld [vmem:[%s1 + $0xc8] sm:$0xff]
  %v101 = vld [vmem:[%s1 + $0xd0] sm:$0xff]
  %v102 = vld [vmem:[%s1 + $0xd8] sm:$0xff]
  %v103 = vld [vmem:[%s1 + $0xe0] sm:$0xff]
  %v104 = vld [vmem:[%s1 + $0xe8] sm:$0xff]
  %v105 = vld [vmem:[%s1 + $0xf0] sm:$0xff]
  %v106 = vld [vmem:[%s1 + $0xf8] sm:$0xff]
  %v107 = vld [vmem:[%s1 + $0x100] sm:$0xff]
  %v108 = vld [vmem:[%s1 + $0x108] sm:$0xff]
  %v109 = vld [vmem:[%s1 + $0x110] sm:$0xff]
  %v110 = vld [vmem:[%s1 + $0x118] sm:$0xff]
  %v111 = vld [vmem:[%s1 + $0x120] sm:$0xff]
  %v112 = vld [vmem:[%s1 + $0x128] sm:$0xff]
  %v113 = vld [vmem:[%s1 + $0x130] sm:$0xff]
  %v114 = vld [vmem:[%s1 + $0x138] sm:$0xff]
  %v115 = vld [vmem:[%s1 + $0x140] sm:$0xff]
  %v116 = vld [vmem:[%s1 + $0x148] sm:$0xff]
  %v117 = vld [vmem:[%s1 + $0x150] sm:$0xff]
  %v118 = vld [vmem:[%s1 + $0x158] sm:$0xff]
  %v119 = vld [vmem:[%s1 + $0x160] sm:$0xff]
  %v120 = vld [vmem:[%s1 + $0x168] sm:$0xff]
  %v121 = vld [vmem:[%s1 + $0x170] sm:$0xff]
  %v122 = vld [vmem:[%s1 + $0x178] sm:$0xff]
  %v123 = vld [vmem:[%s1 + $0x180] sm:$0xff]
  %v124 = vadd.f32 %v26, %v75
  %v125 = vadd.f32 %v27, %v76
  %v126 = vadd.f32 %v28, %v77
  %v127 = vadd.f32 %v29, %v78
  %v128 = vadd.f32 %v30, %v79
  %v129 = vadd.f32 %v31, %v80
  %v130 = vadd.f32 %v32, %v81
  %v131 = vadd.f32 %v33, %v82
  %v132 = vadd.f32 %v34, %v83
  %v133 = vadd.f32 %v35, %v84
  %v134 = vadd.f32 %v36, %v85
  %v135 = vadd.f32 %v37, %v86
  %v136 = vadd.f32 %v38, %v87
  %v137 = vadd.f32 %v39, %v88
  %v138 = vadd.f32 %v40, %v89
  %v139 = vadd.f32 %v41, %v90
  %v140 = vadd.f32 %v42, %v91
  %v141 = vadd.f32 %v43, %v92
  %v142 = vadd.f32 %v44, %v93
  %v143 = vadd.f32 %v45, %v94
  %v144 = vadd.f32 %v46, %v95
  %v145 = vadd.f32 %v47, %v96
  %v146 = vadd.f32 %v48, %v97
  %v147 = vadd.f32 %v49, %v98
  %v148 = vadd.f32 %v50, %v99
  %v149 = vadd.f32 %v51, %v100
  %v150 = vadd.f32 %v52, %v101
  %v151 = vadd.f32 %v53, %v102
  %v152 = vadd.f32 %v54, %v103
  %v153 = vadd.f32 %v55, %v104
  %v154 = vadd.f32 %v56, %v105
  %v155 = vadd.f32 %v57, %v106
  %v156 = vadd.f32 %v58, %v107
  %v157 = vadd.f32 %v59, %v108
  %v158 = vadd.f32 %v60, %v109
  %v159 = vadd.f32 %v61, %v110
  %v160 = vadd.f32 %v62, %v111
  %v161 = vadd.f32 %v63, %v112
  %v162 = vadd.f32 %v64, %v113
  %v163 = vadd.f32 %v65, %v114
  %v164 = vadd.f32 %v66, %v115
  %v165 = vadd.f32 %v67, %v116
  %v166 = vadd.f32 %v68, %v117
  %v167 = vadd.f32 %v69, %v118
  %v168 = vadd.f32 %v70, %v119
  %v169 = vadd.f32 %v71, %v120
  %v170 = vadd.f32 %v72, %v121
  %v171 = vadd.f32 %v73, %v122
  %v172 = vadd.f32 %v74, %v123
  %v173 = vld [vmem:[%s3] sm:$0xff]
  %v174 = vld [vmem:[%s3 + $0x8] sm:$0xff]
  %v175 = vld [vmem:[%s3 + $0x10] sm:$0xff]
  %v176 = vld [vmem:[%s3 + $0x18] sm:$0xff]
  %v177 = vld [vmem:[%s3 + $0x20] sm:$0xff]
  %v178 = vld [vmem:[%s3 + $0x28] sm:$0xff]
  %v179 = vld [vmem:[%s3 + $0x30] sm:$0xff]
  %v180 = vld [vmem:[%s3 + $0x38] sm:$0xff]
  %v181 = vld [vmem:[%s3 + $0x40] sm:$0xff]
  %v182 = vld [vmem:[%s3 + $0x48] sm:$0xff]
  %v183 = vld [vmem:[%s3 + $0x50] sm:$0xff]
  %v184 = vld [vmem:[%s3 + $0x58] sm:$0xff]
  %v185 = vld [vmem:[%s3 + $0x60] sm:$0xff]
  %v186 = vld [vmem:[%s3 + $0x68] sm:$0xff]
  %v187 = vld [vmem:[%s3 + $0x70] sm:$0xff]
  %v188 = vld [vmem:[%s3 + $0x78] sm:$0xff]
  %v189 = vld [vmem:[%s4] sm:$0x3]
  %v191 = vlaneseq
  %v192 = vshrl.u32 %v191, 7
  %v193 = vsub.s32 0, %v192
  %v194 = vrot.slane %v189, %v193
  %v195 = vlaneseq
  %v196 = vshrl.u32 %v195, 7
  %v197 = vsub.s32 1, %v196
  %v198 = vrot.slane %v189, %v197
  %vm201 = vcmask 523264
  %v203 = vsel %vm201, %v124, 0
  %v206 = vsel %vm201, %v125, 0
  %v209 = vsel %vm201, %v126, 0
  %v212 = vsel %vm201, %v127, 0
  %v215 = vsel %vm201, %v128, 0
  %v218 = vsel %vm201, %v129, 0
  %v221 = vsel %vm201, %v130, 0
  %v224 = vsel %vm201, %v131, 0
  %v227 = vsel %vm201, %v132, 0
  %v230 = vsel %vm201, %v133, 0
  %v233 = vsel %vm201, %v134, 0
  %v236 = vsel %vm201, %v135, 0
  %v239 = vsel %vm201, %v136, 0
  %v242 = vsel %vm201, %v137, 0
  %v245 = vsel %vm201, %v138, 0
  %v248 = vsel %vm201, %v139, 0
  %v251 = vsel %vm201, %v140, 0
  %v254 = vsel %vm201, %v141, 0
  %v257 = vsel %vm201, %v142, 0
  %v260 = vsel %vm201, %v143, 0
  %v263 = vsel %vm201, %v144, 0
  %v266 = vsel %vm201, %v145, 0
  %v269 = vsel %vm201, %v146, 0
  %v272 = vsel %vm201, %v147, 0
  %v275 = vsel %vm201, %v148, 0
  %v278 = vsel %vm201, %v149, 0
  %v281 = vsel %vm201, %v150, 0
  %v284 = vsel %vm201, %v151, 0
  %v287 = vsel %vm201, %v152, 0
  %v290 = vsel %vm201, %v153, 0
  %v293 = vsel %vm201, %v154, 0
  %v296 = vsel %vm201, %v155, 0
  %v299 = vsel %vm201, %v156, 0
  %v302 = vsel %vm201, %v157, 0
  %v305 = vsel %vm201, %v158, 0
  %v308 = vsel %vm201, %v159, 0
  %v311 = vsel %vm201, %v160, 0
  %v314 = vsel %vm201, %v161, 0
  %v317 = vsel %vm201, %v162, 0
  %v320 = vsel %vm201, %v163, 0
  %v323 = vsel %vm201, %v164, 0
  %v326 = vsel %vm201, %v165, 0
  %v329 = vsel %vm201, %v166, 0
  %v332 = vsel %vm201, %v167, 0
  %v335 = vsel %vm201, %v168, 0
  %v338 = vsel %vm201, %v169, 0
  %v341 = vsel %vm201, %v170, 0
  %v344 = vsel %vm201, %v171, 0
  %v347 = vsel %vm201, %v172, 0
  %349 = vmatprep.subr.mxu0 0.0
  %350 = vmatpush1.msra.mxu0 0.0
  %351 = vmatprep.subr.mxu0 0.0
  %352 = vmatpush1.msra.mxu0 0.0
  %353 = vmatprep.subr.mxu0 0.0
  %354 = vmatpush1.msra.mxu0 0.0
  %355 = vmatprep.subr.mxu0 0.0
  %356 = vmatpush1.msra.mxu0 0.0
  %357 = vmatprep.subr.mxu0 0.0
  %358 = vmatpush1.msra.mxu0 0.0
  %359 = vmatprep.subr.mxu0 0.0
  %360 = vmatpush1.msra.mxu0 0.0
  %361 = vmatprep.subr.mxu0 0.0
  %362 = vmatpush1.msra.mxu0 0.0
  %363 = vmatprep.subr.mxu0 0.0
  %364 = vmatpush1.msra.mxu0 0.0
  %365 = vmatprep.subr.mxu0 %v188
  %366 = vmatpush1.msra.mxu0 %v187
  %367 = vmatprep.subr.mxu0 %v186
  %368 = vmatpush1.msra.mxu0 %v185
  %369 = vmatprep.subr.mxu0 %v184
  %370 = vmatpush1.msra.mxu0 %v183
  %371 = vmatprep.subr.mxu0 %v182
  %372 = vmatpush1.msra.mxu0 %v181
  %373 = vmatprep.subr.mxu0 %v180
  %374 = vmatpush1.msra.mxu0 %v179
  %375 = vmatprep.subr.mxu0 %v178
  %376 = vmatpush1.msra.mxu0 %v177
  %377 = vmatprep.subr.mxu0 %v176
  %378 = vmatpush1.msra.mxu0 %v175
  %379 = vmatprep.subr.mxu0 %v174
  %380 = vmatpush1.msra.mxu0 %v173
  %381 = vmatprep.subr.mxu0 0.0
  %382 = vmatpush2.msra.mxu0 0.0
  %383 = vmatprep.subr.mxu0 0.0
  %384 = vmatpush2.msra.mxu0 0.0
  %385 = vmatprep.subr.mxu0 0.0
  %386 = vmatpush2.msra.mxu0 0.0
  %387 = vmatprep.subr.mxu0 0.0
  %388 = vmatpush2.msra.mxu0 0.0
  %389 = vmatprep.subr.mxu0 0.0
  %390 = vmatpush2.msra.mxu0 0.0
  %391 = vmatprep.subr.mxu0 0.0
  %392 = vmatpush2.msra.mxu0 0.0
  %393 = vmatprep.subr.mxu0 0.0
  %394 = vmatpush2.msra.mxu0 0.0
  %395 = vmatprep.subr.mxu0 0.0
  %396 = vmatpush2.msra.mxu0 0.0
  %397 = vmatprep.subr.mxu0 0.0
  %398 = vmatpush2.msra.mxu0 0.0
  %399 = vmatprep.subr.mxu0 0.0
  %400 = vmatpush2.msra.mxu0 0.0
  %401 = vmatprep.subr.mxu0 0.0
  %402 = vmatpush2.msra.mxu0 0.0
  %403 = vmatprep.subr.mxu0 0.0
  %404 = vmatpush2.msra.mxu0 0.0
  %405 = vmatprep.subr.mxu0 0.0
  %406 = vmatpush2.msra.mxu0 0.0
  %407 = vmatprep.subr.mxu0 0.0
  %408 = vmatpush2.msra.mxu0 0.0
  %409 = vmatprep.subr.mxu0 0.0
  %410 = vmatpush2.msra.mxu0 0.0
  %411 = vmatprep.subr.mxu0 0.0
  %412 = vmatpush2.msra.mxu0 0.0
  %413 = vmatprep.mubr.f32.mxu0 0.0
  %414 = vmatmul.mubr.f32.gmra.mxu0 %v203
  %v415 = vpop.f32.mrf.mxu0
  %v416 = vadd.f32 %v194, %v415
  %v417 = vpop.f32.mrf.mxu0
  %v418 = vadd.f32 %v198, %v417
  %419 = vmatprep.mubr.f32.mxu0 0.0
  %420 = vmatmul.mubr.f32.gmra.mxu0 %v206
  %v421 = vpop.f32.mrf.mxu0
  %v422 = vadd.f32 %v194, %v421
  %v423 = vpop.f32.mrf.mxu0
  %v424 = vadd.f32 %v198, %v423
  %425 = vmatprep.mubr.f32.mxu0 0.0
  %426 = vmatmul.mubr.f32.gmra.mxu0 %v209
  %v427 = vpop.f32.mrf.mxu0
  %v428 = vadd.f32 %v194, %v427
  %v429 = vpop.f32.mrf.mxu0
  %v430 = vadd.f32 %v198, %v429
  %431 = vmatprep.mubr.f32.mxu0 0.0
  %432 = vmatmul.mubr.f32.gmra.mxu0 %v212
  %v433 = vpop.f32.mrf.mxu0
  %v434 = vadd.f32 %v194, %v433
  %v435 = vpop.f32.mrf.mxu0
  %v436 = vadd.f32 %v198, %v435
  %437 = vmatprep.mubr.f32.mxu0 0.0
  %438 = vmatmul.mubr.f32.gmra.mxu0 %v215
  %v439 = vpop.f32.mrf.mxu0
  %v440 = vadd.f32 %v194, %v439
  %v441 = vpop.f32.mrf.mxu0
  %v442 = vadd.f32 %v198, %v441
  %443 = vmatprep.mubr.f32.mxu0 0.0
  %444 = vmatmul.mubr.f32.gmra.mxu0 %v218
  %v445 = vpop.f32.mrf.mxu0
  %v446 = vadd.f32 %v194, %v445
  %v447 = vpop.f32.mrf.mxu0
  %v448 = vadd.f32 %v198, %v447
  %449 = vmatprep.mubr.f32.mxu0 0.0
  %450 = vmatmul.mubr.f32.gmra.mxu0 %v221
  %v451 = vpop.f32.mrf.mxu0
  %v452 = vadd.f32 %v194, %v451
  %v453 = vpop.f32.mrf.mxu0
  %v454 = vadd.f32 %v198, %v453
  %455 = vmatprep.mubr.f32.mxu0 0.0
  %456 = vmatmul.mubr.f32.gmra.mxu0 %v224
  %v457 = vpop.f32.mrf.mxu0
  %v458 = vadd.f32 %v194, %v457
  %v459 = vpop.f32.mrf.mxu0
  %v460 = vadd.f32 %v198, %v459
  %461 = vmatprep.mubr.f32.mxu0 0.0
  %462 = vmatmul.mubr.f32.gmra.mxu0 %v227
  %v463 = vpop.f32.mrf.mxu0
  %v464 = vadd.f32 %v194, %v463
  %v465 = vpop.f32.mrf.mxu0
  %v466 = vadd.f32 %v198, %v465
  %467 = vmatprep.mubr.f32.mxu0 0.0
  %468 = vmatmul.mubr.f32.gmra.mxu0 %v230
  %v469 = vpop.f32.mrf.mxu0
  %v470 = vadd.f32 %v194, %v469
  %v471 = vpop.f32.mrf.mxu0
  %v472 = vadd.f32 %v198, %v471
  %473 = vmatprep.mubr.f32.mxu0 0.0
  %474 = vmatmul.mubr.f32.gmra.mxu0 %v233
  %v475 = vpop.f32.mrf.mxu0
  %v476 = vadd.f32 %v194, %v475
  %v477 = vpop.f32.mrf.mxu0
  %v478 = vadd.f32 %v198, %v477
  %479 = vmatprep.mubr.f32.mxu0 0.0
  %480 = vmatmul.mubr.f32.gmra.mxu0 %v236
  %v481 = vpop.f32.mrf.mxu0
  %v482 = vadd.f32 %v194, %v481
  %v483 = vpop.f32.mrf.mxu0
  %v484 = vadd.f32 %v198, %v483
  %485 = vmatprep.mubr.f32.mxu0 0.0
  %486 = vmatmul.mubr.f32.gmra.mxu0 %v239
  %v487 = vpop.f32.mrf.mxu0
  %v488 = vadd.f32 %v194, %v487
  %v489 = vpop.f32.mrf.mxu0
  %v490 = vadd.f32 %v198, %v489
  %491 = vmatprep.mubr.f32.mxu0 0.0
  %492 = vmatmul.mubr.f32.gmra.mxu0 %v242
  %v493 = vpop.f32.mrf.mxu0
  %v494 = vadd.f32 %v194, %v493
  %v495 = vpop.f32.mrf.mxu0
  %v496 = vadd.f32 %v198, %v495
  %497 = vmatprep.mubr.f32.mxu0 0.0
  %498 = vmatmul.mubr.f32.gmra.mxu0 %v245
  %v499 = vpop.f32.mrf.mxu0
  %v500 = vadd.f32 %v194, %v499
  %v501 = vpop.f32.mrf.mxu0
  %v502 = vadd.f32 %v198, %v501
  %503 = vmatprep.mubr.f32.mxu0 0.0
  %504 = vmatmul.mubr.f32.gmra.mxu0 %v248
  %v505 = vpop.f32.mrf.mxu0
  %v506 = vadd.f32 %v194, %v505
  %v507 = vpop.f32.mrf.mxu0
  %v508 = vadd.f32 %v198, %v507
  %509 = vmatprep.mubr.f32.mxu0 0.0
  %510 = vmatmul.mubr.f32.gmra.mxu0 %v251
  %v511 = vpop.f32.mrf.mxu0
  %v512 = vadd.f32 %v194, %v511
  %v513 = vpop.f32.mrf.mxu0
  %v514 = vadd.f32 %v198, %v513
  %515 = vmatprep.mubr.f32.mxu0 0.0
  %516 = vmatmul.mubr.f32.gmra.mxu0 %v254
  %v517 = vpop.f32.mrf.mxu0
  %v518 = vadd.f32 %v194, %v517
  %v519 = vpop.f32.mrf.mxu0
  %v520 = vadd.f32 %v198, %v519
  %521 = vmatprep.mubr.f32.mxu0 0.0
  %522 = vmatmul.mubr.f32.gmra.mxu0 %v257
  %v523 = vpop.f32.mrf.mxu0
  %v524 = vadd.f32 %v194, %v523
  %v525 = vpop.f32.mrf.mxu0
  %v526 = vadd.f32 %v198, %v525
  %527 = vmatprep.mubr.f32.mxu0 0.0
  %528 = vmatmul.mubr.f32.gmra.mxu0 %v260
  %v529 = vpop.f32.mrf.mxu0
  %v530 = vadd.f32 %v194, %v529
  %v531 = vpop.f32.mrf.mxu0
  %v532 = vadd.f32 %v198, %v531
  %533 = vmatprep.mubr.f32.mxu0 0.0
  %534 = vmatmul.mubr.f32.gmra.mxu0 %v263
  %v535 = vpop.f32.mrf.mxu0
  %v536 = vadd.f32 %v194, %v535
  %v537 = vpop.f32.mrf.mxu0
  %v538 = vadd.f32 %v198, %v537
  %539 = vmatprep.mubr.f32.mxu0 0.0
  %540 = vmatmul.mubr.f32.gmra.mxu0 %v266
  %v541 = vpop.f32.mrf.mxu0
  %v542 = vadd.f32 %v194, %v541
  %v543 = vpop.f32.mrf.mxu0
  %v544 = vadd.f32 %v198, %v543
  %545 = vmatprep.mubr.f32.mxu0 0.0
  %546 = vmatmul.mubr.f32.gmra.mxu0 %v269
  %v547 = vpop.f32.mrf.mxu0
  %v548 = vadd.f32 %v194, %v547
  %v549 = vpop.f32.mrf.mxu0
  %v550 = vadd.f32 %v198, %v549
  %551 = vmatprep.mubr.f32.mxu0 0.0
  %552 = vmatmul.mubr.f32.gmra.mxu0 %v272
  %v553 = vpop.f32.mrf.mxu0
  %v554 = vadd.f32 %v194, %v553
  %v555 = vpop.f32.mrf.mxu0
  %v556 = vadd.f32 %v198, %v555
  %557 = vmatprep.mubr.f32.mxu0 0.0
  %558 = vmatmul.mubr.f32.gmra.mxu0 %v275
  %v559 = vpop.f32.mrf.mxu0
  %v560 = vadd.f32 %v194, %v559
  %v561 = vpop.f32.mrf.mxu0
  %v562 = vadd.f32 %v198, %v561
  %563 = vmatprep.mubr.f32.mxu0 0.0
  %564 = vmatmul.mubr.f32.gmra.mxu0 %v278
  %v565 = vpop.f32.mrf.mxu0
  %v566 = vadd.f32 %v194, %v565
  %v567 = vpop.f32.mrf.mxu0
  %v568 = vadd.f32 %v198, %v567
  %569 = vmatprep.mubr.f32.mxu0 0.0
  %570 = vmatmul.mubr.f32.gmra.mxu0 %v281
  %v571 = vpop.f32.mrf.mxu0
  %v572 = vadd.f32 %v194, %v571
  %v573 = vpop.f32.mrf.mxu0
  %v574 = vadd.f32 %v198, %v573
  %575 = vmatprep.mubr.f32.mxu0 0.0
  %576 = vmatmul.mubr.f32.gmra.mxu0 %v284
  %v577 = vpop.f32.mrf.mxu0
  %v578 = vadd.f32 %v194, %v577
  %v579 = vpop.f32.mrf.mxu0
  %v580 = vadd.f32 %v198, %v579
  %581 = vmatprep.mubr.f32.mxu0 0.0
  %582 = vmatmul.mubr.f32.gmra.mxu0 %v287
  %v583 = vpop.f32.mrf.mxu0
  %v584 = vadd.f32 %v194, %v583
  %v585 = vpop.f32.mrf.mxu0
  %v586 = vadd.f32 %v198, %v585
  %587 = vmatprep.mubr.f32.mxu0 0.0
  %588 = vmatmul.mubr.f32.gmra.mxu0 %v290
  %v589 = vpop.f32.mrf.mxu0
  %v590 = vadd.f32 %v194, %v589
  %v591 = vpop.f32.mrf.mxu0
  %v592 = vadd.f32 %v198, %v591
  %593 = vmatprep.mubr.f32.mxu0 0.0
  %594 = vmatmul.mubr.f32.gmra.mxu0 %v293
  %v595 = vpop.f32.mrf.mxu0
  %v596 = vadd.f32 %v194, %v595
  %v597 = vpop.f32.mrf.mxu0
  %v598 = vadd.f32 %v198, %v597
  %599 = vmatprep.mubr.f32.mxu0 0.0
  %600 = vmatmul.mubr.f32.gmra.mxu0 %v296
  %v601 = vpop.f32.mrf.mxu0
  %v602 = vadd.f32 %v194, %v601
  %v603 = vpop.f32.mrf.mxu0
  %v604 = vadd.f32 %v198, %v603
  %605 = vmatprep.mubr.f32.mxu0 0.0
  %606 = vmatmul.mubr.f32.gmra.mxu0 %v299
  %v607 = vpop.f32.mrf.mxu0
  %v608 = vadd.f32 %v194, %v607
  %v609 = vpop.f32.mrf.mxu0
  %v610 = vadd.f32 %v198, %v609
  %611 = vmatprep.mubr.f32.mxu0 0.0
  %612 = vmatmul.mubr.f32.gmra.mxu0 %v302
  %v613 = vpop.f32.mrf.mxu0
  %v614 = vadd.f32 %v194, %v613
  %v615 = vpop.f32.mrf.mxu0
  %v616 = vadd.f32 %v198, %v615
  %617 = vmatprep.mubr.f32.mxu0 0.0
  %618 = vmatmul.mubr.f32.gmra.mxu0 %v305
  %v619 = vpop.f32.mrf.mxu0
  %v620 = vadd.f32 %v194, %v619
  %v621 = vpop.f32.mrf.mxu0
  %v622 = vadd.f32 %v198, %v621
  %623 = vmatprep.mubr.f32.mxu0 0.0
  %624 = vmatmul.mubr.f32.gmra.mxu0 %v308
  %v625 = vpop.f32.mrf.mxu0
  %v626 = vadd.f32 %v194, %v625
  %v627 = vpop.f32.mrf.mxu0
  %v628 = vadd.f32 %v198, %v627
  %629 = vmatprep.mubr.f32.mxu0 0.0
  %630 = vmatmul.mubr.f32.gmra.mxu0 %v311
  %v631 = vpop.f32.mrf.mxu0
  %v632 = vadd.f32 %v194, %v631
  %v633 = vpop.f32.mrf.mxu0
  %v634 = vadd.f32 %v198, %v633
  %635 = vmatprep.mubr.f32.mxu0 0.0
  %636 = vmatmul.mubr.f32.gmra.mxu0 %v314
  %v637 = vpop.f32.mrf.mxu0
  %v638 = vadd.f32 %v194, %v637
  %v639 = vpop.f32.mrf.mxu0
  %v640 = vadd.f32 %v198, %v639
  %641 = vmatprep.mubr.f32.mxu0 0.0
  %642 = vmatmul.mubr.f32.gmra.mxu0 %v317
  %v643 = vpop.f32.mrf.mxu0
  %v644 = vadd.f32 %v194, %v643
  %v645 = vpop.f32.mrf.mxu0
  %v646 = vadd.f32 %v198, %v645
  %647 = vmatprep.mubr.f32.mxu0 0.0
  %648 = vmatmul.mubr.f32.gmra.mxu0 %v320
  %v649 = vpop.f32.mrf.mxu0
  %v650 = vadd.f32 %v194, %v649
  %v651 = vpop.f32.mrf.mxu0
  %v652 = vadd.f32 %v198, %v651
  %653 = vmatprep.mubr.f32.mxu0 0.0
  %654 = vmatmul.mubr.f32.gmra.mxu0 %v323
  %v655 = vpop.f32.mrf.mxu0
  %v656 = vadd.f32 %v194, %v655
  %v657 = vpop.f32.mrf.mxu0
  %v658 = vadd.f32 %v198, %v657
  %659 = vmatprep.mubr.f32.mxu0 0.0
  %660 = vmatmul.mubr.f32.gmra.mxu0 %v326
  %v661 = vpop.f32.mrf.mxu0
  %v662 = vadd.f32 %v194, %v661
  %v663 = vpop.f32.mrf.mxu0
  %v664 = vadd.f32 %v198, %v663
  %665 = vmatprep.mubr.f32.mxu0 0.0
  %666 = vmatmul.mubr.f32.gmra.mxu0 %v329
  %v667 = vpop.f32.mrf.mxu0
  %v668 = vadd.f32 %v194, %v667
  %v669 = vpop.f32.mrf.mxu0
  %v670 = vadd.f32 %v198, %v669
  %671 = vmatprep.mubr.f32.mxu0 0.0
  %672 = vmatmul.mubr.f32.gmra.mxu0 %v332
  %v673 = vpop.f32.mrf.mxu0
  %v674 = vadd.f32 %v194, %v673
  %v675 = vpop.f32.mrf.mxu0
  %v676 = vadd.f32 %v198, %v675
  %677 = vmatprep.mubr.f32.mxu0 0.0
  %678 = vmatmul.mubr.f32.gmra.mxu0 %v335
  %v679 = vpop.f32.mrf.mxu0
  %v680 = vadd.f32 %v194, %v679
  %v681 = vpop.f32.mrf.mxu0
  %v682 = vadd.f32 %v198, %v681
  %683 = vmatprep.mubr.f32.mxu0 0.0
  %684 = vmatmul.mubr.f32.gmra.mxu0 %v338
  %v685 = vpop.f32.mrf.mxu0
  %v686 = vadd.f32 %v194, %v685
  %v687 = vpop.f32.mrf.mxu0
  %v688 = vadd.f32 %v198, %v687
  %689 = vmatprep.mubr.f32.mxu0 0.0
  %690 = vmatmul.mubr.f32.gmra.mxu0 %v341
  %v691 = vpop.f32.mrf.mxu0
  %v692 = vadd.f32 %v194, %v691
  %v693 = vpop.f32.mrf.mxu0
  %v694 = vadd.f32 %v198, %v693
  %695 = vmatprep.mubr.f32.mxu0 0.0
  %696 = vmatmul.mubr.f32.gmra.mxu0 %v344
  %v697 = vpop.f32.mrf.mxu0
  %v698 = vadd.f32 %v194, %v697
  %v699 = vpop.f32.mrf.mxu0
  %v700 = vadd.f32 %v198, %v699
  %701 = vmatprep.mubr.f32.mxu0 0.0
  %702 = vmatmul.mubr.f32.gmra.mxu0 %v347
  %v703 = vpop.f32.mrf.mxu0
  %v704 = vadd.f32 %v194, %v703
  %v705 = vpop.f32.mrf.mxu0
  %v706 = vadd.f32 %v198, %v705
  %707 = vdwg.mxu0
  %v708 = vlaneseq
  %v709 = vand.u32 %v708, 127
  %v710 = vadd.s32 %v709, 128
  %v711 = vadd.s32 %v709, 256
  %v712 = vadd.s32 %v709, 384
  %v713 = vlaneseq
  %v714 = vshrl.u32 %v713, 7
  %v715 = vmul.u32 %v714, 49
  %vm716 = vcmp.ge.s32.totalorder %v709, %v715
  %vm717 = vcmp.ge.s32.totalorder %v710, %v715
  %vm718 = vcmp.ge.s32.totalorder %v711, %v715
  %vm719 = vcmp.ge.s32.totalorder %v712, %v715
  %v720 = vadd.s32 %v714, 1
  %v721 = vmul.u32 %v720, 49
  %vm722 = vcmp.lt.s32.totalorder %v709, %v721
  %vm723 = vcmp.lt.s32.totalorder %v710, %v721
  %vm724 = vcmp.lt.s32.totalorder %v711, %v721
  %vm725 = vcmp.lt.s32.totalorder %v712, %v721
  %vm726 = vmand %vm716, %vm722
  %vm727 = vmand %vm717, %vm723
  %vm728 = vmand %vm718, %vm724
  %vm729 = vmand %vm719, %vm725
  %v730 = vsel %vm726, 0.020408163, 0.0
  %v731 = vsel %vm727, 0.020408163, 0.0
  %v732 = vsel %vm728, 0.020408163, 0.0
  %v733 = vsel %vm729, 0.020408163, 0.0
  %v734 = vld [vmem:[%s2] sm:$0x3]
  %v736 = vlaneseq
  %v737 = vshrl.u32 %v736, 7
  %v738 = vsub.s32 0, %v737
  %v739 = vrot.slane %v734, %v738
  %v740 = vlaneseq
  %v741 = vshrl.u32 %v740, 7
  %v742 = vsub.s32 1, %v741
  %v743 = vrot.slane %v734, %v742
  %vm746 = vcmask 64512
  %v748 = vsel %vm746, %v733, 0
  %750 = vmatprep.subr.mxu0 %v508
  %751 = vmatpush1.msra.mxu0 %v506
  %752 = vmatprep.subr.mxu0 %v502
  %753 = vmatpush1.msra.mxu0 %v500
  %754 = vmatprep.subr.mxu0 %v496
  %755 = vmatpush1.msra.mxu0 %v494
  %756 = vmatprep.subr.mxu0 %v490
  %757 = vmatpush1.msra.mxu0 %v488
  %758 = vmatprep.subr.mxu0 %v484
  %759 = vmatpush1.msra.mxu0 %v482
  %760 = vmatprep.subr.mxu0 %v478
  %761 = vmatpush1.msra.mxu0 %v476
  %762 = vmatprep.subr.mxu0 %v472
  %763 = vmatpush1.msra.mxu0 %v470
  %764 = vmatprep.subr.mxu0 %v466
  %765 = vmatpush1.msra.mxu0 %v464
  %766 = vmatprep.subr.mxu0 %v460
  %767 = vmatpush1.msra.mxu0 %v458
  %768 = vmatprep.subr.mxu0 %v454
  %769 = vmatpush1.msra.mxu0 %v452
  %770 = vmatprep.subr.mxu0 %v448
  %771 = vmatpush1.msra.mxu0 %v446
  %772 = vmatprep.subr.mxu0 %v442
  %773 = vmatpush1.msra.mxu0 %v440
  %774 = vmatprep.subr.mxu0 %v436
  %775 = vmatpush1.msra.mxu0 %v434
  %776 = vmatprep.subr.mxu0 %v430
  %777 = vmatpush1.msra.mxu0 %v428
  %778 = vmatprep.subr.mxu0 %v424
  %779 = vmatpush1.msra.mxu0 %v422
  %780 = vmatprep.subr.mxu0 %v418
  %781 = vmatpush1.msra.mxu0 %v416
  %782 = vmatprep.subr.mxu0 %v604
  %783 = vmatpush2.msra.mxu0 %v602
  %784 = vmatprep.subr.mxu0 %v598
  %785 = vmatpush2.msra.mxu0 %v596
  %786 = vmatprep.subr.mxu0 %v592
  %787 = vmatpush2.msra.mxu0 %v590
  %788 = vmatprep.subr.mxu0 %v586
  %789 = vmatpush2.msra.mxu0 %v584
  %790 = vmatprep.subr.mxu0 %v580
  %791 = vmatpush2.msra.mxu0 %v578
  %792 = vmatprep.subr.mxu0 %v574
  %793 = vmatpush2.msra.mxu0 %v572
  %794 = vmatprep.subr.mxu0 %v568
  %795 = vmatpush2.msra.mxu0 %v566
  %796 = vmatprep.subr.mxu0 %v562
  %797 = vmatpush2.msra.mxu0 %v560
  %798 = vmatprep.subr.mxu0 %v556
  %799 = vmatpush2.msra.mxu0 %v554
  %800 = vmatprep.subr.mxu0 %v550
  %801 = vmatpush2.msra.mxu0 %v548
  %802 = vmatprep.subr.mxu0 %v544
  %803 = vmatpush2.msra.mxu0 %v542
  %804 = vmatprep.subr.mxu0 %v538
  %805 = vmatpush2.msra.mxu0 %v536
  %806 = vmatprep.subr.mxu0 %v532
  %807 = vmatpush2.msra.mxu0 %v530
  %808 = vmatprep.subr.mxu0 %v526
  %809 = vmatpush2.msra.mxu0 %v524
  %810 = vmatprep.subr.mxu0 %v520
  %811 = vmatpush2.msra.mxu0 %v518
  %812 = vmatprep.subr.mxu0 %v514
  %813 = vmatpush2.msra.mxu0 %v512
  %814 = vmatprep.mubr.f32.mxu0 %v731
  %815 = vmatmul.mubr.f32.gmra.mxu0 %v730
  %v816 = vpop.f32.mrf.mxu0
  %v817 = vadd.f32 %v739, %v816
  %v818 = vpop.f32.mrf.mxu0
  %v819 = vadd.f32 %v743, %v818
  %820 = vdwg.mxu0
  %821 = vmatprep.subr.mxu0 %v700
  %822 = vmatpush1.msra.mxu0 %v698
  %823 = vmatprep.subr.mxu0 %v694
  %824 = vmatpush1.msra.mxu0 %v692
  %825 = vmatprep.subr.mxu0 %v688
  %826 = vmatpush1.msra.mxu0 %v686
  %827 = vmatprep.subr.mxu0 %v682
  %828 = vmatpush1.msra.mxu0 %v680
  %829 = vmatprep.subr.mxu0 %v676
  %830 = vmatpush1.msra.mxu0 %v674
  %831 = vmatprep.subr.mxu0 %v670
  %832 = vmatpush1.msra.mxu0 %v668
  %833 = vmatprep.subr.mxu0 %v664
  %834 = vmatpush1.msra.mxu0 %v662
  %835 = vmatprep.subr.mxu0 %v658
  %836 = vmatpush1.msra.mxu0 %v656
  %837 = vmatprep.subr.mxu0 %v652
  %838 = vmatpush1.msra.mxu0 %v650
  %839 = vmatprep.subr.mxu0 %v646
  %840 = vmatpush1.msra.mxu0 %v644
  %841 = vmatprep.subr.mxu0 %v640
  %842 = vmatpush1.msra.mxu0 %v638
  %843 = vmatprep.subr.mxu0 %v634
  %844 = vmatpush1.msra.mxu0 %v632
  %845 = vmatprep.subr.mxu0 %v628
  %846 = vmatpush1.msra.mxu0 %v626
  %847 = vmatprep.subr.mxu0 %v622
  %848 = vmatpush1.msra.mxu0 %v620
  %849 = vmatprep.subr.mxu0 %v616
  %850 = vmatpush1.msra.mxu0 %v614
  %851 = vmatprep.subr.mxu0 %v610
  %852 = vmatpush1.msra.mxu0 %v608
  %853 = vmatprep.subr.mxu0 0.0
  %854 = vmatpush2.msra.mxu0 0.0
  %855 = vmatprep.subr.mxu0 0.0
  %856 = vmatpush2.msra.mxu0 0.0
  %857 = vmatprep.subr.mxu0 0.0
  %858 = vmatpush2.msra.mxu0 0.0
  %859 = vmatprep.subr.mxu0 0.0
  %860 = vmatpush2.msra.mxu0 0.0
  %861 = vmatprep.subr.mxu0 0.0
  %862 = vmatpush2.msra.mxu0 0.0
  %863 = vmatprep.subr.mxu0 0.0
  %864 = vmatpush2.msra.mxu0 0.0
  %865 = vmatprep.subr.mxu0 0.0
  %866 = vmatpush2.msra.mxu0 0.0
  %867 = vmatprep.subr.mxu0 0.0
  %868 = vmatpush2.msra.mxu0 0.0
  %869 = vmatprep.subr.mxu0 0.0
  %870 = vmatpush2.msra.mxu0 0.0
  %871 = vmatprep.subr.mxu0 0.0
  %872 = vmatpush2.msra.mxu0 0.0
  %873 = vmatprep.subr.mxu0 0.0
  %874 = vmatpush2.msra.mxu0 0.0
  %875 = vmatprep.subr.mxu0 0.0
  %876 = vmatpush2.msra.mxu0 0.0
  %877 = vmatprep.subr.mxu0 0.0
  %878 = vmatpush2.msra.mxu0 0.0
  %879 = vmatprep.subr.mxu0 0.0
  %880 = vmatpush2.msra.mxu0 0.0
  %881 = vmatprep.subr.mxu0 0.0
  %882 = vmatpush2.msra.mxu0 0.0
  %883 = vmatprep.subr.mxu0 %v706
  %884 = vmatpush2.msra.mxu0 %v704
  %885 = vmatprep.mubr.f32.mxu0 %v748
  %886 = vmatmul.mubr.f32.gmra.mxu0 %v732
  %v887 = vpop.f32.mrf.mxu0
  %v888 = vadd.f32 %v817, %v887
  %v889 = vpop.f32.mrf.mxu0
  %v890 = vadd.f32 %v819, %v889
  %891 = vdwg.mxu0
  %v892 = vmul.f32 %v888, 0.25
  %942 = vrot.lane.b32.xlu0 %v416, 64
  %v943 = vpop.permute.xlu0 %942
  %944 = vrot.lane.b32.xlu0 %v422, 64
  %v945 = vpop.permute.xlu0 %944
  %946 = vrot.lane.b32.xlu0 %v428, 64
  %v947 = vpop.permute.xlu0 %946
  %948 = vrot.lane.b32.xlu0 %v434, 64
  %v949 = vpop.permute.xlu0 %948
  %950 = vrot.lane.b32.xlu0 %v440, 64
  %v951 = vpop.permute.xlu0 %950
  %952 = vrot.lane.b32.xlu0 %v446, 64
  %v953 = vpop.permute.xlu0 %952
  %954 = vrot.lane.b32.xlu0 %v452, 64
  %v955 = vpop.permute.xlu0 %954
  %956 = vrot.lane.b32.xlu0 %v458, 64
  %v957 = vpop.permute.xlu0 %956
  %958 = vrot.lane.b32.xlu0 %v464, 64
  %v959 = vpop.permute.xlu0 %958
  %960 = vrot.lane.b32.xlu0 %v470, 64
  %v961 = vpop.permute.xlu0 %960
  %962 = vrot.lane.b32.xlu0 %v476, 64
  %v963 = vpop.permute.xlu0 %962
  %964 = vrot.lane.b32.xlu0 %v482, 64
  %v965 = vpop.permute.xlu0 %964
  %966 = vrot.lane.b32.xlu0 %v488, 64
  %v967 = vpop.permute.xlu0 %966
  %968 = vrot.lane.b32.xlu0 %v494, 64
  %v969 = vpop.permute.xlu0 %968
  %970 = vrot.lane.b32.xlu0 %v500, 64
  %v971 = vpop.permute.xlu0 %970
  %972 = vrot.lane.b32.xlu0 %v506, 64
  %v973 = vpop.permute.xlu0 %972
  %974 = vrot.lane.b32.xlu0 %v512, 64
  %v975 = vpop.permute.xlu0 %974
  %976 = vrot.lane.b32.xlu0 %v518, 64
  %v977 = vpop.permute.xlu0 %976
  %978 = vrot.lane.b32.xlu0 %v524, 64
  %v979 = vpop.permute.xlu0 %978
  %980 = vrot.lane.b32.xlu0 %v530, 64
  %v981 = vpop.permute.xlu0 %980
  %982 = vrot.lane.b32.xlu0 %v536, 64
  %v983 = vpop.permute.xlu0 %982
  %984 = vrot.lane.b32.xlu0 %v542, 64
  %v985 = vpop.permute.xlu0 %984
  %986 = vrot.lane.b32.xlu0 %v548, 64
  %v987 = vpop.permute.xlu0 %986
  %988 = vrot.lane.b32.xlu0 %v554, 64
  %v989 = vpop.permute.xlu0 %988
  %990 = vrot.lane.b32.xlu0 %v560, 64
  %v991 = vpop.permute.xlu0 %990
  %992 = vrot.lane.b32.xlu0 %v566, 64
  %v993 = vpop.permute.xlu0 %992
  %994 = vrot.lane.b32.xlu0 %v572, 64
  %v995 = vpop.permute.xlu0 %994
  %996 = vrot.lane.b32.xlu0 %v578, 64
  %v997 = vpop.permute.xlu0 %996
  %998 = vrot.lane.b32.xlu0 %v584, 64
  %v999 = vpop.permute.xlu0 %998
  %1000 = vrot.lane.b32.xlu0 %v590, 64
  %v1001 = vpop.permute.xlu0 %1000
  %1002 = vrot.lane.b32.xlu0 %v596, 64
  %v1003 = vpop.permute.xlu0 %1002
  %1004 = vrot.lane.b32.xlu0 %v602, 64
  %v1005 = vpop.permute.xlu0 %1004
  %1006 = vrot.lane.b32.xlu0 %v608, 64
  %v1007 = vpop.permute.xlu0 %1006
  %1008 = vrot.lane.b32.xlu0 %v614, 64
  %v1009 = vpop.permute.xlu0 %1008
  %1010 = vrot.lane.b32.xlu0 %v620, 64
  %v1011 = vpop.permute.xlu0 %1010
  %1012 = vrot.lane.b32.xlu0 %v626, 64
  %v1013 = vpop.permute.xlu0 %1012
  %1014 = vrot.lane.b32.xlu0 %v632, 64
  %v1015 = vpop.permute.xlu0 %1014
  %1016 = vrot.lane.b32.xlu0 %v638, 64
  %v1017 = vpop.permute.xlu0 %1016
  %1018 = vrot.lane.b32.xlu0 %v644, 64
  %v1019 = vpop.permute.xlu0 %1018
  %1020 = vrot.lane.b32.xlu0 %v650, 64
  %v1021 = vpop.permute.xlu0 %1020
  %1022 = vrot.lane.b32.xlu0 %v656, 64
  %v1023 = vpop.permute.xlu0 %1022
  %1024 = vrot.lane.b32.xlu0 %v662, 64
  %v1025 = vpop.permute.xlu0 %1024
  %1026 = vrot.lane.b32.xlu0 %v668, 64
  %v1027 = vpop.permute.xlu0 %1026
  %1028 = vrot.lane.b32.xlu0 %v674, 64
  %v1029 = vpop.permute.xlu0 %1028
  %1030 = vrot.lane.b32.xlu0 %v680, 64
  %v1031 = vpop.permute.xlu0 %1030
  %1032 = vrot.lane.b32.xlu0 %v686, 64
  %v1033 = vpop.permute.xlu0 %1032
  %1034 = vrot.lane.b32.xlu0 %v692, 64
  %v1035 = vpop.permute.xlu0 %1034
  %1036 = vrot.lane.b32.xlu0 %v698, 64
  %v1037 = vpop.permute.xlu0 %1036
  %1038 = vrot.lane.b32.xlu0 %v704, 64
  %v1039 = vpop.permute.xlu0 %1038
  %vm1040 = vcmask 130048
  %v1042 = vsel %vm1040, %v892, 0
  %v1044 = vsel %vm1040, %v943, 0
  %v1046 = vsel %vm1040, %v945, 0
  %v1048 = vsel %vm1040, %v947, 0
  %v1050 = vsel %vm1040, %v949, 0
  %v1052 = vsel %vm1040, %v951, 0
  %v1054 = vsel %vm1040, %v953, 0
  %v1056 = vsel %vm1040, %v955, 0
  %v1058 = vsel %vm1040, %v957, 0
  %v1060 = vsel %vm1040, %v959, 0
  %v1062 = vsel %vm1040, %v961, 0
  %v1064 = vsel %vm1040, %v963, 0
  %v1066 = vsel %vm1040, %v965, 0
  %v1068 = vsel %vm1040, %v967, 0
  %v1070 = vsel %vm1040, %v969, 0
  %v1072 = vsel %vm1040, %v971, 0
  %v1074 = vsel %vm1040, %v973, 0
  %v1076 = vsel %vm1040, %v975, 0
  %v1078 = vsel %vm1040, %v977, 0
  %v1080 = vsel %vm1040, %v979, 0
  %v1082 = vsel %vm1040, %v981, 0
  %v1084 = vsel %vm1040, %v983, 0
  %v1086 = vsel %vm1040, %v985, 0
  %v1088 = vsel %vm1040, %v987, 0
  %v1090 = vsel %vm1040, %v989, 0
  %v1092 = vsel %vm1040, %v991, 0
  %v1094 = vsel %vm1040, %v993, 0
  %v1096 = vsel %vm1040, %v995, 0
  %v1098 = vsel %vm1040, %v997, 0
  %v1100 = vsel %vm1040, %v999, 0
  %v1102 = vsel %vm1040, %v1001, 0
  %v1104 = vsel %vm1040, %v1003, 0
  %v1106 = vsel %vm1040, %v1005, 0
  %v1108 = vsel %vm1040, %v1007, 0
  %v1110 = vsel %vm1040, %v1009, 0
  %v1112 = vsel %vm1040, %v1011, 0
  %v1114 = vsel %vm1040, %v1013, 0
  %v1116 = vsel %vm1040, %v1015, 0
  %v1118 = vsel %vm1040, %v1017, 0
  %v1120 = vsel %vm1040, %v1019, 0
  %v1122 = vsel %vm1040, %v1021, 0
  %v1124 = vsel %vm1040, %v1023, 0
  %v1126 = vsel %vm1040, %v1025, 0
  %v1128 = vsel %vm1040, %v1027, 0
  %v1130 = vsel %vm1040, %v1029, 0
  %v1132 = vsel %vm1040, %v1031, 0
  %v1134 = vsel %vm1040, %v1033, 0
  %v1136 = vsel %vm1040, %v1035, 0
  %v1138 = vsel %vm1040, %v1037, 0
  %v1140 = vsel %vm1040, %v1039, 0
  %1142 = vmatprep.subr.mxu0 0.0
  %1143 = vmatpush1.xpose.msra.mxu0 %v1074
  %1144 = vmatprep.subr.mxu0 0.0
  %1145 = vmatpush1.xpose.msra.mxu0 %v1072
  %1146 = vmatprep.subr.mxu0 0.0
  %1147 = vmatpush1.xpose.msra.mxu0 %v1070
  %1148 = vmatprep.subr.mxu0 0.0
  %1149 = vmatpush1.xpose.msra.mxu0 %v1068
  %1150 = vmatprep.subr.mxu0 0.0
  %1151 = vmatpush1.xpose.msra.mxu0 %v1066
  %1152 = vmatprep.subr.mxu0 0.0
  %1153 = vmatpush1.xpose.msra.mxu0 %v1064
  %1154 = vmatprep.subr.mxu0 0.0
  %1155 = vmatpush1.xpose.msra.mxu0 %v1062
  %1156 = vmatprep.subr.mxu0 0.0
  %1157 = vmatpush1.xpose.msra.mxu0 %v1060
  %1158 = vmatprep.subr.mxu0 0.0
  %1159 = vmatpush1.xpose.msra.mxu0 %v1058
  %1160 = vmatprep.subr.mxu0 0.0
  %1161 = vmatpush1.xpose.msra.mxu0 %v1056
  %1162 = vmatprep.subr.mxu0 0.0
  %1163 = vmatpush1.xpose.msra.mxu0 %v1054
  %1164 = vmatprep.subr.mxu0 0.0
  %1165 = vmatpush1.xpose.msra.mxu0 %v1052
  %1166 = vmatprep.subr.mxu0 0.0
  %1167 = vmatpush1.xpose.msra.mxu0 %v1050
  %1168 = vmatprep.subr.mxu0 0.0
  %1169 = vmatpush1.xpose.msra.mxu0 %v1048
  %1170 = vmatprep.subr.mxu0 0.0
  %1171 = vmatpush1.xpose.msra.mxu0 %v1046
  %1172 = vmatprep.subr.mxu0 0.0
  %1173 = vmatpush1.xpose.msra.mxu0 %v1044
  %1174 = vmatprep.subr.mxu0 0.0
  %1175 = vmatpush2.xpose.msra.mxu0 %v1106
  %1176 = vmatprep.subr.mxu0 0.0
  %1177 = vmatpush2.xpose.msra.mxu0 %v1104
  %1178 = vmatprep.subr.mxu0 0.0
  %1179 = vmatpush2.xpose.msra.mxu0 %v1102
  %1180 = vmatprep.subr.mxu0 0.0
  %1181 = vmatpush2.xpose.msra.mxu0 %v1100
  %1182 = vmatprep.subr.mxu0 0.0
  %1183 = vmatpush2.xpose.msra.mxu0 %v1098
  %1184 = vmatprep.subr.mxu0 0.0
  %1185 = vmatpush2.xpose.msra.mxu0 %v1096
  %1186 = vmatprep.subr.mxu0 0.0
  %1187 = vmatpush2.xpose.msra.mxu0 %v1094
  %1188 = vmatprep.subr.mxu0 0.0
  %1189 = vmatpush2.xpose.msra.mxu0 %v1092
  %1190 = vmatprep.subr.mxu0 0.0
  %1191 = vmatpush2.xpose.msra.mxu0 %v1090
  %1192 = vmatprep.subr.mxu0 0.0
  %1193 = vmatpush2.xpose.msra.mxu0 %v1088
  %1194 = vmatprep.subr.mxu0 0.0
  %1195 = vmatpush2.xpose.msra.mxu0 %v1086
  %1196 = vmatprep.subr.mxu0 0.0
  %1197 = vmatpush2.xpose.msra.mxu0 %v1084
  %1198 = vmatprep.subr.mxu0 0.0
  %1199 = vmatpush2.xpose.msra.mxu0 %v1082
  %1200 = vmatprep.subr.mxu0 0.0
  %1201 = vmatpush2.xpose.msra.mxu0 %v1080
  %1202 = vmatprep.subr.mxu0 0.0
  %1203 = vmatpush2.xpose.msra.mxu0 %v1078
  %1204 = vmatprep.subr.mxu0 0.0
  %1205 = vmatpush2.xpose.msra.mxu0 %v1076
  %1206 = vmatprep.mubr.f32.mxu0 0.0
  %1207 = vmatmul.mubr.f32.gmra.mxu0 %v1042
  %v1208 = vpop.f32.mrf.mxu0
  %v1209 = vadd.f32 0.0, %v1208
  %v1210 = vpop.f32.mrf.mxu0
  %v1211 = vadd.f32 0.0, %v1210
  %1212 = vdwg.mxu0
  %1213 = vmatprep.subr.mxu0 0.0
  %1214 = vmatpush1.xpose.msra.mxu0 %v1138
  %1215 = vmatprep.subr.mxu0 0.0
  %1216 = vmatpush1.xpose.msra.mxu0 %v1136
  %1217 = vmatprep.subr.mxu0 0.0
  %1218 = vmatpush1.xpose.msra.mxu0 %v1134
  %1219 = vmatprep.subr.mxu0 0.0
  %1220 = vmatpush1.xpose.msra.mxu0 %v1132
  %1221 = vmatprep.subr.mxu0 0.0
  %1222 = vmatpush1.xpose.msra.mxu0 %v1130
  %1223 = vmatprep.subr.mxu0 0.0
  %1224 = vmatpush1.xpose.msra.mxu0 %v1128
  %1225 = vmatprep.subr.mxu0 0.0
  %1226 = vmatpush1.xpose.msra.mxu0 %v1126
  %1227 = vmatprep.subr.mxu0 0.0
  %1228 = vmatpush1.xpose.msra.mxu0 %v1124
  %1229 = vmatprep.subr.mxu0 0.0
  %1230 = vmatpush1.xpose.msra.mxu0 %v1122
  %1231 = vmatprep.subr.mxu0 0.0
  %1232 = vmatpush1.xpose.msra.mxu0 %v1120
  %1233 = vmatprep.subr.mxu0 0.0
  %1234 = vmatpush1.xpose.msra.mxu0 %v1118
  %1235 = vmatprep.subr.mxu0 0.0
  %1236 = vmatpush1.xpose.msra.mxu0 %v1116
  %1237 = vmatprep.subr.mxu0 0.0
  %1238 = vmatpush1.xpose.msra.mxu0 %v1114
  %1239 = vmatprep.subr.mxu0 0.0
  %1240 = vmatpush1.xpose.msra.mxu0 %v1112
  %1241 = vmatprep.subr.mxu0 0.0
  %1242 = vmatpush1.xpose.msra.mxu0 %v1110
  %1243 = vmatprep.subr.mxu0 0.0
  %1244 = vmatpush1.xpose.msra.mxu0 %v1108
  %1245 = vmatprep.subr.mxu0 0.0
  %1246 = vmatpush2.xpose.msra.mxu0 0.0
  %1247 = vmatprep.subr.mxu0 0.0
  %1248 = vmatpush2.xpose.msra.mxu0 0.0
  %1249 = vmatprep.subr.mxu0 0.0
  %1250 = vmatpush2.xpose.msra.mxu0 0.0
  %1251 = vmatprep.subr.mxu0 0.0
  %1252 = vmatpush2.xpose.msra.mxu0 0.0
  %1253 = vmatprep.subr.mxu0 0.0
  %1254 = vmatpush2.xpose.msra.mxu0 0.0
  %1255 = vmatprep.subr.mxu0 0.0
  %1256 = vmatpush2.xpose.msra.mxu0 0.0
  %1257 = vmatprep.subr.mxu0 0.0
  %1258 = vmatpush2.xpose.msra.mxu0 0.0
  %1259 = vmatprep.subr.mxu0 0.0
  %1260 = vmatpush2.xpose.msra.mxu0 0.0
  %1261 = vmatprep.subr.mxu0 0.0
  %1262 = vmatpush2.xpose.msra.mxu0 0.0
  %1263 = vmatprep.subr.mxu0 0.0
  %1264 = vmatpush2.xpose.msra.mxu0 0.0
  %1265 = vmatprep.subr.mxu0 0.0
  %1266 = vmatpush2.xpose.msra.mxu0 0.0
  %1267 = vmatprep.subr.mxu0 0.0
  %1268 = vmatpush2.xpose.msra.mxu0 0.0
  %1269 = vmatprep.subr.mxu0 0.0
  %1270 = vmatpush2.xpose.msra.mxu0 0.0
  %1271 = vmatprep.subr.mxu0 0.0
  %1272 = vmatpush2.xpose.msra.mxu0 0.0
  %1273 = vmatprep.subr.mxu0 0.0
  %1274 = vmatpush2.xpose.msra.mxu0 0.0
  %1275 = vmatprep.subr.mxu0 0.0
  %1276 = vmatpush2.xpose.msra.mxu0 %v1140
  %1277 = vmatprep.mubr.f32.mxu0 0.0
  %1278 = vmatmul.mubr.f32.gmra.mxu0 %v1042
  %v1279 = vpop.f32.mrf.mxu0
  %v1280 = vadd.f32 0.0, %v1279
  %v1281 = vpop.f32.mrf.mxu0
  %v1282 = vadd.f32 0.0, %v1281
  %1283 = vdwg.mxu0
  %v1284 = vsel %vm726, %v1209, -1e+30
  %v1285 = vsel %vm727, %v1211, -1e+30
  %v1286 = vsel %vm728, %v1280, -1e+30
  %v1287 = vsel %vm729, %v1282, -1e+30
  %1289 = vrot.lane.b32.xlu0 %v888, 64
  %v1290 = vpop.permute.xlu0 %1289
  %v1292 = vmul.f32 %v892, %v1290
  %v1293 = vsel %vm1040, %v1292, 0.0
  %1294 = vadd.xlane.f32.xlu0 %v1293
  %v1295 = vpop.xlane.xlu0 %1294
  %v1296 = vsel %vm746, %v1287, -inf
  %v1297 = vmax.f32 %v1284, %v1285
  %v1298 = vmax.f32 %v1286, %v1296
  %v1299 = vmax.f32 %v1297, %v1298
  %1300 = vmax.xlane.f32.xlu0 %v1299
  %v1301 = vpop.xlane.xlu0 %1300
  %v1302 = vmax.f32 %v1301, %v1295
  %v1303 = vsub.f32 %v1295, %v1302
  %v1304 = vmul.f32 %v1303, 1.442695
  %v1305 = vpow.pop %v1304
  %v1306 = vsub.f32 %v1284, %v1302
  %v1307 = vsub.f32 %v1285, %v1302
  %v1308 = vsub.f32 %v1286, %v1302
  %v1309 = vsub.f32 %v1287, %v1302
  %v1310 = vmul.f32 %v1306, 1.442695
  %v1311 = vpow.pop %v1310
  %v1312 = vmul.f32 %v1307, 1.442695
  %v1313 = vpow.pop %v1312
  %v1314 = vmul.f32 %v1308, 1.442695
  %v1315 = vpow.pop %v1314
  %v1316 = vmul.f32 %v1309, 1.442695
  %v1317 = vpow.pop %v1316
  %v1318 = vadd.f32 %v1311, %v1313
  %v1319 = vadd.f32 %v1318, %v1315
  %v1320 = vsel %vm746, %v1317, 0.0
  %v1321 = vadd.f32 %v1319, %v1320
  %1322 = vadd.xlane.f32.xlu0 %v1321
  %v1323 = vpop.xlane.xlu0 %1322
  %v1324 = vadd.f32 %v1305, %v1323
  %v1326 = vsel %vm746, %v1317, 0
  %1328 = vmatprep.subr.mxu0 0.0
  %1329 = vmatpush1.msra.mxu0 %v508
  %1330 = vmatprep.subr.mxu0 0.0
  %1331 = vmatpush1.msra.mxu0 %v502
  %1332 = vmatprep.subr.mxu0 0.0
  %1333 = vmatpush1.msra.mxu0 %v496
  %1334 = vmatprep.subr.mxu0 0.0
  %1335 = vmatpush1.msra.mxu0 %v490
  %1336 = vmatprep.subr.mxu0 0.0
  %1337 = vmatpush1.msra.mxu0 %v484
  %1338 = vmatprep.subr.mxu0 0.0
  %1339 = vmatpush1.msra.mxu0 %v478
  %1340 = vmatprep.subr.mxu0 0.0
  %1341 = vmatpush1.msra.mxu0 %v472
  %1342 = vmatprep.subr.mxu0 0.0
  %1343 = vmatpush1.msra.mxu0 %v466
  %1344 = vmatprep.subr.mxu0 0.0
  %1345 = vmatpush1.msra.mxu0 %v460
  %1346 = vmatprep.subr.mxu0 0.0
  %1347 = vmatpush1.msra.mxu0 %v454
  %1348 = vmatprep.subr.mxu0 0.0
  %1349 = vmatpush1.msra.mxu0 %v448
  %1350 = vmatprep.subr.mxu0 0.0
  %1351 = vmatpush1.msra.mxu0 %v442
  %1352 = vmatprep.subr.mxu0 0.0
  %1353 = vmatpush1.msra.mxu0 %v436
  %1354 = vmatprep.subr.mxu0 0.0
  %1355 = vmatpush1.msra.mxu0 %v430
  %1356 = vmatprep.subr.mxu0 0.0
  %1357 = vmatpush1.msra.mxu0 %v424
  %1358 = vmatprep.subr.mxu0 0.0
  %1359 = vmatpush1.msra.mxu0 %v418
  %1360 = vmatprep.subr.mxu0 0.0
  %1361 = vmatpush2.msra.mxu0 %v604
  %1362 = vmatprep.subr.mxu0 0.0
  %1363 = vmatpush2.msra.mxu0 %v598
  %1364 = vmatprep.subr.mxu0 0.0
  %1365 = vmatpush2.msra.mxu0 %v592
  %1366 = vmatprep.subr.mxu0 0.0
  %1367 = vmatpush2.msra.mxu0 %v586
  %1368 = vmatprep.subr.mxu0 0.0
  %1369 = vmatpush2.msra.mxu0 %v580
  %1370 = vmatprep.subr.mxu0 0.0
  %1371 = vmatpush2.msra.mxu0 %v574
  %1372 = vmatprep.subr.mxu0 0.0
  %1373 = vmatpush2.msra.mxu0 %v568
  %1374 = vmatprep.subr.mxu0 0.0
  %1375 = vmatpush2.msra.mxu0 %v562
  %1376 = vmatprep.subr.mxu0 0.0
  %1377 = vmatpush2.msra.mxu0 %v556
  %1378 = vmatprep.subr.mxu0 0.0
  %1379 = vmatpush2.msra.mxu0 %v550
  %1380 = vmatprep.subr.mxu0 0.0
  %1381 = vmatpush2.msra.mxu0 %v544
  %1382 = vmatprep.subr.mxu0 0.0
  %1383 = vmatpush2.msra.mxu0 %v538
  %1384 = vmatprep.subr.mxu0 0.0
  %1385 = vmatpush2.msra.mxu0 %v532
  %1386 = vmatprep.subr.mxu0 0.0
  %1387 = vmatpush2.msra.mxu0 %v526
  %1388 = vmatprep.subr.mxu0 0.0
  %1389 = vmatpush2.msra.mxu0 %v520
  %1390 = vmatprep.subr.mxu0 0.0
  %1391 = vmatpush2.msra.mxu0 %v514
  %1392 = vmatprep.mubr.f32.mxu0 %v1313
  %1393 = vmatmul.mubr.f32.gmra.mxu0 %v1311
  %v1394 = vpop.f32.mrf.mxu0
  %v1395 = vadd.f32 0.0, %v1394
  %v1396 = vpop.f32.mrf.mxu0
  %1397 = vdwg.mxu0
  %1398 = vmatprep.subr.mxu0 0.0
  %1399 = vmatpush1.msra.mxu0 %v700
  %1400 = vmatprep.subr.mxu0 0.0
  %1401 = vmatpush1.msra.mxu0 %v694
  %1402 = vmatprep.subr.mxu0 0.0
  %1403 = vmatpush1.msra.mxu0 %v688
  %1404 = vmatprep.subr.mxu0 0.0
  %1405 = vmatpush1.msra.mxu0 %v682
  %1406 = vmatprep.subr.mxu0 0.0
  %1407 = vmatpush1.msra.mxu0 %v676
  %1408 = vmatprep.subr.mxu0 0.0
  %1409 = vmatpush1.msra.mxu0 %v670
  %1410 = vmatprep.subr.mxu0 0.0
  %1411 = vmatpush1.msra.mxu0 %v664
  %1412 = vmatprep.subr.mxu0 0.0
  %1413 = vmatpush1.msra.mxu0 %v658
  %1414 = vmatprep.subr.mxu0 0.0
  %1415 = vmatpush1.msra.mxu0 %v652
  %1416 = vmatprep.subr.mxu0 0.0
  %1417 = vmatpush1.msra.mxu0 %v646
  %1418 = vmatprep.subr.mxu0 0.0
  %1419 = vmatpush1.msra.mxu0 %v640
  %1420 = vmatprep.subr.mxu0 0.0
  %1421 = vmatpush1.msra.mxu0 %v634
  %1422 = vmatprep.subr.mxu0 0.0
  %1423 = vmatpush1.msra.mxu0 %v628
  %1424 = vmatprep.subr.mxu0 0.0
  %1425 = vmatpush1.msra.mxu0 %v622
  %1426 = vmatprep.subr.mxu0 0.0
  %1427 = vmatpush1.msra.mxu0 %v616
  %1428 = vmatprep.subr.mxu0 0.0
  %1429 = vmatpush1.msra.mxu0 %v610
  %1430 = vmatprep.subr.mxu0 0.0
  %1431 = vmatpush2.msra.mxu0 0.0
  %1432 = vmatprep.subr.mxu0 0.0
  %1433 = vmatpush2.msra.mxu0 0.0
  %1434 = vmatprep.subr.mxu0 0.0
  %1435 = vmatpush2.msra.mxu0 0.0
  %1436 = vmatprep.subr.mxu0 0.0
  %1437 = vmatpush2.msra.mxu0 0.0
  %1438 = vmatprep.subr.mxu0 0.0
  %1439 = vmatpush2.msra.mxu0 0.0
  %1440 = vmatprep.subr.mxu0 0.0
  %1441 = vmatpush2.msra.mxu0 0.0
  %1442 = vmatprep.subr.mxu0 0.0
  %1443 = vmatpush2.msra.mxu0 0.0
  %1444 = vmatprep.subr.mxu0 0.0
  %1445 = vmatpush2.msra.mxu0 0.0
  %1446 = vmatprep.subr.mxu0 0.0
  %1447 = vmatpush2.msra.mxu0 0.0
  %1448 = vmatprep.subr.mxu0 0.0
  %1449 = vmatpush2.msra.mxu0 0.0
  %1450 = vmatprep.subr.mxu0 0.0
  %1451 = vmatpush2.msra.mxu0 0.0
  %1452 = vmatprep.subr.mxu0 0.0
  %1453 = vmatpush2.msra.mxu0 0.0
  %1454 = vmatprep.subr.mxu0 0.0
  %1455 = vmatpush2.msra.mxu0 0.0
  %1456 = vmatprep.subr.mxu0 0.0
  %1457 = vmatpush2.msra.mxu0 0.0
  %1458 = vmatprep.subr.mxu0 0.0
  %1459 = vmatpush2.msra.mxu0 0.0
  %1460 = vmatprep.subr.mxu0 0.0
  %1461 = vmatpush2.msra.mxu0 %v706
  %1462 = vmatprep.mubr.f32.mxu0 %v1326
  %1463 = vmatmul.mubr.f32.gmra.mxu0 %v1315
  %v1464 = vpop.f32.mrf.mxu0
  %v1465 = vadd.f32 %v1395, %v1464
  %v1466 = vpop.f32.mrf.mxu0
  %1467 = vdwg.mxu0
  %v1468 = vmul.f32 %v1305, %v890
  %v1469 = vadd.f32 %v1468, %v1465
  %v1470 = vrcp.pop %v1324
  %v1471 = vmul.f32 %v1469, %v1470
  %1472 = vst.msk [vmem:[#allocation2] sm:$0xff] %vm1040, %v1471
  %1473 = vrot.lane.b32.xlu0 %v892, 112
  %v1474 = vpop.permute.xlu0 %1473
  %1475 = vrot.lane.b32.xlu0 %v416, 48
  %v1476 = vpop.permute.xlu0 %1475
  %1477 = vrot.lane.b32.xlu0 %v422, 48
  %v1478 = vpop.permute.xlu0 %1477
  %1479 = vrot.lane.b32.xlu0 %v428, 48
  %v1480 = vpop.permute.xlu0 %1479
  %1481 = vrot.lane.b32.xlu0 %v434, 48
  %v1482 = vpop.permute.xlu0 %1481
  %1483 = vrot.lane.b32.xlu0 %v440, 48
  %v1484 = vpop.permute.xlu0 %1483
  %1485 = vrot.lane.b32.xlu0 %v446, 48
  %v1486 = vpop.permute.xlu0 %1485
  %1487 = vrot.lane.b32.xlu0 %v452, 48
  %v1488 = vpop.permute.xlu0 %1487
  %1489 = vrot.lane.b32.xlu0 %v458, 48
  %v1490 = vpop.permute.xlu0 %1489
  %1491 = vrot.lane.b32.xlu0 %v464, 48
  %v1492 = vpop.permute.xlu0 %1491
  %1493 = vrot.lane.b32.xlu0 %v470, 48
  %v1494 = vpop.permute.xlu0 %1493
  %1495 = vrot.lane.b32.xlu0 %v476, 48
  %v1496 = vpop.permute.xlu0 %1495
  %1497 = vrot.lane.b32.xlu0 %v482, 48
  %v1498 = vpop.permute.xlu0 %1497
  %1499 = vrot.lane.b32.xlu0 %v488, 48
  %v1500 = vpop.permute.xlu0 %1499
  %1501 = vrot.lane.b32.xlu0 %v494, 48
  %v1502 = vpop.permute.xlu0 %1501
  %1503 = vrot.lane.b32.xlu0 %v500, 48
  %v1504 = vpop.permute.xlu0 %1503
  %1505 = vrot.lane.b32.xlu0 %v506, 48
  %v1506 = vpop.permute.xlu0 %1505
  %1507 = vrot.lane.b32.xlu0 %v512, 48
  %v1508 = vpop.permute.xlu0 %1507
  %1509 = vrot.lane.b32.xlu0 %v518, 48
  %v1510 = vpop.permute.xlu0 %1509
  %1511 = vrot.lane.b32.xlu0 %v524, 48
  %v1512 = vpop.permute.xlu0 %1511
  %1513 = vrot.lane.b32.xlu0 %v530, 48
  %v1514 = vpop.permute.xlu0 %1513
  %1515 = vrot.lane.b32.xlu0 %v536, 48
  %v1516 = vpop.permute.xlu0 %1515
  %1517 = vrot.lane.b32.xlu0 %v542, 48
  %v1518 = vpop.permute.xlu0 %1517
  %1519 = vrot.lane.b32.xlu0 %v548, 48
  %v1520 = vpop.permute.xlu0 %1519
  %1521 = vrot.lane.b32.xlu0 %v554, 48
  %v1522 = vpop.permute.xlu0 %1521
  %1523 = vrot.lane.b32.xlu0 %v560, 48
  %v1524 = vpop.permute.xlu0 %1523
  %1525 = vrot.lane.b32.xlu0 %v566, 48
  %v1526 = vpop.permute.xlu0 %1525
  %1527 = vrot.lane.b32.xlu0 %v572, 48
  %v1528 = vpop.permute.xlu0 %1527
  %1529 = vrot.lane.b32.xlu0 %v578, 48
  %v1530 = vpop.permute.xlu0 %1529
  %1531 = vrot.lane.b32.xlu0 %v584, 48
  %v1532 = vpop.permute.xlu0 %1531
  %1533 = vrot.lane.b32.xlu0 %v590, 48
  %v1534 = vpop.permute.xlu0 %1533
  %1535 = vrot.lane.b32.xlu0 %v596, 48
  %v1536 = vpop.permute.xlu0 %1535
  %1537 = vrot.lane.b32.xlu0 %v602, 48
  %v1538 = vpop.permute.xlu0 %1537
  %1539 = vrot.lane.b32.xlu0 %v608, 48
  %v1540 = vpop.permute.xlu0 %1539
  %1541 = vrot.lane.b32.xlu0 %v614, 48
  %v1542 = vpop.permute.xlu0 %1541
  %1543 = vrot.lane.b32.xlu0 %v620, 48
  %v1544 = vpop.permute.xlu0 %1543
  %1545 = vrot.lane.b32.xlu0 %v626, 48
  %v1546 = vpop.permute.xlu0 %1545
  %1547 = vrot.lane.b32.xlu0 %v632, 48
  %v1548 = vpop.permute.xlu0 %1547
  %1549 = vrot.lane.b32.xlu0 %v638, 48
  %v1550 = vpop.permute.xlu0 %1549
  %1551 = vrot.lane.b32.xlu0 %v644, 48
  %v1552 = vpop.permute.xlu0 %1551
  %1553 = vrot.lane.b32.xlu0 %v650, 48
  %v1554 = vpop.permute.xlu0 %1553
  %1555 = vrot.lane.b32.xlu0 %v656, 48
  %v1556 = vpop.permute.xlu0 %1555
  %1557 = vrot.lane.b32.xlu0 %v662, 48
  %v1558 = vpop.permute.xlu0 %1557
  %1559 = vrot.lane.b32.xlu0 %v668, 48
  %v1560 = vpop.permute.xlu0 %1559
  %1561 = vrot.lane.b32.xlu0 %v674, 48
  %v1562 = vpop.permute.xlu0 %1561
  %1563 = vrot.lane.b32.xlu0 %v680, 48
  %v1564 = vpop.permute.xlu0 %1563
  %1565 = vrot.lane.b32.xlu0 %v686, 48
  %v1566 = vpop.permute.xlu0 %1565
  %1567 = vrot.lane.b32.xlu0 %v692, 48
  %v1568 = vpop.permute.xlu0 %1567
  %1569 = vrot.lane.b32.xlu0 %v698, 48
  %v1570 = vpop.permute.xlu0 %1569
  %1571 = vrot.lane.b32.xlu0 %v704, 48
  %v1572 = vpop.permute.xlu0 %1571
  %v1573 = vsel %vm1040, %v1474, 0
  %v1575 = vsel %vm1040, %v1476, 0
  %v1577 = vsel %vm1040, %v1478, 0
  %v1579 = vsel %vm1040, %v1480, 0
  %v1581 = vsel %vm1040, %v1482, 0
  %v1583 = vsel %vm1040, %v1484, 0
  %v1585 = vsel %vm1040, %v1486, 0
  %v1587 = vsel %vm1040, %v1488, 0
  %v1589 = vsel %vm1040, %v1490, 0
  %v1591 = vsel %vm1040, %v1492, 0
  %v1593 = vsel %vm1040, %v1494, 0
  %v1595 = vsel %vm1040, %v1496, 0
  %v1597 = vsel %vm1040, %v1498, 0
  %v1599 = vsel %vm1040, %v1500, 0
  %v1601 = vsel %vm1040, %v1502, 0
  %v1603 = vsel %vm1040, %v1504, 0
  %v1605 = vsel %vm1040, %v1506, 0
  %v1607 = vsel %vm1040, %v1508, 0
  %v1609 = vsel %vm1040, %v1510, 0
  %v1611 = vsel %vm1040, %v1512, 0
  %v1613 = vsel %vm1040, %v1514, 0
  %v1615 = vsel %vm1040, %v1516, 0
  %v1617 = vsel %vm1040, %v1518, 0
  %v1619 = vsel %vm1040, %v1520, 0
  %v1621 = vsel %vm1040, %v1522, 0
  %v1623 = vsel %vm1040, %v1524, 0
  %v1625 = vsel %vm1040, %v1526, 0
  %v1627 = vsel %vm1040, %v1528, 0
  %v1629 = vsel %vm1040, %v1530, 0
  %v1631 = vsel %vm1040, %v1532, 0
  %v1633 = vsel %vm1040, %v1534, 0
  %v1635 = vsel %vm1040, %v1536, 0
  %v1637 = vsel %vm1040, %v1538, 0
  %v1639 = vsel %vm1040, %v1540, 0
  %v1641 = vsel %vm1040, %v1542, 0
  %v1643 = vsel %vm1040, %v1544, 0
  %v1645 = vsel %vm1040, %v1546, 0
  %v1647 = vsel %vm1040, %v1548, 0
  %v1649 = vsel %vm1040, %v1550, 0
  %v1651 = vsel %vm1040, %v1552, 0
  %v1653 = vsel %vm1040, %v1554, 0
  %v1655 = vsel %vm1040, %v1556, 0
  %v1657 = vsel %vm1040, %v1558, 0
  %v1659 = vsel %vm1040, %v1560, 0
  %v1661 = vsel %vm1040, %v1562, 0
  %v1663 = vsel %vm1040, %v1564, 0
  %v1665 = vsel %vm1040, %v1566, 0
  %v1667 = vsel %vm1040, %v1568, 0
  %v1669 = vsel %vm1040, %v1570, 0
  %v1671 = vsel %vm1040, %v1572, 0
  %1673 = vmatprep.subr.mxu0 0.0
  %1674 = vmatpush1.xpose.msra.mxu0 %v1605
  %1675 = vmatprep.subr.mxu0 0.0
  %1676 = vmatpush1.xpose.msra.mxu0 %v1603
  %1677 = vmatprep.subr.mxu0 0.0
  %1678 = vmatpush1.xpose.msra.mxu0 %v1601
  %1679 = vmatprep.subr.mxu0 0.0
  %1680 = vmatpush1.xpose.msra.mxu0 %v1599
  %1681 = vmatprep.subr.mxu0 0.0
  %1682 = vmatpush1.xpose.msra.mxu0 %v1597
  %1683 = vmatprep.subr.mxu0 0.0
  %1684 = vmatpush1.xpose.msra.mxu0 %v1595
  %1685 = vmatprep.subr.mxu0 0.0
  %1686 = vmatpush1.xpose.msra.mxu0 %v1593
  %1687 = vmatprep.subr.mxu0 0.0
  %1688 = vmatpush1.xpose.msra.mxu0 %v1591
  %1689 = vmatprep.subr.mxu0 0.0
  %1690 = vmatpush1.xpose.msra.mxu0 %v1589
  %1691 = vmatprep.subr.mxu0 0.0
  %1692 = vmatpush1.xpose.msra.mxu0 %v1587
  %1693 = vmatprep.subr.mxu0 0.0
  %1694 = vmatpush1.xpose.msra.mxu0 %v1585
  %1695 = vmatprep.subr.mxu0 0.0
  %1696 = vmatpush1.xpose.msra.mxu0 %v1583
  %1697 = vmatprep.subr.mxu0 0.0
  %1698 = vmatpush1.xpose.msra.mxu0 %v1581
  %1699 = vmatprep.subr.mxu0 0.0
  %1700 = vmatpush1.xpose.msra.mxu0 %v1579
  %1701 = vmatprep.subr.mxu0 0.0
  %1702 = vmatpush1.xpose.msra.mxu0 %v1577
  %1703 = vmatprep.subr.mxu0 0.0
  %1704 = vmatpush1.xpose.msra.mxu0 %v1575
  %1705 = vmatprep.subr.mxu0 0.0
  %1706 = vmatpush2.xpose.msra.mxu0 %v1637
  %1707 = vmatprep.subr.mxu0 0.0
  %1708 = vmatpush2.xpose.msra.mxu0 %v1635
  %1709 = vmatprep.subr.mxu0 0.0
  %1710 = vmatpush2.xpose.msra.mxu0 %v1633
  %1711 = vmatprep.subr.mxu0 0.0
  %1712 = vmatpush2.xpose.msra.mxu0 %v1631
  %1713 = vmatprep.subr.mxu0 0.0
  %1714 = vmatpush2.xpose.msra.mxu0 %v1629
  %1715 = vmatprep.subr.mxu0 0.0
  %1716 = vmatpush2.xpose.msra.mxu0 %v1627
  %1717 = vmatprep.subr.mxu0 0.0
  %1718 = vmatpush2.xpose.msra.mxu0 %v1625
  %1719 = vmatprep.subr.mxu0 0.0
  %1720 = vmatpush2.xpose.msra.mxu0 %v1623
  %1721 = vmatprep.subr.mxu0 0.0
  %1722 = vmatpush2.xpose.msra.mxu0 %v1621
  %1723 = vmatprep.subr.mxu0 0.0
  %1724 = vmatpush2.xpose.msra.mxu0 %v1619
  %1725 = vmatprep.subr.mxu0 0.0
  %1726 = vmatpush2.xpose.msra.mxu0 %v1617
  %1727 = vmatprep.subr.mxu0 0.0
  %1728 = vmatpush2.xpose.msra.mxu0 %v1615
  %1729 = vmatprep.subr.mxu0 0.0
  %1730 = vmatpush2.xpose.msra.mxu0 %v1613
  %1731 = vmatprep.subr.mxu0 0.0
  %1732 = vmatpush2.xpose.msra.mxu0 %v1611
  %1733 = vmatprep.subr.mxu0 0.0
  %1734 = vmatpush2.xpose.msra.mxu0 %v1609
  %1735 = vmatprep.subr.mxu0 0.0
  %1736 = vmatpush2.xpose.msra.mxu0 %v1607
  %1737 = vmatprep.mubr.f32.mxu0 0.0
  %1738 = vmatmul.mubr.f32.gmra.mxu0 %v1573
  %v1739 = vpop.f32.mrf.mxu0
  %v1740 = vadd.f32 0.0, %v1739
  %v1741 = vpop.f32.mrf.mxu0
  %v1742 = vadd.f32 0.0, %v1741
  %1743 = vdwg.mxu0
  %1744 = vmatprep.subr.mxu0 0.0
  %1745 = vmatpush1.xpose.msra.mxu0 %v1669
  %1746 = vmatprep.subr.mxu0 0.0
  %1747 = vmatpush1.xpose.msra.mxu0 %v1667
  %1748 = vmatprep.subr.mxu0 0.0
  %1749 = vmatpush1.xpose.msra.mxu0 %v1665
  %1750 = vmatprep.subr.mxu0 0.0
  %1751 = vmatpush1.xpose.msra.mxu0 %v1663
  %1752 = vmatprep.subr.mxu0 0.0
  %1753 = vmatpush1.xpose.msra.mxu0 %v1661
  %1754 = vmatprep.subr.mxu0 0.0
  %1755 = vmatpush1.xpose.msra.mxu0 %v1659
  %1756 = vmatprep.subr.mxu0 0.0
  %1757 = vmatpush1.xpose.msra.mxu0 %v1657
  %1758 = vmatprep.subr.mxu0 0.0
  %1759 = vmatpush1.xpose.msra.mxu0 %v1655
  %1760 = vmatprep.subr.mxu0 0.0
  %1761 = vmatpush1.xpose.msra.mxu0 %v1653
  %1762 = vmatprep.subr.mxu0 0.0
  %1763 = vmatpush1.xpose.msra.mxu0 %v1651
  %1764 = vmatprep.subr.mxu0 0.0
  %1765 = vmatpush1.xpose.msra.mxu0 %v1649
  %1766 = vmatprep.subr.mxu0 0.0
  %1767 = vmatpush1.xpose.msra.mxu0 %v1647
  %1768 = vmatprep.subr.mxu0 0.0
  %1769 = vmatpush1.xpose.msra.mxu0 %v1645
  %1770 = vmatprep.subr.mxu0 0.0
  %1771 = vmatpush1.xpose.msra.mxu0 %v1643
  %1772 = vmatprep.subr.mxu0 0.0
  %1773 = vmatpush1.xpose.msra.mxu0 %v1641
  %1774 = vmatprep.subr.mxu0 0.0
  %1775 = vmatpush1.xpose.msra.mxu0 %v1639
  %1776 = vmatprep.subr.mxu0 0.0
  %1777 = vmatpush2.xpose.msra.mxu0 0.0
  %1778 = vmatprep.subr.mxu0 0.0
  %1779 = vmatpush2.xpose.msra.mxu0 0.0
  %1780 = vmatprep.subr.mxu0 0.0
  %1781 = vmatpush2.xpose.msra.mxu0 0.0
  %1782 = vmatprep.subr.mxu0 0.0
  %1783 = vmatpush2.xpose.msra.mxu0 0.0
  %1784 = vmatprep.subr.mxu0 0.0
  %1785 = vmatpush2.xpose.msra.mxu0 0.0
  %1786 = vmatprep.subr.mxu0 0.0
  %1787 = vmatpush2.xpose.msra.mxu0 0.0
  %1788 = vmatprep.subr.mxu0 0.0
  %1789 = vmatpush2.xpose.msra.mxu0 0.0
  %1790 = vmatprep.subr.mxu0 0.0
  %1791 = vmatpush2.xpose.msra.mxu0 0.0
  %1792 = vmatprep.subr.mxu0 0.0
  %1793 = vmatpush2.xpose.msra.mxu0 0.0
  %1794 = vmatprep.subr.mxu0 0.0
  %1795 = vmatpush2.xpose.msra.mxu0 0.0
  %1796 = vmatprep.subr.mxu0 0.0
  %1797 = vmatpush2.xpose.msra.mxu0 0.0
  %1798 = vmatprep.subr.mxu0 0.0
  %1799 = vmatpush2.xpose.msra.mxu0 0.0
  %1800 = vmatprep.subr.mxu0 0.0
  %1801 = vmatpush2.xpose.msra.mxu0 0.0
  %1802 = vmatprep.subr.mxu0 0.0
  %1803 = vmatpush2.xpose.msra.mxu0 0.0
  %1804 = vmatprep.subr.mxu0 0.0
  %1805 = vmatpush2.xpose.msra.mxu0 0.0
  %1806 = vmatprep.subr.mxu0 0.0
  %1807 = vmatpush2.xpose.msra.mxu0 %v1671
  %1808 = vmatprep.mubr.f32.mxu0 0.0
  %1809 = vmatmul.mubr.f32.gmra.mxu0 %v1573
  %v1810 = vpop.f32.mrf.mxu0
  %v1811 = vadd.f32 0.0, %v1810
  %v1812 = vpop.f32.mrf.mxu0
  %v1813 = vadd.f32 0.0, %v1812
  %1814 = vdwg.mxu0
  %v1815 = vsel %vm726, %v1740, -1e+30
  %v1816 = vsel %vm727, %v1742, -1e+30
  %v1817 = vsel %vm728, %v1811, -1e+30
  %v1818 = vsel %vm729, %v1813, -1e+30
  %1820 = vrot.lane.b32.xlu0 %v1292, 112
  %v1821 = vpop.permute.xlu0 %1820
  %v1823 = vsel %vm1040, %v1821, 0.0
  %1824 = vadd.xlane.f32.xlu0 %v1823
  %v1825 = vpop.xlane.xlu0 %1824
  %v1826 = vsel %vm746, %v1818, -inf
  %v1827 = vmax.f32 %v1815, %v1816
  %v1828 = vmax.f32 %v1817, %v1826
  %v1829 = vmax.f32 %v1827, %v1828
  %1830 = vmax.xlane.f32.xlu0 %v1829
  %v1831 = vpop.xlane.xlu0 %1830
  %v1832 = vmax.f32 %v1831, %v1825
  %v1833 = vsub.f32 %v1825, %v1832
  %v1834 = vmul.f32 %v1833, 1.442695
  %v1835 = vpow.pop %v1834
  %v1836 = vsub.f32 %v1815, %v1832
  %v1837 = vsub.f32 %v1816, %v1832
  %v1838 = vsub.f32 %v1817, %v1832
  %v1839 = vsub.f32 %v1818, %v1832
  %v1840 = vmul.f32 %v1836, 1.442695
  %v1841 = vpow.pop %v1840
  %v1842 = vmul.f32 %v1837, 1.442695
  %v1843 = vpow.pop %v1842
  %v1844 = vmul.f32 %v1838, 1.442695
  %v1845 = vpow.pop %v1844
  %v1846 = vmul.f32 %v1839, 1.442695
  %v1847 = vpow.pop %v1846
  %v1848 = vadd.f32 %v1841, %v1843
  %v1849 = vadd.f32 %v1848, %v1845
  %v1850 = vsel %vm746, %v1847, 0.0
  %v1851 = vadd.f32 %v1849, %v1850
  %1852 = vadd.xlane.f32.xlu0 %v1851
  %v1853 = vpop.xlane.xlu0 %1852
  %v1854 = vadd.f32 %v1835, %v1853
  %1904 = vrot.lane.b32.xlu0 %v418, 112
  %v1905 = vpop.permute.xlu0 %1904
  %1906 = vrot.lane.b32.xlu0 %v424, 112
  %v1907 = vpop.permute.xlu0 %1906
  %1908 = vrot.lane.b32.xlu0 %v430, 112
  %v1909 = vpop.permute.xlu0 %1908
  %1910 = vrot.lane.b32.xlu0 %v436, 112
  %v1911 = vpop.permute.xlu0 %1910
  %1912 = vrot.lane.b32.xlu0 %v442, 112
  %v1913 = vpop.permute.xlu0 %1912
  %1914 = vrot.lane.b32.xlu0 %v448, 112
  %v1915 = vpop.permute.xlu0 %1914
  %1916 = vrot.lane.b32.xlu0 %v454, 112
  %v1917 = vpop.permute.xlu0 %1916
  %1918 = vrot.lane.b32.xlu0 %v460, 112
  %v1919 = vpop.permute.xlu0 %1918
  %1920 = vrot.lane.b32.xlu0 %v466, 112
  %v1921 = vpop.permute.xlu0 %1920
  %1922 = vrot.lane.b32.xlu0 %v472, 112
  %v1923 = vpop.permute.xlu0 %1922
  %1924 = vrot.lane.b32.xlu0 %v478, 112
  %v1925 = vpop.permute.xlu0 %1924
  %1926 = vrot.lane.b32.xlu0 %v484, 112
  %v1927 = vpop.permute.xlu0 %1926
  %1928 = vrot.lane.b32.xlu0 %v490, 112
  %v1929 = vpop.permute.xlu0 %1928
  %1930 = vrot.lane.b32.xlu0 %v496, 112
  %v1931 = vpop.permute.xlu0 %1930
  %1932 = vrot.lane.b32.xlu0 %v502, 112
  %v1933 = vpop.permute.xlu0 %1932
  %1934 = vrot.lane.b32.xlu0 %v508, 112
  %v1935 = vpop.permute.xlu0 %1934
  %1936 = vrot.lane.b32.xlu0 %v514, 112
  %v1937 = vpop.permute.xlu0 %1936
  %1938 = vrot.lane.b32.xlu0 %v520, 112
  %v1939 = vpop.permute.xlu0 %1938
  %1940 = vrot.lane.b32.xlu0 %v526, 112
  %v1941 = vpop.permute.xlu0 %1940
  %1942 = vrot.lane.b32.xlu0 %v532, 112
  %v1943 = vpop.permute.xlu0 %1942
  %1944 = vrot.lane.b32.xlu0 %v538, 112
  %v1945 = vpop.permute.xlu0 %1944
  %1946 = vrot.lane.b32.xlu0 %v544, 112
  %v1947 = vpop.permute.xlu0 %1946
  %1948 = vrot.lane.b32.xlu0 %v550, 112
  %v1949 = vpop.permute.xlu0 %1948
  %1950 = vrot.lane.b32.xlu0 %v556, 112
  %v1951 = vpop.permute.xlu0 %1950
  %1952 = vrot.lane.b32.xlu0 %v562, 112
  %v1953 = vpop.permute.xlu0 %1952
  %1954 = vrot.lane.b32.xlu0 %v568, 112
  %v1955 = vpop.permute.xlu0 %1954
  %1956 = vrot.lane.b32.xlu0 %v574, 112
  %v1957 = vpop.permute.xlu0 %1956
  %1958 = vrot.lane.b32.xlu0 %v580, 112
  %v1959 = vpop.permute.xlu0 %1958
  %1960 = vrot.lane.b32.xlu0 %v586, 112
  %v1961 = vpop.permute.xlu0 %1960
  %1962 = vrot.lane.b32.xlu0 %v592, 112
  %v1963 = vpop.permute.xlu0 %1962
  %1964 = vrot.lane.b32.xlu0 %v598, 112
  %v1965 = vpop.permute.xlu0 %1964
  %1966 = vrot.lane.b32.xlu0 %v604, 112
  %v1967 = vpop.permute.xlu0 %1966
  %1968 = vrot.lane.b32.xlu0 %v610, 112
  %v1969 = vpop.permute.xlu0 %1968
  %1970 = vrot.lane.b32.xlu0 %v616, 112
  %v1971 = vpop.permute.xlu0 %1970
  %1972 = vrot.lane.b32.xlu0 %v622, 112
  %v1973 = vpop.permute.xlu0 %1972
  %1974 = vrot.lane.b32.xlu0 %v628, 112
  %v1975 = vpop.permute.xlu0 %1974
  %1976 = vrot.lane.b32.xlu0 %v634, 112
  %v1977 = vpop.permute.xlu0 %1976
  %1978 = vrot.lane.b32.xlu0 %v640, 112
  %v1979 = vpop.permute.xlu0 %1978
  %1980 = vrot.lane.b32.xlu0 %v646, 112
  %v1981 = vpop.permute.xlu0 %1980
  %1982 = vrot.lane.b32.xlu0 %v652, 112
  %v1983 = vpop.permute.xlu0 %1982
  %1984 = vrot.lane.b32.xlu0 %v658, 112
  %v1985 = vpop.permute.xlu0 %1984
  %1986 = vrot.lane.b32.xlu0 %v664, 112
  %v1987 = vpop.permute.xlu0 %1986
  %1988 = vrot.lane.b32.xlu0 %v670, 112
  %v1989 = vpop.permute.xlu0 %1988
  %1990 = vrot.lane.b32.xlu0 %v676, 112
  %v1991 = vpop.permute.xlu0 %1990
  %1992 = vrot.lane.b32.xlu0 %v682, 112
  %v1993 = vpop.permute.xlu0 %1992
  %1994 = vrot.lane.b32.xlu0 %v688, 112
  %v1995 = vpop.permute.xlu0 %1994
  %1996 = vrot.lane.b32.xlu0 %v694, 112
  %v1997 = vpop.permute.xlu0 %1996
  %1998 = vrot.lane.b32.xlu0 %v700, 112
  %v1999 = vpop.permute.xlu0 %1998
  %2000 = vrot.lane.b32.xlu0 %v706, 112
  %v2001 = vpop.permute.xlu0 %2000
  %v2052 = vsel %vm746, %v1847, 0
  %2054 = vmatprep.subr.mxu0 0.0
  %2055 = vmatpush1.msra.mxu0 %v1935
  %2056 = vmatprep.subr.mxu0 0.0
  %2057 = vmatpush1.msra.mxu0 %v1933
  %2058 = vmatprep.subr.mxu0 0.0
  %2059 = vmatpush1.msra.mxu0 %v1931
  %2060 = vmatprep.subr.mxu0 0.0
  %2061 = vmatpush1.msra.mxu0 %v1929
  %2062 = vmatprep.subr.mxu0 0.0
  %2063 = vmatpush1.msra.mxu0 %v1927
  %2064 = vmatprep.subr.mxu0 0.0
  %2065 = vmatpush1.msra.mxu0 %v1925
  %2066 = vmatprep.subr.mxu0 0.0
  %2067 = vmatpush1.msra.mxu0 %v1923
  %2068 = vmatprep.subr.mxu0 0.0
  %2069 = vmatpush1.msra.mxu0 %v1921
  %2070 = vmatprep.subr.mxu0 0.0
  %2071 = vmatpush1.msra.mxu0 %v1919
  %2072 = vmatprep.subr.mxu0 0.0
  %2073 = vmatpush1.msra.mxu0 %v1917
  %2074 = vmatprep.subr.mxu0 0.0
  %2075 = vmatpush1.msra.mxu0 %v1915
  %2076 = vmatprep.subr.mxu0 0.0
  %2077 = vmatpush1.msra.mxu0 %v1913
  %2078 = vmatprep.subr.mxu0 0.0
  %2079 = vmatpush1.msra.mxu0 %v1911
  %2080 = vmatprep.subr.mxu0 0.0
  %2081 = vmatpush1.msra.mxu0 %v1909
  %2082 = vmatprep.subr.mxu0 0.0
  %2083 = vmatpush1.msra.mxu0 %v1907
  %2084 = vmatprep.subr.mxu0 0.0
  %2085 = vmatpush1.msra.mxu0 %v1905
  %2086 = vmatprep.subr.mxu0 0.0
  %2087 = vmatpush2.msra.mxu0 %v1967
  %2088 = vmatprep.subr.mxu0 0.0
  %2089 = vmatpush2.msra.mxu0 %v1965
  %2090 = vmatprep.subr.mxu0 0.0
  %2091 = vmatpush2.msra.mxu0 %v1963
  %2092 = vmatprep.subr.mxu0 0.0
  %2093 = vmatpush2.msra.mxu0 %v1961
  %2094 = vmatprep.subr.mxu0 0.0
  %2095 = vmatpush2.msra.mxu0 %v1959
  %2096 = vmatprep.subr.mxu0 0.0
  %2097 = vmatpush2.msra.mxu0 %v1957
  %2098 = vmatprep.subr.mxu0 0.0
  %2099 = vmatpush2.msra.mxu0 %v1955
  %2100 = vmatprep.subr.mxu0 0.0
  %2101 = vmatpush2.msra.mxu0 %v1953
  %2102 = vmatprep.subr.mxu0 0.0
  %2103 = vmatpush2.msra.mxu0 %v1951
  %2104 = vmatprep.subr.mxu0 0.0
  %2105 = vmatpush2.msra.mxu0 %v1949
  %2106 = vmatprep.subr.mxu0 0.0
  %2107 = vmatpush2.msra.mxu0 %v1947
  %2108 = vmatprep.subr.mxu0 0.0
  %2109 = vmatpush2.msra.mxu0 %v1945
  %2110 = vmatprep.subr.mxu0 0.0
  %2111 = vmatpush2.msra.mxu0 %v1943
  %2112 = vmatprep.subr.mxu0 0.0
  %2113 = vmatpush2.msra.mxu0 %v1941
  %2114 = vmatprep.subr.mxu0 0.0
  %2115 = vmatpush2.msra.mxu0 %v1939
  %2116 = vmatprep.subr.mxu0 0.0
  %2117 = vmatpush2.msra.mxu0 %v1937
  %2118 = vmatprep.mubr.f32.mxu0 %v1843
  %2119 = vmatmul.mubr.f32.gmra.mxu0 %v1841
  %v2120 = vpop.f32.mrf.mxu0
  %v2121 = vadd.f32 0.0, %v2120
  %v2122 = vpop.f32.mrf.mxu0
  %2123 = vdwg.mxu0
  %2124 = vmatprep.subr.mxu0 0.0
  %2125 = vmatpush1.msra.mxu0 %v1999
  %2126 = vmatprep.subr.mxu0 0.0
  %2127 = vmatpush1.msra.mxu0 %v1997
  %2128 = vmatprep.subr.mxu0 0.0
  %2129 = vmatpush1.msra.mxu0 %v1995
  %2130 = vmatprep.subr.mxu0 0.0
  %2131 = vmatpush1.msra.mxu0 %v1993
  %2132 = vmatprep.subr.mxu0 0.0
  %2133 = vmatpush1.msra.mxu0 %v1991
  %2134 = vmatprep.subr.mxu0 0.0
  %2135 = vmatpush1.msra.mxu0 %v1989
  %2136 = vmatprep.subr.mxu0 0.0
  %2137 = vmatpush1.msra.mxu0 %v1987
  %2138 = vmatprep.subr.mxu0 0.0
  %2139 = vmatpush1.msra.mxu0 %v1985
  %2140 = vmatprep.subr.mxu0 0.0
  %2141 = vmatpush1.msra.mxu0 %v1983
  %2142 = vmatprep.subr.mxu0 0.0
  %2143 = vmatpush1.msra.mxu0 %v1981
  %2144 = vmatprep.subr.mxu0 0.0
  %2145 = vmatpush1.msra.mxu0 %v1979
  %2146 = vmatprep.subr.mxu0 0.0
  %2147 = vmatpush1.msra.mxu0 %v1977
  %2148 = vmatprep.subr.mxu0 0.0
  %2149 = vmatpush1.msra.mxu0 %v1975
  %2150 = vmatprep.subr.mxu0 0.0
  %2151 = vmatpush1.msra.mxu0 %v1973
  %2152 = vmatprep.subr.mxu0 0.0
  %2153 = vmatpush1.msra.mxu0 %v1971
  %2154 = vmatprep.subr.mxu0 0.0
  %2155 = vmatpush1.msra.mxu0 %v1969
  %2156 = vmatprep.subr.mxu0 0.0
  %2157 = vmatpush2.msra.mxu0 0.0
  %2158 = vmatprep.subr.mxu0 0.0
  %2159 = vmatpush2.msra.mxu0 0.0
  %2160 = vmatprep.subr.mxu0 0.0
  %2161 = vmatpush2.msra.mxu0 0.0
  %2162 = vmatprep.subr.mxu0 0.0
  %2163 = vmatpush2.msra.mxu0 0.0
  %2164 = vmatprep.subr.mxu0 0.0
  %2165 = vmatpush2.msra.mxu0 0.0
  %2166 = vmatprep.subr.mxu0 0.0
  %2167 = vmatpush2.msra.mxu0 0.0
  %2168 = vmatprep.subr.mxu0 0.0
  %2169 = vmatpush2.msra.mxu0 0.0
  %2170 = vmatprep.subr.mxu0 0.0
  %2171 = vmatpush2.msra.mxu0 0.0
  %2172 = vmatprep.subr.mxu0 0.0
  %2173 = vmatpush2.msra.mxu0 0.0
  %2174 = vmatprep.subr.mxu0 0.0
  %2175 = vmatpush2.msra.mxu0 0.0
  %2176 = vmatprep.subr.mxu0 0.0
  %2177 = vmatpush2.msra.mxu0 0.0
  %2178 = vmatprep.subr.mxu0 0.0
  %2179 = vmatpush2.msra.mxu0 0.0
  %2180 = vmatprep.subr.mxu0 0.0
  %2181 = vmatpush2.msra.mxu0 0.0
  %2182 = vmatprep.subr.mxu0 0.0
  %2183 = vmatpush2.msra.mxu0 0.0
  %2184 = vmatprep.subr.mxu0 0.0
  %2185 = vmatpush2.msra.mxu0 0.0
  %2186 = vmatprep.subr.mxu0 0.0
  %2187 = vmatpush2.msra.mxu0 %v2001
  %2188 = vmatprep.mubr.f32.mxu0 %v2052
  %2189 = vmatmul.mubr.f32.gmra.mxu0 %v1845
  %v2190 = vpop.f32.mrf.mxu0
  %v2191 = vadd.f32 %v2121, %v2190
  %v2192 = vpop.f32.mrf.mxu0
  %2193 = vdwg.mxu0
  %v2194 = vmul.f32 %v1835, %v890
  %2196 = vrot.lane.b32.xlu0 %v2191, 16
  %v2197 = vpop.permute.xlu0 %2196
  %v2199 = vadd.f32 %v2194, %v2197
  %v2200 = vrcp.pop %v1854
  %v2201 = vmul.f32 %v2199, %v2200
  %vm2202 = vcmask 261248
  %2203 = vst.msk [vmem:[#allocation2] sm:$0xff] %vm2202, %v2201
  %2204 = vrot.lane.b32.xlu0 %v892, 96
  %v2205 = vpop.permute.xlu0 %2204
  %2206 = vrot.lane.b32.xlu0 %v416, 32
  %v2207 = vpop.permute.xlu0 %2206
  %2208 = vrot.lane.b32.xlu0 %v422, 32
  %v2209 = vpop.permute.xlu0 %2208
  %2210 = vrot.lane.b32.xlu0 %v428, 32
  %v2211 = vpop.permute.xlu0 %2210
  %2212 = vrot.lane.b32.xlu0 %v434, 32
  %v2213 = vpop.permute.xlu0 %2212
  %2214 = vrot.lane.b32.xlu0 %v440, 32
  %v2215 = vpop.permute.xlu0 %2214
  %2216 = vrot.lane.b32.xlu0 %v446, 32
  %v2217 = vpop.permute.xlu0 %2216
  %2218 = vrot.lane.b32.xlu0 %v452, 32
  %v2219 = vpop.permute.xlu0 %2218
  %2220 = vrot.lane.b32.xlu0 %v458, 32
  %v2221 = vpop.permute.xlu0 %2220
  %2222 = vrot.lane.b32.xlu0 %v464, 32
  %v2223 = vpop.permute.xlu0 %2222
  %2224 = vrot.lane.b32.xlu0 %v470, 32
  %v2225 = vpop.permute.xlu0 %2224
  %2226 = vrot.lane.b32.xlu0 %v476, 32
  %v2227 = vpop.permute.xlu0 %2226
  %2228 = vrot.lane.b32.xlu0 %v482, 32
  %v2229 = vpop.permute.xlu0 %2228
  %2230 = vrot.lane.b32.xlu0 %v488, 32
  %v2231 = vpop.permute.xlu0 %2230
  %2232 = vrot.lane.b32.xlu0 %v494, 32
  %v2233 = vpop.permute.xlu0 %2232
  %2234 = vrot.lane.b32.xlu0 %v500, 32
  %v2235 = vpop.permute.xlu0 %2234
  %2236 = vrot.lane.b32.xlu0 %v506, 32
  %v2237 = vpop.permute.xlu0 %2236
  %2238 = vrot.lane.b32.xlu0 %v512, 32
  %v2239 = vpop.permute.xlu0 %2238
  %2240 = vrot.lane.b32.xlu0 %v518, 32
  %v2241 = vpop.permute.xlu0 %2240
  %2242 = vrot.lane.b32.xlu0 %v524, 32
  %v2243 = vpop.permute.xlu0 %2242
  %2244 = vrot.lane.b32.xlu0 %v530, 32
  %v2245 = vpop.permute.xlu0 %2244
  %2246 = vrot.lane.b32.xlu0 %v536, 32
  %v2247 = vpop.permute.xlu0 %2246
  %2248 = vrot.lane.b32.xlu0 %v542, 32
  %v2249 = vpop.permute.xlu0 %2248
  %2250 = vrot.lane.b32.xlu0 %v548, 32
  %v2251 = vpop.permute.xlu0 %2250
  %2252 = vrot.lane.b32.xlu0 %v554, 32
  %v2253 = vpop.permute.xlu0 %2252
  %2254 = vrot.lane.b32.xlu0 %v560, 32
  %v2255 = vpop.permute.xlu0 %2254
  %2256 = vrot.lane.b32.xlu0 %v566, 32
  %v2257 = vpop.permute.xlu0 %2256
  %2258 = vrot.lane.b32.xlu0 %v572, 32
  %v2259 = vpop.permute.xlu0 %2258
  %2260 = vrot.lane.b32.xlu0 %v578, 32
  %v2261 = vpop.permute.xlu0 %2260
  %2262 = vrot.lane.b32.xlu0 %v584, 32
  %v2263 = vpop.permute.xlu0 %2262
  %2264 = vrot.lane.b32.xlu0 %v590, 32
  %v2265 = vpop.permute.xlu0 %2264
  %2266 = vrot.lane.b32.xlu0 %v596, 32
  %v2267 = vpop.permute.xlu0 %2266
  %2268 = vrot.lane.b32.xlu0 %v602, 32
  %v2269 = vpop.permute.xlu0 %2268
  %2270 = vrot.lane.b32.xlu0 %v608, 32
  %v2271 = vpop.permute.xlu0 %2270
  %2272 = vrot.lane.b32.xlu0 %v614, 32
  %v2273 = vpop.permute.xlu0 %2272
  %2274 = vrot.lane.b32.xlu0 %v620, 32
  %v2275 = vpop.permute.xlu0 %2274
  %2276 = vrot.lane.b32.xlu0 %v626, 32
  %v2277 = vpop.permute.xlu0 %2276
  %2278 = vrot.lane.b32.xlu0 %v632, 32
  %v2279 = vpop.permute.xlu0 %2278
  %2280 = vrot.lane.b32.xlu0 %v638, 32
  %v2281 = vpop.permute.xlu0 %2280
  %2282 = vrot.lane.b32.xlu0 %v644, 32
  %v2283 = vpop.permute.xlu0 %2282
  %2284 = vrot.lane.b32.xlu0 %v650, 32
  %v2285 = vpop.permute.xlu0 %2284
  %2286 = vrot.lane.b32.xlu0 %v656, 32
  %v2287 = vpop.permute.xlu0 %2286
  %2288 = vrot.lane.b32.xlu0 %v662, 32
  %v2289 = vpop.permute.xlu0 %2288
  %2290 = vrot.lane.b32.xlu0 %v668, 32
  %v2291 = vpop.permute.xlu0 %2290
  %2292 = vrot.lane.b32.xlu0 %v674, 32
  %v2293 = vpop.permute.xlu0 %2292
  %2294 = vrot.lane.b32.xlu0 %v680, 32
  %v2295 = vpop.permute.xlu0 %2294
  %2296 = vrot.lane.b32.xlu0 %v686, 32
  %v2297 = vpop.permute.xlu0 %2296
  %2298 = vrot.lane.b32.xlu0 %v692, 32
  %v2299 = vpop.permute.xlu0 %2298
  %2300 = vrot.lane.b32.xlu0 %v698, 32
  %v2301 = vpop.permute.xlu0 %2300
  %2302 = vrot.lane.b32.xlu0 %v704, 32
  %v2303 = vpop.permute.xlu0 %2302
  %v2304 = vsel %vm1040, %v2205, 0
  %v2306 = vsel %vm1040, %v2207, 0
  %v2308 = vsel %vm1040, %v2209, 0
  %v2310 = vsel %vm1040, %v2211, 0
  %v2312 = vsel %vm1040, %v2213, 0
  %v2314 = vsel %vm1040, %v2215, 0
  %v2316 = vsel %vm1040, %v2217, 0
  %v2318 = vsel %vm1040, %v2219, 0
  %v2320 = vsel %vm1040, %v2221, 0
  %v2322 = vsel %vm1040, %v2223, 0
  %v2324 = vsel %vm1040, %v2225, 0
  %v2326 = vsel %vm1040, %v2227, 0
  %v2328 = vsel %vm1040, %v2229, 0
  %v2330 = vsel %vm1040, %v2231, 0
  %v2332 = vsel %vm1040, %v2233, 0
  %v2334 = vsel %vm1040, %v2235, 0
  %v2336 = vsel %vm1040, %v2237, 0
  %v2338 = vsel %vm1040, %v2239, 0
  %v2340 = vsel %vm1040, %v2241, 0
  %v2342 = vsel %vm1040, %v2243, 0
  %v2344 = vsel %vm1040, %v2245, 0
  %v2346 = vsel %vm1040, %v2247, 0
  %v2348 = vsel %vm1040, %v2249, 0
  %v2350 = vsel %vm1040, %v2251, 0
  %v2352 = vsel %vm1040, %v2253, 0
  %v2354 = vsel %vm1040, %v2255, 0
  %v2356 = vsel %vm1040, %v2257, 0
  %v2358 = vsel %vm1040, %v2259, 0
  %v2360 = vsel %vm1040, %v2261, 0
  %v2362 = vsel %vm1040, %v2263, 0
  %v2364 = vsel %vm1040, %v2265, 0
  %v2366 = vsel %vm1040, %v2267, 0
  %v2368 = vsel %vm1040, %v2269, 0
  %v2370 = vsel %vm1040, %v2271, 0
  %v2372 = vsel %vm1040, %v2273, 0
  %v2374 = vsel %vm1040, %v2275, 0
  %v2376 = vsel %vm1040, %v2277, 0
  %v2378 = vsel %vm1040, %v2279, 0
  %v2380 = vsel %vm1040, %v2281, 0
  %v2382 = vsel %vm1040, %v2283, 0
  %v2384 = vsel %vm1040, %v2285, 0
  %v2386 = vsel %vm1040, %v2287, 0
  %v2388 = vsel %vm1040, %v2289, 0
  %v2390 = vsel %vm1040, %v2291, 0
  %v2392 = vsel %vm1040, %v2293, 0
  %v2394 = vsel %vm1040, %v2295, 0
  %v2396 = vsel %vm1040, %v2297, 0
  %v2398 = vsel %vm1040, %v2299, 0
  %v2400 = vsel %vm1040, %v2301, 0
  %v2402 = vsel %vm1040, %v2303, 0
  %2404 = vmatprep.subr.mxu0 0.0
  %2405 = vmatpush1.xpose.msra.mxu0 %v2336
  %2406 = vmatprep.subr.mxu0 0.0
  %2407 = vmatpush1.xpose.msra.mxu0 %v2334
  %2408 = vmatprep.subr.mxu0 0.0
  %2409 = vmatpush1.xpose.msra.mxu0 %v2332
  %2410 = vmatprep.subr.mxu0 0.0
  %2411 = vmatpush1.xpose.msra.mxu0 %v2330
  %2412 = vmatprep.subr.mxu0 0.0
  %2413 = vmatpush1.xpose.msra.mxu0 %v2328
  %2414 = vmatprep.subr.mxu0 0.0
  %2415 = vmatpush1.xpose.msra.mxu0 %v2326
  %2416 = vmatprep.subr.mxu0 0.0
  %2417 = vmatpush1.xpose.msra.mxu0 %v2324
  %2418 = vmatprep.subr.mxu0 0.0
  %2419 = vmatpush1.xpose.msra.mxu0 %v2322
  %2420 = vmatprep.subr.mxu0 0.0
  %2421 = vmatpush1.xpose.msra.mxu0 %v2320
  %2422 = vmatprep.subr.mxu0 0.0
  %2423 = vmatpush1.xpose.msra.mxu0 %v2318
  %2424 = vmatprep.subr.mxu0 0.0
  %2425 = vmatpush1.xpose.msra.mxu0 %v2316
  %2426 = vmatprep.subr.mxu0 0.0
  %2427 = vmatpush1.xpose.msra.mxu0 %v2314
  %2428 = vmatprep.subr.mxu0 0.0
  %2429 = vmatpush1.xpose.msra.mxu0 %v2312
  %2430 = vmatprep.subr.mxu0 0.0
  %2431 = vmatpush1.xpose.msra.mxu0 %v2310
  %2432 = vmatprep.subr.mxu0 0.0
  %2433 = vmatpush1.xpose.msra.mxu0 %v2308
  %2434 = vmatprep.subr.mxu0 0.0
  %2435 = vmatpush1.xpose.msra.mxu0 %v2306
  %2436 = vmatprep.subr.mxu0 0.0
  %2437 = vmatpush2.xpose.msra.mxu0 %v2368
  %2438 = vmatprep.subr.mxu0 0.0
  %2439 = vmatpush2.xpose.msra.mxu0 %v2366
  %2440 = vmatprep.subr.mxu0 0.0
  %2441 = vmatpush2.xpose.msra.mxu0 %v2364
  %2442 = vmatprep.subr.mxu0 0.0
  %2443 = vmatpush2.xpose.msra.mxu0 %v2362
  %2444 = vmatprep.subr.mxu0 0.0
  %2445 = vmatpush2.xpose.msra.mxu0 %v2360
  %2446 = vmatprep.subr.mxu0 0.0
  %2447 = vmatpush2.xpose.msra.mxu0 %v2358
  %2448 = vmatprep.subr.mxu0 0.0
  %2449 = vmatpush2.xpose.msra.mxu0 %v2356
  %2450 = vmatprep.subr.mxu0 0.0
  %2451 = vmatpush2.xpose.msra.mxu0 %v2354
  %2452 = vmatprep.subr.mxu0 0.0
  %2453 = vmatpush2.xpose.msra.mxu0 %v2352
  %2454 = vmatprep.subr.mxu0 0.0
  %2455 = vmatpush2.xpose.msra.mxu0 %v2350
  %2456 = vmatprep.subr.mxu0 0.0
  %2457 = vmatpush2.xpose.msra.mxu0 %v2348
  %2458 = vmatprep.subr.mxu0 0.0
  %2459 = vmatpush2.xpose.msra.mxu0 %v2346
  %2460 = vmatprep.subr.mxu0 0.0
  %2461 = vmatpush2.xpose.msra.mxu0 %v2344
  %2462 = vmatprep.subr.mxu0 0.0
  %2463 = vmatpush2.xpose.msra.mxu0 %v2342
  %2464 = vmatprep.subr.mxu0 0.0
  %2465 = vmatpush2.xpose.msra.mxu0 %v2340
  %2466 = vmatprep.subr.mxu0 0.0
  %2467 = vmatpush2.xpose.msra.mxu0 %v2338
  %2468 = vmatprep.mubr.f32.mxu0 0.0
  %2469 = vmatmul.mubr.f32.gmra.mxu0 %v2304
  %v2470 = vpop.f32.mrf.mxu0
  %v2471 = vadd.f32 0.0, %v2470
  %v2472 = vpop.f32.mrf.mxu0
  %v2473 = vadd.f32 0.0, %v2472
  %2474 = vdwg.mxu0
  %2475 = vmatprep.subr.mxu0 0.0
  %2476 = vmatpush1.xpose.msra.mxu0 %v2400
  %2477 = vmatprep.subr.mxu0 0.0
  %2478 = vmatpush1.xpose.msra.mxu0 %v2398
  %2479 = vmatprep.subr.mxu0 0.0
  %2480 = vmatpush1.xpose.msra.mxu0 %v2396
  %2481 = vmatprep.subr.mxu0 0.0
  %2482 = vmatpush1.xpose.msra.mxu0 %v2394
  %2483 = vmatprep.subr.mxu0 0.0
  %2484 = vmatpush1.xpose.msra.mxu0 %v2392
  %2485 = vmatprep.subr.mxu0 0.0
  %2486 = vmatpush1.xpose.msra.mxu0 %v2390
  %2487 = vmatprep.subr.mxu0 0.0
  %2488 = vmatpush1.xpose.msra.mxu0 %v2388
  %2489 = vmatprep.subr.mxu0 0.0
  %2490 = vmatpush1.xpose.msra.mxu0 %v2386
  %2491 = vmatprep.subr.mxu0 0.0
  %2492 = vmatpush1.xpose.msra.mxu0 %v2384
  %2493 = vmatprep.subr.mxu0 0.0
  %2494 = vmatpush1.xpose.msra.mxu0 %v2382
  %2495 = vmatprep.subr.mxu0 0.0
  %2496 = vmatpush1.xpose.msra.mxu0 %v2380
  %2497 = vmatprep.subr.mxu0 0.0
  %2498 = vmatpush1.xpose.msra.mxu0 %v2378
  %2499 = vmatprep.subr.mxu0 0.0
  %2500 = vmatpush1.xpose.msra.mxu0 %v2376
  %2501 = vmatprep.subr.mxu0 0.0
  %2502 = vmatpush1.xpose.msra.mxu0 %v2374
  %2503 = vmatprep.subr.mxu0 0.0
  %2504 = vmatpush1.xpose.msra.mxu0 %v2372
  %2505 = vmatprep.subr.mxu0 0.0
  %2506 = vmatpush1.xpose.msra.mxu0 %v2370
  %2507 = vmatprep.subr.mxu0 0.0
  %2508 = vmatpush2.xpose.msra.mxu0 0.0
  %2509 = vmatprep.subr.mxu0 0.0
  %2510 = vmatpush2.xpose.msra.mxu0 0.0
  %2511 = vmatprep.subr.mxu0 0.0
  %2512 = vmatpush2.xpose.msra.mxu0 0.0
  %2513 = vmatprep.subr.mxu0 0.0
  %2514 = vmatpush2.xpose.msra.mxu0 0.0
  %2515 = vmatprep.subr.mxu0 0.0
  %2516 = vmatpush2.xpose.msra.mxu0 0.0
  %2517 = vmatprep.subr.mxu0 0.0
  %2518 = vmatpush2.xpose.msra.mxu0 0.0
  %2519 = vmatprep.subr.mxu0 0.0
  %2520 = vmatpush2.xpose.msra.mxu0 0.0
  %2521 = vmatprep.subr.mxu0 0.0
  %2522 = vmatpush2.xpose.msra.mxu0 0.0
  %2523 = vmatprep.subr.mxu0 0.0
  %2524 = vmatpush2.xpose.msra.mxu0 0.0
  %2525 = vmatprep.subr.mxu0 0.0
  %2526 = vmatpush2.xpose.msra.mxu0 0.0
  %2527 = vmatprep.subr.mxu0 0.0
  %2528 = vmatpush2.xpose.msra.mxu0 0.0
  %2529 = vmatprep.subr.mxu0 0.0
  %2530 = vmatpush2.xpose.msra.mxu0 0.0
  %2531 = vmatprep.subr.mxu0 0.0
  %2532 = vmatpush2.xpose.msra.mxu0 0.0
  %2533 = vmatprep.subr.mxu0 0.0
  %2534 = vmatpush2.xpose.msra.mxu0 0.0
  %2535 = vmatprep.subr.mxu0 0.0
  %2536 = vmatpush2.xpose.msra.mxu0 0.0
  %2537 = vmatprep.subr.mxu0 0.0
  %2538 = vmatpush2.xpose.msra.mxu0 %v2402
  %2539 = vmatprep.mubr.f32.mxu0 0.0
  %2540 = vmatmul.mubr.f32.gmra.mxu0 %v2304
  %v2541 = vpop.f32.mrf.mxu0
  %v2542 = vadd.f32 0.0, %v2541
  %v2543 = vpop.f32.mrf.mxu0
  %v2544 = vadd.f32 0.0, %v2543
  %2545 = vdwg.mxu0
  %v2546 = vsel %vm726, %v2471, -1e+30
  %v2547 = vsel %vm727, %v2473, -1e+30
  %v2548 = vsel %vm728, %v2542, -1e+30
  %v2549 = vsel %vm729, %v2544, -1e+30
  %2550 = vrot.lane.b32.xlu0 %v1292, 96
  %v2551 = vpop.permute.xlu0 %2550
  %v2553 = vsel %vm1040, %v2551, 0.0
  %2554 = vadd.xlane.f32.xlu0 %v2553
  %v2555 = vpop.xlane.xlu0 %2554
  %v2556 = vsel %vm746, %v2549, -inf
  %v2557 = vmax.f32 %v2546, %v2547
  %v2558 = vmax.f32 %v2548, %v2556
  %v2559 = vmax.f32 %v2557, %v2558
  %2560 = vmax.xlane.f32.xlu0 %v2559
  %v2561 = vpop.xlane.xlu0 %2560
  %v2562 = vmax.f32 %v2561, %v2555
  %v2563 = vsub.f32 %v2555, %v2562
  %v2564 = vmul.f32 %v2563, 1.442695
  %v2565 = vpow.pop %v2564
  %v2566 = vsub.f32 %v2546, %v2562
  %v2567 = vsub.f32 %v2547, %v2562
  %v2568 = vsub.f32 %v2548, %v2562
  %v2569 = vsub.f32 %v2549, %v2562
  %v2570 = vmul.f32 %v2566, 1.442695
  %v2571 = vpow.pop %v2570
  %v2572 = vmul.f32 %v2567, 1.442695
  %v2573 = vpow.pop %v2572
  %v2574 = vmul.f32 %v2568, 1.442695
  %v2575 = vpow.pop %v2574
  %v2576 = vmul.f32 %v2569, 1.442695
  %v2577 = vpow.pop %v2576
  %v2578 = vadd.f32 %v2571, %v2573
  %v2579 = vadd.f32 %v2578, %v2575
  %v2580 = vsel %vm746, %v2577, 0.0
  %v2581 = vadd.f32 %v2579, %v2580
  %2582 = vadd.xlane.f32.xlu0 %v2581
  %v2583 = vpop.xlane.xlu0 %2582
  %v2584 = vadd.f32 %v2565, %v2583
  %2585 = vrot.lane.b32.xlu0 %v418, 96
  %v2586 = vpop.permute.xlu0 %2585
  %2587 = vrot.lane.b32.xlu0 %v424, 96
  %v2588 = vpop.permute.xlu0 %2587
  %2589 = vrot.lane.b32.xlu0 %v430, 96
  %v2590 = vpop.permute.xlu0 %2589
  %2591 = vrot.lane.b32.xlu0 %v436, 96
  %v2592 = vpop.permute.xlu0 %2591
  %2593 = vrot.lane.b32.xlu0 %v442, 96
  %v2594 = vpop.permute.xlu0 %2593
  %2595 = vrot.lane.b32.xlu0 %v448, 96
  %v2596 = vpop.permute.xlu0 %2595
  %2597 = vrot.lane.b32.xlu0 %v454, 96
  %v2598 = vpop.permute.xlu0 %2597
  %2599 = vrot.lane.b32.xlu0 %v460, 96
  %v2600 = vpop.permute.xlu0 %2599
  %2601 = vrot.lane.b32.xlu0 %v466, 96
  %v2602 = vpop.permute.xlu0 %2601
  %2603 = vrot.lane.b32.xlu0 %v472, 96
  %v2604 = vpop.permute.xlu0 %2603
  %2605 = vrot.lane.b32.xlu0 %v478, 96
  %v2606 = vpop.permute.xlu0 %2605
  %2607 = vrot.lane.b32.xlu0 %v484, 96
  %v2608 = vpop.permute.xlu0 %2607
  %2609 = vrot.lane.b32.xlu0 %v490, 96
  %v2610 = vpop.permute.xlu0 %2609
  %2611 = vrot.lane.b32.xlu0 %v496, 96
  %v2612 = vpop.permute.xlu0 %2611
  %2613 = vrot.lane.b32.xlu0 %v502, 96
  %v2614 = vpop.permute.xlu0 %2613
  %2615 = vrot.lane.b32.xlu0 %v508, 96
  %v2616 = vpop.permute.xlu0 %2615
  %2617 = vrot.lane.b32.xlu0 %v514, 96
  %v2618 = vpop.permute.xlu0 %2617
  %2619 = vrot.lane.b32.xlu0 %v520, 96
  %v2620 = vpop.permute.xlu0 %2619
  %2621 = vrot.lane.b32.xlu0 %v526, 96
  %v2622 = vpop.permute.xlu0 %2621
  %2623 = vrot.lane.b32.xlu0 %v532, 96
  %v2624 = vpop.permute.xlu0 %2623
  %2625 = vrot.lane.b32.xlu0 %v538, 96
  %v2626 = vpop.permute.xlu0 %2625
  %2627 = vrot.lane.b32.xlu0 %v544, 96
  %v2628 = vpop.permute.xlu0 %2627
  %2629 = vrot.lane.b32.xlu0 %v550, 96
  %v2630 = vpop.permute.xlu0 %2629
  %2631 = vrot.lane.b32.xlu0 %v556, 96
  %v2632 = vpop.permute.xlu0 %2631
  %2633 = vrot.lane.b32.xlu0 %v562, 96
  %v2634 = vpop.permute.xlu0 %2633
  %2635 = vrot.lane.b32.xlu0 %v568, 96
  %v2636 = vpop.permute.xlu0 %2635
  %2637 = vrot.lane.b32.xlu0 %v574, 96
  %v2638 = vpop.permute.xlu0 %2637
  %2639 = vrot.lane.b32.xlu0 %v580, 96
  %v2640 = vpop.permute.xlu0 %2639
  %2641 = vrot.lane.b32.xlu0 %v586, 96
  %v2642 = vpop.permute.xlu0 %2641
  %2643 = vrot.lane.b32.xlu0 %v592, 96
  %v2644 = vpop.permute.xlu0 %2643
  %2645 = vrot.lane.b32.xlu0 %v598, 96
  %v2646 = vpop.permute.xlu0 %2645
  %2647 = vrot.lane.b32.xlu0 %v604, 96
  %v2648 = vpop.permute.xlu0 %2647
  %2649 = vrot.lane.b32.xlu0 %v610, 96
  %v2650 = vpop.permute.xlu0 %2649
  %2651 = vrot.lane.b32.xlu0 %v616, 96
  %v2652 = vpop.permute.xlu0 %2651
  %2653 = vrot.lane.b32.xlu0 %v622, 96
  %v2654 = vpop.permute.xlu0 %2653
  %2655 = vrot.lane.b32.xlu0 %v628, 96
  %v2656 = vpop.permute.xlu0 %2655
  %2657 = vrot.lane.b32.xlu0 %v634, 96
  %v2658 = vpop.permute.xlu0 %2657
  %2659 = vrot.lane.b32.xlu0 %v640, 96
  %v2660 = vpop.permute.xlu0 %2659
  %2661 = vrot.lane.b32.xlu0 %v646, 96
  %v2662 = vpop.permute.xlu0 %2661
  %2663 = vrot.lane.b32.xlu0 %v652, 96
  %v2664 = vpop.permute.xlu0 %2663
  %2665 = vrot.lane.b32.xlu0 %v658, 96
  %v2666 = vpop.permute.xlu0 %2665
  %2667 = vrot.lane.b32.xlu0 %v664, 96
  %v2668 = vpop.permute.xlu0 %2667
  %2669 = vrot.lane.b32.xlu0 %v670, 96
  %v2670 = vpop.permute.xlu0 %2669
  %2671 = vrot.lane.b32.xlu0 %v676, 96
  %v2672 = vpop.permute.xlu0 %2671
  %2673 = vrot.lane.b32.xlu0 %v682, 96
  %v2674 = vpop.permute.xlu0 %2673
  %2675 = vrot.lane.b32.xlu0 %v688, 96
  %v2676 = vpop.permute.xlu0 %2675
  %2677 = vrot.lane.b32.xlu0 %v694, 96
  %v2678 = vpop.permute.xlu0 %2677
  %2679 = vrot.lane.b32.xlu0 %v700, 96
  %v2680 = vpop.permute.xlu0 %2679
  %2681 = vrot.lane.b32.xlu0 %v706, 96
  %v2682 = vpop.permute.xlu0 %2681
  %v2733 = vsel %vm746, %v2577, 0
  %2735 = vmatprep.subr.mxu0 0.0
  %2736 = vmatpush1.msra.mxu0 %v2616
  %2737 = vmatprep.subr.mxu0 0.0
  %2738 = vmatpush1.msra.mxu0 %v2614
  %2739 = vmatprep.subr.mxu0 0.0
  %2740 = vmatpush1.msra.mxu0 %v2612
  %2741 = vmatprep.subr.mxu0 0.0
  %2742 = vmatpush1.msra.mxu0 %v2610
  %2743 = vmatprep.subr.mxu0 0.0
  %2744 = vmatpush1.msra.mxu0 %v2608
  %2745 = vmatprep.subr.mxu0 0.0
  %2746 = vmatpush1.msra.mxu0 %v2606
  %2747 = vmatprep.subr.mxu0 0.0
  %2748 = vmatpush1.msra.mxu0 %v2604
  %2749 = vmatprep.subr.mxu0 0.0
  %2750 = vmatpush1.msra.mxu0 %v2602
  %2751 = vmatprep.subr.mxu0 0.0
  %2752 = vmatpush1.msra.mxu0 %v2600
  %2753 = vmatprep.subr.mxu0 0.0
  %2754 = vmatpush1.msra.mxu0 %v2598
  %2755 = vmatprep.subr.mxu0 0.0
  %2756 = vmatpush1.msra.mxu0 %v2596
  %2757 = vmatprep.subr.mxu0 0.0
  %2758 = vmatpush1.msra.mxu0 %v2594
  %2759 = vmatprep.subr.mxu0 0.0
  %2760 = vmatpush1.msra.mxu0 %v2592
  %2761 = vmatprep.subr.mxu0 0.0
  %2762 = vmatpush1.msra.mxu0 %v2590
  %2763 = vmatprep.subr.mxu0 0.0
  %2764 = vmatpush1.msra.mxu0 %v2588
  %2765 = vmatprep.subr.mxu0 0.0
  %2766 = vmatpush1.msra.mxu0 %v2586
  %2767 = vmatprep.subr.mxu0 0.0
  %2768 = vmatpush2.msra.mxu0 %v2648
  %2769 = vmatprep.subr.mxu0 0.0
  %2770 = vmatpush2.msra.mxu0 %v2646
  %2771 = vmatprep.subr.mxu0 0.0
  %2772 = vmatpush2.msra.mxu0 %v2644
  %2773 = vmatprep.subr.mxu0 0.0
  %2774 = vmatpush2.msra.mxu0 %v2642
  %2775 = vmatprep.subr.mxu0 0.0
  %2776 = vmatpush2.msra.mxu0 %v2640
  %2777 = vmatprep.subr.mxu0 0.0
  %2778 = vmatpush2.msra.mxu0 %v2638
  %2779 = vmatprep.subr.mxu0 0.0
  %2780 = vmatpush2.msra.mxu0 %v2636
  %2781 = vmatprep.subr.mxu0 0.0
  %2782 = vmatpush2.msra.mxu0 %v2634
  %2783 = vmatprep.subr.mxu0 0.0
  %2784 = vmatpush2.msra.mxu0 %v2632
  %2785 = vmatprep.subr.mxu0 0.0
  %2786 = vmatpush2.msra.mxu0 %v2630
  %2787 = vmatprep.subr.mxu0 0.0
  %2788 = vmatpush2.msra.mxu0 %v2628
  %2789 = vmatprep.subr.mxu0 0.0
  %2790 = vmatpush2.msra.mxu0 %v2626
  %2791 = vmatprep.subr.mxu0 0.0
  %2792 = vmatpush2.msra.mxu0 %v2624
  %2793 = vmatprep.subr.mxu0 0.0
  %2794 = vmatpush2.msra.mxu0 %v2622
  %2795 = vmatprep.subr.mxu0 0.0
  %2796 = vmatpush2.msra.mxu0 %v2620
  %2797 = vmatprep.subr.mxu0 0.0
  %2798 = vmatpush2.msra.mxu0 %v2618
  %2799 = vmatprep.mubr.f32.mxu0 %v2573
  %2800 = vmatmul.mubr.f32.gmra.mxu0 %v2571
  %v2801 = vpop.f32.mrf.mxu0
  %v2802 = vadd.f32 0.0, %v2801
  %v2803 = vpop.f32.mrf.mxu0
  %2804 = vdwg.mxu0
  %2805 = vmatprep.subr.mxu0 0.0
  %2806 = vmatpush1.msra.mxu0 %v2680
  %2807 = vmatprep.subr.mxu0 0.0
  %2808 = vmatpush1.msra.mxu0 %v2678
  %2809 = vmatprep.subr.mxu0 0.0
  %2810 = vmatpush1.msra.mxu0 %v2676
  %2811 = vmatprep.subr.mxu0 0.0
  %2812 = vmatpush1.msra.mxu0 %v2674
  %2813 = vmatprep.subr.mxu0 0.0
  %2814 = vmatpush1.msra.mxu0 %v2672
  %2815 = vmatprep.subr.mxu0 0.0
  %2816 = vmatpush1.msra.mxu0 %v2670
  %2817 = vmatprep.subr.mxu0 0.0
  %2818 = vmatpush1.msra.mxu0 %v2668
  %2819 = vmatprep.subr.mxu0 0.0
  %2820 = vmatpush1.msra.mxu0 %v2666
  %2821 = vmatprep.subr.mxu0 0.0
  %2822 = vmatpush1.msra.mxu0 %v2664
  %2823 = vmatprep.subr.mxu0 0.0
  %2824 = vmatpush1.msra.mxu0 %v2662
  %2825 = vmatprep.subr.mxu0 0.0
  %2826 = vmatpush1.msra.mxu0 %v2660
  %2827 = vmatprep.subr.mxu0 0.0
  %2828 = vmatpush1.msra.mxu0 %v2658
  %2829 = vmatprep.subr.mxu0 0.0
  %2830 = vmatpush1.msra.mxu0 %v2656
  %2831 = vmatprep.subr.mxu0 0.0
  %2832 = vmatpush1.msra.mxu0 %v2654
  %2833 = vmatprep.subr.mxu0 0.0
  %2834 = vmatpush1.msra.mxu0 %v2652
  %2835 = vmatprep.subr.mxu0 0.0
  %2836 = vmatpush1.msra.mxu0 %v2650
  %2837 = vmatprep.subr.mxu0 0.0
  %2838 = vmatpush2.msra.mxu0 0.0
  %2839 = vmatprep.subr.mxu0 0.0
  %2840 = vmatpush2.msra.mxu0 0.0
  %2841 = vmatprep.subr.mxu0 0.0
  %2842 = vmatpush2.msra.mxu0 0.0
  %2843 = vmatprep.subr.mxu0 0.0
  %2844 = vmatpush2.msra.mxu0 0.0
  %2845 = vmatprep.subr.mxu0 0.0
  %2846 = vmatpush2.msra.mxu0 0.0
  %2847 = vmatprep.subr.mxu0 0.0
  %2848 = vmatpush2.msra.mxu0 0.0
  %2849 = vmatprep.subr.mxu0 0.0
  %2850 = vmatpush2.msra.mxu0 0.0
  %2851 = vmatprep.subr.mxu0 0.0
  %2852 = vmatpush2.msra.mxu0 0.0
  %2853 = vmatprep.subr.mxu0 0.0
  %2854 = vmatpush2.msra.mxu0 0.0
  %2855 = vmatprep.subr.mxu0 0.0
  %2856 = vmatpush2.msra.mxu0 0.0
  %2857 = vmatprep.subr.mxu0 0.0
  %2858 = vmatpush2.msra.mxu0 0.0
  %2859 = vmatprep.subr.mxu0 0.0
  %2860 = vmatpush2.msra.mxu0 0.0
  %2861 = vmatprep.subr.mxu0 0.0
  %2862 = vmatpush2.msra.mxu0 0.0
  %2863 = vmatprep.subr.mxu0 0.0
  %2864 = vmatpush2.msra.mxu0 0.0
  %2865 = vmatprep.subr.mxu0 0.0
  %2866 = vmatpush2.msra.mxu0 0.0
  %2867 = vmatprep.subr.mxu0 0.0
  %2868 = vmatpush2.msra.mxu0 %v2682
  %2869 = vmatprep.mubr.f32.mxu0 %v2733
  %2870 = vmatmul.mubr.f32.gmra.mxu0 %v2575
  %v2871 = vpop.f32.mrf.mxu0
  %v2872 = vadd.f32 %v2802, %v2871
  %v2873 = vpop.f32.mrf.mxu0
  %2874 = vdwg.mxu0
  %v2875 = vmul.f32 %v2565, %v890
  %2877 = vrot.lane.b32.xlu0 %v2872, 32
  %v2878 = vpop.permute.xlu0 %2877
  %v2880 = vadd.f32 %v2875, %v2878
  %v2881 = vrcp.pop %v2584
  %v2882 = vmul.f32 %v2880, %v2881
  %vm2883 = vcmask 392448
  %2884 = vst.msk [vmem:[#allocation2] sm:$0xff] %vm2883, %v2882
  %2885 = vrot.lane.b32.xlu0 %v892, 80
  %v2886 = vpop.permute.xlu0 %2885
  %2887 = vrot.lane.b32.xlu0 %v416, 16
  %v2888 = vpop.permute.xlu0 %2887
  %2889 = vrot.lane.b32.xlu0 %v422, 16
  %v2890 = vpop.permute.xlu0 %2889
  %2891 = vrot.lane.b32.xlu0 %v428, 16
  %v2892 = vpop.permute.xlu0 %2891
  %2893 = vrot.lane.b32.xlu0 %v434, 16
  %v2894 = vpop.permute.xlu0 %2893
  %2895 = vrot.lane.b32.xlu0 %v440, 16
  %v2896 = vpop.permute.xlu0 %2895
  %2897 = vrot.lane.b32.xlu0 %v446, 16
  %v2898 = vpop.permute.xlu0 %2897
  %2899 = vrot.lane.b32.xlu0 %v452, 16
  %v2900 = vpop.permute.xlu0 %2899
  %2901 = vrot.lane.b32.xlu0 %v458, 16
  %v2902 = vpop.permute.xlu0 %2901
  %2903 = vrot.lane.b32.xlu0 %v464, 16
  %v2904 = vpop.permute.xlu0 %2903
  %2905 = vrot.lane.b32.xlu0 %v470, 16
  %v2906 = vpop.permute.xlu0 %2905
  %2907 = vrot.lane.b32.xlu0 %v476, 16
  %v2908 = vpop.permute.xlu0 %2907
  %2909 = vrot.lane.b32.xlu0 %v482, 16
  %v2910 = vpop.permute.xlu0 %2909
  %2911 = vrot.lane.b32.xlu0 %v488, 16
  %v2912 = vpop.permute.xlu0 %2911
  %2913 = vrot.lane.b32.xlu0 %v494, 16
  %v2914 = vpop.permute.xlu0 %2913
  %2915 = vrot.lane.b32.xlu0 %v500, 16
  %v2916 = vpop.permute.xlu0 %2915
  %2917 = vrot.lane.b32.xlu0 %v506, 16
  %v2918 = vpop.permute.xlu0 %2917
  %2919 = vrot.lane.b32.xlu0 %v512, 16
  %v2920 = vpop.permute.xlu0 %2919
  %2921 = vrot.lane.b32.xlu0 %v518, 16
  %v2922 = vpop.permute.xlu0 %2921
  %2923 = vrot.lane.b32.xlu0 %v524, 16
  %v2924 = vpop.permute.xlu0 %2923
  %2925 = vrot.lane.b32.xlu0 %v530, 16
  %v2926 = vpop.permute.xlu0 %2925
  %2927 = vrot.lane.b32.xlu0 %v536, 16
  %v2928 = vpop.permute.xlu0 %2927
  %2929 = vrot.lane.b32.xlu0 %v542, 16
  %v2930 = vpop.permute.xlu0 %2929
  %2931 = vrot.lane.b32.xlu0 %v548, 16
  %v2932 = vpop.permute.xlu0 %2931
  %2933 = vrot.lane.b32.xlu0 %v554, 16
  %v2934 = vpop.permute.xlu0 %2933
  %2935 = vrot.lane.b32.xlu0 %v560, 16
  %v2936 = vpop.permute.xlu0 %2935
  %2937 = vrot.lane.b32.xlu0 %v566, 16
  %v2938 = vpop.permute.xlu0 %2937
  %2939 = vrot.lane.b32.xlu0 %v572, 16
  %v2940 = vpop.permute.xlu0 %2939
  %2941 = vrot.lane.b32.xlu0 %v578, 16
  %v2942 = vpop.permute.xlu0 %2941
  %2943 = vrot.lane.b32.xlu0 %v584, 16
  %v2944 = vpop.permute.xlu0 %2943
  %2945 = vrot.lane.b32.xlu0 %v590, 16
  %v2946 = vpop.permute.xlu0 %2945
  %2947 = vrot.lane.b32.xlu0 %v596, 16
  %v2948 = vpop.permute.xlu0 %2947
  %2949 = vrot.lane.b32.xlu0 %v602, 16
  %v2950 = vpop.permute.xlu0 %2949
  %2951 = vrot.lane.b32.xlu0 %v608, 16
  %v2952 = vpop.permute.xlu0 %2951
  %2953 = vrot.lane.b32.xlu0 %v614, 16
  %v2954 = vpop.permute.xlu0 %2953
  %2955 = vrot.lane.b32.xlu0 %v620, 16
  %v2956 = vpop.permute.xlu0 %2955
  %2957 = vrot.lane.b32.xlu0 %v626, 16
  %v2958 = vpop.permute.xlu0 %2957
  %2959 = vrot.lane.b32.xlu0 %v632, 16
  %v2960 = vpop.permute.xlu0 %2959
  %2961 = vrot.lane.b32.xlu0 %v638, 16
  %v2962 = vpop.permute.xlu0 %2961
  %2963 = vrot.lane.b32.xlu0 %v644, 16
  %v2964 = vpop.permute.xlu0 %2963
  %2965 = vrot.lane.b32.xlu0 %v650, 16
  %v2966 = vpop.permute.xlu0 %2965
  %2967 = vrot.lane.b32.xlu0 %v656, 16
  %v2968 = vpop.permute.xlu0 %2967
  %2969 = vrot.lane.b32.xlu0 %v662, 16
  %v2970 = vpop.permute.xlu0 %2969
  %2971 = vrot.lane.b32.xlu0 %v668, 16
  %v2972 = vpop.permute.xlu0 %2971
  %2973 = vrot.lane.b32.xlu0 %v674, 16
  %v2974 = vpop.permute.xlu0 %2973
  %2975 = vrot.lane.b32.xlu0 %v680, 16
  %v2976 = vpop.permute.xlu0 %2975
  %2977 = vrot.lane.b32.xlu0 %v686, 16
  %v2978 = vpop.permute.xlu0 %2977
  %2979 = vrot.lane.b32.xlu0 %v692, 16
  %v2980 = vpop.permute.xlu0 %2979
  %2981 = vrot.lane.b32.xlu0 %v698, 16
  %v2982 = vpop.permute.xlu0 %2981
  %2983 = vrot.lane.b32.xlu0 %v704, 16
  %v2984 = vpop.permute.xlu0 %2983
  %v2985 = vsel %vm1040, %v2886, 0
  %v2987 = vsel %vm1040, %v2888, 0
  %v2989 = vsel %vm1040, %v2890, 0
  %v2991 = vsel %vm1040, %v2892, 0
  %v2993 = vsel %vm1040, %v2894, 0
  %v2995 = vsel %vm1040, %v2896, 0
  %v2997 = vsel %vm1040, %v2898, 0
  %v2999 = vsel %vm1040, %v2900, 0
  %v3001 = vsel %vm1040, %v2902, 0
  %v3003 = vsel %vm1040, %v2904, 0
  %v3005 = vsel %vm1040, %v2906, 0
  %v3007 = vsel %vm1040, %v2908, 0
  %v3009 = vsel %vm1040, %v2910, 0
  %v3011 = vsel %vm1040, %v2912, 0
  %v3013 = vsel %vm1040, %v2914, 0
  %v3015 = vsel %vm1040, %v2916, 0
  %v3017 = vsel %vm1040, %v2918, 0
  %v3019 = vsel %vm1040, %v2920, 0
  %v3021 = vsel %vm1040, %v2922, 0
  %v3023 = vsel %vm1040, %v2924, 0
  %v3025 = vsel %vm1040, %v2926, 0
  %v3027 = vsel %vm1040, %v2928, 0
  %v3029 = vsel %vm1040, %v2930, 0
  %v3031 = vsel %vm1040, %v2932, 0
  %v3033 = vsel %vm1040, %v2934, 0
  %v3035 = vsel %vm1040, %v2936, 0
  %v3037 = vsel %vm1040, %v2938, 0
  %v3039 = vsel %vm1040, %v2940, 0
  %v3041 = vsel %vm1040, %v2942, 0
  %v3043 = vsel %vm1040, %v2944, 0
  %v3045 = vsel %vm1040, %v2946, 0
  %v3047 = vsel %vm1040, %v2948, 0
  %v3049 = vsel %vm1040, %v2950, 0
  %v3051 = vsel %vm1040, %v2952, 0
  %v3053 = vsel %vm1040, %v2954, 0
  %v3055 = vsel %vm1040, %v2956, 0
  %v3057 = vsel %vm1040, %v2958, 0
  %v3059 = vsel %vm1040, %v2960, 0
  %v3061 = vsel %vm1040, %v2962, 0
  %v3063 = vsel %vm1040, %v2964, 0
  %v3065 = vsel %vm1040, %v2966, 0
  %v3067 = vsel %vm1040, %v2968, 0
  %v3069 = vsel %vm1040, %v2970, 0
  %v3071 = vsel %vm1040, %v2972, 0
  %v3073 = vsel %vm1040, %v2974, 0
  %v3075 = vsel %vm1040, %v2976, 0
  %v3077 = vsel %vm1040, %v2978, 0
  %v3079 = vsel %vm1040, %v2980, 0
  %v3081 = vsel %vm1040, %v2982, 0
  %v3083 = vsel %vm1040, %v2984, 0
  %3085 = vmatprep.subr.mxu0 0.0
  %3086 = vmatpush1.xpose.msra.mxu0 %v3017
  %3087 = vmatprep.subr.mxu0 0.0
  %3088 = vmatpush1.xpose.msra.mxu0 %v3015
  %3089 = vmatprep.subr.mxu0 0.0
  %3090 = vmatpush1.xpose.msra.mxu0 %v3013
  %3091 = vmatprep.subr.mxu0 0.0
  %3092 = vmatpush1.xpose.msra.mxu0 %v3011
  %3093 = vmatprep.subr.mxu0 0.0
  %3094 = vmatpush1.xpose.msra.mxu0 %v3009
  %3095 = vmatprep.subr.mxu0 0.0
  %3096 = vmatpush1.xpose.msra.mxu0 %v3007
  %3097 = vmatprep.subr.mxu0 0.0
  %3098 = vmatpush1.xpose.msra.mxu0 %v3005
  %3099 = vmatprep.subr.mxu0 0.0
  %3100 = vmatpush1.xpose.msra.mxu0 %v3003
  %3101 = vmatprep.subr.mxu0 0.0
  %3102 = vmatpush1.xpose.msra.mxu0 %v3001
  %3103 = vmatprep.subr.mxu0 0.0
  %3104 = vmatpush1.xpose.msra.mxu0 %v2999
  %3105 = vmatprep.subr.mxu0 0.0
  %3106 = vmatpush1.xpose.msra.mxu0 %v2997
  %3107 = vmatprep.subr.mxu0 0.0
  %3108 = vmatpush1.xpose.msra.mxu0 %v2995
  %3109 = vmatprep.subr.mxu0 0.0
  %3110 = vmatpush1.xpose.msra.mxu0 %v2993
  %3111 = vmatprep.subr.mxu0 0.0
  %3112 = vmatpush1.xpose.msra.mxu0 %v2991
  %3113 = vmatprep.subr.mxu0 0.0
  %3114 = vmatpush1.xpose.msra.mxu0 %v2989
  %3115 = vmatprep.subr.mxu0 0.0
  %3116 = vmatpush1.xpose.msra.mxu0 %v2987
  %3117 = vmatprep.subr.mxu0 0.0
  %3118 = vmatpush2.xpose.msra.mxu0 %v3049
  %3119 = vmatprep.subr.mxu0 0.0
  %3120 = vmatpush2.xpose.msra.mxu0 %v3047
  %3121 = vmatprep.subr.mxu0 0.0
  %3122 = vmatpush2.xpose.msra.mxu0 %v3045
  %3123 = vmatprep.subr.mxu0 0.0
  %3124 = vmatpush2.xpose.msra.mxu0 %v3043
  %3125 = vmatprep.subr.mxu0 0.0
  %3126 = vmatpush2.xpose.msra.mxu0 %v3041
  %3127 = vmatprep.subr.mxu0 0.0
  %3128 = vmatpush2.xpose.msra.mxu0 %v3039
  %3129 = vmatprep.subr.mxu0 0.0
  %3130 = vmatpush2.xpose.msra.mxu0 %v3037
  %3131 = vmatprep.subr.mxu0 0.0
  %3132 = vmatpush2.xpose.msra.mxu0 %v3035
  %3133 = vmatprep.subr.mxu0 0.0
  %3134 = vmatpush2.xpose.msra.mxu0 %v3033
  %3135 = vmatprep.subr.mxu0 0.0
  %3136 = vmatpush2.xpose.msra.mxu0 %v3031
  %3137 = vmatprep.subr.mxu0 0.0
  %3138 = vmatpush2.xpose.msra.mxu0 %v3029
  %3139 = vmatprep.subr.mxu0 0.0
  %3140 = vmatpush2.xpose.msra.mxu0 %v3027
  %3141 = vmatprep.subr.mxu0 0.0
  %3142 = vmatpush2.xpose.msra.mxu0 %v3025
  %3143 = vmatprep.subr.mxu0 0.0
  %3144 = vmatpush2.xpose.msra.mxu0 %v3023
  %3145 = vmatprep.subr.mxu0 0.0
  %3146 = vmatpush2.xpose.msra.mxu0 %v3021
  %3147 = vmatprep.subr.mxu0 0.0
  %3148 = vmatpush2.xpose.msra.mxu0 %v3019
  %3149 = vmatprep.mubr.f32.mxu0 0.0
  %3150 = vmatmul.mubr.f32.gmra.mxu0 %v2985
  %v3151 = vpop.f32.mrf.mxu0
  %v3152 = vadd.f32 0.0, %v3151
  %v3153 = vpop.f32.mrf.mxu0
  %v3154 = vadd.f32 0.0, %v3153
  %3155 = vdwg.mxu0
  %3156 = vmatprep.subr.mxu0 0.0
  %3157 = vmatpush1.xpose.msra.mxu0 %v3081
  %3158 = vmatprep.subr.mxu0 0.0
  %3159 = vmatpush1.xpose.msra.mxu0 %v3079
  %3160 = vmatprep.subr.mxu0 0.0
  %3161 = vmatpush1.xpose.msra.mxu0 %v3077
  %3162 = vmatprep.subr.mxu0 0.0
  %3163 = vmatpush1.xpose.msra.mxu0 %v3075
  %3164 = vmatprep.subr.mxu0 0.0
  %3165 = vmatpush1.xpose.msra.mxu0 %v3073
  %3166 = vmatprep.subr.mxu0 0.0
  %3167 = vmatpush1.xpose.msra.mxu0 %v3071
  %3168 = vmatprep.subr.mxu0 0.0
  %3169 = vmatpush1.xpose.msra.mxu0 %v3069
  %3170 = vmatprep.subr.mxu0 0.0
  %3171 = vmatpush1.xpose.msra.mxu0 %v3067
  %3172 = vmatprep.subr.mxu0 0.0
  %3173 = vmatpush1.xpose.msra.mxu0 %v3065
  %3174 = vmatprep.subr.mxu0 0.0
  %3175 = vmatpush1.xpose.msra.mxu0 %v3063
  %3176 = vmatprep.subr.mxu0 0.0
  %3177 = vmatpush1.xpose.msra.mxu0 %v3061
  %3178 = vmatprep.subr.mxu0 0.0
  %3179 = vmatpush1.xpose.msra.mxu0 %v3059
  %3180 = vmatprep.subr.mxu0 0.0
  %3181 = vmatpush1.xpose.msra.mxu0 %v3057
  %3182 = vmatprep.subr.mxu0 0.0
  %3183 = vmatpush1.xpose.msra.mxu0 %v3055
  %3184 = vmatprep.subr.mxu0 0.0
  %3185 = vmatpush1.xpose.msra.mxu0 %v3053
  %3186 = vmatprep.subr.mxu0 0.0
  %3187 = vmatpush1.xpose.msra.mxu0 %v3051
  %3188 = vmatprep.subr.mxu0 0.0
  %3189 = vmatpush2.xpose.msra.mxu0 0.0
  %3190 = vmatprep.subr.mxu0 0.0
  %3191 = vmatpush2.xpose.msra.mxu0 0.0
  %3192 = vmatprep.subr.mxu0 0.0
  %3193 = vmatpush2.xpose.msra.mxu0 0.0
  %3194 = vmatprep.subr.mxu0 0.0
  %3195 = vmatpush2.xpose.msra.mxu0 0.0
  %3196 = vmatprep.subr.mxu0 0.0
  %3197 = vmatpush2.xpose.msra.mxu0 0.0
  %3198 = vmatprep.subr.mxu0 0.0
  %3199 = vmatpush2.xpose.msra.mxu0 0.0
  %3200 = vmatprep.subr.mxu0 0.0
  %3201 = vmatpush2.xpose.msra.mxu0 0.0
  %3202 = vmatprep.subr.mxu0 0.0
  %3203 = vmatpush2.xpose.msra.mxu0 0.0
  %3204 = vmatprep.subr.mxu0 0.0
  %3205 = vmatpush2.xpose.msra.mxu0 0.0
  %3206 = vmatprep.subr.mxu0 0.0
  %3207 = vmatpush2.xpose.msra.mxu0 0.0
  %3208 = vmatprep.subr.mxu0 0.0
  %3209 = vmatpush2.xpose.msra.mxu0 0.0
  %3210 = vmatprep.subr.mxu0 0.0
  %3211 = vmatpush2.xpose.msra.mxu0 0.0
  %3212 = vmatprep.subr.mxu0 0.0
  %3213 = vmatpush2.xpose.msra.mxu0 0.0
  %3214 = vmatprep.subr.mxu0 0.0
  %3215 = vmatpush2.xpose.msra.mxu0 0.0
  %3216 = vmatprep.subr.mxu0 0.0
  %3217 = vmatpush2.xpose.msra.mxu0 0.0
  %3218 = vmatprep.subr.mxu0 0.0
  %3219 = vmatpush2.xpose.msra.mxu0 %v3083
  %3220 = vmatprep.mubr.f32.mxu0 0.0
  %3221 = vmatmul.mubr.f32.gmra.mxu0 %v2985
  %v3222 = vpop.f32.mrf.mxu0
  %v3223 = vadd.f32 0.0, %v3222
  %v3224 = vpop.f32.mrf.mxu0
  %v3225 = vadd.f32 0.0, %v3224
  %3226 = vdwg.mxu0
  %v3227 = vsel %vm726, %v3152, -1e+30
  %v3228 = vsel %vm727, %v3154, -1e+30
  %v3229 = vsel %vm728, %v3223, -1e+30
  %v3230 = vsel %vm729, %v3225, -1e+30
  %3231 = vrot.lane.b32.xlu0 %v1292, 80
  %v3232 = vpop.permute.xlu0 %3231
  %v3234 = vsel %vm1040, %v3232, 0.0
  %3235 = vadd.xlane.f32.xlu0 %v3234
  %v3236 = vpop.xlane.xlu0 %3235
  %v3237 = vsel %vm746, %v3230, -inf
  %v3238 = vmax.f32 %v3227, %v3228
  %v3239 = vmax.f32 %v3229, %v3237
  %v3240 = vmax.f32 %v3238, %v3239
  %3241 = vmax.xlane.f32.xlu0 %v3240
  %v3242 = vpop.xlane.xlu0 %3241
  %v3243 = vmax.f32 %v3242, %v3236
  %v3244 = vsub.f32 %v3236, %v3243
  %v3245 = vmul.f32 %v3244, 1.442695
  %v3246 = vpow.pop %v3245
  %v3247 = vsub.f32 %v3227, %v3243
  %v3248 = vsub.f32 %v3228, %v3243
  %v3249 = vsub.f32 %v3229, %v3243
  %v3250 = vsub.f32 %v3230, %v3243
  %v3251 = vmul.f32 %v3247, 1.442695
  %v3252 = vpow.pop %v3251
  %v3253 = vmul.f32 %v3248, 1.442695
  %v3254 = vpow.pop %v3253
  %v3255 = vmul.f32 %v3249, 1.442695
  %v3256 = vpow.pop %v3255
  %v3257 = vmul.f32 %v3250, 1.442695
  %v3258 = vpow.pop %v3257
  %v3259 = vadd.f32 %v3252, %v3254
  %v3260 = vadd.f32 %v3259, %v3256
  %v3261 = vsel %vm746, %v3258, 0.0
  %v3262 = vadd.f32 %v3260, %v3261
  %3263 = vadd.xlane.f32.xlu0 %v3262
  %v3264 = vpop.xlane.xlu0 %3263
  %v3265 = vadd.f32 %v3246, %v3264
  %3266 = vrot.lane.b32.xlu0 %v418, 80
  %v3267 = vpop.permute.xlu0 %3266
  %3268 = vrot.lane.b32.xlu0 %v424, 80
  %v3269 = vpop.permute.xlu0 %3268
  %3270 = vrot.lane.b32.xlu0 %v430, 80
  %v3271 = vpop.permute.xlu0 %3270
  %3272 = vrot.lane.b32.xlu0 %v436, 80
  %v3273 = vpop.permute.xlu0 %3272
  %3274 = vrot.lane.b32.xlu0 %v442, 80
  %v3275 = vpop.permute.xlu0 %3274
  %3276 = vrot.lane.b32.xlu0 %v448, 80
  %v3277 = vpop.permute.xlu0 %3276
  %3278 = vrot.lane.b32.xlu0 %v454, 80
  %v3279 = vpop.permute.xlu0 %3278
  %3280 = vrot.lane.b32.xlu0 %v460, 80
  %v3281 = vpop.permute.xlu0 %3280
  %3282 = vrot.lane.b32.xlu0 %v466, 80
  %v3283 = vpop.permute.xlu0 %3282
  %3284 = vrot.lane.b32.xlu0 %v472, 80
  %v3285 = vpop.permute.xlu0 %3284
  %3286 = vrot.lane.b32.xlu0 %v478, 80
  %v3287 = vpop.permute.xlu0 %3286
  %3288 = vrot.lane.b32.xlu0 %v484, 80
  %v3289 = vpop.permute.xlu0 %3288
  %3290 = vrot.lane.b32.xlu0 %v490, 80
  %v3291 = vpop.permute.xlu0 %3290
  %3292 = vrot.lane.b32.xlu0 %v496, 80
  %v3293 = vpop.permute.xlu0 %3292
  %3294 = vrot.lane.b32.xlu0 %v502, 80
  %v3295 = vpop.permute.xlu0 %3294
  %3296 = vrot.lane.b32.xlu0 %v508, 80
  %v3297 = vpop.permute.xlu0 %3296
  %3298 = vrot.lane.b32.xlu0 %v514, 80
  %v3299 = vpop.permute.xlu0 %3298
  %3300 = vrot.lane.b32.xlu0 %v520, 80
  %v3301 = vpop.permute.xlu0 %3300
  %3302 = vrot.lane.b32.xlu0 %v526, 80
  %v3303 = vpop.permute.xlu0 %3302
  %3304 = vrot.lane.b32.xlu0 %v532, 80
  %v3305 = vpop.permute.xlu0 %3304
  %3306 = vrot.lane.b32.xlu0 %v538, 80
  %v3307 = vpop.permute.xlu0 %3306
  %3308 = vrot.lane.b32.xlu0 %v544, 80
  %v3309 = vpop.permute.xlu0 %3308
  %3310 = vrot.lane.b32.xlu0 %v550, 80
  %v3311 = vpop.permute.xlu0 %3310
  %3312 = vrot.lane.b32.xlu0 %v556, 80
  %v3313 = vpop.permute.xlu0 %3312
  %3314 = vrot.lane.b32.xlu0 %v562, 80
  %v3315 = vpop.permute.xlu0 %3314
  %3316 = vrot.lane.b32.xlu0 %v568, 80
  %v3317 = vpop.permute.xlu0 %3316
  %3318 = vrot.lane.b32.xlu0 %v574, 80
  %v3319 = vpop.permute.xlu0 %3318
  %3320 = vrot.lane.b32.xlu0 %v580, 80
  %v3321 = vpop.permute.xlu0 %3320
  %3322 = vrot.lane.b32.xlu0 %v586, 80
  %v3323 = vpop.permute.xlu0 %3322
  %3324 = vrot.lane.b32.xlu0 %v592, 80
  %v3325 = vpop.permute.xlu0 %3324
  %3326 = vrot.lane.b32.xlu0 %v598, 80
  %v3327 = vpop.permute.xlu0 %3326
  %3328 = vrot.lane.b32.xlu0 %v604, 80
  %v3329 = vpop.permute.xlu0 %3328
  %3330 = vrot.lane.b32.xlu0 %v610, 80
  %v3331 = vpop.permute.xlu0 %3330
  %3332 = vrot.lane.b32.xlu0 %v616, 80
  %v3333 = vpop.permute.xlu0 %3332
  %3334 = vrot.lane.b32.xlu0 %v622, 80
  %v3335 = vpop.permute.xlu0 %3334
  %3336 = vrot.lane.b32.xlu0 %v628, 80
  %v3337 = vpop.permute.xlu0 %3336
  %3338 = vrot.lane.b32.xlu0 %v634, 80
  %v3339 = vpop.permute.xlu0 %3338
  %3340 = vrot.lane.b32.xlu0 %v640, 80
  %v3341 = vpop.permute.xlu0 %3340
  %3342 = vrot.lane.b32.xlu0 %v646, 80
  %v3343 = vpop.permute.xlu0 %3342
  %3344 = vrot.lane.b32.xlu0 %v652, 80
  %v3345 = vpop.permute.xlu0 %3344
  %3346 = vrot.lane.b32.xlu0 %v658, 80
  %v3347 = vpop.permute.xlu0 %3346
  %3348 = vrot.lane.b32.xlu0 %v664, 80
  %v3349 = vpop.permute.xlu0 %3348
  %3350 = vrot.lane.b32.xlu0 %v670, 80
  %v3351 = vpop.permute.xlu0 %3350
  %3352 = vrot.lane.b32.xlu0 %v676, 80
  %v3353 = vpop.permute.xlu0 %3352
  %3354 = vrot.lane.b32.xlu0 %v682, 80
  %v3355 = vpop.permute.xlu0 %3354
  %3356 = vrot.lane.b32.xlu0 %v688, 80
  %v3357 = vpop.permute.xlu0 %3356
  %3358 = vrot.lane.b32.xlu0 %v694, 80
  %v3359 = vpop.permute.xlu0 %3358
  %3360 = vrot.lane.b32.xlu0 %v700, 80
  %v3361 = vpop.permute.xlu0 %3360
  %3362 = vrot.lane.b32.xlu0 %v706, 80
  %v3363 = vpop.permute.xlu0 %3362
  %v3414 = vsel %vm746, %v3258, 0
  %3416 = vmatprep.subr.mxu0 0.0
  %3417 = vmatpush1.msra.mxu0 %v3297
  %3418 = vmatprep.subr.mxu0 0.0
  %3419 = vmatpush1.msra.mxu0 %v3295
  %3420 = vmatprep.subr.mxu0 0.0
  %3421 = vmatpush1.msra.mxu0 %v3293
  %3422 = vmatprep.subr.mxu0 0.0
  %3423 = vmatpush1.msra.mxu0 %v3291
  %3424 = vmatprep.subr.mxu0 0.0
  %3425 = vmatpush1.msra.mxu0 %v3289
  %3426 = vmatprep.subr.mxu0 0.0
  %3427 = vmatpush1.msra.mxu0 %v3287
  %3428 = vmatprep.subr.mxu0 0.0
  %3429 = vmatpush1.msra.mxu0 %v3285
  %3430 = vmatprep.subr.mxu0 0.0
  %3431 = vmatpush1.msra.mxu0 %v3283
  %3432 = vmatprep.subr.mxu0 0.0
  %3433 = vmatpush1.msra.mxu0 %v3281
  %3434 = vmatprep.subr.mxu0 0.0
  %3435 = vmatpush1.msra.mxu0 %v3279
  %3436 = vmatprep.subr.mxu0 0.0
  %3437 = vmatpush1.msra.mxu0 %v3277
  %3438 = vmatprep.subr.mxu0 0.0
  %3439 = vmatpush1.msra.mxu0 %v3275
  %3440 = vmatprep.subr.mxu0 0.0
  %3441 = vmatpush1.msra.mxu0 %v3273
  %3442 = vmatprep.subr.mxu0 0.0
  %3443 = vmatpush1.msra.mxu0 %v3271
  %3444 = vmatprep.subr.mxu0 0.0
  %3445 = vmatpush1.msra.mxu0 %v3269
  %3446 = vmatprep.subr.mxu0 0.0
  %3447 = vmatpush1.msra.mxu0 %v3267
  %3448 = vmatprep.subr.mxu0 0.0
  %3449 = vmatpush2.msra.mxu0 %v3329
  %3450 = vmatprep.subr.mxu0 0.0
  %3451 = vmatpush2.msra.mxu0 %v3327
  %3452 = vmatprep.subr.mxu0 0.0
  %3453 = vmatpush2.msra.mxu0 %v3325
  %3454 = vmatprep.subr.mxu0 0.0
  %3455 = vmatpush2.msra.mxu0 %v3323
  %3456 = vmatprep.subr.mxu0 0.0
  %3457 = vmatpush2.msra.mxu0 %v3321
  %3458 = vmatprep.subr.mxu0 0.0
  %3459 = vmatpush2.msra.mxu0 %v3319
  %3460 = vmatprep.subr.mxu0 0.0
  %3461 = vmatpush2.msra.mxu0 %v3317
  %3462 = vmatprep.subr.mxu0 0.0
  %3463 = vmatpush2.msra.mxu0 %v3315
  %3464 = vmatprep.subr.mxu0 0.0
  %3465 = vmatpush2.msra.mxu0 %v3313
  %3466 = vmatprep.subr.mxu0 0.0
  %3467 = vmatpush2.msra.mxu0 %v3311
  %3468 = vmatprep.subr.mxu0 0.0
  %3469 = vmatpush2.msra.mxu0 %v3309
  %3470 = vmatprep.subr.mxu0 0.0
  %3471 = vmatpush2.msra.mxu0 %v3307
  %3472 = vmatprep.subr.mxu0 0.0
  %3473 = vmatpush2.msra.mxu0 %v3305
  %3474 = vmatprep.subr.mxu0 0.0
  %3475 = vmatpush2.msra.mxu0 %v3303
  %3476 = vmatprep.subr.mxu0 0.0
  %3477 = vmatpush2.msra.mxu0 %v3301
  %3478 = vmatprep.subr.mxu0 0.0
  %3479 = vmatpush2.msra.mxu0 %v3299
  %3480 = vmatprep.mubr.f32.mxu0 %v3254
  %3481 = vmatmul.mubr.f32.gmra.mxu0 %v3252
  %v3482 = vpop.f32.mrf.mxu0
  %v3483 = vadd.f32 0.0, %v3482
  %v3484 = vpop.f32.mrf.mxu0
  %3485 = vdwg.mxu0
  %3486 = vmatprep.subr.mxu0 0.0
  %3487 = vmatpush1.msra.mxu0 %v3361
  %3488 = vmatprep.subr.mxu0 0.0
  %3489 = vmatpush1.msra.mxu0 %v3359
  %3490 = vmatprep.subr.mxu0 0.0
  %3491 = vmatpush1.msra.mxu0 %v3357
  %3492 = vmatprep.subr.mxu0 0.0
  %3493 = vmatpush1.msra.mxu0 %v3355
  %3494 = vmatprep.subr.mxu0 0.0
  %3495 = vmatpush1.msra.mxu0 %v3353
  %3496 = vmatprep.subr.mxu0 0.0
  %3497 = vmatpush1.msra.mxu0 %v3351
  %3498 = vmatprep.subr.mxu0 0.0
  %3499 = vmatpush1.msra.mxu0 %v3349
  %3500 = vmatprep.subr.mxu0 0.0
  %3501 = vmatpush1.msra.mxu0 %v3347
  %3502 = vmatprep.subr.mxu0 0.0
  %3503 = vmatpush1.msra.mxu0 %v3345
  %3504 = vmatprep.subr.mxu0 0.0
  %3505 = vmatpush1.msra.mxu0 %v3343
  %3506 = vmatprep.subr.mxu0 0.0
  %3507 = vmatpush1.msra.mxu0 %v3341
  %3508 = vmatprep.subr.mxu0 0.0
  %3509 = vmatpush1.msra.mxu0 %v3339
  %3510 = vmatprep.subr.mxu0 0.0
  %3511 = vmatpush1.msra.mxu0 %v3337
  %3512 = vmatprep.subr.mxu0 0.0
  %3513 = vmatpush1.msra.mxu0 %v3335
  %3514 = vmatprep.subr.mxu0 0.0
  %3515 = vmatpush1.msra.mxu0 %v3333
  %3516 = vmatprep.subr.mxu0 0.0
  %3517 = vmatpush1.msra.mxu0 %v3331
  %3518 = vmatprep.subr.mxu0 0.0
  %3519 = vmatpush2.msra.mxu0 0.0
  %3520 = vmatprep.subr.mxu0 0.0
  %3521 = vmatpush2.msra.mxu0 0.0
  %3522 = vmatprep.subr.mxu0 0.0
  %3523 = vmatpush2.msra.mxu0 0.0
  %3524 = vmatprep.subr.mxu0 0.0
  %3525 = vmatpush2.msra.mxu0 0.0
  %3526 = vmatprep.subr.mxu0 0.0
  %3527 = vmatpush2.msra.mxu0 0.0
  %3528 = vmatprep.subr.mxu0 0.0
  %3529 = vmatpush2.msra.mxu0 0.0
  %3530 = vmatprep.subr.mxu0 0.0
  %3531 = vmatpush2.msra.mxu0 0.0
  %3532 = vmatprep.subr.mxu0 0.0
  %3533 = vmatpush2.msra.mxu0 0.0
  %3534 = vmatprep.subr.mxu0 0.0
  %3535 = vmatpush2.msra.mxu0 0.0
  %3536 = vmatprep.subr.mxu0 0.0
  %3537 = vmatpush2.msra.mxu0 0.0
  %3538 = vmatprep.subr.mxu0 0.0
  %3539 = vmatpush2.msra.mxu0 0.0
  %3540 = vmatprep.subr.mxu0 0.0
  %3541 = vmatpush2.msra.mxu0 0.0
  %3542 = vmatprep.subr.mxu0 0.0
  %3543 = vmatpush2.msra.mxu0 0.0
  %3544 = vmatprep.subr.mxu0 0.0
  %3545 = vmatpush2.msra.mxu0 0.0
  %3546 = vmatprep.subr.mxu0 0.0
  %3547 = vmatpush2.msra.mxu0 0.0
  %3548 = vmatprep.subr.mxu0 0.0
  %3549 = vmatpush2.msra.mxu0 %v3363
  %3550 = vmatprep.mubr.f32.mxu0 %v3414
  %3551 = vmatmul.mubr.f32.gmra.mxu0 %v3256
  %v3552 = vpop.f32.mrf.mxu0
  %v3553 = vadd.f32 %v3483, %v3552
  %v3554 = vpop.f32.mrf.mxu0
  %3555 = vdwg.mxu0
  %v3556 = vmul.f32 %v3246, %v890
  %3558 = vrot.lane.b32.xlu0 %v3553, 48
  %v3559 = vpop.permute.xlu0 %3558
  %v3561 = vadd.f32 %v3556, %v3559
  %v3562 = vrcp.pop %v3265
  %v3563 = vmul.f32 %v3561, %v3562
  %vm3564 = vcmask 523648
  %3565 = vst.msk [vmem:[#allocation2] sm:$0xff] %vm3564, %v3563
  %v3566 = vld [vmem:[#allocation2] sm:$0xff]
  %v3567 = vld [vmem:[%s5] sm:$0xff]
  %v3568 = vld [vmem:[%s5 + $0x8] sm:$0xff]
  %v3569 = vld [vmem:[%s5 + $0x10] sm:$0xff]
  %v3570 = vld [vmem:[%s5 + $0x18] sm:$0xff]
  %v3571 = vld [vmem:[%s5 + $0x20] sm:$0xff]
  %v3572 = vld [vmem:[%s5 + $0x28] sm:$0xff]
  %v3573 = vld [vmem:[%s5 + $0x30] sm:$0xff]
  %v3574 = vld [vmem:[%s5 + $0x38] sm:$0xff]
  %v3575 = vld [vmem:[%s6] sm:$0x1]
  %v3577 = vlaneseq
  %v3578 = vshrl.u32 %v3577, 7
  %v3579 = vsub.s32 0, %v3578
  %v3580 = vrot.slane %v3575, %v3579
  %v3583 = vsel %vm201, %v3566, 0
  %3585 = vmatprep.subr.mxu0 0.0
  %3586 = vmatpush1.msra.mxu0 0.0
  %3587 = vmatprep.subr.mxu0 0.0
  %3588 = vmatpush1.msra.mxu0 0.0
  %3589 = vmatprep.subr.mxu0 0.0
  %3590 = vmatpush1.msra.mxu0 0.0
  %3591 = vmatprep.subr.mxu0 0.0
  %3592 = vmatpush1.msra.mxu0 0.0
  %3593 = vmatprep.subr.mxu0 0.0
  %3594 = vmatpush1.msra.mxu0 0.0
  %3595 = vmatprep.subr.mxu0 0.0
  %3596 = vmatpush1.msra.mxu0 0.0
  %3597 = vmatprep.subr.mxu0 0.0
  %3598 = vmatpush1.msra.mxu0 0.0
  %3599 = vmatprep.subr.mxu0 0.0
  %3600 = vmatpush1.msra.mxu0 0.0
  %3601 = vmatprep.subr.mxu0 0.0
  %3602 = vmatpush1.msra.mxu0 %v3574
  %3603 = vmatprep.subr.mxu0 0.0
  %3604 = vmatpush1.msra.mxu0 %v3573
  %3605 = vmatprep.subr.mxu0 0.0
  %3606 = vmatpush1.msra.mxu0 %v3572
  %3607 = vmatprep.subr.mxu0 0.0
  %3608 = vmatpush1.msra.mxu0 %v3571
  %3609 = vmatprep.subr.mxu0 0.0
  %3610 = vmatpush1.msra.mxu0 %v3570
  %3611 = vmatprep.subr.mxu0 0.0
  %3612 = vmatpush1.msra.mxu0 %v3569
  %3613 = vmatprep.subr.mxu0 0.0
  %3614 = vmatpush1.msra.mxu0 %v3568
  %3615 = vmatprep.subr.mxu0 0.0
  %3616 = vmatpush1.msra.mxu0 %v3567
  %3617 = vmatprep.subr.mxu0 0.0
  %3618 = vmatpush2.msra.mxu0 0.0
  %3619 = vmatprep.subr.mxu0 0.0
  %3620 = vmatpush2.msra.mxu0 0.0
  %3621 = vmatprep.subr.mxu0 0.0
  %3622 = vmatpush2.msra.mxu0 0.0
  %3623 = vmatprep.subr.mxu0 0.0
  %3624 = vmatpush2.msra.mxu0 0.0
  %3625 = vmatprep.subr.mxu0 0.0
  %3626 = vmatpush2.msra.mxu0 0.0
  %3627 = vmatprep.subr.mxu0 0.0
  %3628 = vmatpush2.msra.mxu0 0.0
  %3629 = vmatprep.subr.mxu0 0.0
  %3630 = vmatpush2.msra.mxu0 0.0
  %3631 = vmatprep.subr.mxu0 0.0
  %3632 = vmatpush2.msra.mxu0 0.0
  %3633 = vmatprep.subr.mxu0 0.0
  %3634 = vmatpush2.msra.mxu0 0.0
  %3635 = vmatprep.subr.mxu0 0.0
  %3636 = vmatpush2.msra.mxu0 0.0
  %3637 = vmatprep.subr.mxu0 0.0
  %3638 = vmatpush2.msra.mxu0 0.0
  %3639 = vmatprep.subr.mxu0 0.0
  %3640 = vmatpush2.msra.mxu0 0.0
  %3641 = vmatprep.subr.mxu0 0.0
  %3642 = vmatpush2.msra.mxu0 0.0
  %3643 = vmatprep.subr.mxu0 0.0
  %3644 = vmatpush2.msra.mxu0 0.0
  %3645 = vmatprep.subr.mxu0 0.0
  %3646 = vmatpush2.msra.mxu0 0.0
  %3647 = vmatprep.subr.mxu0 0.0
  %3648 = vmatpush2.msra.mxu0 0.0
  %3649 = vmatprep.mubr.f32.mxu0 0.0
  %3650 = vmatmul.mubr.f32.gmra.mxu0 %v3583
  %v3651 = vpop.f32.mrf.mxu0
  %v3652 = vadd.f32 %v3580, %v3651
  %v3653 = vpop.f32.mrf.mxu0
  %3654 = vdwg.mxu0
  %vm3655 = vcmask 261120
  %3656 = vst.msk [vmem:[%s7] sm:$0xff] %vm3655, %v3652
  // Predicated region
  $region30: #{clip_vision_forward.3} parent=0 // pred_check
    _
  $region31: #{clip_vision_forward.3} parent=0 // pred_check_branch
    %3658 = sbr.rel (0) target = $region33
  $region32: #{clip_vision_forward.3} parent=0 // pred_region
    _
  $region33: #{clip_vision_forward.3} parent=0 // pred_fallthru
    _
  // Predicated region
  $region34: #{clip_vision_forward.3} parent=0 // pred_check
    _
  $region35: #{clip_vision_forward.3} parent=0 // pred_check_branch
    %3660 = sbr.rel (0) target = $region37
  $region36: #{clip_vision_forward.3} parent=0 // pred_region
    _
  $region37: #{clip_vision_forward.3} parent=0 // pred_fallthru
    _

// kernel: clip_vision_forward.2
$region0: #{clip_vision_forward.2}
  #allocation0 [shape = 'u32[]', space=smem, size = 0x4, offset = 0x4, fixed_abs, tag = 'smem constant byte address 0x4 - core index']
  #allocation1 [shape = 'u32[144,128]{1,0:T(1,128)}', space=vmem, size = 0x12000, scoped, tag = 'internal scratch']
  %s0 = inlined_call_operand.vmem [shape: f32[392,3072], index: 0, kind: input, shape index: {}]
  %s1 = inlined_call_operand.vmem [shape: f32[3072,64], index: 1, kind: input, shape index: {}]
  %s2 = inlined_call_operand.vmem [shape: f32[1,64], index: 2, kind: input, shape index: {}]
  %s3 = inlined_call_operand.vmem [shape: f32[392,64], index: 3, kind: output, shape index: {}]
  %s4 = sld [smem:[#allocation0]]
  $region22: #{clip_vision_forward.2} parent=0
    _
  %s6 = ssub.s32 1, %s4
  %s7 = scalar_select 0, %s6, %s4
  // Predicated region
  $region2: #{clip_vision_forward.2} parent=0 // pred_check
    _
  $region3: #{clip_vision_forward.2} parent=0 // pred_check_branch
    %9 = sbr.rel (0) target = $region5
  $region4: #{clip_vision_forward.2} parent=0 // pred_region
    _
  $region5: #{clip_vision_forward.2} parent=0 // pred_fallthru
    _
  // Predicated region
  $region6: #{clip_vision_forward.2} parent=0 // pred_check
    _
  $region7: #{clip_vision_forward.2} parent=0 // pred_check_branch
    %11 = sbr.rel (0) target = $region9
  $region8: #{clip_vision_forward.2} parent=0 // pred_region
    _
  $region9: #{clip_vision_forward.2} parent=0 // pred_fallthru
    _
  // Predicated region
  $region10: #{clip_vision_forward.2} parent=0 // pred_check
    _
  $region11: #{clip_vision_forward.2} parent=0 // pred_check_branch
    %13 = sbr.rel (0) target = $region13
  $region12: #{clip_vision_forward.2} parent=0 // pred_region
    _
  $region13: #{clip_vision_forward.2} parent=0 // pred_fallthru
    _
  %v14 = vld [vmem:[%s0] sm:$0xff]
  %v15 = vld [vmem:[%s0 + $0x8] sm:$0xff]
  %v16 = vld [vmem:[%s0 + $0x10] sm:$0xff]
  %v17 = vld [vmem:[%s0 + $0x18] sm:$0xff]
  %v18 = vld [vmem:[%s0 + $0x20] sm:$0xff]
  %v19 = vld [vmem:[%s0 + $0x28] sm:$0xff]
  %v20 = vld [vmem:[%s0 + $0x30] sm:$0xff]
  %v21 = vld [vmem:[%s0 + $0x38] sm:$0xff]
  %v22 = vld [vmem:[%s0 + $0x40] sm:$0xff]
  %v23 = vld [vmem:[%s0 + $0x48] sm:$0xff]
  %v24 = vld [vmem:[%s0 + $0x50] sm:$0xff]
  %v25 = vld [vmem:[%s0 + $0x58] sm:$0xff]
  %v26 = vld [vmem:[%s0 + $0x60] sm:$0xff]
  %v27 = vld [vmem:[%s0 + $0x68] sm:$0xff]
  %v28 = vld [vmem:[%s0 + $0x70] sm:$0xff]
  %v29 = vld [vmem:[%s0 + $0x78] sm:$0xff]
  %v30 = vld [vmem:[%s0 + $0x80] sm:$0xff]
  %v31 = vld [vmem:[%s0 + $0x88] sm:$0xff]
  %v32 = vld [vmem:[%s0 + $0x90] sm:$0xff]
  %v33 = vld [vmem:[%s0 + $0x98] sm:$0xff]
  %v34 = vld [vmem:[%s0 + $0xa0] sm:$0xff]
  %v35 = vld [vmem:[%s0 + $0xa8] sm:$0xff]
  %v36 = vld [vmem:[%s0 + $0xb0] sm:$0xff]
  %v37 = vld [vmem:[%s0 + $0xb8] sm:$0xff]
  %v38 = vld [vmem:[%s0 + $0xc0] sm:$0xff]
  %v39 = vld [vmem:[%s0 + $0xc8] sm:$0xff]
  %v40 = vld [vmem:[%s0 + $0xd0] sm:$0xff]
  %v41 = vld [vmem:[%s0 + $0xd8] sm:$0xff]
  %v42 = vld [vmem:[%s0 + $0xe0] sm:$0xff]
  %v43 = vld [vmem:[%s0 + $0xe8] sm:$0xff]
  %v44 = vld [vmem:[%s0 + $0xf0] sm:$0xff]
  %v45 = vld [vmem:[%s0 + $0xf8] sm:$0xff]
  %v46 = vld [vmem:[%s0 + $0x100] sm:$0xff]
  %v47 = vld [vmem:[%s0 + $0x108] sm:$0xff]
  %v48 = vld [vmem:[%s0 + $0x110] sm:$0xff]
  %v49 = vld [vmem:[%s0 + $0x118] sm:$0xff]
  %v50 = vld [vmem:[%s0 + $0x120] sm:$0xff]
  %v51 = vld [vmem:[%s0 + $0x128] sm:$0xff]
  %v52 = vld [vmem:[%s0 + $0x130] sm:$0xff]
  %v53 = vld [vmem:[%s0 + $0x138] sm:$0xff]
  %v54 = vld [vmem:[%s0 + $0x140] sm:$0xff]
  %v55 = vld [vmem:[%s0 + $0x148] sm:$0xff]
  %v56 = vld [vmem:[%s0 + $0x150] sm:$0xff]
  %v57 = vld [vmem:[%s0 + $0x158] sm:$0xff]
  %v58 = vld [vmem:[%s0 + $0x160] sm:$0xff]
  %v59 = vld [vmem:[%s0 + $0x168] sm:$0xff]
  %v60 = vld [vmem:[%s0 + $0x170] sm:$0xff]
  %v61 = vld [vmem:[%s0 + $0x178] sm:$0xff]
  %v62 = vld [vmem:[%s0 + $0x180] sm:$0xff]
  %v63 = vld [vmem:[%s0 + $0x188] sm:$0xff]
  %v64 = vld [vmem:[%s0 + $0x190] sm:$0xff]
  %v65 = vld [vmem:[%s0 + $0x198] sm:$0xff]
  %v66 = vld [vmem:[%s0 + $0x1a0] sm:$0xff]
  %v67 = vld [vmem:[%s0 + $0x1a8] sm:$0xff]
  %v68 = vld [vmem:[%s0 + $0x1b0] sm:$0xff]
  %v69 = vld [vmem:[%s0 + $0x1b8] sm:$0xff]
  %v70 = vld [vmem:[%s0 + $0x1c0] sm:$0xff]
  %v71 = vld [vmem:[%s0 + $0x1c8] sm:$0xff]
  %v72 = vld [vmem:[%s0 + $0x1d0] sm:$0xff]
  %v73 = vld [vmem:[%s0 + $0x1d8] sm:$0xff]
  %v74 = vld [vmem:[%s0 + $0x1e0] sm:$0xff]
  %v75 = vld [vmem:[%s0 + $0x1e8] sm:$0xff]
  %v76 = vld [vmem:[%s0 + $0x1f0] sm:$0xff]
  %v77 = vld [vmem:[%s0 + $0x1f8] sm:$0xff]
  %v78 = vld [vmem:[%s0 + $0x200] sm:$0xff]
  %v79 = vld [vmem:[%s0 + $0x208] sm:$0xff]
  %v80 = vld [vmem:[%s0 + $0x210] sm:$0xff]
  %v81 = vld [vmem:[%s0 + $0x218] sm:$0xff]
  %v82 = vld [vmem:[%s0 + $0x220] sm:$0xff]
  %v83 = vld [vmem:[%s0 + $0x228] sm:$0xff]
  %v84 = vld [vmem:[%s0 + $0x230] sm:$0xff]
  %v85 = vld [vmem:[%s0 + $0x238] sm:$0xff]
  %v86 = vld [vmem:[%s0 + $0x240] sm:$0xff]
  %v87 = vld [vmem:[%s0 + $0x248] sm:$0xff]
  %v88 = vld [vmem:[%s0 + $0x250] sm:$0xff]
  %v89 = vld [vmem:[%s0 + $0x258] sm:$0xff]
  %v90 = vld [vmem:[%s0 + $0x260] sm:$0xff]
  %v91 = vld [vmem:[%s0 + $0x268] sm:$0xff]
  %v92 = vld [vmem:[%s0 + $0x270] sm:$0xff]
  %v93 = vld [vmem:[%s0 + $0x278] sm:$0xff]
  %v94 = vld [vmem:[%s0 + $0x280] sm:$0xff]
  %v95 = vld [vmem:[%s0 + $0x288] sm:$0xff]
  %v96 = vld [vmem:[%s0 + $0x290] sm:$0xff]
  %v97 = vld [vmem:[%s0 + $0x298] sm:$0xff]
  %v98 = vld [vmem:[%s0 + $0x2a0] sm:$0xff]
  %v99 = vld [vmem:[%s0 + $0x2a8] sm:$0xff]
  %v100 = vld [vmem:[%s0 + $0x2b0] sm:$0xff]
  %v101 = vld [vmem:[%s0 + $0x2b8] sm:$0xff]
  %v102 = vld [vmem:[%s0 + $0x2c0] sm:$0xff]
  %v103 = vld [vmem:[%s0 + $0x2c8] sm:$0xff]
  %v104 = vld [vmem:[%s0 + $0x2d0] sm:$0xff]
  %v105 = vld [vmem:[%s0 + $0x2d8] sm:$0xff]
  %v106 = vld [vmem:[%s0 + $0x2e0] sm:$0xff]
  %v107 = vld [vmem:[%s0 + $0x2e8] sm:$0xff]
  %v108 = vld [vmem:[%s0 + $0x2f0] sm:$0xff]
  %v109 = vld [vmem:[%s0 + $0x2f8] sm:$0xff]
  %v110 = vld [vmem:[%s0 + $0x300] sm:$0xff]
  %v111 = vld [vmem:[%s0 + $0x308] sm:$0xff]
  %v112 = vld [vmem:[%s0 + $0x310] sm:$0xff]
  %v113 = vld [vmem:[%s0 + $0x318] sm:$0xff]
  %v114 = vld [vmem:[%s0 + $0x320] sm:$0xff]
  %v115 = vld [vmem:[%s0 + $0x328] sm:$0xff]
  %v116 = vld [vmem:[%s0 + $0x330] sm:$0xff]
  %v117 = vld [vmem:[%s0 + $0x338] sm:$0xff]
  %v118 = vld [vmem:[%s0 + $0x340] sm:$0xff]
  %v119 = vld [vmem:[%s0 + $0x348] sm:$0xff]
  %v120 = vld [vmem:[%s0 + $0x350] sm:$0xff]
  %v121 = vld [vmem:[%s0 + $0x358] sm:$0xff]
  %v122 = vld [vmem:[%s0 + $0x360] sm:$0xff]
  %v123 = vld [vmem:[%s0 + $0x368] sm:$0xff]
  %v124 = vld [vmem:[%s0 + $0x370] sm:$0xff]
  %v125 = vld [vmem:[%s0 + $0x378] sm:$0xff]
  %v126 = vld [vmem:[%s0 + $0x380] sm:$0xff]
  %v127 = vld [vmem:[%s0 + $0x388] sm:$0xff]
  %v128 = vld [vmem:[%s0 + $0x390] sm:$0xff]
  %v129 = vld [vmem:[%s0 + $0x398] sm:$0xff]
  %v130 = vld [vmem:[%s0 + $0x3a0] sm:$0xff]
  %v131 = vld [vmem:[%s0 + $0x3a8] sm:$0xff]
  %v132 = vld [vmem:[%s0 + $0x3b0] sm:$0xff]
  %v133 = vld [vmem:[%s0 + $0x3b8] sm:$0xff]
  %v134 = vld [vmem:[%s0 + $0x3c0] sm:$0xff]
  %v135 = vld [vmem:[%s0 + $0x3c8] sm:$0xff]
  %v136 = vld [vmem:[%s0 + $0x3d0] sm:$0xff]
  %v137 = vld [vmem:[%s0 + $0x3d8] sm:$0xff]
  %v138 = vld [vmem:[%s0 + $0x3e0] sm:$0xff]
  %v139 = vld [vmem:[%s0 + $0x3e8] sm:$0xff]
  %v140 = vld [vmem:[%s0 + $0x3f0] sm:$0xff]
  %v141 = vld [vmem:[%s0 + $0x3f8] sm:$0xff]
  %v142 = vld [vmem:[%s0 + $0x400] sm:$0xff]
  %v143 = vld [vmem:[%s0 + $0x408] sm:$0xff]
  %v144 = vld [vmem:[%s0 + $0x410] sm:$0xff]
  %v145 = vld [vmem:[%s0 + $0x418] sm:$0xff]
  %v146 = vld [vmem:[%s0 + $0x420] sm:$0xff]
  %v147 = vld [vmem:[%s0 + $0x428] sm:$0xff]
  %v148 = vld [vmem:[%s0 + $0x430] sm:$0xff]
  %v149 = vld [vmem:[%s0 + $0x438] sm:$0xff]
  %v150 = vld [vmem:[%s0 + $0x440] sm:$0xff]
  %v151 = vld [vmem:[%s0 + $0x448] sm:$0xff]
  %v152 = vld [vmem:[%s0 + $0x450] sm:$0xff]
  %v153 = vld [vmem:[%s0 + $0x458] sm:$0xff]
  %v154 = vld [vmem:[%s0 + $0x460] sm:$0xff]
  %v155 = vld [vmem:[%s0 + $0x468] sm:$0xff]
  %v156 = vld [vmem:[%s0 + $0x470] sm:$0xff]
  %v157 = vld [vmem:[%s0 + $0x478] sm:$0xff]
  %v158 = vld [vmem:[%s0 + $0x480] sm:$0xff]
  %v159 = vld [vmem:[%s0 + $0x488] sm:$0xff]
  %v160 = vld [vmem:[%s0 + $0x490] sm:$0xff]
  %v161 = vld [vmem:[%s0 + $0x498] sm:$0xff]
  %v162 = vld [vmem:[%s0 + $0x4a0] sm:$0xff]
  %v163 = vld [vmem:[%s0 + $0x4a8] sm:$0xff]
  %v164 = vld [vmem:[%s0 + $0x4b0] sm:$0xff]
  %v165 = vld [vmem:[%s0 + $0x4b8] sm:$0xff]
  %v166 = vld [vmem:[%s0 + $0x4c0] sm:$0xff]
  %v167 = vld [vmem:[%s0 + $0x4c8] sm:$0xff]
  %v168 = vld [vmem:[%s0 + $0x4d0] sm:$0xff]
  %v169 = vld [vmem:[%s0 + $0x4d8] sm:$0xff]
  %v170 = vld [vmem:[%s0 + $0x4e0] sm:$0xff]
  %v171 = vld [vmem:[%s0 + $0x4e8] sm:$0xff]
  %v172 = vld [vmem:[%s0 + $0x4f0] sm:$0xff]
  %v173 = vld [vmem:[%s0 + $0x4f8] sm:$0xff]
  %v174 = vld [vmem:[%s0 + $0x500] sm:$0xff]
  %v175 = vld [vmem:[%s0 + $0x508] sm:$0xff]
  %v176 = vld [vmem:[%s0 + $0x510] sm:$0xff]
  %v177 = vld [vmem:[%s0 + $0x518] sm:$0xff]
  %v178 = vld [vmem:[%s0 + $0x520] sm:$0xff]
  %v179 = vld [vmem:[%s0 + $0x528] sm:$0xff]
  %v180 = vld [vmem:[%s0 + $0x530] sm:$0xff]
  %v181 = vld [vmem:[%s0 + $0x538] sm:$0xff]
  %v182 = vld [vmem:[%s0 + $0x540] sm:$0xff]
  %v183 = vld [vmem:[%s0 + $0x548] sm:$0xff]
  %v184 = vld [vmem:[%s0 + $0x550] sm:$0xff]
  %v185 = vld [vmem:[%s0 + $0x558] sm:$0xff]
  %v186 = vld [vmem:[%s0 + $0x560] sm:$0xff]
  %v187 = vld [vmem:[%s0 + $0x568] sm:$0xff]
  %v188 = vld [vmem:[%s0 + $0x570] sm:$0xff]
  %v189 = vld [vmem:[%s0 + $0x578] sm:$0xff]
  %v190 = vld [vmem:[%s0 + $0x580] sm:$0xff]
  %v191 = vld [vmem:[%s0 + $0x588] sm:$0xff]
  %v192 = vld [vmem:[%s0 + $0x590] sm:$0xff]
  %v193 = vld [vmem:[%s0 + $0x598] sm:$0xff]
  %v194 = vld [vmem:[%s0 + $0x5a0] sm:$0xff]
  %v195 = vld [vmem:[%s0 + $0x5a8] sm:$0xff]
  %v196 = vld [vmem:[%s0 + $0x5b0] sm:$0xff]
  %v197 = vld [vmem:[%s0 + $0x5b8] sm:$0xff]
  %v198 = vld [vmem:[%s0 + $0x5c0] sm:$0xff]
  %v199 = vld [vmem:[%s0 + $0x5c8] sm:$0xff]
  %v200 = vld [vmem:[%s0 + $0x5d0] sm:$0xff]
  %v201 = vld [vmem:[%s0 + $0x5d8] sm:$0xff]
  %v202 = vld [vmem:[%s0 + $0x5e0] sm:$0xff]
  %v203 = vld [vmem:[%s0 + $0x5e8] sm:$0xff]
  %v204 = vld [vmem:[%s0 + $0x5f0] sm:$0xff]
  %v205 = vld [vmem:[%s0 + $0x5f8] sm:$0xff]
  %v206 = vld [vmem:[%s0 + $0x600] sm:$0xff]
  %v207 = vld [vmem:[%s0 + $0x608] sm:$0xff]
  %v208 = vld [vmem:[%s0 + $0x610] sm:$0xff]
  %v209 = vld [vmem:[%s0 + $0x618] sm:$0xff]
  %v210 = vld [vmem:[%s0 + $0x620] sm:$0xff]
  %v211 = vld [vmem:[%s0 + $0x628] sm:$0xff]
  %v212 = vld [vmem:[%s0 + $0x630] sm:$0xff]
  %v213 = vld [vmem:[%s0 + $0x638] sm:$0xff]
  %v214 = vld [vmem:[%s0 + $0x640] sm:$0xff]
  %v215 = vld [vmem:[%s0 + $0x648] sm:$0xff]
  %v216 = vld [vmem:[%s0 + $0x650] sm:$0xff]
  %v217 = vld [vmem:[%s0 + $0x658] sm:$0xff]
  %v218 = vld [vmem:[%s0 + $0x660] sm:$0xff]
  %v219 = vld [vmem:[%s0 + $0x668] sm:$0xff]
  %v220 = vld [vmem:[%s0 + $0x670] sm:$0xff]
  %v221 = vld [vmem:[%s0 + $0x678] sm:$0xff]
  %v222 = vld [vmem:[%s0 + $0x680] sm:$0xff]
  %v223 = vld [vmem:[%s0 + $0x688] sm:$0xff]
  %v224 = vld [vmem:[%s0 + $0x690] sm:$0xff]
  %v225 = vld [vmem:[%s0 + $0x698] sm:$0xff]
  %v226 = vld [vmem:[%s0 + $0x6a0] sm:$0xff]
  %v227 = vld [vmem:[%s0 + $0x6a8] sm:$0xff]
  %v228 = vld [vmem:[%s0 + $0x6b0] sm:$0xff]
  %v229 = vld [vmem:[%s0 + $0x6b8] sm:$0xff]
  %v230 = vld [vmem:[%s0 + $0x6c0] sm:$0xff]
  %v231 = vld [vmem:[%s0 + $0x6c8] sm:$0xff]
  %v232 = vld [vmem:[%s0 + $0x6d0] sm:$0xff]
  %v233 = vld [vmem:[%s0 + $0x6d8] sm:$0xff]
  %v234 = vld [vmem:[%s0 + $0x6e0] sm:$0xff]
  %v235 = vld [vmem:[%s0 + $0x6e8] sm:$0xff]
  %v236 = vld [vmem:[%s0 + $0x6f0] sm:$0xff]
  %v237 = vld [vmem:[%s0 + $0x6f8] sm:$0xff]
  %v238 = vld [vmem:[%s0 + $0x700] sm:$0xff]
  %v239 = vld [vmem:[%s0 + $0x708] sm:$0xff]
  %v240 = vld [vmem:[%s0 + $0x710] sm:$0xff]
  %v241 = vld [vmem:[%s0 + $0x718] sm:$0xff]
  %v242 = vld [vmem:[%s0 + $0x720] sm:$0xff]
  %v243 = vld [vmem:[%s0 + $0x728] sm:$0xff]
  %v244 = vld [vmem:[%s0 + $0x730] sm:$0xff]
  %v245 = vld [vmem:[%s0 + $0x738] sm:$0xff]
  %v246 = vld [vmem:[%s0 + $0x740] sm:$0xff]
  %v247 = vld [vmem:[%s0 + $0x748] sm:$0xff]
  %v248 = vld [vmem:[%s0 + $0x750] sm:$0xff]
  %v249 = vld [vmem:[%s0 + $0x758] sm:$0xff]
  %v250 = vld [vmem:[%s0 + $0x760] sm:$0xff]
  %v251 = vld [vmem:[%s0 + $0x768] sm:$0xff]
  %v252 = vld [vmem:[%s0 + $0x770] sm:$0xff]
  %v253 = vld [vmem:[%s0 + $0x778] sm:$0xff]
  %v254 = vld [vmem:[%s0 + $0x780] sm:$0xff]
  %v255 = vld [vmem:[%s0 + $0x788] sm:$0xff]
  %v256 = vld [vmem:[%s0 + $0x790] sm:$0xff]
  %v257 = vld [vmem:[%s0 + $0x798] sm:$0xff]
  %v258 = vld [vmem:[%s0 + $0x7a0] sm:$0xff]
  %v259 = vld [vmem:[%s0 + $0x7a8] sm:$0xff]
  %v260 = vld [vmem:[%s0 + $0x7b0] sm:$0xff]
  %v261 = vld [vmem:[%s0 + $0x7b8] sm:$0xff]
  %v262 = vld [vmem:[%s0 + $0x7c0] sm:$0xff]
  %v263 = vld [vmem:[%s0 + $0x7c8] sm:$0xff]
  %v264 = vld [vmem:[%s0 + $0x7d0] sm:$0xff]
  %v265 = vld [vmem:[%s0 + $0x7d8] sm:$0xff]
  %v266 = vld [vmem:[%s0 + $0x7e0] sm:$0xff]
  %v267 = vld [vmem:[%s0 + $0x7e8] sm:$0xff]
  %v268 = vld [vmem:[%s0 + $0x7f0] sm:$0xff]
  %v269 = vld [vmem:[%s0 + $0x7f8] sm:$0xff]
  %v270 = vld [vmem:[%s0 + $0x800] sm:$0xff]
  %v271 = vld [vmem:[%s0 + $0x808] sm:$0xff]
  %v272 = vld [vmem:[%s0 + $0x810] sm:$0xff]
  %v273 = vld [vmem:[%s0 + $0x818] sm:$0xff]
  %v274 = vld [vmem:[%s0 + $0x820] sm:$0xff]
  %v275 = vld [vmem:[%s0 + $0x828] sm:$0xff]
  %v276 = vld [vmem:[%s0 + $0x830] sm:$0xff]
  %v277 = vld [vmem:[%s0 + $0x838] sm:$0xff]
  %v278 = vld [vmem:[%s0 + $0x840] sm:$0xff]
  %v279 = vld [vmem:[%s0 + $0x848] sm:$0xff]
  %v280 = vld [vmem:[%s0 + $0x850] sm:$0xff]
  %v281 = vld [vmem:[%s0 + $0x858] sm:$0xff]
  %v282 = vld [vmem:[%s0 + $0x860] sm:$0xff]
  %v283 = vld [vmem:[%s0 + $0x868] sm:$0xff]
  %v284 = vld [vmem:[%s0 + $0x870] sm:$0xff]
  %v285 = vld [vmem:[%s0 + $0x878] sm:$0xff]
  %v286 = vld [vmem:[%s0 + $0x880] sm:$0xff]
  %v287 = vld [vmem:[%s0 + $0x888] sm:$0xff]
  %v288 = vld [vmem:[%s0 + $0x890] sm:$0xff]
  %v289 = vld [vmem:[%s0 + $0x898] sm:$0xff]
  %v290 = vld [vmem:[%s0 + $0x8a0] sm:$0xff]
  %v291 = vld [vmem:[%s0 + $0x8a8] sm:$0xff]
  %v292 = vld [vmem:[%s0 + $0x8b0] sm:$0xff]
  %v293 = vld [vmem:[%s0 + $0x8b8] sm:$0xff]
  %v294 = vld [vmem:[%s0 + $0x8c0] sm:$0xff]
  %v295 = vld [vmem:[%s0 + $0x8c8] sm:$0xff]
  %v296 = vld [vmem:[%s0 + $0x8d0] sm:$0xff]
  %v297 = vld [vmem:[%s0 + $0x8d8] sm:$0xff]
  %v298 = vld [vmem:[%s0 + $0x8e0] sm:$0xff]
  %v299 = vld [vmem:[%s0 + $0x8e8] sm:$0xff]
  %v300 = vld [vmem:[%s0 + $0x8f0] sm:$0xff]
  %v301 = vld [vmem:[%s0 + $0x8f8] sm:$0xff]
  %v302 = vld [vmem:[%s0 + $0x900] sm:$0xff]
  %v303 = vld [vmem:[%s0 + $0x908] sm:$0xff]
  %v304 = vld [vmem:[%s0 + $0x910] sm:$0xff]
  %v305 = vld [vmem:[%s0 + $0x918] sm:$0xff]
  %v306 = vld [vmem:[%s0 + $0x920] sm:$0xff]
  %v307 = vld [vmem:[%s0 + $0x928] sm:$0xff]
  %v308 = vld [vmem:[%s0 + $0x930] sm:$0xff]
  %v309 = vld [vmem:[%s0 + $0x938] sm:$0xff]
  %v310 = vld [vmem:[%s0 + $0x940] sm:$0xff]
  %v311 = vld [vmem:[%s0 + $0x948] sm:$0xff]
  %v312 = vld [vmem:[%s0 + $0x950] sm:$0xff]
  %v313 = vld [vmem:[%s0 + $0x958] sm:$0xff]
  %v314 = vld [vmem:[%s0 + $0x960] sm:$0xff]
  %v315 = vld [vmem:[%s0 + $0x968] sm:$0xff]
  %v316 = vld [vmem:[%s0 + $0x970] sm:$0xff]
  %v317 = vld [vmem:[%s0 + $0x978] sm:$0xff]
  %v318 = vld [vmem:[%s0 + $0x980] sm:$0xff]
  %v319 = vld [vmem:[%s0 + $0x988] sm:$0xff]
  %v320 = vld [vmem:[%s0 + $0x990] sm:$0xff]
  %v321 = vld [vmem:[%s0 + $0x998] sm:$0xff]
  %v322 = vld [vmem:[%s0 + $0x9a0] sm:$0xff]
  %v323 = vld [vmem:[%s0 + $0x9a8] sm:$0xff]
  %v324 = vld [vmem:[%s0 + $0x9b0] sm:$0xff]
  %v325 = vld [vmem:[%s0 + $0x9b8] sm:$0xff]
  %v326 = vld [vmem:[%s0 + $0x9c0] sm:$0xff]
  %v327 = vld [vmem:[%s0 + $0x9c8] sm:$0xff]
  %v328 = vld [vmem:[%s0 + $0x9d0] sm:$0xff]
  %v329 = vld [vmem:[%s0 + $0x9d8] sm:$0xff]
  %v330 = vld [vmem:[%s0 + $0x9e0] sm:$0xff]
  %v331 = vld [vmem:[%s0 + $0x9e8] sm:$0xff]
  %v332 = vld [vmem:[%s0 + $0x9f0] sm:$0xff]
  %v333 = vld [vmem:[%s0 + $0x9f8] sm:$0xff]
  %v334 = vld [vmem:[%s0 + $0xa00] sm:$0xff]
  %v335 = vld [vmem:[%s0 + $0xa08] sm:$0xff]
  %v336 = vld [vmem:[%s0 + $0xa10] sm:$0xff]
  %v337 = vld [vmem:[%s0 + $0xa18] sm:$0xff]
  %v338 = vld [vmem:[%s0 + $0xa20] sm:$0xff]
  %v339 = vld [vmem:[%s0 + $0xa28] sm:$0xff]
  %v340 = vld [vmem:[%s0 + $0xa30] sm:$0xff]
  %v341 = vld [vmem:[%s0 + $0xa38] sm:$0xff]
  %v342 = vld [vmem:[%s0 + $0xa40] sm:$0xff]
  %v343 = vld [vmem:[%s0 + $0xa48] sm:$0xff]
  %v344 = vld [vmem:[%s0 + $0xa50] sm:$0xff]
  %v345 = vld [vmem:[%s0 + $0xa58] sm:$0xff]
  %v346 = vld [vmem:[%s0 + $0xa60] sm:$0xff]
  %v347 = vld [vmem:[%s0 + $0xa68] sm:$0xff]
  %v348 = vld [vmem:[%s0 + $0xa70] sm:$0xff]
  %v349 = vld [vmem:[%s0 + $0xa78] sm:$0xff]
  %v350 = vld [vmem:[%s0 + $0xa80] sm:$0xff]
  %v351 = vld [vmem:[%s0 + $0xa88] sm:$0xff]
  %v352 = vld [vmem:[%s0 + $0xa90] sm:$0xff]
  %v353 = vld [vmem:[%s0 + $0xa98] sm:$0xff]
  %v354 = vld [vmem:[%s0 + $0xaa0] sm:$0xff]
  %v355 = vld [vmem:[%s0 + $0xaa8] sm:$0xff]
  %v356 = vld [vmem:[%s0 + $0xab0] sm:$0xff]
  %v357 = vld [vmem:[%s0 + $0xab8] sm:$0xff]
  %v358 = vld [vmem:[%s0 + $0xac0] sm:$0xff]
  %v359 = vld [vmem:[%s0 + $0xac8] sm:$0xff]
  %v360 = vld [vmem:[%s0 + $0xad0] sm:$0xff]
  %v361 = vld [vmem:[%s0 + $0xad8] sm:$0xff]
  %v362 = vld [vmem:[%s0 + $0xae0] sm:$0xff]
  %v363 = vld [vmem:[%s0 + $0xae8] sm:$0xff]
  %v364 = vld [vmem:[%s0 + $0xaf0] sm:$0xff]
  %v365 = vld [vmem:[%s0 + $0xaf8] sm:$0xff]
  %v366 = vld [vmem:[%s0 + $0xb00] sm:$0xff]
  %v367 = vld [vmem:[%s0 + $0xb08] sm:$0xff]
  %v368 = vld [vmem:[%s0 + $0xb10] sm:$0xff]
  %v369 = vld [vmem:[%s0 + $0xb18] sm:$0xff]
  %v370 = vld [vmem:[%s0 + $0xb20] sm:$0xff]
  %v371 = vld [vmem:[%s0 + $0xb28] sm:$0xff]
  %v372 = vld [vmem:[%s0 + $0xb30] sm:$0xff]
  %v373 = vld [vmem:[%s0 + $0xb38] sm:$0xff]
  %v374 = vld [vmem:[%s0 + $0xb40] sm:$0xff]
  %v375 = vld [vmem:[%s0 + $0xb48] sm:$0xff]
  %v376 = vld [vmem:[%s0 + $0xb50] sm:$0xff]
  %v377 = vld [vmem:[%s0 + $0xb58] sm:$0xff]
  %v378 = vld [vmem:[%s0 + $0xb60] sm:$0xff]
  %v379 = vld [vmem:[%s0 + $0xb68] sm:$0xff]
  %v380 = vld [vmem:[%s0 + $0xb70] sm:$0xff]
  %v381 = vld [vmem:[%s0 + $0xb78] sm:$0xff]
  %v382 = vld [vmem:[%s0 + $0xb80] sm:$0xff]
  %v383 = vld [vmem:[%s0 + $0xb88] sm:$0xff]
  %v384 = vld [vmem:[%s0 + $0xb90] sm:$0xff]
  %v385 = vld [vmem:[%s0 + $0xb98] sm:$0xff]
  %v386 = vld [vmem:[%s0 + $0xba0] sm:$0xff]
  %v387 = vld [vmem:[%s0 + $0xba8] sm:$0xff]
  %v388 = vld [vmem:[%s0 + $0xbb0] sm:$0xff]
  %v389 = vld [vmem:[%s0 + $0xbb8] sm:$0xff]
  %v390 = vld [vmem:[%s0 + $0xbc0] sm:$0xff]
  %v391 = vld [vmem:[%s0 + $0xbc8] sm:$0xff]
  %v392 = vld [vmem:[%s0 + $0xbd0] sm:$0xff]
  %v393 = vld [vmem:[%s0 + $0xbd8] sm:$0xff]
  %v394 = vld [vmem:[%s0 + $0xbe0] sm:$0xff]
  %v395 = vld [vmem:[%s0 + $0xbe8] sm:$0xff]
  %v396 = vld [vmem:[%s0 + $0xbf0] sm:$0xff]
  %v397 = vld [vmem:[%s0 + $0xbf8] sm:$0xff]
  %v398 = vld [vmem:[%s0 + $0xc00] sm:$0xff]
  %v399 = vld [vmem:[%s0 + $0xc08] sm:$0xff]
  %v400 = vld [vmem:[%s0 + $0xc10] sm:$0xff]
  %v401 = vld [vmem:[%s0 + $0xc18] sm:$0xff]
  %v402 = vld [vmem:[%s0 + $0xc20] sm:$0xff]
  %v403 = vld [vmem:[%s0 + $0xc28] sm:$0xff]
  %v404 = vld [vmem:[%s0 + $0xc30] sm:$0xff]
  %v405 = vld [vmem:[%s0 + $0xc38] sm:$0xff]
  %v406 = vld [vmem:[%s0 + $0xc40] sm:$0xff]
  %v407 = vld [vmem:[%s0 + $0xc48] sm:$0xff]
  %v408 = vld [vmem:[%s0 + $0xc50] sm:$0xff]
  %v409 = vld [vmem:[%s0 + $0xc58] sm:$0xff]
  %v410 = vld [vmem:[%s0 + $0xc60] sm:$0xff]
  %v411 = vld [vmem:[%s0 + $0xc68] sm:$0xff]
  %v412 = vld [vmem:[%s0 + $0xc70] sm:$0xff]
  %v413 = vld [vmem:[%s0 + $0xc78] sm:$0xff]
  %v414 = vld [vmem:[%s0 + $0xc80] sm:$0xff]
  %v415 = vld [vmem:[%s0 + $0xc88] sm:$0xff]
  %v416 = vld [vmem:[%s0 + $0xc90] sm:$0xff]
  %v417 = vld [vmem:[%s0 + $0xc98] sm:$0xff]
  %v418 = vld [vmem:[%s0 + $0xca0] sm:$0xff]
  %v419 = vld [vmem:[%s0 + $0xca8] sm:$0xff]
  %v420 = vld [vmem:[%s0 + $0xcb0] sm:$0xff]
  %v421 = vld [vmem:[%s0 + $0xcb8] sm:$0xff]
  %v422 = vld [vmem:[%s0 + $0xcc0] sm:$0xff]
  %v423 = vld [vmem:[%s0 + $0xcc8] sm:$0xff]
  %v424 = vld [vmem:[%s0 + $0xcd0] sm:$0xff]
  %v425 = vld [vmem:[%s0 + $0xcd8] sm:$0xff]
  %v426 = vld [vmem:[%s0 + $0xce0] sm:$0xff]
  %v427 = vld [vmem:[%s0 + $0xce8] sm:$0xff]
  %v428 = vld [vmem:[%s0 + $0xcf0] sm:$0xff]
  %v429 = vld [vmem:[%s0 + $0xcf8] sm:$0xff]
  %v430 = vld [vmem:[%s0 + $0xd00] sm:$0xff]
  %v431 = vld [vmem:[%s0 + $0xd08] sm:$0xff]
  %v432 = vld [vmem:[%s0 + $0xd10] sm:$0xff]
  %v433 = vld [vmem:[%s0 + $0xd18] sm:$0xff]
  %v434 = vld [vmem:[%s0 + $0xd20] sm:$0xff]
  %v435 = vld [vmem:[%s0 + $0xd28] sm:$0xff]
  %v436 = vld [vmem:[%s0 + $0xd30] sm:$0xff]
  %v437 = vld [vmem:[%s0 + $0xd38] sm:$0xff]
  %v438 = vld [vmem:[%s0 + $0xd40] sm:$0xff]
  %v439 = vld [vmem:[%s0 + $0xd48] sm:$0xff]
  %v440 = vld [vmem:[%s0 + $0xd50] sm:$0xff]
  %v441 = vld [vmem:[%s0 + $0xd58] sm:$0xff]
  %v442 = vld [vmem:[%s0 + $0xd60] sm:$0xff]
  %v443 = vld [vmem:[%s0 + $0xd68] sm:$0xff]
  %v444 = vld [vmem:[%s0 + $0xd70] sm:$0xff]
  %v445 = vld [vmem:[%s0 + $0xd78] sm:$0xff]
  %v446 = vld [vmem:[%s0 + $0xd80] sm:$0xff]
  %v447 = vld [vmem:[%s0 + $0xd88] sm:$0xff]
  %v448 = vld [vmem:[%s0 + $0xd90] sm:$0xff]
  %v449 = vld [vmem:[%s0 + $0xd98] sm:$0xff]
  %v450 = vld [vmem:[%s0 + $0xda0] sm:$0xff]
  %v451 = vld [vmem:[%s0 + $0xda8] sm:$0xff]
  %v452 = vld [vmem:[%s0 + $0xdb0] sm:$0xff]
  %v453 = vld [vmem:[%s0 + $0xdb8] sm:$0xff]
  %v454 = vld [vmem:[%s0 + $0xdc0] sm:$0xff]
  %v455 = vld [vmem:[%s0 + $0xdc8] sm:$0xff]
  %v456 = vld [vmem:[%s0 + $0xdd0] sm:$0xff]
  %v457 = vld [vmem:[%s0 + $0xdd8] sm:$0xff]
  %v458 = vld [vmem:[%s0 + $0xde0] sm:$0xff]
  %v459 = vld [vmem:[%s0 + $0xde8] sm:$0xff]
  %v460 = vld [vmem:[%s0 + $0xdf0] sm:$0xff]
  %v461 = vld [vmem:[%s0 + $0xdf8] sm:$0xff]
  %v462 = vld [vmem:[%s0 + $0xe00] sm:$0xff]
  %v463 = vld [vmem:[%s0 + $0xe08] sm:$0xff]
  %v464 = vld [vmem:[%s0 + $0xe10] sm:$0xff]
  %v465 = vld [vmem:[%s0 + $0xe18] sm:$0xff]
  %v466 = vld [vmem:[%s0 + $0xe20] sm:$0xff]
  %v467 = vld [vmem:[%s0 + $0xe28] sm:$0xff]
  %v468 = vld [vmem:[%s0 + $0xe30] sm:$0xff]
  %v469 = vld [vmem:[%s0 + $0xe38] sm:$0xff]
  %v470 = vld [vmem:[%s0 + $0xe40] sm:$0xff]
  %v471 = vld [vmem:[%s0 + $0xe48] sm:$0xff]
  %v472 = vld [vmem:[%s0 + $0xe50] sm:$0xff]
  %v473 = vld [vmem:[%s0 + $0xe58] sm:$0xff]
  %v474 = vld [vmem:[%s0 + $0xe60] sm:$0xff]
  %v475 = vld [vmem:[%s0 + $0xe68] sm:$0xff]
  %v476 = vld [vmem:[%s0 + $0xe70] sm:$0xff]
  %v477 = vld [vmem:[%s0 + $0xe78] sm:$0xff]
  %v478 = vld [vmem:[%s0 + $0xe80] sm:$0xff]
  %v479 = vld [vmem:[%s0 + $0xe88] sm:$0xff]
  %v480 = vld [vmem:[%s0 + $0xe90] sm:$0xff]
  %v481 = vld [vmem:[%s0 + $0xe98] sm:$0xff]
  %v482 = vld [vmem:[%s0 + $0xea0] sm:$0xff]
  %v483 = vld [vmem:[%s0 + $0xea8] sm:$0xff]
  %v484 = vld [vmem:[%s0 + $0xeb0] sm:$0xff]
  %v485 = vld [vmem:[%s0 + $0xeb8] sm:$0xff]
  %v486 = vld [vmem:[%s0 + $0xec0] sm:$0xff]
  %v487 = vld [vmem:[%s0 + $0xec8] sm:$0xff]
  %v488 = vld [vmem:[%s0 + $0xed0] sm:$0xff]
  %v489 = vld [vmem:[%s0 + $0xed8] sm:$0xff]
  %v490 = vld [vmem:[%s0 + $0xee0] sm:$0xff]
  %v491 = vld [vmem:[%s0 + $0xee8] sm:$0xff]
  %v492 = vld [vmem:[%s0 + $0xef0] sm:$0xff]
  %v493 = vld [vmem:[%s0 + $0xef8] sm:$0xff]
  %v494 = vld [vmem:[%s0 + $0xf00] sm:$0xff]
  %v495 = vld [vmem:[%s0 + $0xf08] sm:$0xff]
  %v496 = vld [vmem:[%s0 + $0xf10] sm:$0xff]
  %v497 = vld [vmem:[%s0 + $0xf18] sm:$0xff]
  %v498 = vld [vmem:[%s0 + $0xf20] sm:$0xff]
  %v499 = vld [vmem:[%s0 + $0xf28] sm:$0xff]
  %v500 = vld [vmem:[%s0 + $0xf30] sm:$0xff]
  %v501 = vld [vmem:[%s0 + $0xf38] sm:$0xff]
  %v502 = vld [vmem:[%s0 + $0xf40] sm:$0xff]
  %v503 = vld [vmem:[%s0 + $0xf48] sm:$0xff]
  %v504 = vld [vmem:[%s0 + $0xf50] sm:$0xff]
  %v505 = vld [vmem:[%s0 + $0xf58] sm:$0xff]
  %v506 = vld [vmem:[%s0 + $0xf60] sm:$0xff]
  %v507 = vld [vmem:[%s0 + $0xf68] sm:$0xff]
  %v508 = vld [vmem:[%s0 + $0xf70] sm:$0xff]
  %v509 = vld [vmem:[%s0 + $0xf78] sm:$0xff]
  %v510 = vld [vmem:[%s0 + $0xf80] sm:$0xff]
  %v511 = vld [vmem:[%s0 + $0xf88] sm:$0xff]
  %v512 = vld [vmem:[%s0 + $0xf90] sm:$0xff]
  %v513 = vld [vmem:[%s0 + $0xf98] sm:$0xff]
  %v514 = vld [vmem:[%s0 + $0xfa0] sm:$0xff]
  %v515 = vld [vmem:[%s0 + $0xfa8] sm:$0xff]
  %v516 = vld [vmem:[%s0 + $0xfb0] sm:$0xff]
  %v517 = vld [vmem:[%s0 + $0xfb8] sm:$0xff]
  %v518 = vld [vmem:[%s0 + $0xfc0] sm:$0xff]
  %v519 = vld [vmem:[%s0 + $0xfc8] sm:$0xff]
  %v520 = vld [vmem:[%s0 + $0xfd0] sm:$0xff]
  %v521 = vld [vmem:[%s0 + $0xfd8] sm:$0xff]
  %v522 = vld [vmem:[%s0 + $0xfe0] sm:$0xff]
  %v523 = vld [vmem:[%s0 + $0xfe8] sm:$0xff]
  %v524 = vld [vmem:[%s0 + $0xff0] sm:$0xff]
  %v525 = vld [vmem:[%s0 + $0xff8] sm:$0xff]
  %v526 = vld [vmem:[%s0 + $0x1000] sm:$0xff]
  %v527 = vld [vmem:[%s0 + $0x1008] sm:$0xff]
  %v528 = vld [vmem:[%s0 + $0x1010] sm:$0xff]
  %v529 = vld [vmem:[%s0 + $0x1018] sm:$0xff]
  %v530 = vld [vmem:[%s0 + $0x1020] sm:$0xff]
  %v531 = vld [vmem:[%s0 + $0x1028] sm:$0xff]
  %v532 = vld [vmem:[%s0 + $0x1030] sm:$0xff]
  %v533 = vld [vmem:[%s0 + $0x1038] sm:$0xff]
  %v534 = vld [vmem:[%s0 + $0x1040] sm:$0xff]
  %v535 = vld [vmem:[%s0 + $0x1048] sm:$0xff]
  %v536 = vld [vmem:[%s0 + $0x1050] sm:$0xff]
  %v537 = vld [vmem:[%s0 + $0x1058] sm:$0xff]
  %v538 = vld [vmem:[%s0 + $0x1060] sm:$0xff]
  %v539 = vld [vmem:[%s0 + $0x1068] sm:$0xff]
  %v540 = vld [vmem:[%s0 + $0x1070] sm:$0xff]
  %v541 = vld [vmem:[%s0 + $0x1078] sm:$0xff]
  %v542 = vld [vmem:[%s0 + $0x1080] sm:$0xff]
  %v543 = vld [vmem:[%s0 + $0x1088] sm:$0xff]
  %v544 = vld [vmem:[%s0 + $0x1090] sm:$0xff]
  %v545 = vld [vmem:[%s0 + $0x1098] sm:$0xff]
  %v546 = vld [vmem:[%s0 + $0x10a0] sm:$0xff]
  %v547 = vld [vmem:[%s0 + $0x10a8] sm:$0xff]
  %v548 = vld [vmem:[%s0 + $0x10b0] sm:$0xff]
  %v549 = vld [vmem:[%s0 + $0x10b8] sm:$0xff]
  %v550 = vld [vmem:[%s0 + $0x10c0] sm:$0xff]
  %v551 = vld [vmem:[%s0 + $0x10c8] sm:$0xff]
  %v552 = vld [vmem:[%s0 + $0x10d0] sm:$0xff]
  %v553 = vld [vmem:[%s0 + $0x10d8] sm:$0xff]
  %v554 = vld [vmem:[%s0 + $0x10e0] sm:$0xff]
  %v555 = vld [vmem:[%s0 + $0x10e8] sm:$0xff]
  %v556 = vld [vmem:[%s0 + $0x10f0] sm:$0xff]
  %v557 = vld [vmem:[%s0 + $0x10f8] sm:$0xff]
  %v558 = vld [vmem:[%s0 + $0x1100] sm:$0xff]
  %v559 = vld [vmem:[%s0 + $0x1108] sm:$0xff]
  %v560 = vld [vmem:[%s0 + $0x1110] sm:$0xff]
  %v561 = vld [vmem:[%s0 + $0x1118] sm:$0xff]
  %v562 = vld [vmem:[%s0 + $0x1120] sm:$0xff]
  %v563 = vld [vmem:[%s0 + $0x1128] sm:$0xff]
  %v564 = vld [vmem:[%s0 + $0x1130] sm:$0xff]
  %v565 = vld [vmem:[%s0 + $0x1138] sm:$0xff]
  %v566 = vld [vmem:[%s0 + $0x1140] sm:$0xff]
  %v567 = vld [vmem:[%s0 + $0x1148] sm:$0xff]
  %v568 = vld [vmem:[%s0 + $0x1150] sm:$0xff]
  %v569 = vld [vmem:[%s0 + $0x1158] sm:$0xff]
  %v570 = vld [vmem:[%s0 + $0x1160] sm:$0xff]
  %v571 = vld [vmem:[%s0 + $0x1168] sm:$0xff]
  %v572 = vld [vmem:[%s0 + $0x1170] sm:$0xff]
  %v573 = vld [vmem:[%s0 + $0x1178] sm:$0xff]
  %v574 = vld [vmem:[%s0 + $0x1180] sm:$0xff]
  %v575 = vld [vmem:[%s0 + $0x1188] sm:$0xff]
  %v576 = vld [vmem:[%s0 + $0x1190] sm:$0xff]
  %v577 = vld [vmem:[%s0 + $0x1198] sm:$0xff]
  %v578 = vld [vmem:[%s0 + $0x11a0] sm:$0xff]
  %v579 = vld [vmem:[%s0 + $0x11a8] sm:$0xff]
  %v580 = vld [vmem:[%s0 + $0x11b0] sm:$0xff]
  %v581 = vld [vmem:[%s0 + $0x11b8] sm:$0xff]
  %v582 = vld [vmem:[%s0 + $0x11c0] sm:$0xff]
  %v583 = vld [vmem:[%s0 + $0x11c8] sm:$0xff]
  %v584 = vld [vmem:[%s0 + $0x11d0] sm:$0xff]
  %v585 = vld [vmem:[%s0 + $0x11d8] sm:$0xff]
  %v586 = vld [vmem:[%s0 + $0x11e0] sm:$0xff]
  %v587 = vld [vmem:[%s0 + $0x11e8] sm:$0xff]
  %v588 = vld [vmem:[%s0 + $0x11f0] sm:$0xff]
  %v589 = vld [vmem:[%s0 + $0x11f8] sm:$0xff]
  %v590 = vld [vmem:[%s0 + $0x1200] sm:$0xff]
  %v591 = vld [vmem:[%s0 + $0x1208] sm:$0xff]
  %v592 = vld [vmem:[%s0 + $0x1210] sm:$0xff]
  %v593 = vld [vmem:[%s0 + $0x1218] sm:$0xff]
  %v594 = vld [vmem:[%s0 + $0x1220] sm:$0xff]
  %v595 = vld [vmem:[%s0 + $0x1228] sm:$0xff]
  %v596 = vld [vmem:[%s0 + $0x1230] sm:$0xff]
  %v597 = vld [vmem:[%s0 + $0x1238] sm:$0xff]
  %v598 = vld [vmem:[%s0 + $0x1240] sm:$0xff]
  %v599 = vld [vmem:[%s0 + $0x1248] sm:$0xff]
  %v600 = vld [vmem:[%s0 + $0x1250] sm:$0xff]
  %v601 = vld [vmem:[%s0 + $0x1258] sm:$0xff]
  %v602 = vld [vmem:[%s0 + $0x1260] sm:$0xff]
  %v603 = vld [vmem:[%s0 + $0x1268] sm:$0xff]
  %v604 = vld [vmem:[%s0 + $0x1270] sm:$0xff]
  %v605 = vld [vmem:[%s0 + $0x1278] sm:$0xff]
  %v606 = vld [vmem:[%s0 + $0x1280] sm:$0xff]
  %v607 = vld [vmem:[%s0 + $0x1288] sm:$0xff]
  %v608 = vld [vmem:[%s0 + $0x1290] sm:$0xff]
  %v609 = vld [vmem:[%s0 + $0x1298] sm:$0xff]
  %v610 = vld [vmem:[%s0 + $0x12a0] sm:$0xff]
  %v611 = vld [vmem:[%s0 + $0x12a8] sm:$0xff]
  %v612 = vld [vmem:[%s0 + $0x12b0] sm:$0xff]
  %v613 = vld [vmem:[%s0 + $0x12b8] sm:$0xff]
  %v614 = vld [vmem:[%s0 + $0x12c0] sm:$0xff]
  %v615 = vld [vmem:[%s0 + $0x12c8] sm:$0xff]
  %v616 = vld [vmem:[%s0 + $0x12d0] sm:$0xff]
  %v617 = vld [vmem:[%s0 + $0x12d8] sm:$0xff]
  %v618 = vld [vmem:[%s0 + $0x12e0] sm:$0xff]
  %v619 = vld [vmem:[%s0 + $0x12e8] sm:$0xff]
  %v620 = vld [vmem:[%s0 + $0x12f0] sm:$0xff]
  %v621 = vld [vmem:[%s0 + $0x12f8] sm:$0xff]
  %v622 = vld [vmem:[%s0 + $0x1300] sm:$0xff]
  %v623 = vld [vmem:[%s0 + $0x1308] sm:$0xff]
  %v624 = vld [vmem:[%s0 + $0x1310] sm:$0xff]
  %v625 = vld [vmem:[%s0 + $0x1318] sm:$0xff]
  %v626 = vld [vmem:[%s0 + $0x1320] sm:$0xff]
  %v627 = vld [vmem:[%s0 + $0x1328] sm:$0xff]
  %v628 = vld [vmem:[%s0 + $0x1330] sm:$0xff]
  %v629 = vld [vmem:[%s0 + $0x1338] sm:$0xff]
  %v630 = vld [vmem:[%s0 + $0x1340] sm:$0xff]
  %v631 = vld [vmem:[%s0 + $0x1348] sm:$0xff]
  %v632 = vld [vmem:[%s0 + $0x1350] sm:$0xff]
  %v633 = vld [vmem:[%s0 + $0x1358] sm:$0xff]
  %v634 = vld [vmem:[%s0 + $0x1360] sm:$0xff]
  %v635 = vld [vmem:[%s0 + $0x1368] sm:$0xff]
  %v636 = vld [vmem:[%s0 + $0x1370] sm:$0xff]
  %v637 = vld [vmem:[%s0 + $0x1378] sm:$0xff]
  %v638 = vld [vmem:[%s0 + $0x1380] sm:$0xff]
  %v639 = vld [vmem:[%s0 + $0x1388] sm:$0xff]
  %v640 = vld [vmem:[%s0 + $0x1390] sm:$0xff]
  %v641 = vld [vmem:[%s0 + $0x1398] sm:$0xff]
  %v642 = vld [vmem:[%s0 + $0x13a0] sm:$0xff]
  %v643 = vld [vmem:[%s0 + $0x13a8] sm:$0xff]
  %v644 = vld [vmem:[%s0 + $0x13b0] sm:$0xff]
  %v645 = vld [vmem:[%s0 + $0x13b8] sm:$0xff]
  %v646 = vld [vmem:[%s0 + $0x13c0] sm:$0xff]
  %v647 = vld [vmem:[%s0 + $0x13c8] sm:$0xff]
  %v648 = vld [vmem:[%s0 + $0x13d0] sm:$0xff]
  %v649 = vld [vmem:[%s0 + $0x13d8] sm:$0xff]
  %v650 = vld [vmem:[%s0 + $0x13e0] sm:$0xff]
  %v651 = vld [vmem:[%s0 + $0x13e8] sm:$0xff]
  %v652 = vld [vmem:[%s0 + $0x13f0] sm:$0xff]
  %v653 = vld [vmem:[%s0 + $0x13f8] sm:$0xff]
  %v654 = vld [vmem:[%s0 + $0x1400] sm:$0xff]
  %v655 = vld [vmem:[%s0 + $0x1408] sm:$0xff]
  %v656 = vld [vmem:[%s0 + $0x1410] sm:$0xff]
  %v657 = vld [vmem:[%s0 + $0x1418] sm:$0xff]
  %v658 = vld [vmem:[%s0 + $0x1420] sm:$0xff]
  %v659 = vld [vmem:[%s0 + $0x1428] sm:$0xff]
  %v660 = vld [vmem:[%s0 + $0x1430] sm:$0xff]
  %v661 = vld [vmem:[%s0 + $0x1438] sm:$0xff]
  %v662 = vld [vmem:[%s0 + $0x1440] sm:$0xff]
  %v663 = vld [vmem:[%s0 + $0x1448] sm:$0xff]
  %v664 = vld [vmem:[%s0 + $0x1450] sm:$0xff]
  %v665 = vld [vmem:[%s0 + $0x1458] sm:$0xff]
  %v666 = vld [vmem:[%s0 + $0x1460] sm:$0xff]
  %v667 = vld [vmem:[%s0 + $0x1468] sm:$0xff]
  %v668 = vld [vmem:[%s0 + $0x1470] sm:$0xff]
  %v669 = vld [vmem:[%s0 + $0x1478] sm:$0xff]
  %v670 = vld [vmem:[%s0 + $0x1480] sm:$0xff]
  %v671 = vld [vmem:[%s0 + $0x1488] sm:$0xff]
  %v672 = vld [vmem:[%s0 + $0x1490] sm:$0xff]
  %v673 = vld [vmem:[%s0 + $0x1498] sm:$0xff]
  %v674 = vld [vmem:[%s0 + $0x14a0] sm:$0xff]
  %v675 = vld [vmem:[%s0 + $0x14a8] sm:$0xff]
  %v676 = vld [vmem:[%s0 + $0x14b0] sm:$0xff]
  %v677 = vld [vmem:[%s0 + $0x14b8] sm:$0xff]
  %v678 = vld [vmem:[%s0 + $0x14c0] sm:$0xff]
  %v679 = vld [vmem:[%s0 + $0x14c8] sm:$0xff]
  %v680 = vld [vmem:[%s0 + $0x14d0] sm:$0xff]
  %v681 = vld [vmem:[%s0 + $0x14d8] sm:$0xff]
  %v682 = vld [vmem:[%s0 + $0x14e0] sm:$0xff]
  %v683 = vld [vmem:[%s0 + $0x14e8] sm:$0xff]
  %v684 = vld [vmem:[%s0 + $0x14f0] sm:$0xff]
  %v685 = vld [vmem:[%s0 + $0x14f8] sm:$0xff]
  %v686 = vld [vmem:[%s0 + $0x1500] sm:$0xff]
  %v687 = vld [vmem:[%s0 + $0x1508] sm:$0xff]
  %v688 = vld [vmem:[%s0 + $0x1510] sm:$0xff]
  %v689 = vld [vmem:[%s0 + $0x1518] sm:$0xff]
  %v690 = vld [vmem:[%s0 + $0x1520] sm:$0xff]
  %v691 = vld [vmem:[%s0 + $0x1528] sm:$0xff]
  %v692 = vld [vmem:[%s0 + $0x1530] sm:$0xff]
  %v693 = vld [vmem:[%s0 + $0x1538] sm:$0xff]
  %v694 = vld [vmem:[%s0 + $0x1540] sm:$0xff]
  %v695 = vld [vmem:[%s0 + $0x1548] sm:$0xff]
  %v696 = vld [vmem:[%s0 + $0x1550] sm:$0xff]
  %v697 = vld [vmem:[%s0 + $0x1558] sm:$0xff]
  %v698 = vld [vmem:[%s0 + $0x1560] sm:$0xff]
  %v699 = vld [vmem:[%s0 + $0x1568] sm:$0xff]
  %v700 = vld [vmem:[%s0 + $0x1570] sm:$0xff]
  %v701 = vld [vmem:[%s0 + $0x1578] sm:$0xff]
  %v702 = vld [vmem:[%s0 + $0x1580] sm:$0xff]
  %v703 = vld [vmem:[%s0 + $0x1588] sm:$0xff]
  %v704 = vld [vmem:[%s0 + $0x1590] sm:$0xff]
  %v705 = vld [vmem:[%s0 + $0x1598] sm:$0xff]
  %v706 = vld [vmem:[%s0 + $0x15a0] sm:$0xff]
  %v707 = vld [vmem:[%s0 + $0x15a8] sm:$0xff]
  %v708 = vld [vmem:[%s0 + $0x15b0] sm:$0xff]
  %v709 = vld [vmem:[%s0 + $0x15b8] sm:$0xff]
  %v710 = vld [vmem:[%s0 + $0x15c0] sm:$0xff]
  %v711 = vld [vmem:[%s0 + $0x15c8] sm:$0xff]
  %v712 = vld [vmem:[%s0 + $0x15d0] sm:$0xff]
  %v713 = vld [vmem:[%s0 + $0x15d8] sm:$0xff]
  %v714 = vld [vmem:[%s0 + $0x15e0] sm:$0xff]
  %v715 = vld [vmem:[%s0 + $0x15e8] sm:$0xff]
  %v716 = vld [vmem:[%s0 + $0x15f0] sm:$0xff]
  %v717 = vld [vmem:[%s0 + $0x15f8] sm:$0xff]
  %v718 = vld [vmem:[%s0 + $0x1600] sm:$0xff]
  %v719 = vld [vmem:[%s0 + $0x1608] sm:$0xff]
  %v720 = vld [vmem:[%s0 + $0x1610] sm:$0xff]
  %v721 = vld [vmem:[%s0 + $0x1618] sm:$0xff]
  %v722 = vld [vmem:[%s0 + $0x1620] sm:$0xff]
  %v723 = vld [vmem:[%s0 + $0x1628] sm:$0xff]
  %v724 = vld [vmem:[%s0 + $0x1630] sm:$0xff]
  %v725 = vld [vmem:[%s0 + $0x1638] sm:$0xff]
  %v726 = vld [vmem:[%s0 + $0x1640] sm:$0xff]
  %v727 = vld [vmem:[%s0 + $0x1648] sm:$0xff]
  %v728 = vld [vmem:[%s0 + $0x1650] sm:$0xff]
  %v729 = vld [vmem:[%s0 + $0x1658] sm:$0xff]
  %v730 = vld [vmem:[%s0 + $0x1660] sm:$0xff]
  %v731 = vld [vmem:[%s0 + $0x1668] sm:$0xff]
  %v732 = vld [vmem:[%s0 + $0x1670] sm:$0xff]
  %v733 = vld [vmem:[%s0 + $0x1678] sm:$0xff]
  %v734 = vld [vmem:[%s0 + $0x1680] sm:$0xff]
  %v735 = vld [vmem:[%s0 + $0x1688] sm:$0xff]
  %v736 = vld [vmem:[%s0 + $0x1690] sm:$0xff]
  %v737 = vld [vmem:[%s0 + $0x1698] sm:$0xff]
  %v738 = vld [vmem:[%s0 + $0x16a0] sm:$0xff]
  %v739 = vld [vmem:[%s0 + $0x16a8] sm:$0xff]
  %v740 = vld [vmem:[%s0 + $0x16b0] sm:$0xff]
  %v741 = vld [vmem:[%s0 + $0x16b8] sm:$0xff]
  %v742 = vld [vmem:[%s0 + $0x16c0] sm:$0xff]
  %v743 = vld [vmem:[%s0 + $0x16c8] sm:$0xff]
  %v744 = vld [vmem:[%s0 + $0x16d0] sm:$0xff]
  %v745 = vld [vmem:[%s0 + $0x16d8] sm:$0xff]
  %v746 = vld [vmem:[%s0 + $0x16e0] sm:$0xff]
  %v747 = vld [vmem:[%s0 + $0x16e8] sm:$0xff]
  %v748 = vld [vmem:[%s0 + $0x16f0] sm:$0xff]
  %v749 = vld [vmem:[%s0 + $0x16f8] sm:$0xff]
  %v750 = vld [vmem:[%s0 + $0x1700] sm:$0xff]
  %v751 = vld [vmem:[%s0 + $0x1708] sm:$0xff]
  %v752 = vld [vmem:[%s0 + $0x1710] sm:$0xff]
  %v753 = vld [vmem:[%s0 + $0x1718] sm:$0xff]
  %v754 = vld [vmem:[%s0 + $0x1720] sm:$0xff]
  %v755 = vld [vmem:[%s0 + $0x1728] sm:$0xff]
  %v756 = vld [vmem:[%s0 + $0x1730] sm:$0xff]
  %v757 = vld [vmem:[%s0 + $0x1738] sm:$0xff]
  %v758 = vld [vmem:[%s0 + $0x1740] sm:$0xff]
  %v759 = vld [vmem:[%s0 + $0x1748] sm:$0xff]
  %v760 = vld [vmem:[%s0 + $0x1750] sm:$0xff]
  %v761 = vld [vmem:[%s0 + $0x1758] sm:$0xff]
  %v762 = vld [vmem:[%s0 + $0x1760] sm:$0xff]
  %v763 = vld [vmem:[%s0 + $0x1768] sm:$0xff]
  %v764 = vld [vmem:[%s0 + $0x1770] sm:$0xff]
  %v765 = vld [vmem:[%s0 + $0x1778] sm:$0xff]
  %v766 = vld [vmem:[%s0 + $0x1780] sm:$0xff]
  %v767 = vld [vmem:[%s0 + $0x1788] sm:$0xff]
  %v768 = vld [vmem:[%s0 + $0x1790] sm:$0xff]
  %v769 = vld [vmem:[%s0 + $0x1798] sm:$0xff]
  %v770 = vld [vmem:[%s0 + $0x17a0] sm:$0xff]
  %v771 = vld [vmem:[%s0 + $0x17a8] sm:$0xff]
  %v772 = vld [vmem:[%s0 + $0x17b0] sm:$0xff]
  %v773 = vld [vmem:[%s0 + $0x17b8] sm:$0xff]
  %v774 = vld [vmem:[%s0 + $0x17c0] sm:$0xff]
  %v775 = vld [vmem:[%s0 + $0x17c8] sm:$0xff]
  %v776 = vld [vmem:[%s0 + $0x17d0] sm:$0xff]
  %v777 = vld [vmem:[%s0 + $0x17d8] sm:$0xff]
  %v778 = vld [vmem:[%s0 + $0x17e0] sm:$0xff]
  %v779 = vld [vmem:[%s0 + $0x17e8] sm:$0xff]
  %v780 = vld [vmem:[%s0 + $0x17f0] sm:$0xff]
  %v781 = vld [vmem:[%s0 + $0x17f8] sm:$0xff]
  %v782 = vld [vmem:[%s0 + $0x1800] sm:$0xff]
  %v783 = vld [vmem:[%s0 + $0x1808] sm:$0xff]
  %v784 = vld [vmem:[%s0 + $0x1810] sm:$0xff]
  %v785 = vld [vmem:[%s0 + $0x1818] sm:$0xff]
  %v786 = vld [vmem:[%s0 + $0x1820] sm:$0xff]
  %v787 = vld [vmem:[%s0 + $0x1828] sm:$0xff]
  %v788 = vld [vmem:[%s0 + $0x1830] sm:$0xff]
  %v789 = vld [vmem:[%s0 + $0x1838] sm:$0xff]
  %v790 = vld [vmem:[%s0 + $0x1840] sm:$0xff]
  %v791 = vld [vmem:[%s0 + $0x1848] sm:$0xff]
  %v792 = vld [vmem:[%s0 + $0x1850] sm:$0xff]
  %v793 = vld [vmem:[%s0 + $0x1858] sm:$0xff]
  %v794 = vld [vmem:[%s0 + $0x1860] sm:$0xff]
  %v795 = vld [vmem:[%s0 + $0x1868] sm:$0xff]
  %v796 = vld [vmem:[%s0 + $0x1870] sm:$0xff]
  %v797 = vld [vmem:[%s0 + $0x1878] sm:$0xff]
  %v798 = vld [vmem:[%s0 + $0x1880] sm:$0xff]
  %v799 = vld [vmem:[%s0 + $0x1888] sm:$0xff]
  %v800 = vld [vmem:[%s0 + $0x1890] sm:$0xff]
  %v801 = vld [vmem:[%s0 + $0x1898] sm:$0xff]
  %v802 = vld [vmem:[%s0 + $0x18a0] sm:$0xff]
  %v803 = vld [vmem:[%s0 + $0x18a8] sm:$0xff]
  %v804 = vld [vmem:[%s0 + $0x18b0] sm:$0xff]
  %v805 = vld [vmem:[%s0 + $0x18b8] sm:$0xff]
  %v806 = vld [vmem:[%s0 + $0x18c0] sm:$0xff]
  %v807 = vld [vmem:[%s0 + $0x18c8] sm:$0xff]
  %v808 = vld [vmem:[%s0 + $0x18d0] sm:$0xff]
  %v809 = vld [vmem:[%s0 + $0x18d8] sm:$0xff]
  %v810 = vld [vmem:[%s0 + $0x18e0] sm:$0xff]
  %v811 = vld [vmem:[%s0 + $0x18e8] sm:$0xff]
  %v812 = vld [vmem:[%s0 + $0x18f0] sm:$0xff]
  %v813 = vld [vmem:[%s0 + $0x18f8] sm:$0xff]
  %v814 = vld [vmem:[%s0 + $0x1900] sm:$0xff]
  %v815 = vld [vmem:[%s0 + $0x1908] sm:$0xff]
  %v816 = vld [vmem:[%s0 + $0x1910] sm:$0xff]
  %v817 = vld [vmem:[%s0 + $0x1918] sm:$0xff]
  %v818 = vld [vmem:[%s0 + $0x1920] sm:$0xff]
  %v819 = vld [vmem:[%s0 + $0x1928] sm:$0xff]
  %v820 = vld [vmem:[%s0 + $0x1930] sm:$0xff]
  %v821 = vld [vmem:[%s0 + $0x1938] sm:$0xff]
  %v822 = vld [vmem:[%s0 + $0x1940] sm:$0xff]
  %v823 = vld [vmem:[%s0 + $0x1948] sm:$0xff]
  %v824 = vld [vmem:[%s0 + $0x1950] sm:$0xff]
  %v825 = vld [vmem:[%s0 + $0x1958] sm:$0xff]
  %v826 = vld [vmem:[%s0 + $0x1960] sm:$0xff]
  %v827 = vld [vmem:[%s0 + $0x1968] sm:$0xff]
  %v828 = vld [vmem:[%s0 + $0x1970] sm:$0xff]
  %v829 = vld [vmem:[%s0 + $0x1978] sm:$0xff]
  %v830 = vld [vmem:[%s0 + $0x1980] sm:$0xff]
  %v831 = vld [vmem:[%s0 + $0x1988] sm:$0xff]
  %v832 = vld [vmem:[%s0 + $0x1990] sm:$0xff]
  %v833 = vld [vmem:[%s0 + $0x1998] sm:$0xff]
  %v834 = vld [vmem:[%s0 + $0x19a0] sm:$0xff]
  %v835 = vld [vmem:[%s0 + $0x19a8] sm:$0xff]
  %v836 = vld [vmem:[%s0 + $0x19b0] sm:$0xff]
  %v837 = vld [vmem:[%s0 + $0x19b8] sm:$0xff]
  %v838 = vld [vmem:[%s0 + $0x19c0] sm:$0xff]
  %v839 = vld [vmem:[%s0 + $0x19c8] sm:$0xff]
  %v840 = vld [vmem:[%s0 + $0x19d0] sm:$0xff]
  %v841 = vld [vmem:[%s0 + $0x19d8] sm:$0xff]
  %v842 = vld [vmem:[%s0 + $0x19e0] sm:$0xff]
  %v843 = vld [vmem:[%s0 + $0x19e8] sm:$0xff]
  %v844 = vld [vmem:[%s0 + $0x19f0] sm:$0xff]
  %v845 = vld [vmem:[%s0 + $0x19f8] sm:$0xff]
  %v846 = vld [vmem:[%s0 + $0x1a00] sm:$0xff]
  %v847 = vld [vmem:[%s0 + $0x1a08] sm:$0xff]
  %v848 = vld [vmem:[%s0 + $0x1a10] sm:$0xff]
  %v849 = vld [vmem:[%s0 + $0x1a18] sm:$0xff]
  %v850 = vld [vmem:[%s0 + $0x1a20] sm:$0xff]
  %v851 = vld [vmem:[%s0 + $0x1a28] sm:$0xff]
  %v852 = vld [vmem:[%s0 + $0x1a30] sm:$0xff]
  %v853 = vld [vmem:[%s0 + $0x1a38] sm:$0xff]
  %v854 = vld [vmem:[%s0 + $0x1a40] sm:$0xff]
  %v855 = vld [vmem:[%s0 + $0x1a48] sm:$0xff]
  %v856 = vld [vmem:[%s0 + $0x1a50] sm:$0xff]
  %v857 = vld [vmem:[%s0 + $0x1a58] sm:$0xff]
  %v858 = vld [vmem:[%s0 + $0x1a60] sm:$0xff]
  %v859 = vld [vmem:[%s0 + $0x1a68] sm:$0xff]
  %v860 = vld [vmem:[%s0 + $0x1a70] sm:$0xff]
  %v861 = vld [vmem:[%s0 + $0x1a78] sm:$0xff]
  %v862 = vld [vmem:[%s0 + $0x1a80] sm:$0xff]
  %v863 = vld [vmem:[%s0 + $0x1a88] sm:$0xff]
  %v864 = vld [vmem:[%s0 + $0x1a90] sm:$0xff]
  %v865 = vld [vmem:[%s0 + $0x1a98] sm:$0xff]
  %v866 = vld [vmem:[%s0 + $0x1aa0] sm:$0xff]
  %v867 = vld [vmem:[%s0 + $0x1aa8] sm:$0xff]
  %v868 = vld [vmem:[%s0 + $0x1ab0] sm:$0xff]
  %v869 = vld [vmem:[%s0 + $0x1ab8] sm:$0xff]
  %v870 = vld [vmem:[%s0 + $0x1ac0] sm:$0xff]
  %v871 = vld [vmem:[%s0 + $0x1ac8] sm:$0xff]
  %v872 = vld [vmem:[%s0 + $0x1ad0] sm:$0xff]
  %v873 = vld [vmem:[%s0 + $0x1ad8] sm:$0xff]
  %v874 = vld [vmem:[%s0 + $0x1ae0] sm:$0xff]
  %v875 = vld [vmem:[%s0 + $0x1ae8] sm:$0xff]
  %v876 = vld [vmem:[%s0 + $0x1af0] sm:$0xff]
  %v877 = vld [vmem:[%s0 + $0x1af8] sm:$0xff]
  %v878 = vld [vmem:[%s0 + $0x1b00] sm:$0xff]
  %v879 = vld [vmem:[%s0 + $0x1b08] sm:$0xff]
  %v880 = vld [vmem:[%s0 + $0x1b10] sm:$0xff]
  %v881 = vld [vmem:[%s0 + $0x1b18] sm:$0xff]
  %v882 = vld [vmem:[%s0 + $0x1b20] sm:$0xff]
  %v883 = vld [vmem:[%s0 + $0x1b28] sm:$0xff]
  %v884 = vld [vmem:[%s0 + $0x1b30] sm:$0xff]
  %v885 = vld [vmem:[%s0 + $0x1b38] sm:$0xff]
  %v886 = vld [vmem:[%s0 + $0x1b40] sm:$0xff]
  %v887 = vld [vmem:[%s0 + $0x1b48] sm:$0xff]
  %v888 = vld [vmem:[%s0 + $0x1b50] sm:$0xff]
  %v889 = vld [vmem:[%s0 + $0x1b58] sm:$0xff]
  %v890 = vld [vmem:[%s0 + $0x1b60] sm:$0xff]
  %v891 = vld [vmem:[%s0 + $0x1b68] sm:$0xff]
  %v892 = vld [vmem:[%s0 + $0x1b70] sm:$0xff]
  %v893 = vld [vmem:[%s0 + $0x1b78] sm:$0xff]
  %v894 = vld [vmem:[%s0 + $0x1b80] sm:$0xff]
  %v895 = vld [vmem:[%s0 + $0x1b88] sm:$0xff]
  %v896 = vld [vmem:[%s0 + $0x1b90] sm:$0xff]
  %v897 = vld [vmem:[%s0 + $0x1b98] sm:$0xff]
  %v898 = vld [vmem:[%s0 + $0x1ba0] sm:$0xff]
  %v899 = vld [vmem:[%s0 + $0x1ba8] sm:$0xff]
  %v900 = vld [vmem:[%s0 + $0x1bb0] sm:$0xff]
  %v901 = vld [vmem:[%s0 + $0x1bb8] sm:$0xff]
  %v902 = vld [vmem:[%s0 + $0x1bc0] sm:$0xff]
  %v903 = vld [vmem:[%s0 + $0x1bc8] sm:$0xff]
  %v904 = vld [vmem:[%s0 + $0x1bd0] sm:$0xff]
  %v905 = vld [vmem:[%s0 + $0x1bd8] sm:$0xff]
  %v906 = vld [vmem:[%s0 + $0x1be0] sm:$0xff]
  %v907 = vld [vmem:[%s0 + $0x1be8] sm:$0xff]
  %v908 = vld [vmem:[%s0 + $0x1bf0] sm:$0xff]
  %v909 = vld [vmem:[%s0 + $0x1bf8] sm:$0xff]
  %v910 = vld [vmem:[%s0 + $0x1c00] sm:$0xff]
  %v911 = vld [vmem:[%s0 + $0x1c08] sm:$0xff]
  %v912 = vld [vmem:[%s0 + $0x1c10] sm:$0xff]
  %v913 = vld [vmem:[%s0 + $0x1c18] sm:$0xff]
  %v914 = vld [vmem:[%s0 + $0x1c20] sm:$0xff]
  %v915 = vld [vmem:[%s0 + $0x1c28] sm:$0xff]
  %v916 = vld [vmem:[%s0 + $0x1c30] sm:$0xff]
  %v917 = vld [vmem:[%s0 + $0x1c38] sm:$0xff]
  %v918 = vld [vmem:[%s0 + $0x1c40] sm:$0xff]
  %v919 = vld [vmem:[%s0 + $0x1c48] sm:$0xff]
  %v920 = vld [vmem:[%s0 + $0x1c50] sm:$0xff]
  %v921 = vld [vmem:[%s0 + $0x1c58] sm:$0xff]
  %v922 = vld [vmem:[%s0 + $0x1c60] sm:$0xff]
  %v923 = vld [vmem:[%s0 + $0x1c68] sm:$0xff]
  %v924 = vld [vmem:[%s0 + $0x1c70] sm:$0xff]
  %v925 = vld [vmem:[%s0 + $0x1c78] sm:$0xff]
  %v926 = vld [vmem:[%s0 + $0x1c80] sm:$0xff]
  %v927 = vld [vmem:[%s0 + $0x1c88] sm:$0xff]
  %v928 = vld [vmem:[%s0 + $0x1c90] sm:$0xff]
  %v929 = vld [vmem:[%s0 + $0x1c98] sm:$0xff]
  %v930 = vld [vmem:[%s0 + $0x1ca0] sm:$0xff]
  %v931 = vld [vmem:[%s0 + $0x1ca8] sm:$0xff]
  %v932 = vld [vmem:[%s0 + $0x1cb0] sm:$0xff]
  %v933 = vld [vmem:[%s0 + $0x1cb8] sm:$0xff]
  %v934 = vld [vmem:[%s0 + $0x1cc0] sm:$0xff]
  %v935 = vld [vmem:[%s0 + $0x1cc8] sm:$0xff]
  %v936 = vld [vmem:[%s0 + $0x1cd0] sm:$0xff]
  %v937 = vld [vmem:[%s0 + $0x1cd8] sm:$0xff]
  %v938 = vld [vmem:[%s0 + $0x1ce0] sm:$0xff]
  %v939 = vld [vmem:[%s0 + $0x1ce8] sm:$0xff]
  %v940 = vld [vmem:[%s0 + $0x1cf0] sm:$0xff]
  %v941 = vld [vmem:[%s0 + $0x1cf8] sm:$0xff]
  %v942 = vld [vmem:[%s0 + $0x1d00] sm:$0xff]
  %v943 = vld [vmem:[%s0 + $0x1d08] sm:$0xff]
  %v944 = vld [vmem:[%s0 + $0x1d10] sm:$0xff]
  %v945 = vld [vmem:[%s0 + $0x1d18] sm:$0xff]
  %v946 = vld [vmem:[%s0 + $0x1d20] sm:$0xff]
  %v947 = vld [vmem:[%s0 + $0x1d28] sm:$0xff]
  %v948 = vld [vmem:[%s0 + $0x1d30] sm:$0xff]
  %v949 = vld [vmem:[%s0 + $0x1d38] sm:$0xff]
  %v950 = vld [vmem:[%s0 + $0x1d40] sm:$0xff]
  %v951 = vld [vmem:[%s0 + $0x1d48] sm:$0xff]
  %v952 = vld [vmem:[%s0 + $0x1d50] sm:$0xff]
  %v953 = vld [vmem:[%s0 + $0x1d58] sm:$0xff]
  %v954 = vld [vmem:[%s0 + $0x1d60] sm:$0xff]
  %v955 = vld [vmem:[%s0 + $0x1d68] sm:$0xff]
  %v956 = vld [vmem:[%s0 + $0x1d70] sm:$0xff]
  %v957 = vld [vmem:[%s0 + $0x1d78] sm:$0xff]
  %v958 = vld [vmem:[%s0 + $0x1d80] sm:$0xff]
  %v959 = vld [vmem:[%s0 + $0x1d88] sm:$0xff]
  %v960 = vld [vmem:[%s0 + $0x1d90] sm:$0xff]
  %v961 = vld [vmem:[%s0 + $0x1d98] sm:$0xff]
  %v962 = vld [vmem:[%s0 + $0x1da0] sm:$0xff]
  %v963 = vld [vmem:[%s0 + $0x1da8] sm:$0xff]
  %v964 = vld [vmem:[%s0 + $0x1db0] sm:$0xff]
  %v965 = vld [vmem:[%s0 + $0x1db8] sm:$0xff]
  %v966 = vld [vmem:[%s0 + $0x1dc0] sm:$0xff]
  %v967 = vld [vmem:[%s0 + $0x1dc8] sm:$0xff]
  %v968 = vld [vmem:[%s0 + $0x1dd0] sm:$0xff]
  %v969 = vld [vmem:[%s0 + $0x1dd8] sm:$0xff]
  %v970 = vld [vmem:[%s0 + $0x1de0] sm:$0xff]
  %v971 = vld [vmem:[%s0 + $0x1de8] sm:$0xff]
  %v972 = vld [vmem:[%s0 + $0x1df0] sm:$0xff]
  %v973 = vld [vmem:[%s0 + $0x1df8] sm:$0xff]
  %v974 = vld [vmem:[%s0 + $0x1e00] sm:$0xff]
  %v975 = vld [vmem:[%s0 + $0x1e08] sm:$0xff]
  %v976 = vld [vmem:[%s0 + $0x1e10] sm:$0xff]
  %v977 = vld [vmem:[%s0 + $0x1e18] sm:$0xff]
  %v978 = vld [vmem:[%s0 + $0x1e20] sm:$0xff]
  %v979 = vld [vmem:[%s0 + $0x1e28] sm:$0xff]
  %v980 = vld [vmem:[%s0 + $0x1e30] sm:$0xff]
  %v981 = vld [vmem:[%s0 + $0x1e38] sm:$0xff]
  %v982 = vld [vmem:[%s0 + $0x1e40] sm:$0xff]
  %v983 = vld [vmem:[%s0 + $0x1e48] sm:$0xff]
  %v984 = vld [vmem:[%s0 + $0x1e50] sm:$0xff]
  %v985 = vld [vmem:[%s0 + $0x1e58] sm:$0xff]
  %v986 = vld [vmem:[%s0 + $0x1e60] sm:$0xff]
  %v987 = vld [vmem:[%s0 + $0x1e68] sm:$0xff]
  %v988 = vld [vmem:[%s0 + $0x1e70] sm:$0xff]
  %v989 = vld [vmem:[%s0 + $0x1e78] sm:$0xff]
  %v990 = vld [vmem:[%s0 + $0x1e80] sm:$0xff]
  %v991 = vld [vmem:[%s0 + $0x1e88] sm:$0xff]
  %v992 = vld [vmem:[%s0 + $0x1e90] sm:$0xff]
  %v993 = vld [vmem:[%s0 + $0x1e98] sm:$0xff]
  %v994 = vld [vmem:[%s0 + $0x1ea0] sm:$0xff]
  %v995 = vld [vmem:[%s0 + $0x1ea8] sm:$0xff]
  %v996 = vld [vmem:[%s0 + $0x1eb0] sm:$0xff]
  %v997 = vld [vmem:[%s0 + $0x1eb8] sm:$0xff]
  %v998 = vld [vmem:[%s0 + $0x1ec0] sm:$0xff]
  %v999 = vld [vmem:[%s0 + $0x1ec8] sm:$0xff]
  %v1000 = vld [vmem:[%s0 + $0x1ed0] sm:$0xff]
  %v1001 = vld [vmem:[%s0 + $0x1ed8] sm:$0xff]
  %v1002 = vld [vmem:[%s0 + $0x1ee0] sm:$0xff]
  %v1003 = vld [vmem:[%s0 + $0x1ee8] sm:$0xff]
  %v1004 = vld [vmem:[%s0 + $0x1ef0] sm:$0xff]
  %v1005 = vld [vmem:[%s0 + $0x1ef8] sm:$0xff]
  %v1006 = vld [vmem:[%s0 + $0x1f00] sm:$0xff]
  %v1007 = vld [vmem:[%s0 + $0x1f08] sm:$0xff]
  %v1008 = vld [vmem:[%s0 + $0x1f10] sm:$0xff]
  %v1009 = vld [vmem:[%s0 + $0x1f18] sm:$0xff]
  %v1010 = vld [vmem:[%s0 + $0x1f20] sm:$0xff]
  %v1011 = vld [vmem:[%s0 + $0x1f28] sm:$0xff]
  %v1012 = vld [vmem:[%s0 + $0x1f30] sm:$0xff]
  %v1013 = vld [vmem:[%s0 + $0x1f38] sm:$0xff]
  %v1014 = vld [vmem:[%s0 + $0x1f40] sm:$0xff]
  %v1015 = vld [vmem:[%s0 + $0x1f48] sm:$0xff]
  %v1016 = vld [vmem:[%s0 + $0x1f50] sm:$0xff]
  %v1017 = vld [vmem:[%s0 + $0x1f58] sm:$0xff]
  %v1018 = vld [vmem:[%s0 + $0x1f60] sm:$0xff]
  %v1019 = vld [vmem:[%s0 + $0x1f68] sm:$0xff]
  %v1020 = vld [vmem:[%s0 + $0x1f70] sm:$0xff]
  %v1021 = vld [vmem:[%s0 + $0x1f78] sm:$0xff]
  %v1022 = vld [vmem:[%s0 + $0x1f80] sm:$0xff]
  %v1023 = vld [vmem:[%s0 + $0x1f88] sm:$0xff]
  %v1024 = vld [vmem:[%s0 + $0x1f90] sm:$0xff]
  %v1025 = vld [vmem:[%s0 + $0x1f98] sm:$0xff]
  %v1026 = vld [vmem:[%s0 + $0x1fa0] sm:$0xff]
  %v1027 = vld [vmem:[%s0 + $0x1fa8] sm:$0xff]
  %v1028 = vld [vmem:[%s0 + $0x1fb0] sm:$0xff]
  %v1029 = vld [vmem:[%s0 + $0x1fb8] sm:$0xff]
  %v1030 = vld [vmem:[%s0 + $0x1fc0] sm:$0xff]
  %v1031 = vld [vmem:[%s0 + $0x1fc8] sm:$0xff]
  %v1032 = vld [vmem:[%s0 + $0x1fd0] sm:$0xff]
  %v1033 = vld [vmem:[%s0 + $0x1fd8] sm:$0xff]
  %v1034 = vld [vmem:[%s0 + $0x1fe0] sm:$0xff]
  %v1035 = vld [vmem:[%s0 + $0x1fe8] sm:$0xff]
  %v1036 = vld [vmem:[%s0 + $0x1ff0] sm:$0xff]
  %v1037 = vld [vmem:[%s0 + $0x1ff8] sm:$0xff]
  %v1038 = vld [vmem:[%s0 + $0x2000] sm:$0xff]
  %v1039 = vld [vmem:[%s0 + $0x2008] sm:$0xff]
  %v1040 = vld [vmem:[%s0 + $0x2010] sm:$0xff]
  %v1041 = vld [vmem:[%s0 + $0x2018] sm:$0xff]
  %v1042 = vld [vmem:[%s0 + $0x2020] sm:$0xff]
  %v1043 = vld [vmem:[%s0 + $0x2028] sm:$0xff]
  %v1044 = vld [vmem:[%s0 + $0x2030] sm:$0xff]
  %v1045 = vld [vmem:[%s0 + $0x2038] sm:$0xff]
  %v1046 = vld [vmem:[%s0 + $0x2040] sm:$0xff]
  %v1047 = vld [vmem:[%s0 + $0x2048] sm:$0xff]
  %v1048 = vld [vmem:[%s0 + $0x2050] sm:$0xff]
  %v1049 = vld [vmem:[%s0 + $0x2058] sm:$0xff]
  %v1050 = vld [vmem:[%s0 + $0x2060] sm:$0xff]
  %v1051 = vld [vmem:[%s0 + $0x2068] sm:$0xff]
  %v1052 = vld [vmem:[%s0 + $0x2070] sm:$0xff]
  %v1053 = vld [vmem:[%s0 + $0x2078] sm:$0xff]
  %v1054 = vld [vmem:[%s0 + $0x2080] sm:$0xff]
  %v1055 = vld [vmem:[%s0 + $0x2088] sm:$0xff]
  %v1056 = vld [vmem:[%s0 + $0x2090] sm:$0xff]
  %v1057 = vld [vmem:[%s0 + $0x2098] sm:$0xff]
  %v1058 = vld [vmem:[%s0 + $0x20a0] sm:$0xff]
  %v1059 = vld [vmem:[%s0 + $0x20a8] sm:$0xff]
  %v1060 = vld [vmem:[%s0 + $0x20b0] sm:$0xff]
  %v1061 = vld [vmem:[%s0 + $0x20b8] sm:$0xff]
  %v1062 = vld [vmem:[%s0 + $0x20c0] sm:$0xff]
  %v1063 = vld [vmem:[%s0 + $0x20c8] sm:$0xff]
  %v1064 = vld [vmem:[%s0 + $0x20d0] sm:$0xff]
  %v1065 = vld [vmem:[%s0 + $0x20d8] sm:$0xff]
  %v1066 = vld [vmem:[%s0 + $0x20e0] sm:$0xff]
  %v1067 = vld [vmem:[%s0 + $0x20e8] sm:$0xff]
  %v1068 = vld [vmem:[%s0 + $0x20f0] sm:$0xff]
  %v1069 = vld [vmem:[%s0 + $0x20f8] sm:$0xff]
  %v1070 = vld [vmem:[%s0 + $0x2100] sm:$0xff]
  %v1071 = vld [vmem:[%s0 + $0x2108] sm:$0xff]
  %v1072 = vld [vmem:[%s0 + $0x2110] sm:$0xff]
  %v1073 = vld [vmem:[%s0 + $0x2118] sm:$0xff]
  %v1074 = vld [vmem:[%s0 + $0x2120] sm:$0xff]
  %v1075 = vld [vmem:[%s0 + $0x2128] sm:$0xff]
  %v1076 = vld [vmem:[%s0 + $0x2130] sm:$0xff]
  %v1077 = vld [vmem:[%s0 + $0x2138] sm:$0xff]
  %v1078 = vld [vmem:[%s0 + $0x2140] sm:$0xff]
  %v1079 = vld [vmem:[%s0 + $0x2148] sm:$0xff]
  %v1080 = vld [vmem:[%s0 + $0x2150] sm:$0xff]
  %v1081 = vld [vmem:[%s0 + $0x2158] sm:$0xff]
  %v1082 = vld [vmem:[%s0 + $0x2160] sm:$0xff]
  %v1083 = vld [vmem:[%s0 + $0x2168] sm:$0xff]
  %v1084 = vld [vmem:[%s0 + $0x2170] sm:$0xff]
  %v1085 = vld [vmem:[%s0 + $0x2178] sm:$0xff]
  %v1086 = vld [vmem:[%s0 + $0x2180] sm:$0xff]
  %v1087 = vld [vmem:[%s0 + $0x2188] sm:$0xff]
  %v1088 = vld [vmem:[%s0 + $0x2190] sm:$0xff]
  %v1089 = vld [vmem:[%s0 + $0x2198] sm:$0xff]
  %v1090 = vld [vmem:[%s0 + $0x21a0] sm:$0xff]
  %v1091 = vld [vmem:[%s0 + $0x21a8] sm:$0xff]
  %v1092 = vld [vmem:[%s0 + $0x21b0] sm:$0xff]
  %v1093 = vld [vmem:[%s0 + $0x21b8] sm:$0xff]
  %v1094 = vld [vmem:[%s0 + $0x21c0] sm:$0xff]
  %v1095 = vld [vmem:[%s0 + $0x21c8] sm:$0xff]
  %v1096 = vld [vmem:[%s0 + $0x21d0] sm:$0xff]
  %v1097 = vld [vmem:[%s0 + $0x21d8] sm:$0xff]
  %v1098 = vld [vmem:[%s0 + $0x21e0] sm:$0xff]
  %v1099 = vld [vmem:[%s0 + $0x21e8] sm:$0xff]
  %v1100 = vld [vmem:[%s0 + $0x21f0] sm:$0xff]
  %v1101 = vld [vmem:[%s0 + $0x21f8] sm:$0xff]
  %v1102 = vld [vmem:[%s0 + $0x2200] sm:$0xff]
  %v1103 = vld [vmem:[%s0 + $0x2208] sm:$0xff]
  %v1104 = vld [vmem:[%s0 + $0x2210] sm:$0xff]
  %v1105 = vld [vmem:[%s0 + $0x2218] sm:$0xff]
  %v1106 = vld [vmem:[%s0 + $0x2220] sm:$0xff]
  %v1107 = vld [vmem:[%s0 + $0x2228] sm:$0xff]
  %v1108 = vld [vmem:[%s0 + $0x2230] sm:$0xff]
  %v1109 = vld [vmem:[%s0 + $0x2238] sm:$0xff]
  %v1110 = vld [vmem:[%s0 + $0x2240] sm:$0xff]
  %v1111 = vld [vmem:[%s0 + $0x2248] sm:$0xff]
  %v1112 = vld [vmem:[%s0 + $0x2250] sm:$0xff]
  %v1113 = vld [vmem:[%s0 + $0x2258] sm:$0xff]
  %v1114 = vld [vmem:[%s0 + $0x2260] sm:$0xff]
  %v1115 = vld [vmem:[%s0 + $0x2268] sm:$0xff]
  %v1116 = vld [vmem:[%s0 + $0x2270] sm:$0xff]
  %v1117 = vld [vmem:[%s0 + $0x2278] sm:$0xff]
  %v1118 = vld [vmem:[%s0 + $0x2280] sm:$0xff]
  %v1119 = vld [vmem:[%s0 + $0x2288] sm:$0xff]
  %v1120 = vld [vmem:[%s0 + $0x2290] sm:$0xff]
  %v1121 = vld [vmem:[%s0 + $0x2298] sm:$0xff]
  %v1122 = vld [vmem:[%s0 + $0x22a0] sm:$0xff]
  %v1123 = vld [vmem:[%s0 + $0x22a8] sm:$0xff]
  %v1124 = vld [vmem:[%s0 + $0x22b0] sm:$0xff]
  %v1125 = vld [vmem:[%s0 + $0x22b8] sm:$0xff]
  %v1126 = vld [vmem:[%s0 + $0x22c0] sm:$0xff]
  %v1127 = vld [vmem:[%s0 + $0x22c8] sm:$0xff]
  %v1128 = vld [vmem:[%s0 + $0x22d0] sm:$0xff]
  %v1129 = vld [vmem:[%s0 + $0x22d8] sm:$0xff]
  %v1130 = vld [vmem:[%s0 + $0x22e0] sm:$0xff]
  %v1131 = vld [vmem:[%s0 + $0x22e8] sm:$0xff]
  %v1132 = vld [vmem:[%s0 + $0x22f0] sm:$0xff]
  %v1133 = vld [vmem:[%s0 + $0x22f8] sm:$0xff]
  %v1134 = vld [vmem:[%s0 + $0x2300] sm:$0xff]
  %v1135 = vld [vmem:[%s0 + $0x2308] sm:$0xff]
  %v1136 = vld [vmem:[%s0 + $0x2310] sm:$0xff]
  %v1137 = vld [vmem:[%s0 + $0x2318] sm:$0xff]
  %v1138 = vld [vmem:[%s0 + $0x2320] sm:$0xff]
  %v1139 = vld [vmem:[%s0 + $0x2328] sm:$0xff]
  %v1140 = vld [vmem:[%s0 + $0x2330] sm:$0xff]
  %v1141 = vld [vmem:[%s0 + $0x2338] sm:$0xff]
  %v1142 = vld [vmem:[%s0 + $0x2340] sm:$0xff]
  %v1143 = vld [vmem:[%s0 + $0x2348] sm:$0xff]
  %v1144 = vld [vmem:[%s0 + $0x2350] sm:$0xff]
  %v1145 = vld [vmem:[%s0 + $0x2358] sm:$0xff]
  %v1146 = vld [vmem:[%s0 + $0x2360] sm:$0xff]
  %v1147 = vld [vmem:[%s0 + $0x2368] sm:$0xff]
  %v1148 = vld [vmem:[%s0 + $0x2370] sm:$0xff]
  %v1149 = vld [vmem:[%s0 + $0x2378] sm:$0xff]
  %v1150 = vld [vmem:[%s0 + $0x2380] sm:$0xff]
  %v1151 = vld [vmem:[%s0 + $0x2388] sm:$0xff]
  %v1152 = vld [vmem:[%s0 + $0x2390] sm:$0xff]
  %v1153 = vld [vmem:[%s0 + $0x2398] sm:$0xff]
  %v1154 = vld [vmem:[%s0 + $0x23a0] sm:$0xff]
  %v1155 = vld [vmem:[%s0 + $0x23a8] sm:$0xff]
  %v1156 = vld [vmem:[%s0 + $0x23b0] sm:$0xff]
  %v1157 = vld [vmem:[%s0 + $0x23b8] sm:$0xff]
  %v1158 = vld [vmem:[%s0 + $0x23c0] sm:$0xff]
  %v1159 = vld [vmem:[%s0 + $0x23c8] sm:$0xff]
  %v1160 = vld [vmem:[%s0 + $0x23d0] sm:$0xff]
  %v1161 = vld [vmem:[%s0 + $0x23d8] sm:$0xff]
  %v1162 = vld [vmem:[%s0 + $0x23e0] sm:$0xff]
  %v1163 = vld [vmem:[%s0 + $0x23e8] sm:$0xff]
  %v1164 = vld [vmem:[%s0 + $0x23f0] sm:$0xff]
  %v1165 = vld [vmem:[%s0 + $0x23f8] sm:$0xff]
  %v1166 = vld [vmem:[%s0 + $0x2400] sm:$0xff]
  %v1167 = vld [vmem:[%s0 + $0x2408] sm:$0xff]
  %v1168 = vld [vmem:[%s0 + $0x2410] sm:$0xff]
  %v1169 = vld [vmem:[%s0 + $0x2418] sm:$0xff]
  %v1170 = vld [vmem:[%s0 + $0x2420] sm:$0xff]
  %v1171 = vld [vmem:[%s0 + $0x2428] sm:$0xff]
  %v1172 = vld [vmem:[%s0 + $0x2430] sm:$0xff]
  %v1173 = vld [vmem:[%s0 + $0x2438] sm:$0xff]
  %v1174 = vld [vmem:[%s0 + $0x2440] sm:$0xff]
  %v1175 = vld [vmem:[%s0 + $0x2448] sm:$0xff]
  %v1176 = vld [vmem:[%s0 + $0x2450] sm:$0xff]
  %v1177 = vld [vmem:[%s0 + $0x2458] sm:$0xff]
  %v1178 = vld [vmem:[%s0 + $0x2460] sm:$0xff]
  %v1179 = vld [vmem:[%s0 + $0x2468] sm:$0xff]
  %v1180 = vld [vmem:[%s0 + $0x2470] sm:$0xff]
  %v1181 = vld [vmem:[%s0 + $0x2478] sm:$0xff]
  %v1182 = vld [vmem:[%s0 + $0x2480] sm:$0xff]
  %v1183 = vld [vmem:[%s0 + $0x2488] sm:$0xff]
  %v1184 = vld [vmem:[%s0 + $0x2490] sm:$0xff]
  %v1185 = vld [vmem:[%s0 + $0x2498] sm:$0xff]
  %v1186 = vld [vmem:[%s0 + $0x24a0] sm:$0xff]
  %v1187 = vld [vmem:[%s0 + $0x24a8] sm:$0xff]
  %v1188 = vld [vmem:[%s0 + $0x24b0] sm:$0xff]
  %v1189 = vld [vmem:[%s0 + $0x24b8] sm:$0xff]
  %v1190 = vld [vmem:[%s1] sm:$0xff]
  %v1191 = vld [vmem:[%s1 + $0x8] sm:$0xff]
  %v1192 = vld [vmem:[%s1 + $0x10] sm:$0xff]
  %v1193 = vld [vmem:[%s1 + $0x18] sm:$0xff]
  %v1194 = vld [vmem:[%s1 + $0x20] sm:$0xff]
  %v1195 = vld [vmem:[%s1 + $0x28] sm:$0xff]
  %v1196 = vld [vmem:[%s1 + $0x30] sm:$0xff]
  %v1197 = vld [vmem:[%s1 + $0x38] sm:$0xff]
  %v1198 = vld [vmem:[%s1 + $0x40] sm:$0xff]
  %v1199 = vld [vmem:[%s1 + $0x48] sm:$0xff]
  %v1200 = vld [vmem:[%s1 + $0x50] sm:$0xff]
  %v1201 = vld [vmem:[%s1 + $0x58] sm:$0xff]
  %v1202 = vld [vmem:[%s1 + $0x60] sm:$0xff]
  %v1203 = vld [vmem:[%s1 + $0x68] sm:$0xff]
  %v1204 = vld [vmem:[%s1 + $0x70] sm:$0xff]
  %v1205 = vld [vmem:[%s1 + $0x78] sm:$0xff]
  %v1206 = vld [vmem:[%s1 + $0x80] sm:$0xff]
  %v1207 = vld [vmem:[%s1 + $0x88] sm:$0xff]
  %v1208 = vld [vmem:[%s1 + $0x90] sm:$0xff]
  %v1209 = vld [vmem:[%s1 + $0x98] sm:$0xff]
  %v1210 = vld [vmem:[%s1 + $0xa0] sm:$0xff]
  %v1211 = vld [vmem:[%s1 + $0xa8] sm:$0xff]
  %v1212 = vld [vmem:[%s1 + $0xb0] sm:$0xff]
  %v1213 = vld [vmem:[%s1 + $0xb8] sm:$0xff]
  %v1214 = vld [vmem:[%s1 + $0xc0] sm:$0xff]
  %v1215 = vld [vmem:[%s1 + $0xc8] sm:$0xff]
  %v1216 = vld [vmem:[%s1 + $0xd0] sm:$0xff]
  %v1217 = vld [vmem:[%s1 + $0xd8] sm:$0xff]
  %v1218 = vld [vmem:[%s1 + $0xe0] sm:$0xff]
  %v1219 = vld [vmem:[%s1 + $0xe8] sm:$0xff]
  %v1220 = vld [vmem:[%s1 + $0xf0] sm:$0xff]
  %v1221 = vld [vmem:[%s1 + $0xf8] sm:$0xff]
  %v1222 = vld [vmem:[%s1 + $0x100] sm:$0xff]
  %v1223 = vld [vmem:[%s1 + $0x108] sm:$0xff]
  %v1224 = vld [vmem:[%s1 + $0x110] sm:$0xff]
  %v1225 = vld [vmem:[%s1 + $0x118] sm:$0xff]
  %v1226 = vld [vmem:[%s1 + $0x120] sm:$0xff]
  %v1227 = vld [vmem:[%s1 + $0x128] sm:$0xff]
  %v1228 = vld [vmem:[%s1 + $0x130] sm:$0xff]
  %v1229 = vld [vmem:[%s1 + $0x138] sm:$0xff]
  %v1230 = vld [vmem:[%s1 + $0x140] sm:$0xff]
  %v1231 = vld [vmem:[%s1 + $0x148] sm:$0xff]
  %v1232 = vld [vmem:[%s1 + $0x150] sm:$0xff]
  %v1233 = vld [vmem:[%s1 + $0x158] sm:$0xff]
  %v1234 = vld [vmem:[%s1 + $0x160] sm:$0xff]
  %v1235 = vld [vmem:[%s1 + $0x168] sm:$0xff]
  %v1236 = vld [vmem:[%s1 + $0x170] sm:$0xff]
  %v1237 = vld [vmem:[%s1 + $0x178] sm:$0xff]
  %v1238 = vld [vmem:[%s1 + $0x180] sm:$0xff]
  %v1239 = vld [vmem:[%s1 + $0x188] sm:$0xff]
  %v1240 = vld [vmem:[%s1 + $0x190] sm:$0xff]
  %v1241 = vld [vmem:[%s1 + $0x198] sm:$0xff]
  %v1242 = vld [vmem:[%s1 + $0x1a0] sm:$0xff]
  %v1243 = vld [vmem:[%s1 + $0x1a8] sm:$0xff]
  %v1244 = vld [vmem:[%s1 + $0x1b0] sm:$0xff]
  %v1245 = vld [vmem:[%s1 + $0x1b8] sm:$0xff]
  %v1246 = vld [vmem:[%s1 + $0x1c0] sm:$0xff]
  %v1247 = vld [vmem:[%s1 + $0x1c8] sm:$0xff]
  %v1248 = vld [vmem:[%s1 + $0x1d0] sm:$0xff]
  %v1249 = vld [vmem:[%s1 + $0x1d8] sm:$0xff]
  %v1250 = vld [vmem:[%s1 + $0x1e0] sm:$0xff]
  %v1251 = vld [vmem:[%s1 + $0x1e8] sm:$0xff]
  %v1252 = vld [vmem:[%s1 + $0x1f0] sm:$0xff]
  %v1253 = vld [vmem:[%s1 + $0x1f8] sm:$0xff]
  %v1254 = vld [vmem:[%s1 + $0x200] sm:$0xff]
  %v1255 = vld [vmem:[%s1 + $0x208] sm:$0xff]
  %v1256 = vld [vmem:[%s1 + $0x210] sm:$0xff]
  %v1257 = vld [vmem:[%s1 + $0x218] sm:$0xff]
  %v1258 = vld [vmem:[%s1 + $0x220] sm:$0xff]
  %v1259 = vld [vmem:[%s1 + $0x228] sm:$0xff]
  %v1260 = vld [vmem:[%s1 + $0x230] sm:$0xff]
  %v1261 = vld [vmem:[%s1 + $0x238] sm:$0xff]
  %v1262 = vld [vmem:[%s1 + $0x240] sm:$0xff]
  %v1263 = vld [vmem:[%s1 + $0x248] sm:$0xff]
  %v1264 = vld [vmem:[%s1 + $0x250] sm:$0xff]
  %v1265 = vld [vmem:[%s1 + $0x258] sm:$0xff]
  %v1266 = vld [vmem:[%s1 + $0x260] sm:$0xff]
  %v1267 = vld [vmem:[%s1 + $0x268] sm:$0xff]
  %v1268 = vld [vmem:[%s1 + $0x270] sm:$0xff]
  %v1269 = vld [vmem:[%s1 + $0x278] sm:$0xff]
  %v1270 = vld [vmem:[%s1 + $0x280] sm:$0xff]
  %v1271 = vld [vmem:[%s1 + $0x288] sm:$0xff]
  %v1272 = vld [vmem:[%s1 + $0x290] sm:$0xff]
  %v1273 = vld [vmem:[%s1 + $0x298] sm:$0xff]
  %v1274 = vld [vmem:[%s1 + $0x2a0] sm:$0xff]
  %v1275 = vld [vmem:[%s1 + $0x2a8] sm:$0xff]
  %v1276 = vld [vmem:[%s1 + $0x2b0] sm:$0xff]
  %v1277 = vld [vmem:[%s1 + $0x2b8] sm:$0xff]
  %v1278 = vld [vmem:[%s1 + $0x2c0] sm:$0xff]
  %v1279 = vld [vmem:[%s1 + $0x2c8] sm:$0xff]
  %v1280 = vld [vmem:[%s1 + $0x2d0] sm:$0xff]
  %v1281 = vld [vmem:[%s1 + $0x2d8] sm:$0xff]
  %v1282 = vld [vmem:[%s1 + $0x2e0] sm:$0xff]
  %v1283 = vld [vmem:[%s1 + $0x2e8] sm:$0xff]
  %v1284 = vld [vmem:[%s1 + $0x2f0] sm:$0xff]
  %v1285 = vld [vmem:[%s1 + $0x2f8] sm:$0xff]
  %v1286 = vld [vmem:[%s1 + $0x300] sm:$0xff]
  %v1287 = vld [vmem:[%s1 + $0x308] sm:$0xff]
  %v1288 = vld [vmem:[%s1 + $0x310] sm:$0xff]
  %v1289 = vld [vmem:[%s1 + $0x318] sm:$0xff]
  %v1290 = vld [vmem:[%s1 + $0x320] sm:$0xff]
  %v1291 = vld [vmem:[%s1 + $0x328] sm:$0xff]
  %v1292 = vld [vmem:[%s1 + $0x330] sm:$0xff]
  %v1293 = vld [vmem:[%s1 + $0x338] sm:$0xff]
  %v1294 = vld [vmem:[%s1 + $0x340] sm:$0xff]
  %v1295 = vld [vmem:[%s1 + $0x348] sm:$0xff]
  %v1296 = vld [vmem:[%s1 + $0x350] sm:$0xff]
  %v1297 = vld [vmem:[%s1 + $0x358] sm:$0xff]
  %v1298 = vld [vmem:[%s1 + $0x360] sm:$0xff]
  %v1299 = vld [vmem:[%s1 + $0x368] sm:$0xff]
  %v1300 = vld [vmem:[%s1 + $0x370] sm:$0xff]
  %v1301 = vld [vmem:[%s1 + $0x378] sm:$0xff]
  %v1302 = vld [vmem:[%s1 + $0x380] sm:$0xff]
  %v1303 = vld [vmem:[%s1 + $0x388] sm:$0xff]
  %v1304 = vld [vmem:[%s1 + $0x390] sm:$0xff]
  %v1305 = vld [vmem:[%s1 + $0x398] sm:$0xff]
  %v1306 = vld [vmem:[%s1 + $0x3a0] sm:$0xff]
  %v1307 = vld [vmem:[%s1 + $0x3a8] sm:$0xff]
  %v1308 = vld [vmem:[%s1 + $0x3b0] sm:$0xff]
  %v1309 = vld [vmem:[%s1 + $0x3b8] sm:$0xff]
  %v1310 = vld [vmem:[%s1 + $0x3c0] sm:$0xff]
  %v1311 = vld [vmem:[%s1 + $0x3c8] sm:$0xff]
  %v1312 = vld [vmem:[%s1 + $0x3d0] sm:$0xff]
  %v1313 = vld [vmem:[%s1 + $0x3d8] sm:$0xff]
  %v1314 = vld [vmem:[%s1 + $0x3e0] sm:$0xff]
  %v1315 = vld [vmem:[%s1 + $0x3e8] sm:$0xff]
  %v1316 = vld [vmem:[%s1 + $0x3f0] sm:$0xff]
  %v1317 = vld [vmem:[%s1 + $0x3f8] sm:$0xff]
  %v1318 = vld [vmem:[%s1 + $0x400] sm:$0xff]
  %v1319 = vld [vmem:[%s1 + $0x408] sm:$0xff]
  %v1320 = vld [vmem:[%s1 + $0x410] sm:$0xff]
  %v1321 = vld [vmem:[%s1 + $0x418] sm:$0xff]
  %v1322 = vld [vmem:[%s1 + $0x420] sm:$0xff]
  %v1323 = vld [vmem:[%s1 + $0x428] sm:$0xff]
  %v1324 = vld [vmem:[%s1 + $0x430] sm:$0xff]
  %v1325 = vld [vmem:[%s1 + $0x438] sm:$0xff]
  %v1326 = vld [vmem:[%s1 + $0x440] sm:$0xff]
  %v1327 = vld [vmem:[%s1 + $0x448] sm:$0xff]
  %v1328 = vld [vmem:[%s1 + $0x450] sm:$0xff]
  %v1329 = vld [vmem:[%s1 + $0x458] sm:$0xff]
  %v1330 = vld [vmem:[%s1 + $0x460] sm:$0xff]
  %v1331 = vld [vmem:[%s1 + $0x468] sm:$0xff]
  %v1332 = vld [vmem:[%s1 + $0x470] sm:$0xff]
  %v1333 = vld [vmem:[%s1 + $0x478] sm:$0xff]
  %v1334 = vld [vmem:[%s1 + $0x480] sm:$0xff]
  %v1335 = vld [vmem:[%s1 + $0x488] sm:$0xff]
  %v1336 = vld [vmem:[%s1 + $0x490] sm:$0xff]
  %v1337 = vld [vmem:[%s1 + $0x498] sm:$0xff]
  %v1338 = vld [vmem:[%s1 + $0x4a0] sm:$0xff]
  %v1339 = vld [vmem:[%s1 + $0x4a8] sm:$0xff]
  %v1340 = vld [vmem:[%s1 + $0x4b0] sm:$0xff]
  %v1341 = vld [vmem:[%s1 + $0x4b8] sm:$0xff]
  %v1342 = vld [vmem:[%s1 + $0x4c0] sm:$0xff]
  %v1343 = vld [vmem:[%s1 + $0x4c8] sm:$0xff]
  %v1344 = vld [vmem:[%s1 + $0x4d0] sm:$0xff]
  %v1345 = vld [vmem:[%s1 + $0x4d8] sm:$0xff]
  %v1346 = vld [vmem:[%s1 + $0x4e0] sm:$0xff]
  %v1347 = vld [vmem:[%s1 + $0x4e8] sm:$0xff]
  %v1348 = vld [vmem:[%s1 + $0x4f0] sm:$0xff]
  %v1349 = vld [vmem:[%s1 + $0x4f8] sm:$0xff]
  %v1350 = vld [vmem:[%s1 + $0x500] sm:$0xff]
  %v1351 = vld [vmem:[%s1 + $0x508] sm:$0xff]
  %v1352 = vld [vmem:[%s1 + $0x510] sm:$0xff]
  %v1353 = vld [vmem:[%s1 + $0x518] sm:$0xff]
  %v1354 = vld [vmem:[%s1 + $0x520] sm:$0xff]
  %v1355 = vld [vmem:[%s1 + $0x528] sm:$0xff]
  %v1356 = vld [vmem:[%s1 + $0x530] sm:$0xff]
  %v1357 = vld [vmem:[%s1 + $0x538] sm:$0xff]
  %v1358 = vld [vmem:[%s1 + $0x540] sm:$0xff]
  %v1359 = vld [vmem:[%s1 + $0x548] sm:$0xff]
  %v1360 = vld [vmem:[%s1 + $0x550] sm:$0xff]
  %v1361 = vld [vmem:[%s1 + $0x558] sm:$0xff]
  %v1362 = vld [vmem:[%s1 + $0x560] sm:$0xff]
  %v1363 = vld [vmem:[%s1 + $0x568] sm:$0xff]
  %v1364 = vld [vmem:[%s1 + $0x570] sm:$0xff]
  %v1365 = vld [vmem:[%s1 + $0x578] sm:$0xff]
  %v1366 = vld [vmem:[%s1 + $0x580] sm:$0xff]
  %v1367 = vld [vmem:[%s1 + $0x588] sm:$0xff]
  %v1368 = vld [vmem:[%s1 + $0x590] sm:$0xff]
  %v1369 = vld [vmem:[%s1 + $0x598] sm:$0xff]
  %v1370 = vld [vmem:[%s1 + $0x5a0] sm:$0xff]
  %v1371 = vld [vmem:[%s1 + $0x5a8] sm:$0xff]
  %v1372 = vld [vmem:[%s1 + $0x5b0] sm:$0xff]
  %v1373 = vld [vmem:[%s1 + $0x5b8] sm:$0xff]
  %v1374 = vld [vmem:[%s1 + $0x5c0] sm:$0xff]
  %v1375 = vld [vmem:[%s1 + $0x5c8] sm:$0xff]
  %v1376 = vld [vmem:[%s1 + $0x5d0] sm:$0xff]
  %v1377 = vld [vmem:[%s1 + $0x5d8] sm:$0xff]
  %v1378 = vld [vmem:[%s1 + $0x5e0] sm:$0xff]
  %v1379 = vld [vmem:[%s1 + $0x5e8] sm:$0xff]
  %v1380 = vld [vmem:[%s1 + $0x5f0] sm:$0xff]
  %v1381 = vld [vmem:[%s1 + $0x5f8] sm:$0xff]
  %v1382 = vld [vmem:[%s1 + $0x600] sm:$0xff]
  %v1383 = vld [vmem:[%s1 + $0x608] sm:$0xff]
  %v1384 = vld [vmem:[%s1 + $0x610] sm:$0xff]
  %v1385 = vld [vmem:[%s1 + $0x618] sm:$0xff]
  %v1386 = vld [vmem:[%s1 + $0x620] sm:$0xff]
  %v1387 = vld [vmem:[%s1 + $0x628] sm:$0xff]
  %v1388 = vld [vmem:[%s1 + $0x630] sm:$0xff]
  %v1389 = vld [vmem:[%s1 + $0x638] sm:$0xff]
  %v1390 = vld [vmem:[%s1 + $0x640] sm:$0xff]
  %v1391 = vld [vmem:[%s1 + $0x648] sm:$0xff]
  %v1392 = vld [vmem:[%s1 + $0x650] sm:$0xff]
  %v1393 = vld [vmem:[%s1 + $0x658] sm:$0xff]
  %v1394 = vld [vmem:[%s1 + $0x660] sm:$0xff]
  %v1395 = vld [vmem:[%s1 + $0x668] sm:$0xff]
  %v1396 = vld [vmem:[%s1 + $0x670] sm:$0xff]
  %v1397 = vld [vmem:[%s1 + $0x678] sm:$0xff]
  %v1398 = vld [vmem:[%s1 + $0x680] sm:$0xff]
  %v1399 = vld [vmem:[%s1 + $0x688] sm:$0xff]
  %v1400 = vld [vmem:[%s1 + $0x690] sm:$0xff]
  %v1401 = vld [vmem:[%s1 + $0x698] sm:$0xff]
  %v1402 = vld [vmem:[%s1 + $0x6a0] sm:$0xff]
  %v1403 = vld [vmem:[%s1 + $0x6a8] sm:$0xff]
  %v1404 = vld [vmem:[%s1 + $0x6b0] sm:$0xff]
  %v1405 = vld [vmem:[%s1 + $0x6b8] sm:$0xff]
  %v1406 = vld [vmem:[%s1 + $0x6c0] sm:$0xff]
  %v1407 = vld [vmem:[%s1 + $0x6c8] sm:$0xff]
  %v1408 = vld [vmem:[%s1 + $0x6d0] sm:$0xff]
  %v1409 = vld [vmem:[%s1 + $0x6d8] sm:$0xff]
  %v1410 = vld [vmem:[%s1 + $0x6e0] sm:$0xff]
  %v1411 = vld [vmem:[%s1 + $0x6e8] sm:$0xff]
  %v1412 = vld [vmem:[%s1 + $0x6f0] sm:$0xff]
  %v1413 = vld [vmem:[%s1 + $0x6f8] sm:$0xff]
  %v1414 = vld [vmem:[%s1 + $0x700] sm:$0xff]
  %v1415 = vld [vmem:[%s1 + $0x708] sm:$0xff]
  %v1416 = vld [vmem:[%s1 + $0x710] sm:$0xff]
  %v1417 = vld [vmem:[%s1 + $0x718] sm:$0xff]
  %v1418 = vld [vmem:[%s1 + $0x720] sm:$0xff]
  %v1419 = vld [vmem:[%s1 + $0x728] sm:$0xff]
  %v1420 = vld [vmem:[%s1 + $0x730] sm:$0xff]
  %v1421 = vld [vmem:[%s1 + $0x738] sm:$0xff]
  %v1422 = vld [vmem:[%s1 + $0x740] sm:$0xff]
  %v1423 = vld [vmem:[%s1 + $0x748] sm:$0xff]
  %v1424 = vld [vmem:[%s1 + $0x750] sm:$0xff]
  %v1425 = vld [vmem:[%s1 + $0x758] sm:$0xff]
  %v1426 = vld [vmem:[%s1 + $0x760] sm:$0xff]
  %v1427 = vld [vmem:[%s1 + $0x768] sm:$0xff]
  %v1428 = vld [vmem:[%s1 + $0x770] sm:$0xff]
  %v1429 = vld [vmem:[%s1 + $0x778] sm:$0xff]
  %v1430 = vld [vmem:[%s1 + $0x780] sm:$0xff]
  %v1431 = vld [vmem:[%s1 + $0x788] sm:$0xff]
  %v1432 = vld [vmem:[%s1 + $0x790] sm:$0xff]
  %v1433 = vld [vmem:[%s1 + $0x798] sm:$0xff]
  %v1434 = vld [vmem:[%s1 + $0x7a0] sm:$0xff]
  %v1435 = vld [vmem:[%s1 + $0x7a8] sm:$0xff]
  %v1436 = vld [vmem:[%s1 + $0x7b0] sm:$0xff]
  %v1437 = vld [vmem:[%s1 + $0x7b8] sm:$0xff]
  %v1438 = vld [vmem:[%s1 + $0x7c0] sm:$0xff]
  %v1439 = vld [vmem:[%s1 + $0x7c8] sm:$0xff]
  %v1440 = vld [vmem:[%s1 + $0x7d0] sm:$0xff]
  %v1441 = vld [vmem:[%s1 + $0x7d8] sm:$0xff]
  %v1442 = vld [vmem:[%s1 + $0x7e0] sm:$0xff]
  %v1443 = vld [vmem:[%s1 + $0x7e8] sm:$0xff]
  %v1444 = vld [vmem:[%s1 + $0x7f0] sm:$0xff]
  %v1445 = vld [vmem:[%s1 + $0x7f8] sm:$0xff]
  %v1446 = vld [vmem:[%s1 + $0x800] sm:$0xff]
  %v1447 = vld [vmem:[%s1 + $0x808] sm:$0xff]
  %v1448 = vld [vmem:[%s1 + $0x810] sm:$0xff]
  %v1449 = vld [vmem:[%s1 + $0x818] sm:$0xff]
  %v1450 = vld [vmem:[%s1 + $0x820] sm:$0xff]
  %v1451 = vld [vmem:[%s1 + $0x828] sm:$0xff]
  %v1452 = vld [vmem:[%s1 + $0x830] sm:$0xff]
  %v1453 = vld [vmem:[%s1 + $0x838] sm:$0xff]
  %v1454 = vld [vmem:[%s1 + $0x840] sm:$0xff]
  %v1455 = vld [vmem:[%s1 + $0x848] sm:$0xff]
  %v1456 = vld [vmem:[%s1 + $0x850] sm:$0xff]
  %v1457 = vld [vmem:[%s1 + $0x858] sm:$0xff]
  %v1458 = vld [vmem:[%s1 + $0x860] sm:$0xff]
  %v1459 = vld [vmem:[%s1 + $0x868] sm:$0xff]
  %v1460 = vld [vmem:[%s1 + $0x870] sm:$0xff]
  %v1461 = vld [vmem:[%s1 + $0x878] sm:$0xff]
  %v1462 = vld [vmem:[%s1 + $0x880] sm:$0xff]
  %v1463 = vld [vmem:[%s1 + $0x888] sm:$0xff]
  %v1464 = vld [vmem:[%s1 + $0x890] sm:$0xff]
  %v1465 = vld [vmem:[%s1 + $0x898] sm:$0xff]
  %v1466 = vld [vmem:[%s1 + $0x8a0] sm:$0xff]
  %v1467 = vld [vmem:[%s1 + $0x8a8] sm:$0xff]
  %v1468 = vld [vmem:[%s1 + $0x8b0] sm:$0xff]
  %v1469 = vld [vmem:[%s1 + $0x8b8] sm:$0xff]
  %v1470 = vld [vmem:[%s1 + $0x8c0] sm:$0xff]
  %v1471 = vld [vmem:[%s1 + $0x8c8] sm:$0xff]
  %v1472 = vld [vmem:[%s1 + $0x8d0] sm:$0xff]
  %v1473 = vld [vmem:[%s1 + $0x8d8] sm:$0xff]
  %v1474 = vld [vmem:[%s1 + $0x8e0] sm:$0xff]
  %v1475 = vld [vmem:[%s1 + $0x8e8] sm:$0xff]
  %v1476 = vld [vmem:[%s1 + $0x8f0] sm:$0xff]
  %v1477 = vld [vmem:[%s1 + $0x8f8] sm:$0xff]
  %v1478 = vld [vmem:[%s1 + $0x900] sm:$0xff]
  %v1479 = vld [vmem:[%s1 + $0x908] sm:$0xff]
  %v1480 = vld [vmem:[%s1 + $0x910] sm:$0xff]
  %v1481 = vld [vmem:[%s1 + $0x918] sm:$0xff]
  %v1482 = vld [vmem:[%s1 + $0x920] sm:$0xff]
  %v1483 = vld [vmem:[%s1 + $0x928] sm:$0xff]
  %v1484 = vld [vmem:[%s1 + $0x930] sm:$0xff]
  %v1485 = vld [vmem:[%s1 + $0x938] sm:$0xff]
  %v1486 = vld [vmem:[%s1 + $0x940] sm:$0xff]
  %v1487 = vld [vmem:[%s1 + $0x948] sm:$0xff]
  %v1488 = vld [vmem:[%s1 + $0x950] sm:$0xff]
  %v1489 = vld [vmem:[%s1 + $0x958] sm:$0xff]
  %v1490 = vld [vmem:[%s1 + $0x960] sm:$0xff]
  %v1491 = vld [vmem:[%s1 + $0x968] sm:$0xff]
  %v1492 = vld [vmem:[%s1 + $0x970] sm:$0xff]
  %v1493 = vld [vmem:[%s1 + $0x978] sm:$0xff]
  %v1494 = vld [vmem:[%s1 + $0x980] sm:$0xff]
  %v1495 = vld [vmem:[%s1 + $0x988] sm:$0xff]
  %v1496 = vld [vmem:[%s1 + $0x990] sm:$0xff]
  %v1497 = vld [vmem:[%s1 + $0x998] sm:$0xff]
  %v1498 = vld [vmem:[%s1 + $0x9a0] sm:$0xff]
  %v1499 = vld [vmem:[%s1 + $0x9a8] sm:$0xff]
  %v1500 = vld [vmem:[%s1 + $0x9b0] sm:$0xff]
  %v1501 = vld [vmem:[%s1 + $0x9b8] sm:$0xff]
  %v1502 = vld [vmem:[%s1 + $0x9c0] sm:$0xff]
  %v1503 = vld [vmem:[%s1 + $0x9c8] sm:$0xff]
  %v1504 = vld [vmem:[%s1 + $0x9d0] sm:$0xff]
  %v1505 = vld [vmem:[%s1 + $0x9d8] sm:$0xff]
  %v1506 = vld [vmem:[%s1 + $0x9e0] sm:$0xff]
  %v1507 = vld [vmem:[%s1 + $0x9e8] sm:$0xff]
  %v1508 = vld [vmem:[%s1 + $0x9f0] sm:$0xff]
  %v1509 = vld [vmem:[%s1 + $0x9f8] sm:$0xff]
  %v1510 = vld [vmem:[%s1 + $0xa00] sm:$0xff]
  %v1511 = vld [vmem:[%s1 + $0xa08] sm:$0xff]
  %v1512 = vld [vmem:[%s1 + $0xa10] sm:$0xff]
  %v1513 = vld [vmem:[%s1 + $0xa18] sm:$0xff]
  %v1514 = vld [vmem:[%s1 + $0xa20] sm:$0xff]
  %v1515 = vld [vmem:[%s1 + $0xa28] sm:$0xff]
  %v1516 = vld [vmem:[%s1 + $0xa30] sm:$0xff]
  %v1517 = vld [vmem:[%s1 + $0xa38] sm:$0xff]
  %v1518 = vld [vmem:[%s1 + $0xa40] sm:$0xff]
  %v1519 = vld [vmem:[%s1 + $0xa48] sm:$0xff]
  %v1520 = vld [vmem:[%s1 + $0xa50] sm:$0xff]
  %v1521 = vld [vmem:[%s1 + $0xa58] sm:$0xff]
  %v1522 = vld [vmem:[%s1 + $0xa60] sm:$0xff]
  %v1523 = vld [vmem:[%s1 + $0xa68] sm:$0xff]
  %v1524 = vld [vmem:[%s1 + $0xa70] sm:$0xff]
  %v1525 = vld [vmem:[%s1 + $0xa78] sm:$0xff]
  %v1526 = vld [vmem:[%s1 + $0xa80] sm:$0xff]
  %v1527 = vld [vmem:[%s1 + $0xa88] sm:$0xff]
  %v1528 = vld [vmem:[%s1 + $0xa90] sm:$0xff]
  %v1529 = vld [vmem:[%s1 + $0xa98] sm:$0xff]
  %v1530 = vld [vmem:[%s1 + $0xaa0] sm:$0xff]
  %v1531 = vld [vmem:[%s1 + $0xaa8] sm:$0xff]
  %v1532 = vld [vmem:[%s1 + $0xab0] sm:$0xff]
  %v1533 = vld [vmem:[%s1 + $0xab8] sm:$0xff]
  %v1534 = vld [vmem:[%s1 + $0xac0] sm:$0xff]
  %v1535 = vld [vmem:[%s1 + $0xac8] sm:$0xff]
  %v1536 = vld [vmem:[%s1 + $0xad0] sm:$0xff]
  %v1537 = vld [vmem:[%s1 + $0xad8] sm:$0xff]
  %v1538 = vld [vmem:[%s1 + $0xae0] sm:$0xff]
  %v1539 = vld [vmem:[%s1 + $0xae8] sm:$0xff]
  %v1540 = vld [vmem:[%s1 + $0xaf0] sm:$0xff]
  %v1541 = vld [vmem:[%s1 + $0xaf8] sm:$0xff]
  %v1542 = vld [vmem:[%s1 + $0xb00] sm:$0xff]
  %v1543 = vld [vmem:[%s1 + $0xb08] sm:$0xff]
  %v1544 = vld [vmem:[%s1 + $0xb10] sm:$0xff]
  %v1545 = vld [vmem:[%s1 + $0xb18] sm:$0xff]
  %v1546 = vld [vmem:[%s1 + $0xb20] sm:$0xff]
  %v1547 = vld [vmem:[%s1 + $0xb28] sm:$0xff]
  %v1548 = vld [vmem:[%s1 + $0xb30] sm:$0xff]
  %v1549 = vld [vmem:[%s1 + $0xb38] sm:$0xff]
  %v1550 = vld [vmem:[%s1 + $0xb40] sm:$0xff]
  %v1551 = vld [vmem:[%s1 + $0xb48] sm:$0xff]
  %v1552 = vld [vmem:[%s1 + $0xb50] sm:$0xff]
  %v1553 = vld [vmem:[%s1 + $0xb58] sm:$0xff]
  %v1554 = vld [vmem:[%s1 + $0xb60] sm:$0xff]
  %v1555 = vld [vmem:[%s1 + $0xb68] sm:$0xff]
  %v1556 = vld [vmem:[%s1 + $0xb70] sm:$0xff]
  %v1557 = vld [vmem:[%s1 + $0xb78] sm:$0xff]
  %v1558 = vld [vmem:[%s1 + $0xb80] sm:$0xff]
  %v1559 = vld [vmem:[%s1 + $0xb88] sm:$0xff]
  %v1560 = vld [vmem:[%s1 + $0xb90] sm:$0xff]
  %v1561 = vld [vmem:[%s1 + $0xb98] sm:$0xff]
  %v1562 = vld [vmem:[%s1 + $0xba0] sm:$0xff]
  %v1563 = vld [vmem:[%s1 + $0xba8] sm:$0xff]
  %v1564 = vld [vmem:[%s1 + $0xbb0] sm:$0xff]
  %v1565 = vld [vmem:[%s1 + $0xbb8] sm:$0xff]
  %v1566 = vld [vmem:[%s1 + $0xbc0] sm:$0xff]
  %v1567 = vld [vmem:[%s1 + $0xbc8] sm:$0xff]
  %v1568 = vld [vmem:[%s1 + $0xbd0] sm:$0xff]
  %v1569 = vld [vmem:[%s1 + $0xbd8] sm:$0xff]
  %v1570 = vld [vmem:[%s1 + $0xbe0] sm:$0xff]
  %v1571 = vld [vmem:[%s1 + $0xbe8] sm:$0xff]
  %v1572 = vld [vmem:[%s1 + $0xbf0] sm:$0xff]
  %v1573 = vld [vmem:[%s1 + $0xbf8] sm:$0xff]
  %v1574 = vld [vmem:[%s2] sm:$0x1]
  %v1576 = vlaneseq
  %v1577 = vshrl.u32 %v1576, 7
  %v1578 = vsub.s32 0, %v1577
  %v1579 = vrot.slane %v1574, %v1578
  %1581 = vmatprep.subr.mxu0 0.0
  %1582 = vmatpush1.msra.mxu0 %v1205
  %1583 = vmatprep.subr.mxu0 0.0
  %1584 = vmatpush1.msra.mxu0 %v1204
  %1585 = vmatprep.subr.mxu0 0.0
  %1586 = vmatpush1.msra.mxu0 %v1203
  %1587 = vmatprep.subr.mxu0 0.0
  %1588 = vmatpush1.msra.mxu0 %v1202
  %1589 = vmatprep.subr.mxu0 0.0
  %1590 = vmatpush1.msra.mxu0 %v1201
  %1591 = vmatprep.subr.mxu0 0.0
  %1592 = vmatpush1.msra.mxu0 %v1200
  %1593 = vmatprep.subr.mxu0 0.0
  %1594 = vmatpush1.msra.mxu0 %v1199
  %1595 = vmatprep.subr.mxu0 0.0
  %1596 = vmatpush1.msra.mxu0 %v1198
  %1597 = vmatprep.subr.mxu0 0.0
  %1598 = vmatpush1.msra.mxu0 %v1197
  %1599 = vmatprep.subr.mxu0 0.0
  %1600 = vmatpush1.msra.mxu0 %v1196
  %1601 = vmatprep.subr.mxu0 0.0
  %1602 = vmatpush1.msra.mxu0 %v1195
  %1603 = vmatprep.subr.mxu0 0.0
  %1604 = vmatpush1.msra.mxu0 %v1194
  %1605 = vmatprep.subr.mxu0 0.0
  %1606 = vmatpush1.msra.mxu0 %v1193
  %1607 = vmatprep.subr.mxu0 0.0
  %1608 = vmatpush1.msra.mxu0 %v1192
  %1609 = vmatprep.subr.mxu0 0.0
  %1610 = vmatpush1.msra.mxu0 %v1191
  %1611 = vmatprep.subr.mxu0 0.0
  %1612 = vmatpush1.msra.mxu0 %v1190
  %1613 = vmatprep.subr.mxu0 0.0
  %1614 = vmatpush2.msra.mxu0 %v1221
  %1615 = vmatprep.subr.mxu0 0.0
  %1616 = vmatpush2.msra.mxu0 %v1220
  %1617 = vmatprep.subr.mxu0 0.0
  %1618 = vmatpush2.msra.mxu0 %v1219
  %1619 = vmatprep.subr.mxu0 0.0
  %1620 = vmatpush2.msra.mxu0 %v1218
  %1621 = vmatprep.subr.mxu0 0.0
  %1622 = vmatpush2.msra.mxu0 %v1217
  %1623 = vmatprep.subr.mxu0 0.0
  %1624 = vmatpush2.msra.mxu0 %v1216
  %1625 = vmatprep.subr.mxu0 0.0
  %1626 = vmatpush2.msra.mxu0 %v1215
  %1627 = vmatprep.subr.mxu0 0.0
  %1628 = vmatpush2.msra.mxu0 %v1214
  %1629 = vmatprep.subr.mxu0 0.0
  %1630 = vmatpush2.msra.mxu0 %v1213
  %1631 = vmatprep.subr.mxu0 0.0
  %1632 = vmatpush2.msra.mxu0 %v1212
  %1633 = vmatprep.subr.mxu0 0.0
  %1634 = vmatpush2.msra.mxu0 %v1211
  %1635 = vmatprep.subr.mxu0 0.0
  %1636 = vmatpush2.msra.mxu0 %v1210
  %1637 = vmatprep.subr.mxu0 0.0
  %1638 = vmatpush2.msra.mxu0 %v1209
  %1639 = vmatprep.subr.mxu0 0.0
  %1640 = vmatpush2.msra.mxu0 %v1208
  %1641 = vmatprep.subr.mxu0 0.0
  %1642 = vmatpush2.msra.mxu0 %v1207
  %1643 = vmatprep.subr.mxu0 0.0
  %1644 = vmatpush2.msra.mxu0 %v1206
  %1645 = vmatprep.mubr.f32.mxu0 %v15
  %1646 = vmatmul.mubr.f32.gmra.mxu0 %v14
  %v1647 = vpop.f32.mrf.mxu0
  %v1648 = vadd.f32 %v1579, %v1647
  %v1649 = vpop.f32.mrf.mxu0
  %1650 = vmatprep.mubr.f32.mxu0 %v39
  %1651 = vmatmul.mubr.f32.gmra.mxu0 %v38
  %v1652 = vpop.f32.mrf.mxu0
  %v1653 = vadd.f32 %v1579, %v1652
  %v1654 = vpop.f32.mrf.mxu0
  %1655 = vmatprep.mubr.f32.mxu0 %v63
  %1656 = vmatmul.mubr.f32.gmra.mxu0 %v62
  %v1657 = vpop.f32.mrf.mxu0
  %v1658 = vadd.f32 %v1579, %v1657
  %v1659 = vpop.f32.mrf.mxu0
  %1660 = vmatprep.mubr.f32.mxu0 %v87
  %1661 = vmatmul.mubr.f32.gmra.mxu0 %v86
  %v1662 = vpop.f32.mrf.mxu0
  %v1663 = vadd.f32 %v1579, %v1662
  %v1664 = vpop.f32.mrf.mxu0
  %1665 = vmatprep.mubr.f32.mxu0 %v111
  %1666 = vmatmul.mubr.f32.gmra.mxu0 %v110
  %v1667 = vpop.f32.mrf.mxu0
  %v1668 = vadd.f32 %v1579, %v1667
  %v1669 = vpop.f32.mrf.mxu0
  %1670 = vmatprep.mubr.f32.mxu0 %v135
  %1671 = vmatmul.mubr.f32.gmra.mxu0 %v134
  %v1672 = vpop.f32.mrf.mxu0
  %v1673 = vadd.f32 %v1579, %v1672
  %v1674 = vpop.f32.mrf.mxu0
  %1675 = vmatprep.mubr.f32.mxu0 %v159
  %1676 = vmatmul.mubr.f32.gmra.mxu0 %v158
  %v1677 = vpop.f32.mrf.mxu0
  %v1678 = vadd.f32 %v1579, %v1677
  %v1679 = vpop.f32.mrf.mxu0
  %1680 = vmatprep.mubr.f32.mxu0 %v183
  %1681 = vmatmul.mubr.f32.gmra.mxu0 %v182
  %v1682 = vpop.f32.mrf.mxu0
  %v1683 = vadd.f32 %v1579, %v1682
  %v1684 = vpop.f32.mrf.mxu0
  %1685 = vmatprep.mubr.f32.mxu0 %v207
  %1686 = vmatmul.mubr.f32.gmra.mxu0 %v206
  %v1687 = vpop.f32.mrf.mxu0
  %v1688 = vadd.f32 %v1579, %v1687
  %v1689 = vpop.f32.mrf.mxu0
  %1690 = vmatprep.mubr.f32.mxu0 %v231
  %1691 = vmatmul.mubr.f32.gmra.mxu0 %v230
  %v1692 = vpop.f32.mrf.mxu0
  %v1693 = vadd.f32 %v1579, %v1692
  %v1694 = vpop.f32.mrf.mxu0
  %1695 = vmatprep.mubr.f32.mxu0 %v255
  %1696 = vmatmul.mubr.f32.gmra.mxu0 %v254
  %v1697 = vpop.f32.mrf.mxu0
  %v1698 = vadd.f32 %v1579, %v1697
  %v1699 = vpop.f32.mrf.mxu0
  %1700 = vmatprep.mubr.f32.mxu0 %v279
  %1701 = vmatmul.mubr.f32.gmra.mxu0 %v278
  %v1702 = vpop.f32.mrf.mxu0
  %v1703 = vadd.f32 %v1579, %v1702
  %v1704 = vpop.f32.mrf.mxu0
  %1705 = vmatprep.mubr.f32.mxu0 %v303
  %1706 = vmatmul.mubr.f32.gmra.mxu0 %v302
  %v1707 = vpop.f32.mrf.mxu0
  %v1708 = vadd.f32 %v1579, %v1707
  %v1709 = vpop.f32.mrf.mxu0
  %1710 = vmatprep.mubr.f32.mxu0 %v327
  %1711 = vmatmul.mubr.f32.gmra.mxu0 %v326
  %v1712 = vpop.f32.mrf.mxu0
  %v1713 = vadd.f32 %v1579, %v1712
  %v1714 = vpop.f32.mrf.mxu0
  %1715 = vmatprep.mubr.f32.mxu0 %v351
  %1716 = vmatmul.mubr.f32.gmra.mxu0 %v350
  %v1717 = vpop.f32.mrf.mxu0
  %v1718 = vadd.f32 %v1579, %v1717
  %v1719 = vpop.f32.mrf.mxu0
  %1720 = vmatprep.mubr.f32.mxu0 %v375
  %1721 = vmatmul.mubr.f32.gmra.mxu0 %v374
  %v1722 = vpop.f32.mrf.mxu0
  %v1723 = vadd.f32 %v1579, %v1722
  %v1724 = vpop.f32.mrf.mxu0
  %1725 = vmatprep.mubr.f32.mxu0 %v399
  %1726 = vmatmul.mubr.f32.gmra.mxu0 %v398
  %v1727 = vpop.f32.mrf.mxu0
  %v1728 = vadd.f32 %v1579, %v1727
  %v1729 = vpop.f32.mrf.mxu0
  %1730 = vmatprep.mubr.f32.mxu0 %v423
  %1731 = vmatmul.mubr.f32.gmra.mxu0 %v422
  %v1732 = vpop.f32.mrf.mxu0
  %v1733 = vadd.f32 %v1579, %v1732
  %v1734 = vpop.f32.mrf.mxu0
  %1735 = vmatprep.mubr.f32.mxu0 %v447
  %1736 = vmatmul.mubr.f32.gmra.mxu0 %v446
  %v1737 = vpop.f32.mrf.mxu0
  %v1738 = vadd.f32 %v1579, %v1737
  %v1739 = vpop.f32.mrf.mxu0
  %1740 = vmatprep.mubr.f32.mxu0 %v471
  %1741 = vmatmul.mubr.f32.gmra.mxu0 %v470
  %v1742 = vpop.f32.mrf.mxu0
  %v1743 = vadd.f32 %v1579, %v1742
  %v1744 = vpop.f32.mrf.mxu0
  %1745 = vmatprep.mubr.f32.mxu0 %v495
  %1746 = vmatmul.mubr.f32.gmra.mxu0 %v494
  %v1747 = vpop.f32.mrf.mxu0
  %v1748 = vadd.f32 %v1579, %v1747
  %v1749 = vpop.f32.mrf.mxu0
  %1750 = vmatprep.mubr.f32.mxu0 %v519
  %1751 = vmatmul.mubr.f32.gmra.mxu0 %v518
  %v1752 = vpop.f32.mrf.mxu0
  %v1753 = vadd.f32 %v1579, %v1752
  %v1754 = vpop.f32.mrf.mxu0
  %1755 = vmatprep.mubr.f32.mxu0 %v543
  %1756 = vmatmul.mubr.f32.gmra.mxu0 %v542
  %v1757 = vpop.f32.mrf.mxu0
  %v1758 = vadd.f32 %v1579, %v1757
  %v1759 = vpop.f32.mrf.mxu0
  %1760 = vmatprep.mubr.f32.mxu0 %v567
  %1761 = vmatmul.mubr.f32.gmra.mxu0 %v566
  %v1762 = vpop.f32.mrf.mxu0
  %v1763 = vadd.f32 %v1579, %v1762
  %v1764 = vpop.f32.mrf.mxu0
  %1765 = vmatprep.mubr.f32.mxu0 %v591
  %1766 = vmatmul.mubr.f32.gmra.mxu0 %v590
  %v1767 = vpop.f32.mrf.mxu0
  %v1768 = vadd.f32 %v1579, %v1767
  %v1769 = vpop.f32.mrf.mxu0
  %1770 = vmatprep.mubr.f32.mxu0 %v615
  %1771 = vmatmul.mubr.f32.gmra.mxu0 %v614
  %v1772 = vpop.f32.mrf.mxu0
  %v1773 = vadd.f32 %v1579, %v1772
  %v1774 = vpop.f32.mrf.mxu0
  %1775 = vmatprep.mubr.f32.mxu0 %v639
  %1776 = vmatmul.mubr.f32.gmra.mxu0 %v638
  %v1777 = vpop.f32.mrf.mxu0
  %v1778 = vadd.f32 %v1579, %v1777
  %v1779 = vpop.f32.mrf.mxu0
  %1780 = vmatprep.mubr.f32.mxu0 %v663
  %1781 = vmatmul.mubr.f32.gmra.mxu0 %v662
  %v1782 = vpop.f32.mrf.mxu0
  %v1783 = vadd.f32 %v1579, %v1782
  %v1784 = vpop.f32.mrf.mxu0
  %1785 = vmatprep.mubr.f32.mxu0 %v687
  %1786 = vmatmul.mubr.f32.gmra.mxu0 %v686
  %v1787 = vpop.f32.mrf.mxu0
  %v1788 = vadd.f32 %v1579, %v1787
  %v1789 = vpop.f32.mrf.mxu0
  %1790 = vmatprep.mubr.f32.mxu0 %v711
  %1791 = vmatmul.mubr.f32.gmra.mxu0 %v710
  %v1792 = vpop.f32.mrf.mxu0
  %v1793 = vadd.f32 %v1579, %v1792
  %v1794 = vpop.f32.mrf.mxu0
  %1795 = vmatprep.mubr.f32.mxu0 %v735
  %1796 = vmatmul.mubr.f32.gmra.mxu0 %v734
  %v1797 = vpop.f32.mrf.mxu0
  %v1798 = vadd.f32 %v1579, %v1797
  %v1799 = vpop.f32.mrf.mxu0
  %1800 = vmatprep.mubr.f32.mxu0 %v759
  %1801 = vmatmul.mubr.f32.gmra.mxu0 %v758
  %v1802 = vpop.f32.mrf.mxu0
  %v1803 = vadd.f32 %v1579, %v1802
  %v1804 = vpop.f32.mrf.mxu0
  %1805 = vmatprep.mubr.f32.mxu0 %v783
  %1806 = vmatmul.mubr.f32.gmra.mxu0 %v782
  %v1807 = vpop.f32.mrf.mxu0
  %v1808 = vadd.f32 %v1579, %v1807
  %v1809 = vpop.f32.mrf.mxu0
  %1810 = vmatprep.mubr.f32.mxu0 %v807
  %1811 = vmatmul.mubr.f32.gmra.mxu0 %v806
  %v1812 = vpop.f32.mrf.mxu0
  %v1813 = vadd.f32 %v1579, %v1812
  %v1814 = vpop.f32.mrf.mxu0
  %1815 = vmatprep.mubr.f32.mxu0 %v831
  %1816 = vmatmul.mubr.f32.gmra.mxu0 %v830
  %v1817 = vpop.f32.mrf.mxu0
  %v1818 = vadd.f32 %v1579, %v1817
  %v1819 = vpop.f32.mrf.mxu0
  %1820 = vmatprep.mubr.f32.mxu0 %v855
  %1821 = vmatmul.mubr.f32.gmra.mxu0 %v854
  %v1822 = vpop.f32.mrf.mxu0
  %v1823 = vadd.f32 %v1579, %v1822
  %v1824 = vpop.f32.mrf.mxu0
  %1825 = vmatprep.mubr.f32.mxu0 %v879
  %1826 = vmatmul.mubr.f32.gmra.mxu0 %v878
  %v1827 = vpop.f32.mrf.mxu0
  %v1828 = vadd.f32 %v1579, %v1827
  %v1829 = vpop.f32.mrf.mxu0
  %1830 = vmatprep.mubr.f32.mxu0 %v903
  %1831 = vmatmul.mubr.f32.gmra.mxu0 %v902
  %v1832 = vpop.f32.mrf.mxu0
  %v1833 = vadd.f32 %v1579, %v1832
  %v1834 = vpop.f32.mrf.mxu0
  %1835 = vmatprep.mubr.f32.mxu0 %v927
  %1836 = vmatmul.mubr.f32.gmra.mxu0 %v926
  %v1837 = vpop.f32.mrf.mxu0
  %v1838 = vadd.f32 %v1579, %v1837
  %v1839 = vpop.f32.mrf.mxu0
  %1840 = vmatprep.mubr.f32.mxu0 %v951
  %1841 = vmatmul.mubr.f32.gmra.mxu0 %v950
  %v1842 = vpop.f32.mrf.mxu0
  %v1843 = vadd.f32 %v1579, %v1842
  %v1844 = vpop.f32.mrf.mxu0
  %1845 = vmatprep.mubr.f32.mxu0 %v975
  %1846 = vmatmul.mubr.f32.gmra.mxu0 %v974
  %v1847 = vpop.f32.mrf.mxu0
  %v1848 = vadd.f32 %v1579, %v1847
  %v1849 = vpop.f32.mrf.mxu0
  %1850 = vmatprep.mubr.f32.mxu0 %v999
  %1851 = vmatmul.mubr.f32.gmra.mxu0 %v998
  %v1852 = vpop.f32.mrf.mxu0
  %v1853 = vadd.f32 %v1579, %v1852
  %v1854 = vpop.f32.mrf.mxu0
  %1855 = vmatprep.mubr.f32.mxu0 %v1023
  %1856 = vmatmul.mubr.f32.gmra.mxu0 %v1022
  %v1857 = vpop.f32.mrf.mxu0
  %v1858 = vadd.f32 %v1579, %v1857
  %v1859 = vpop.f32.mrf.mxu0
  %1860 = vmatprep.mubr.f32.mxu0 %v1047
  %1861 = vmatmul.mubr.f32.gmra.mxu0 %v1046
  %v1862 = vpop.f32.mrf.mxu0
  %v1863 = vadd.f32 %v1579, %v1862
  %v1864 = vpop.f32.mrf.mxu0
  %1865 = vmatprep.mubr.f32.mxu0 %v1071
  %1866 = vmatmul.mubr.f32.gmra.mxu0 %v1070
  %v1867 = vpop.f32.mrf.mxu0
  %v1868 = vadd.f32 %v1579, %v1867
  %v1869 = vpop.f32.mrf.mxu0
  %1870 = vmatprep.mubr.f32.mxu0 %v1095
  %1871 = vmatmul.mubr.f32.gmra.mxu0 %v1094
  %v1872 = vpop.f32.mrf.mxu0
  %v1873 = vadd.f32 %v1579, %v1872
  %v1874 = vpop.f32.mrf.mxu0
  %1875 = vmatprep.mubr.f32.mxu0 %v1119
  %1876 = vmatmul.mubr.f32.gmra.mxu0 %v1118
  %v1877 = vpop.f32.mrf.mxu0
  %v1878 = vadd.f32 %v1579, %v1877
  %v1879 = vpop.f32.mrf.mxu0
  %1880 = vmatprep.mubr.f32.mxu0 %v1143
  %1881 = vmatmul.mubr.f32.gmra.mxu0 %v1142
  %v1882 = vpop.f32.mrf.mxu0
  %v1883 = vadd.f32 %v1579, %v1882
  %v1884 = vpop.f32.mrf.mxu0
  %1885 = vmatprep.mubr.f32.mxu0 %v1167
  %1886 = vmatmul.mubr.f32.gmra.mxu0 %v1166
  %v1887 = vpop.f32.mrf.mxu0
  %v1888 = vadd.f32 %v1579, %v1887
  %v1889 = vpop.f32.mrf.mxu0
  %1890 = vdwg.mxu0
  %1891 = vmatprep.subr.mxu0 0.0
  %1892 = vmatpush1.msra.mxu0 %v1237
  %1893 = vmatprep.subr.mxu0 0.0
  %1894 = vmatpush1.msra.mxu0 %v1236
  %1895 = vmatprep.subr.mxu0 0.0
  %1896 = vmatpush1.msra.mxu0 %v1235
  %1897 = vmatprep.subr.mxu0 0.0
  %1898 = vmatpush1.msra.mxu0 %v1234
  %1899 = vmatprep.subr.mxu0 0.0
  %1900 = vmatpush1.msra.mxu0 %v1233
  %1901 = vmatprep.subr.mxu0 0.0
  %1902 = vmatpush1.msra.mxu0 %v1232
  %1903 = vmatprep.subr.mxu0 0.0
  %1904 = vmatpush1.msra.mxu0 %v1231
  %1905 = vmatprep.subr.mxu0 0.0
  %1906 = vmatpush1.msra.mxu0 %v1230
  %1907 = vmatprep.subr.mxu0 0.0
  %1908 = vmatpush1.msra.mxu0 %v1229
  %1909 = vmatprep.subr.mxu0 0.0
  %1910 = vmatpush1.msra.mxu0 %v1228
  %1911 = vmatprep.subr.mxu0 0.0
  %1912 = vmatpush1.msra.mxu0 %v1227
  %1913 = vmatprep.subr.mxu0 0.0
  %1914 = vmatpush1.msra.mxu0 %v1226
  %1915 = vmatprep.subr.mxu0 0.0
  %1916 = vmatpush1.msra.mxu0 %v1225
  %1917 = vmatprep.subr.mxu0 0.0
  %1918 = vmatpush1.msra.mxu0 %v1224
  %1919 = vmatprep.subr.mxu0 0.0
  %1920 = vmatpush1.msra.mxu0 %v1223
  %1921 = vmatprep.subr.mxu0 0.0
  %1922 = vmatpush1.msra.mxu0 %v1222
  %1923 = vmatprep.subr.mxu0 0.0
  %1924 = vmatpush2.msra.mxu0 %v1253
  %1925 = vmatprep.subr.mxu0 0.0
  %1926 = vmatpush2.msra.mxu0 %v1252
  %1927 = vmatprep.subr.mxu0 0.0
  %1928 = vmatpush2.msra.mxu0 %v1251
  %1929 = vmatprep.subr.mxu0 0.0
  %1930 = vmatpush2.msra.mxu0 %v1250
  %1931 = vmatprep.subr.mxu0 0.0
  %1932 = vmatpush2.msra.mxu0 %v1249
  %1933 = vmatprep.subr.mxu0 0.0
  %1934 = vmatpush2.msra.mxu0 %v1248
  %1935 = vmatprep.subr.mxu0 0.0
  %1936 = vmatpush2.msra.mxu0 %v1247
  %1937 = vmatprep.subr.mxu0 0.0
  %1938 = vmatpush2.msra.mxu0 %v1246
  %1939 = vmatprep.subr.mxu0 0.0
  %1940 = vmatpush2.msra.mxu0 %v1245
  %1941 = vmatprep.subr.mxu0 0.0
  %1942 = vmatpush2.msra.mxu0 %v1244
  %1943 = vmatprep.subr.mxu0 0.0
  %1944 = vmatpush2.msra.mxu0 %v1243
  %1945 = vmatprep.subr.mxu0 0.0
  %1946 = vmatpush2.msra.mxu0 %v1242
  %1947 = vmatprep.subr.mxu0 0.0
  %1948 = vmatpush2.msra.mxu0 %v1241
  %1949 = vmatprep.subr.mxu0 0.0
  %1950 = vmatpush2.msra.mxu0 %v1240
  %1951 = vmatprep.subr.mxu0 0.0
  %1952 = vmatpush2.msra.mxu0 %v1239
  %1953 = vmatprep.subr.mxu0 0.0
  %1954 = vmatpush2.msra.mxu0 %v1238
  %1955 = vmatprep.mubr.f32.mxu0 %v17
  %1956 = vmatmul.mubr.f32.gmra.mxu0 %v16
  %v1957 = vpop.f32.mrf.mxu0
  %v1958 = vadd.f32 %v1648, %v1957
  %v1959 = vpop.f32.mrf.mxu0
  %1960 = vmatprep.mubr.f32.mxu0 %v41
  %1961 = vmatmul.mubr.f32.gmra.mxu0 %v40
  %v1962 = vpop.f32.mrf.mxu0
  %v1963 = vadd.f32 %v1653, %v1962
  %v1964 = vpop.f32.mrf.mxu0
  %1965 = vmatprep.mubr.f32.mxu0 %v65
  %1966 = vmatmul.mubr.f32.gmra.mxu0 %v64
  %v1967 = vpop.f32.mrf.mxu0
  %v1968 = vadd.f32 %v1658, %v1967
  %v1969 = vpop.f32.mrf.mxu0
  %1970 = vmatprep.mubr.f32.mxu0 %v89
  %1971 = vmatmul.mubr.f32.gmra.mxu0 %v88
  %v1972 = vpop.f32.mrf.mxu0
  %v1973 = vadd.f32 %v1663, %v1972
  %v1974 = vpop.f32.mrf.mxu0
  %1975 = vmatprep.mubr.f32.mxu0 %v113
  %1976 = vmatmul.mubr.f32.gmra.mxu0 %v112
  %v1977 = vpop.f32.mrf.mxu0
  %v1978 = vadd.f32 %v1668, %v1977
  %v1979 = vpop.f32.mrf.mxu0
  %1980 = vmatprep.mubr.f32.mxu0 %v137
  %1981 = vmatmul.mubr.f32.gmra.mxu0 %v136
  %v1982 = vpop.f32.mrf.mxu0
  %v1983 = vadd.f32 %v1673, %v1982
  %v1984 = vpop.f32.mrf.mxu0
  %1985 = vmatprep.mubr.f32.mxu0 %v161
  %1986 = vmatmul.mubr.f32.gmra.mxu0 %v160
  %v1987 = vpop.f32.mrf.mxu0
  %v1988 = vadd.f32 %v1678, %v1987
  %v1989 = vpop.f32.mrf.mxu0
  %1990 = vmatprep.mubr.f32.mxu0 %v185
  %1991 = vmatmul.mubr.f32.gmra.mxu0 %v184
  %v1992 = vpop.f32.mrf.mxu0
  %v1993 = vadd.f32 %v1683, %v1992
  %v1994 = vpop.f32.mrf.mxu0
  %1995 = vmatprep.mubr.f32.mxu0 %v209
  %1996 = vmatmul.mubr.f32.gmra.mxu0 %v208
  %v1997 = vpop.f32.mrf.mxu0
  %v1998 = vadd.f32 %v1688, %v1997
  %v1999 = vpop.f32.mrf.mxu0
  %2000 = vmatprep.mubr.f32.mxu0 %v233
  %2001 = vmatmul.mubr.f32.gmra.mxu0 %v232
  %v2002 = vpop.f32.mrf.mxu0
  %v2003 = vadd.f32 %v1693, %v2002
  %v2004 = vpop.f32.mrf.mxu0
  %2005 = vmatprep.mubr.f32.mxu0 %v257
  %2006 = vmatmul.mubr.f32.gmra.mxu0 %v256
  %v2007 = vpop.f32.mrf.mxu0
  %v2008 = vadd.f32 %v1698, %v2007
  %v2009 = vpop.f32.mrf.mxu0
  %2010 = vmatprep.mubr.f32.mxu0 %v281
  %2011 = vmatmul.mubr.f32.gmra.mxu0 %v280
  %v2012 = vpop.f32.mrf.mxu0
  %v2013 = vadd.f32 %v1703, %v2012
  %v2014 = vpop.f32.mrf.mxu0
  %2015 = vmatprep.mubr.f32.mxu0 %v305
  %2016 = vmatmul.mubr.f32.gmra.mxu0 %v304
  %v2017 = vpop.f32.mrf.mxu0
  %v2018 = vadd.f32 %v1708, %v2017
  %v2019 = vpop.f32.mrf.mxu0
  %2020 = vmatprep.mubr.f32.mxu0 %v329
  %2021 = vmatmul.mubr.f32.gmra.mxu0 %v328
  %v2022 = vpop.f32.mrf.mxu0
  %v2023 = vadd.f32 %v1713, %v2022
  %v2024 = vpop.f32.mrf.mxu0
  %2025 = vmatprep.mubr.f32.mxu0 %v353
  %2026 = vmatmul.mubr.f32.gmra.mxu0 %v352
  %v2027 = vpop.f32.mrf.mxu0
  %v2028 = vadd.f32 %v1718, %v2027
  %v2029 = vpop.f32.mrf.mxu0
  %2030 = vmatprep.mubr.f32.mxu0 %v377
  %2031 = vmatmul.mubr.f32.gmra.mxu0 %v376
  %v2032 = vpop.f32.mrf.mxu0
  %v2033 = vadd.f32 %v1723, %v2032
  %v2034 = vpop.f32.mrf.mxu0
  %2035 = vmatprep.mubr.f32.mxu0 %v401
  %2036 = vmatmul.mubr.f32.gmra.mxu0 %v400
  %v2037 = vpop.f32.mrf.mxu0
  %v2038 = vadd.f32 %v1728, %v2037
  %v2039 = vpop.f32.mrf.mxu0
  %2040 = vmatprep.mubr.f32.mxu0 %v425
  %2041 = vmatmul.mubr.f32.gmra.mxu0 %v424
  %v2042 = vpop.f32.mrf.mxu0
  %v2043 = vadd.f32 %v1733, %v2042
  %v2044 = vpop.f32.mrf.mxu0
  %2045 = vmatprep.mubr.f32.mxu0 %v449
  %2046 = vmatmul.mubr.f32.gmra.mxu0 %v448
  %v2047 = vpop.f32.mrf.mxu0
  %v2048 = vadd.f32 %v1738, %v2047
  %v2049 = vpop.f32.mrf.mxu0
  %2050 = vmatprep.mubr.f32.mxu0 %v473
  %2051 = vmatmul.mubr.f32.gmra.mxu0 %v472
  %v2052 = vpop.f32.mrf.mxu0
  %v2053 = vadd.f32 %v1743, %v2052
  %v2054 = vpop.f32.mrf.mxu0
  %2055 = vmatprep.mubr.f32.mxu0 %v497
  %2056 = vmatmul.mubr.f32.gmra.mxu0 %v496
  %v2057 = vpop.f32.mrf.mxu0
  %v2058 = vadd.f32 %v1748, %v2057
  %v2059 = vpop.f32.mrf.mxu0
  %2060 = vmatprep.mubr.f32.mxu0 %v521
  %2061 = vmatmul.mubr.f32.gmra.mxu0 %v520
  %v2062 = vpop.f32.mrf.mxu0
  %v2063 = vadd.f32 %v1753, %v2062
  %v2064 = vpop.f32.mrf.mxu0
  %2065 = vmatprep.mubr.f32.mxu0 %v545
  %2066 = vmatmul.mubr.f32.gmra.mxu0 %v544
  %v2067 = vpop.f32.mrf.mxu0
  %v2068 = vadd.f32 %v1758, %v2067
  %v2069 = vpop.f32.mrf.mxu0
  %2070 = vmatprep.mubr.f32.mxu0 %v569
  %2071 = vmatmul.mubr.f32.gmra.mxu0 %v568
  %v2072 = vpop.f32.mrf.mxu0
  %v2073 = vadd.f32 %v1763, %v2072
  %v2074 = vpop.f32.mrf.mxu0
  %2075 = vmatprep.mubr.f32.mxu0 %v593
  %2076 = vmatmul.mubr.f32.gmra.mxu0 %v592
  %v2077 = vpop.f32.mrf.mxu0
  %v2078 = vadd.f32 %v1768, %v2077
  %v2079 = vpop.f32.mrf.mxu0
  %2080 = vmatprep.mubr.f32.mxu0 %v617
  %2081 = vmatmul.mubr.f32.gmra.mxu0 %v616
  %v2082 = vpop.f32.mrf.mxu0
  %v2083 = vadd.f32 %v1773, %v2082
  %v2084 = vpop.f32.mrf.mxu0
  %2085 = vmatprep.mubr.f32.mxu0 %v641
  %2086 = vmatmul.mubr.f32.gmra.mxu0 %v640
  %v2087 = vpop.f32.mrf.mxu0
  %v2088 = vadd.f32 %v1778, %v2087
  %v2089 = vpop.f32.mrf.mxu0
  %2090 = vmatprep.mubr.f32.mxu0 %v665
  %2091 = vmatmul.mubr.f32.gmra.mxu0 %v664
  %v2092 = vpop.f32.mrf.mxu0
  %v2093 = vadd.f32 %v1783, %v2092
  %v2094 = vpop.f32.mrf.mxu0
  %2095 = vmatprep.mubr.f32.mxu0 %v689
  %2096 = vmatmul.mubr.f32.gmra.mxu0 %v688
  %v2097 = vpop.f32.mrf.mxu0
  %v2098 = vadd.f32 %v1788, %v2097
  %v2099 = vpop.f32.mrf.mxu0
  %2100 = vmatprep.mubr.f32.mxu0 %v713
  %2101 = vmatmul.mubr.f32.gmra.mxu0 %v712
  %v2102 = vpop.f32.mrf.mxu0
  %v2103 = vadd.f32 %v1793, %v2102
  %v2104 = vpop.f32.mrf.mxu0
  %2105 = vmatprep.mubr.f32.mxu0 %v737
  %2106 = vmatmul.mubr.f32.gmra.mxu0 %v736
  %v2107 = vpop.f32.mrf.mxu0
  %v2108 = vadd.f32 %v1798, %v2107
  %v2109 = vpop.f32.mrf.mxu0
  %2110 = vmatprep.mubr.f32.mxu0 %v761
  %2111 = vmatmul.mubr.f32.gmra.mxu0 %v760
  %v2112 = vpop.f32.mrf.mxu0
  %v2113 = vadd.f32 %v1803, %v2112
  %v2114 = vpop.f32.mrf.mxu0
  %2115 = vmatprep.mubr.f32.mxu0 %v785
  %2116 = vmatmul.mubr.f32.gmra.mxu0 %v784
  %v2117 = vpop.f32.mrf.mxu0
  %v2118 = vadd.f32 %v1808, %v2117
  %v2119 = vpop.f32.mrf.mxu0
  %2120 = vmatprep.mubr.f32.mxu0 %v809
  %2121 = vmatmul.mubr.f32.gmra.mxu0 %v808
  %v2122 = vpop.f32.mrf.mxu0
  %v2123 = vadd.f32 %v1813, %v2122
  %v2124 = vpop.f32.mrf.mxu0
  %2125 = vmatprep.mubr.f32.mxu0 %v833
  %2126 = vmatmul.mubr.f32.gmra.mxu0 %v832
  %v2127 = vpop.f32.mrf.mxu0
  %v2128 = vadd.f32 %v1818, %v2127
  %v2129 = vpop.f32.mrf.mxu0
  %2130 = vmatprep.mubr.f32.mxu0 %v857
  %2131 = vmatmul.mubr.f32.gmra.mxu0 %v856
  %v2132 = vpop.f32.mrf.mxu0
  %v2133 = vadd.f32 %v1823, %v2132
  %v2134 = vpop.f32.mrf.mxu0
  %2135 = vmatprep.mubr.f32.mxu0 %v881
  %2136 = vmatmul.mubr.f32.gmra.mxu0 %v880
  %v2137 = vpop.f32.mrf.mxu0
  %v2138 = vadd.f32 %v1828, %v2137
  %v2139 = vpop.f32.mrf.mxu0
  %2140 = vmatprep.mubr.f32.mxu0 %v905
  %2141 = vmatmul.mubr.f32.gmra.mxu0 %v904
  %v2142 = vpop.f32.mrf.mxu0
  %v2143 = vadd.f32 %v1833, %v2142
  %v2144 = vpop.f32.mrf.mxu0
  %2145 = vmatprep.mubr.f32.mxu0 %v929
  %2146 = vmatmul.mubr.f32.gmra.mxu0 %v928
  %v2147 = vpop.f32.mrf.mxu0
  %v2148 = vadd.f32 %v1838, %v2147
  %v2149 = vpop.f32.mrf.mxu0
  %2150 = vmatprep.mubr.f32.mxu0 %v953
  %2151 = vmatmul.mubr.f32.gmra.mxu0 %v952
  %v2152 = vpop.f32.mrf.mxu0
  %v2153 = vadd.f32 %v1843, %v2152
  %v2154 = vpop.f32.mrf.mxu0
  %2155 = vmatprep.mubr.f32.mxu0 %v977
  %2156 = vmatmul.mubr.f32.gmra.mxu0 %v976
  %v2157 = vpop.f32.mrf.mxu0
  %v2158 = vadd.f32 %v1848, %v2157
  %v2159 = vpop.f32.mrf.mxu0
  %2160 = vmatprep.mubr.f32.mxu0 %v1001
  %2161 = vmatmul.mubr.f32.gmra.mxu0 %v1000
  %v2162 = vpop.f32.mrf.mxu0
  %v2163 = vadd.f32 %v1853, %v2162
  %v2164 = vpop.f32.mrf.mxu0
  %2165 = vmatprep.mubr.f32.mxu0 %v1025
  %2166 = vmatmul.mubr.f32.gmra.mxu0 %v1024
  %v2167 = vpop.f32.mrf.mxu0
  %v2168 = vadd.f32 %v1858, %v2167
  %v2169 = vpop.f32.mrf.mxu0
  %2170 = vmatprep.mubr.f32.mxu0 %v1049
  %2171 = vmatmul.mubr.f32.gmra.mxu0 %v1048
  %v2172 = vpop.f32.mrf.mxu0
  %v2173 = vadd.f32 %v1863, %v2172
  %v2174 = vpop.f32.mrf.mxu0
  %2175 = vmatprep.mubr.f32.mxu0 %v1073
  %2176 = vmatmul.mubr.f32.gmra.mxu0 %v1072
  %v2177 = vpop.f32.mrf.mxu0
  %v2178 = vadd.f32 %v1868, %v2177
  %v2179 = vpop.f32.mrf.mxu0
  %2180 = vmatprep.mubr.f32.mxu0 %v1097
  %2181 = vmatmul.mubr.f32.gmra.mxu0 %v1096
  %v2182 = vpop.f32.mrf.mxu0
  %v2183 = vadd.f32 %v1873, %v2182
  %v2184 = vpop.f32.mrf.mxu0
  %2185 = vmatprep.mubr.f32.mxu0 %v1121
  %2186 = vmatmul.mubr.f32.gmra.mxu0 %v1120
  %v2187 = vpop.f32.mrf.mxu0
  %v2188 = vadd.f32 %v1878, %v2187
  %v2189 = vpop.f32.mrf.mxu0
  %2190 = vmatprep.mubr.f32.mxu0 %v1145
  %2191 = vmatmul.mubr.f32.gmra.mxu0 %v1144
  %v2192 = vpop.f32.mrf.mxu0
  %v2193 = vadd.f32 %v1883, %v2192
  %v2194 = vpop.f32.mrf.mxu0
  %2195 = vmatprep.mubr.f32.mxu0 %v1169
  %2196 = vmatmul.mubr.f32.gmra.mxu0 %v1168
  %v2197 = vpop.f32.mrf.mxu0
  %v2198 = vadd.f32 %v1888, %v2197
  %v2199 = vpop.f32.mrf.mxu0
  %2200 = vdwg.mxu0
  %2201 = vmatprep.subr.mxu0 0.0
  %2202 = vmatpush1.msra.mxu0 %v1269
  %2203 = vmatprep.subr.mxu0 0.0
  %2204 = vmatpush1.msra.mxu0 %v1268
  %2205 = vmatprep.subr.mxu0 0.0
  %2206 = vmatpush1.msra.mxu0 %v1267
  %2207 = vmatprep.subr.mxu0 0.0
  %2208 = vmatpush1.msra.mxu0 %v1266
  %2209 = vmatprep.subr.mxu0 0.0
  %2210 = vmatpush1.msra.mxu0 %v1265
  %2211 = vmatprep.subr.mxu0 0.0
  %2212 = vmatpush1.msra.mxu0 %v1264
  %2213 = vmatprep.subr.mxu0 0.0
  %2214 = vmatpush1.msra.mxu0 %v1263
  %2215 = vmatprep.subr.mxu0 0.0
  %2216 = vmatpush1.msra.mxu0 %v1262
  %2217 = vmatprep.subr.mxu0 0.0
  %2218 = vmatpush1.msra.mxu0 %v1261
  %2219 = vmatprep.subr.mxu0 0.0
  %2220 = vmatpush1.msra.mxu0 %v1260
  %2221 = vmatprep.subr.mxu0 0.0
  %2222 = vmatpush1.msra.mxu0 %v1259
  %2223 = vmatprep.subr.mxu0 0.0
  %2224 = vmatpush1.msra.mxu0 %v1258
  %2225 = vmatprep.subr.mxu0 0.0
  %2226 = vmatpush1.msra.mxu0 %v1257
  %2227 = vmatprep.subr.mxu0 0.0
  %2228 = vmatpush1.msra.mxu0 %v1256
  %2229 = vmatprep.subr.mxu0 0.0
  %2230 = vmatpush1.msra.mxu0 %v1255
  %2231 = vmatprep.subr.mxu0 0.0
  %2232 = vmatpush1.msra.mxu0 %v1254
  %2233 = vmatprep.subr.mxu0 0.0
  %2234 = vmatpush2.msra.mxu0 %v1285
  %2235 = vmatprep.subr.mxu0 0.0
  %2236 = vmatpush2.msra.mxu0 %v1284
  %2237 = vmatprep.subr.mxu0 0.0
  %2238 = vmatpush2.msra.mxu0 %v1283
  %2239 = vmatprep.subr.mxu0 0.0
  %2240 = vmatpush2.msra.mxu0 %v1282
  %2241 = vmatprep.subr.mxu0 0.0
  %2242 = vmatpush2.msra.mxu0 %v1281
  %2243 = vmatprep.subr.mxu0 0.0
  %2244 = vmatpush2.msra.mxu0 %v1280
  %2245 = vmatprep.subr.mxu0 0.0
  %2246 = vmatpush2.msra.mxu0 %v1279
  %2247 = vmatprep.subr.mxu0 0.0
  %2248 = vmatpush2.msra.mxu0 %v1278
  %2249 = vmatprep.subr.mxu0 0.0
  %2250 = vmatpush2.msra.mxu0 %v1277
  %2251 = vmatprep.subr.mxu0 0.0
  %2252 = vmatpush2.msra.mxu0 %v1276
  %2253 = vmatprep.subr.mxu0 0.0
  %2254 = vmatpush2.msra.mxu0 %v1275
  %2255 = vmatprep.subr.mxu0 0.0
  %2256 = vmatpush2.msra.mxu0 %v1274
  %2257 = vmatprep.subr.mxu0 0.0
  %2258 = vmatpush2.msra.mxu0 %v1273
  %2259 = vmatprep.subr.mxu0 0.0
  %2260 = vmatpush2.msra.mxu0 %v1272
  %2261 = vmatprep.subr.mxu0 0.0
  %2262 = vmatpush2.msra.mxu0 %v1271
  %2263 = vmatprep.subr.mxu0 0.0
  %2264 = vmatpush2.msra.mxu0 %v1270
  %2265 = vmatprep.mubr.f32.mxu0 %v19
  %2266 = vmatmul.mubr.f32.gmra.mxu0 %v18
  %v2267 = vpop.f32.mrf.mxu0
  %v2268 = vadd.f32 %v1958, %v2267
  %v2269 = vpop.f32.mrf.mxu0
  %2270 = vmatprep.mubr.f32.mxu0 %v43
  %2271 = vmatmul.mubr.f32.gmra.mxu0 %v42
  %v2272 = vpop.f32.mrf.mxu0
  %v2273 = vadd.f32 %v1963, %v2272
  %v2274 = vpop.f32.mrf.mxu0
  %2275 = vmatprep.mubr.f32.mxu0 %v67
  %2276 = vmatmul.mubr.f32.gmra.mxu0 %v66
  %v2277 = vpop.f32.mrf.mxu0
  %v2278 = vadd.f32 %v1968, %v2277
  %v2279 = vpop.f32.mrf.mxu0
  %2280 = vmatprep.mubr.f32.mxu0 %v91
  %2281 = vmatmul.mubr.f32.gmra.mxu0 %v90
  %v2282 = vpop.f32.mrf.mxu0
  %v2283 = vadd.f32 %v1973, %v2282
  %v2284 = vpop.f32.mrf.mxu0
  %2285 = vmatprep.mubr.f32.mxu0 %v115
  %2286 = vmatmul.mubr.f32.gmra.mxu0 %v114
  %v2287 = vpop.f32.mrf.mxu0
  %v2288 = vadd.f32 %v1978, %v2287
  %v2289 = vpop.f32.mrf.mxu0
  %2290 = vmatprep.mubr.f32.mxu0 %v139
  %2291 = vmatmul.mubr.f32.gmra.mxu0 %v138
  %v2292 = vpop.f32.mrf.mxu0
  %v2293 = vadd.f32 %v1983, %v2292
  %v2294 = vpop.f32.mrf.mxu0
  %2295 = vmatprep.mubr.f32.mxu0 %v163
  %2296 = vmatmul.mubr.f32.gmra.mxu0 %v162
  %v2297 = vpop.f32.mrf.mxu0
  %v2298 = vadd.f32 %v1988, %v2297
  %v2299 = vpop.f32.mrf.mxu0
  %2300 = vmatprep.mubr.f32.mxu0 %v187
  %2301 = vmatmul.mubr.f32.gmra.mxu0 %v186
  %v2302 = vpop.f32.mrf.mxu0
  %v2303 = vadd.f32 %v1993, %v2302
  %v2304 = vpop.f32.mrf.mxu0
  %2305 = vmatprep.mubr.f32.mxu0 %v211
  %2306 = vmatmul.mubr.f32.gmra.mxu0 %v210
  %v2307 = vpop.f32.mrf.mxu0
  %v2308 = vadd.f32 %v1998, %v2307
  %v2309 = vpop.f32.mrf.mxu0
  %2310 = vmatprep.mubr.f32.mxu0 %v235
  %2311 = vmatmul.mubr.f32.gmra.mxu0 %v234
  %v2312 = vpop.f32.mrf.mxu0
  %v2313 = vadd.f32 %v2003, %v2312
  %v2314 = vpop.f32.mrf.mxu0
  %2315 = vmatprep.mubr.f32.mxu0 %v259
  %2316 = vmatmul.mubr.f32.gmra.mxu0 %v258
  %v2317 = vpop.f32.mrf.mxu0
  %v2318 = vadd.f32 %v2008, %v2317
  %v2319 = vpop.f32.mrf.mxu0
  %2320 = vmatprep.mubr.f32.mxu0 %v283
  %2321 = vmatmul.mubr.f32.gmra.mxu0 %v282
  %v2322 = vpop.f32.mrf.mxu0
  %v2323 = vadd.f32 %v2013, %v2322
  %v2324 = vpop.f32.mrf.mxu0
  %2325 = vmatprep.mubr.f32.mxu0 %v307
  %2326 = vmatmul.mubr.f32.gmra.mxu0 %v306
  %v2327 = vpop.f32.mrf.mxu0
  %v2328 = vadd.f32 %v2018, %v2327
  %v2329 = vpop.f32.mrf.mxu0
  %2330 = vmatprep.mubr.f32.mxu0 %v331
  %2331 = vmatmul.mubr.f32.gmra.mxu0 %v330
  %v2332 = vpop.f32.mrf.mxu0
  %v2333 = vadd.f32 %v2023, %v2332
  %v2334 = vpop.f32.mrf.mxu0
  %2335 = vmatprep.mubr.f32.mxu0 %v355
  %2336 = vmatmul.mubr.f32.gmra.mxu0 %v354
  %v2337 = vpop.f32.mrf.mxu0
  %v2338 = vadd.f32 %v2028, %v2337
  %v2339 = vpop.f32.mrf.mxu0
  %2340 = vmatprep.mubr.f32.mxu0 %v379
  %2341 = vmatmul.mubr.f32.gmra.mxu0 %v378
  %v2342 = vpop.f32.mrf.mxu0
  %v2343 = vadd.f32 %v2033, %v2342
  %v2344 = vpop.f32.mrf.mxu0
  %2345 = vmatprep.mubr.f32.mxu0 %v403
  %2346 = vmatmul.mubr.f32.gmra.mxu0 %v402
  %v2347 = vpop.f32.mrf.mxu0
  %v2348 = vadd.f32 %v2038, %v2347
  %v2349 = vpop.f32.mrf.mxu0
  %2350 = vmatprep.mubr.f32.mxu0 %v427
  %2351 = vmatmul.mubr.f32.gmra.mxu0 %v426
  %v2352 = vpop.f32.mrf.mxu0
  %v2353 = vadd.f32 %v2043, %v2352
  %v2354 = vpop.f32.mrf.mxu0
  %2355 = vmatprep.mubr.f32.mxu0 %v451
  %2356 = vmatmul.mubr.f32.gmra.mxu0 %v450
  %v2357 = vpop.f32.mrf.mxu0
  %v2358 = vadd.f32 %v2048, %v2357
  %v2359 = vpop.f32.mrf.mxu0
  %2360 = vmatprep.mubr.f32.mxu0 %v475
  %2361 = vmatmul.mubr.f32.gmra.mxu0 %v474
  %v2362 = vpop.f32.mrf.mxu0
  %v2363 = vadd.f32 %v2053, %v2362
  %v2364 = vpop.f32.mrf.mxu0
  %2365 = vmatprep.mubr.f32.mxu0 %v499
  %2366 = vmatmul.mubr.f32.gmra.mxu0 %v498
  %v2367 = vpop.f32.mrf.mxu0
  %v2368 = vadd.f32 %v2058, %v2367
  %v2369 = vpop.f32.mrf.mxu0
  %2370 = vmatprep.mubr.f32.mxu0 %v523
  %2371 = vmatmul.mubr.f32.gmra.mxu0 %v522
  %v2372 = vpop.f32.mrf.mxu0
  %v2373 = vadd.f32 %v2063, %v2372
  %v2374 = vpop.f32.mrf.mxu0
  %2375 = vmatprep.mubr.f32.mxu0 %v547
  %2376 = vmatmul.mubr.f32.gmra.mxu0 %v546
  %v2377 = vpop.f32.mrf.mxu0
  %v2378 = vadd.f32 %v2068, %v2377
  %v2379 = vpop.f32.mrf.mxu0
  %2380 = vmatprep.mubr.f32.mxu0 %v571
  %2381 = vmatmul.mubr.f32.gmra.mxu0 %v570
  %v2382 = vpop.f32.mrf.mxu0
  %v2383 = vadd.f32 %v2073, %v2382
  %v2384 = vpop.f32.mrf.mxu0
  %2385 = vmatprep.mubr.f32.mxu0 %v595
  %2386 = vmatmul.mubr.f32.gmra.mxu0 %v594
  %v2387 = vpop.f32.mrf.mxu0
  %v2388 = vadd.f32 %v2078, %v2387
  %v2389 = vpop.f32.mrf.mxu0
  %2390 = vmatprep.mubr.f32.mxu0 %v619
  %2391 = vmatmul.mubr.f32.gmra.mxu0 %v618
  %v2392 = vpop.f32.mrf.mxu0
  %v2393 = vadd.f32 %v2083, %v2392
  %v2394 = vpop.f32.mrf.mxu0
  %2395 = vmatprep.mubr.f32.mxu0 %v643
  %2396 = vmatmul.mubr.f32.gmra.mxu0 %v642
  %v2397 = vpop.f32.mrf.mxu0
  %v2398 = vadd.f32 %v2088, %v2397
  %v2399 = vpop.f32.mrf.mxu0
  %2400 = vmatprep.mubr.f32.mxu0 %v667
  %2401 = vmatmul.mubr.f32.gmra.mxu0 %v666
  %v2402 = vpop.f32.mrf.mxu0
  %v2403 = vadd.f32 %v2093, %v2402
  %v2404 = vpop.f32.mrf.mxu0
  %2405 = vmatprep.mubr.f32.mxu0 %v691
  %2406 = vmatmul.mubr.f32.gmra.mxu0 %v690
  %v2407 = vpop.f32.mrf.mxu0
  %v2408 = vadd.f32 %v2098, %v2407
  %v2409 = vpop.f32.mrf.mxu0
  %2410 = vmatprep.mubr.f32.mxu0 %v715
  %2411 = vmatmul.mubr.f32.gmra.mxu0 %v714
  %v2412 = vpop.f32.mrf.mxu0
  %v2413 = vadd.f32 %v2103, %v2412
  %v2414 = vpop.f32.mrf.mxu0
  %2415 = vmatprep.mubr.f32.mxu0 %v739
  %2416 = vmatmul.mubr.f32.gmra.mxu0 %v738
  %v2417 = vpop.f32.mrf.mxu0
  %v2418 = vadd.f32 %v2108, %v2417
  %v2419 = vpop.f32.mrf.mxu0
  %2420 = vmatprep.mubr.f32.mxu0 %v763
  %2421 = vmatmul.mubr.f32.gmra.mxu0 %v762
  %v2422 = vpop.f32.mrf.mxu0
  %v2423 = vadd.f32 %v2113, %v2422
  %v2424 = vpop.f32.mrf.mxu0
  %2425 = vmatprep.mubr.f32.mxu0 %v787
  %2426 = vmatmul.mubr.f32.gmra.mxu0 %v786
  %v2427 = vpop.f32.mrf.mxu0
  %v2428 = vadd.f32 %v2118, %v2427
  %v2429 = vpop.f32.mrf.mxu0
  %2430 = vmatprep.mubr.f32.mxu0 %v811
  %2431 = vmatmul.mubr.f32.gmra.mxu0 %v810
  %v2432 = vpop.f32.mrf.mxu0
  %v2433 = vadd.f32 %v2123, %v2432
  %v2434 = vpop.f32.mrf.mxu0
  %2435 = vmatprep.mubr.f32.mxu0 %v835
  %2436 = vmatmul.mubr.f32.gmra.mxu0 %v834
  %v2437 = vpop.f32.mrf.mxu0
  %v2438 = vadd.f32 %v2128, %v2437
  %v2439 = vpop.f32.mrf.mxu0
  %2440 = vmatprep.mubr.f32.mxu0 %v859
  %2441 = vmatmul.mubr.f32.gmra.mxu0 %v858
  %v2442 = vpop.f32.mrf.mxu0
  %v2443 = vadd.f32 %v2133, %v2442
  %v2444 = vpop.f32.mrf.mxu0
  %2445 = vmatprep.mubr.f32.mxu0 %v883
  %2446 = vmatmul.mubr.f32.gmra.mxu0 %v882
  %v2447 = vpop.f32.mrf.mxu0
  %v2448 = vadd.f32 %v2138, %v2447
  %v2449 = vpop.f32.mrf.mxu0
  %2450 = vmatprep.mubr.f32.mxu0 %v907
  %2451 = vmatmul.mubr.f32.gmra.mxu0 %v906
  %v2452 = vpop.f32.mrf.mxu0
  %v2453 = vadd.f32 %v2143, %v2452
  %v2454 = vpop.f32.mrf.mxu0
  %2455 = vmatprep.mubr.f32.mxu0 %v931
  %2456 = vmatmul.mubr.f32.gmra.mxu0 %v930
  %v2457 = vpop.f32.mrf.mxu0
  %v2458 = vadd.f32 %v2148, %v2457
  %v2459 = vpop.f32.mrf.mxu0
  %2460 = vmatprep.mubr.f32.mxu0 %v955
  %2461 = vmatmul.mubr.f32.gmra.mxu0 %v954
  %v2462 = vpop.f32.mrf.mxu0
  %v2463 = vadd.f32 %v2153, %v2462
  %v2464 = vpop.f32.mrf.mxu0
  %2465 = vmatprep.mubr.f32.mxu0 %v979
  %2466 = vmatmul.mubr.f32.gmra.mxu0 %v978
  %v2467 = vpop.f32.mrf.mxu0
  %v2468 = vadd.f32 %v2158, %v2467
  %v2469 = vpop.f32.mrf.mxu0
  %2470 = vmatprep.mubr.f32.mxu0 %v1003
  %2471 = vmatmul.mubr.f32.gmra.mxu0 %v1002
  %v2472 = vpop.f32.mrf.mxu0
  %v2473 = vadd.f32 %v2163, %v2472
  %v2474 = vpop.f32.mrf.mxu0
  %2475 = vmatprep.mubr.f32.mxu0 %v1027
  %2476 = vmatmul.mubr.f32.gmra.mxu0 %v1026
  %v2477 = vpop.f32.mrf.mxu0
  %v2478 = vadd.f32 %v2168, %v2477
  %v2479 = vpop.f32.mrf.mxu0
  %2480 = vmatprep.mubr.f32.mxu0 %v1051
  %2481 = vmatmul.mubr.f32.gmra.mxu0 %v1050
  %v2482 = vpop.f32.mrf.mxu0
  %v2483 = vadd.f32 %v2173, %v2482
  %v2484 = vpop.f32.mrf.mxu0
  %2485 = vmatprep.mubr.f32.mxu0 %v1075
  %2486 = vmatmul.mubr.f32.gmra.mxu0 %v1074
  %v2487 = vpop.f32.mrf.mxu0
  %v2488 = vadd.f32 %v2178, %v2487
  %v2489 = vpop.f32.mrf.mxu0
  %2490 = vmatprep.mubr.f32.mxu0 %v1099
  %2491 = vmatmul.mubr.f32.gmra.mxu0 %v1098
  %v2492 = vpop.f32.mrf.mxu0
  %v2493 = vadd.f32 %v2183, %v2492
  %v2494 = vpop.f32.mrf.mxu0
  %2495 = vmatprep.mubr.f32.mxu0 %v1123
  %2496 = vmatmul.mubr.f32.gmra.mxu0 %v1122
  %v2497 = vpop.f32.mrf.mxu0
  %v2498 = vadd.f32 %v2188, %v2497
  %v2499 = vpop.f32.mrf.mxu0
  %2500 = vmatprep.mubr.f32.mxu0 %v1147
  %2501 = vmatmul.mubr.f32.gmra.mxu0 %v1146
  %v2502 = vpop.f32.mrf.mxu0
  %v2503 = vadd.f32 %v2193, %v2502
  %v2504 = vpop.f32.mrf.mxu0
  %2505 = vmatprep.mubr.f32.mxu0 %v1171
  %2506 = vmatmul.mubr.f32.gmra.mxu0 %v1170
  %v2507 = vpop.f32.mrf.mxu0
  %v2508 = vadd.f32 %v2198, %v2507
  %v2509 = vpop.f32.mrf.mxu0
  %2510 = vdwg.mxu0
  %2511 = vmatprep.subr.mxu0 0.0
  %2512 = vmatpush1.msra.mxu0 %v1301
  %2513 = vmatprep.subr.mxu0 0.0
  %2514 = vmatpush1.msra.mxu0 %v1300
  %2515 = vmatprep.subr.mxu0 0.0
  %2516 = vmatpush1.msra.mxu0 %v1299
  %2517 = vmatprep.subr.mxu0 0.0
  %2518 = vmatpush1.msra.mxu0 %v1298
  %2519 = vmatprep.subr.mxu0 0.0
  %2520 = vmatpush1.msra.mxu0 %v1297
  %2521 = vmatprep.subr.mxu0 0.0
  %2522 = vmatpush1.msra.mxu0 %v1296
  %2523 = vmatprep.subr.mxu0 0.0
  %2524 = vmatpush1.msra.mxu0 %v1295
  %2525 = vmatprep.subr.mxu0 0.0
  %2526 = vmatpush1.msra.mxu0 %v1294
  %2527 = vmatprep.subr.mxu0 0.0
  %2528 = vmatpush1.msra.mxu0 %v1293
  %2529 = vmatprep.subr.mxu0 0.0
  %2530 = vmatpush1.msra.mxu0 %v1292
  %2531 = vmatprep.subr.mxu0 0.0
  %2532 = vmatpush1.msra.mxu0 %v1291
  %2533 = vmatprep.subr.mxu0 0.0
  %2534 = vmatpush1.msra.mxu0 %v1290
  %2535 = vmatprep.subr.mxu0 0.0
  %2536 = vmatpush1.msra.mxu0 %v1289
  %2537 = vmatprep.subr.mxu0 0.0
  %2538 = vmatpush1.msra.mxu0 %v1288
  %2539 = vmatprep.subr.mxu0 0.0
  %2540 = vmatpush1.msra.mxu0 %v1287
  %2541 = vmatprep.subr.mxu0 0.0
  %2542 = vmatpush1.msra.mxu0 %v1286
  %2543 = vmatprep.subr.mxu0 0.0
  %2544 = vmatpush2.msra.mxu0 %v1317
  %2545 = vmatprep.subr.mxu0 0.0
  %2546 = vmatpush2.msra.mxu0 %v1316
  %2547 = vmatprep.subr.mxu0 0.0
  %2548 = vmatpush2.msra.mxu0 %v1315
  %2549 = vmatprep.subr.mxu0 0.0
  %2550 = vmatpush2.msra.mxu0 %v1314
  %2551 = vmatprep.subr.mxu0 0.0
  %2552 = vmatpush2.msra.mxu0 %v1313
  %2553 = vmatprep.subr.mxu0 0.0
  %2554 = vmatpush2.msra.mxu0 %v1312
  %2555 = vmatprep.subr.mxu0 0.0
  %2556 = vmatpush2.msra.mxu0 %v1311
  %2557 = vmatprep.subr.mxu0 0.0
  %2558 = vmatpush2.msra.mxu0 %v1310
  %2559 = vmatprep.subr.mxu0 0.0
  %2560 = vmatpush2.msra.mxu0 %v1309
  %2561 = vmatprep.subr.mxu0 0.0
  %2562 = vmatpush2.msra.mxu0 %v1308
  %2563 = vmatprep.subr.mxu0 0.0
  %2564 = vmatpush2.msra.mxu0 %v1307
  %2565 = vmatprep.subr.mxu0 0.0
  %2566 = vmatpush2.msra.mxu0 %v1306
  %2567 = vmatprep.subr.mxu0 0.0
  %2568 = vmatpush2.msra.mxu0 %v1305
  %2569 = vmatprep.subr.mxu0 0.0
  %2570 = vmatpush2.msra.mxu0 %v1304
  %2571 = vmatprep.subr.mxu0 0.0
  %2572 = vmatpush2.msra.mxu0 %v1303
  %2573 = vmatprep.subr.mxu0 0.0
  %2574 = vmatpush2.msra.mxu0 %v1302
  %2575 = vmatprep.mubr.f32.mxu0 %v21
  %2576 = vmatmul.mubr.f32.gmra.mxu0 %v20
  %v2577 = vpop.f32.mrf.mxu0
  %v2578 = vadd.f32 %v2268, %v2577
  %v2579 = vpop.f32.mrf.mxu0
  %2580 = vmatprep.mubr.f32.mxu0 %v45
  %2581 = vmatmul.mubr.f32.gmra.mxu0 %v44
  %v2582 = vpop.f32.mrf.mxu0
  %v2583 = vadd.f32 %v2273, %v2582
  %v2584 = vpop.f32.mrf.mxu0
  %2585 = vmatprep.mubr.f32.mxu0 %v69
  %2586 = vmatmul.mubr.f32.gmra.mxu0 %v68
  %v2587 = vpop.f32.mrf.mxu0
  %v2588 = vadd.f32 %v2278, %v2587
  %v2589 = vpop.f32.mrf.mxu0
  %2590 = vmatprep.mubr.f32.mxu0 %v93
  %2591 = vmatmul.mubr.f32.gmra.mxu0 %v92
  %v2592 = vpop.f32.mrf.mxu0
  %v2593 = vadd.f32 %v2283, %v2592
  %v2594 = vpop.f32.mrf.mxu0
  %2595 = vmatprep.mubr.f32.mxu0 %v117
  %2596 = vmatmul.mubr.f32.gmra.mxu0 %v116
  %v2597 = vpop.f32.mrf.mxu0
  %v2598 = vadd.f32 %v2288, %v2597
  %v2599 = vpop.f32.mrf.mxu0
  %2600 = vmatprep.mubr.f32.mxu0 %v141
  %2601 = vmatmul.mubr.f32.gmra.mxu0 %v140
  %v2602 = vpop.f32.mrf.mxu0
  %v2603 = vadd.f32 %v2293, %v2602
  %v2604 = vpop.f32.mrf.mxu0
  %2605 = vmatprep.mubr.f32.mxu0 %v165
  %2606 = vmatmul.mubr.f32.gmra.mxu0 %v164
  %v2607 = vpop.f32.mrf.mxu0
  %v2608 = vadd.f32 %v2298, %v2607
  %v2609 = vpop.f32.mrf.mxu0
  %2610 = vmatprep.mubr.f32.mxu0 %v189
  %2611 = vmatmul.mubr.f32.gmra.mxu0 %v188
  %v2612 = vpop.f32.mrf.mxu0
  %v2613 = vadd.f32 %v2303, %v2612
  %v2614 = vpop.f32.mrf.mxu0
  %2615 = vmatprep.mubr.f32.mxu0 %v213
  %2616 = vmatmul.mubr.f32.gmra.mxu0 %v212
  %v2617 = vpop.f32.mrf.mxu0
  %v2618 = vadd.f32 %v2308, %v2617
  %v2619 = vpop.f32.mrf.mxu0
  %2620 = vmatprep.mubr.f32.mxu0 %v237
  %2621 = vmatmul.mubr.f32.gmra.mxu0 %v236
  %v2622 = vpop.f32.mrf.mxu0
  %v2623 = vadd.f32 %v2313, %v2622
  %v2624 = vpop.f32.mrf.mxu0
  %2625 = vmatprep.mubr.f32.mxu0 %v261
  %2626 = vmatmul.mubr.f32.gmra.mxu0 %v260
  %v2627 = vpop.f32.mrf.mxu0
  %v2628 = vadd.f32 %v2318, %v2627
  %v2629 = vpop.f32.mrf.mxu0
  %2630 = vmatprep.mubr.f32.mxu0 %v285
  %2631 = vmatmul.mubr.f32.gmra.mxu0 %v284
  %v2632 = vpop.f32.mrf.mxu0
  %v2633 = vadd.f32 %v2323, %v2632
  %v2634 = vpop.f32.mrf.mxu0
  %2635 = vmatprep.mubr.f32.mxu0 %v309
  %2636 = vmatmul.mubr.f32.gmra.mxu0 %v308
  %v2637 = vpop.f32.mrf.mxu0
  %v2638 = vadd.f32 %v2328, %v2637
  %v2639 = vpop.f32.mrf.mxu0
  %2640 = vmatprep.mubr.f32.mxu0 %v333
  %2641 = vmatmul.mubr.f32.gmra.mxu0 %v332
  %v2642 = vpop.f32.mrf.mxu0
  %v2643 = vadd.f32 %v2333, %v2642
  %v2644 = vpop.f32.mrf.mxu0
  %2645 = vmatprep.mubr.f32.mxu0 %v357
  %2646 = vmatmul.mubr.f32.gmra.mxu0 %v356
  %v2647 = vpop.f32.mrf.mxu0
  %v2648 = vadd.f32 %v2338, %v2647
  %v2649 = vpop.f32.mrf.mxu0
  %2650 = vmatprep.mubr.f32.mxu0 %v381
  %2651 = vmatmul.mubr.f32.gmra.mxu0 %v380
  %v2652 = vpop.f32.mrf.mxu0
  %v2653 = vadd.f32 %v2343, %v2652
  %v2654 = vpop.f32.mrf.mxu0
  %2655 = vmatprep.mubr.f32.mxu0 %v405
  %2656 = vmatmul.mubr.f32.gmra.mxu0 %v404
  %v2657 = vpop.f32.mrf.mxu0
  %v2658 = vadd.f32 %v2348, %v2657
  %v2659 = vpop.f32.mrf.mxu0
  %2660 = vmatprep.mubr.f32.mxu0 %v429
  %2661 = vmatmul.mubr.f32.gmra.mxu0 %v428
  %v2662 = vpop.f32.mrf.mxu0
  %v2663 = vadd.f32 %v2353, %v2662
  %v2664 = vpop.f32.mrf.mxu0
  %2665 = vmatprep.mubr.f32.mxu0 %v453
  %2666 = vmatmul.mubr.f32.gmra.mxu0 %v452
  %v2667 = vpop.f32.mrf.mxu0
  %v2668 = vadd.f32 %v2358, %v2667
  %v2669 = vpop.f32.mrf.mxu0
  %2670 = vmatprep.mubr.f32.mxu0 %v477
  %2671 = vmatmul.mubr.f32.gmra.mxu0 %v476
  %v2672 = vpop.f32.mrf.mxu0
  %v2673 = vadd.f32 %v2363, %v2672
  %v2674 = vpop.f32.mrf.mxu0
  %2675 = vmatprep.mubr.f32.mxu0 %v501
  %2676 = vmatmul.mubr.f32.gmra.mxu0 %v500
  %v2677 = vpop.f32.mrf.mxu0
  %v2678 = vadd.f32 %v2368, %v2677
  %v2679 = vpop.f32.mrf.mxu0
  %2680 = vmatprep.mubr.f32.mxu0 %v525
  %2681 = vmatmul.mubr.f32.gmra.mxu0 %v524
  %v2682 = vpop.f32.mrf.mxu0
  %v2683 = vadd.f32 %v2373, %v2682
  %v2684 = vpop.f32.mrf.mxu0
  %2685 = vmatprep.mubr.f32.mxu0 %v549
  %2686 = vmatmul.mubr.f32.gmra.mxu0 %v548
  %v2687 = vpop.f32.mrf.mxu0
  %v2688 = vadd.f32 %v2378, %v2687
  %v2689 = vpop.f32.mrf.mxu0
  %2690 = vmatprep.mubr.f32.mxu0 %v573
  %2691 = vmatmul.mubr.f32.gmra.mxu0 %v572
  %v2692 = vpop.f32.mrf.mxu0
  %v2693 = vadd.f32 %v2383, %v2692
  %v2694 = vpop.f32.mrf.mxu0
  %2695 = vmatprep.mubr.f32.mxu0 %v597
  %2696 = vmatmul.mubr.f32.gmra.mxu0 %v596
  %v2697 = vpop.f32.mrf.mxu0
  %v2698 = vadd.f32 %v2388, %v2697
  %v2699 = vpop.f32.mrf.mxu0
  %2700 = vmatprep.mubr.f32.mxu0 %v621
  %2701 = vmatmul.mubr.f32.gmra.mxu0 %v620
  %v2702 = vpop.f32.mrf.mxu0
  %v2703 = vadd.f32 %v2393, %v2702
  %v2704 = vpop.f32.mrf.mxu0
  %2705 = vmatprep.mubr.f32.mxu0 %v645
  %2706 = vmatmul.mubr.f32.gmra.mxu0 %v644
  %v2707 = vpop.f32.mrf.mxu0
  %v2708 = vadd.f32 %v2398, %v2707
  %v2709 = vpop.f32.mrf.mxu0
  %2710 = vmatprep.mubr.f32.mxu0 %v669
  %2711 = vmatmul.mubr.f32.gmra.mxu0 %v668
  %v2712 = vpop.f32.mrf.mxu0
  %v2713 = vadd.f32 %v2403, %v2712
  %v2714 = vpop.f32.mrf.mxu0
  %2715 = vmatprep.mubr.f32.mxu0 %v693
  %2716 = vmatmul.mubr.f32.gmra.mxu0 %v692
  %v2717 = vpop.f32.mrf.mxu0
  %v2718 = vadd.f32 %v2408, %v2717
  %v2719 = vpop.f32.mrf.mxu0
  %2720 = vmatprep.mubr.f32.mxu0 %v717
  %2721 = vmatmul.mubr.f32.gmra.mxu0 %v716
  %v2722 = vpop.f32.mrf.mxu0
  %v2723 = vadd.f32 %v2413, %v2722
  %v2724 = vpop.f32.mrf.mxu0
  %2725 = vmatprep.mubr.f32.mxu0 %v741
  %2726 = vmatmul.mubr.f32.gmra.mxu0 %v740
  %v2727 = vpop.f32.mrf.mxu0
  %v2728 = vadd.f32 %v2418, %v2727
  %v2729 = vpop.f32.mrf.mxu0
  %2730 = vmatprep.mubr.f32.mxu0 %v765
  %2731 = vmatmul.mubr.f32.gmra.mxu0 %v764
  %v2732 = vpop.f32.mrf.mxu0
  %v2733 = vadd.f32 %v2423, %v2732
  %v2734 = vpop.f32.mrf.mxu0
  %2735 = vmatprep.mubr.f32.mxu0 %v789
  %2736 = vmatmul.mubr.f32.gmra.mxu0 %v788
  %v2737 = vpop.f32.mrf.mxu0
  %v2738 = vadd.f32 %v2428, %v2737
  %v2739 = vpop.f32.mrf.mxu0
  %2740 = vmatprep.mubr.f32.mxu0 %v813
  %2741 = vmatmul.mubr.f32.gmra.mxu0 %v812
  %v2742 = vpop.f32.mrf.mxu0
  %v2743 = vadd.f32 %v2433, %v2742
  %v2744 = vpop.f32.mrf.mxu0
  %2745 = vmatprep.mubr.f32.mxu0 %v837
  %2746 = vmatmul.mubr.f32.gmra.mxu0 %v836
  %v2747 = vpop.f32.mrf.mxu0
  %v2748 = vadd.f32 %v2438, %v2747
  %v2749 = vpop.f32.mrf.mxu0
  %2750 = vmatprep.mubr.f32.mxu0 %v861
  %2751 = vmatmul.mubr.f32.gmra.mxu0 %v860
  %v2752 = vpop.f32.mrf.mxu0
  %v2753 = vadd.f32 %v2443, %v2752
  %v2754 = vpop.f32.mrf.mxu0
  %2755 = vmatprep.mubr.f32.mxu0 %v885
  %2756 = vmatmul.mubr.f32.gmra.mxu0 %v884
  %v2757 = vpop.f32.mrf.mxu0
  %v2758 = vadd.f32 %v2448, %v2757
  %v2759 = vpop.f32.mrf.mxu0
  %2760 = vmatprep.mubr.f32.mxu0 %v909
  %2761 = vmatmul.mubr.f32.gmra.mxu0 %v908
  %v2762 = vpop.f32.mrf.mxu0
  %v2763 = vadd.f32 %v2453, %v2762
  %v2764 = vpop.f32.mrf.mxu0
  %2765 = vmatprep.mubr.f32.mxu0 %v933
  %2766 = vmatmul.mubr.f32.gmra.mxu0 %v932
  %v2767 = vpop.f32.mrf.mxu0
  %v2768 = vadd.f32 %v2458, %v2767
  %v2769 = vpop.f32.mrf.mxu0
  %2770 = vmatprep.mubr.f32.mxu0 %v957
  %2771 = vmatmul.mubr.f32.gmra.mxu0 %v956
  %v2772 = vpop.f32.mrf.mxu0
  %v2773 = vadd.f32 %v2463, %v2772
  %v2774 = vpop.f32.mrf.mxu0
  %2775 = vmatprep.mubr.f32.mxu0 %v981
  %2776 = vmatmul.mubr.f32.gmra.mxu0 %v980
  %v2777 = vpop.f32.mrf.mxu0
  %v2778 = vadd.f32 %v2468, %v2777
  %v2779 = vpop.f32.mrf.mxu0
  %2780 = vmatprep.mubr.f32.mxu0 %v1005
  %2781 = vmatmul.mubr.f32.gmra.mxu0 %v1004
  %v2782 = vpop.f32.mrf.mxu0
  %v2783 = vadd.f32 %v2473, %v2782
  %v2784 = vpop.f32.mrf.mxu0
  %2785 = vmatprep.mubr.f32.mxu0 %v1029
  %2786 = vmatmul.mubr.f32.gmra.mxu0 %v1028
  %v2787 = vpop.f32.mrf.mxu0
  %v2788 = vadd.f32 %v2478, %v2787
  %v2789 = vpop.f32.mrf.mxu0
  %2790 = vmatprep.mubr.f32.mxu0 %v1053
  %2791 = vmatmul.mubr.f32.gmra.mxu0 %v1052
  %v2792 = vpop.f32.mrf.mxu0
  %v2793 = vadd.f32 %v2483, %v2792
  %v2794 = vpop.f32.mrf.mxu0
  %2795 = vmatprep.mubr.f32.mxu0 %v1077
  %2796 = vmatmul.mubr.f32.gmra.mxu0 %v1076
  %v2797 = vpop.f32.mrf.mxu0
  %v2798 = vadd.f32 %v2488, %v2797
  %v2799 = vpop.f32.mrf.mxu0
  %2800 = vmatprep.mubr.f32.mxu0 %v1101
  %2801 = vmatmul.mubr.f32.gmra.mxu0 %v1100
  %v2802 = vpop.f32.mrf.mxu0
  %v2803 = vadd.f32 %v2493, %v2802
  %v2804 = vpop.f32.mrf.mxu0
  %2805 = vmatprep.mubr.f32.mxu0 %v1125
  %2806 = vmatmul.mubr.f32.gmra.mxu0 %v1124
  %v2807 = vpop.f32.mrf.mxu0
  %v2808 = vadd.f32 %v2498, %v2807
  %v2809 = vpop.f32.mrf.mxu0
  %2810 = vmatprep.mubr.f32.mxu0 %v1149
  %2811 = vmatmul.mubr.f32.gmra.mxu0 %v1148
  %v2812 = vpop.f32.mrf.mxu0
  %v2813 = vadd.f32 %v2503, %v2812
  %v2814 = vpop.f32.mrf.mxu0
  %2815 = vmatprep.mubr.f32.mxu0 %v1173
  %2816 = vmatmul.mubr.f32.gmra.mxu0 %v1172
  %v2817 = vpop.f32.mrf.mxu0
  %v2818 = vadd.f32 %v2508, %v2817
  %v2819 = vpop.f32.mrf.mxu0
  %2820 = vdwg.mxu0
  %2821 = vmatprep.subr.mxu0 0.0
  %2822 = vmatpush1.msra.mxu0 %v1333
  %2823 = vmatprep.subr.mxu0 0.0
  %2824 = vmatpush1.msra.mxu0 %v1332
  %2825 = vmatprep.subr.mxu0 0.0
  %2826 = vmatpush1.msra.mxu0 %v1331
  %2827 = vmatprep.subr.mxu0 0.0
  %2828 = vmatpush1.msra.mxu0 %v1330
  %2829 = vmatprep.subr.mxu0 0.0
  %2830 = vmatpush1.msra.mxu0 %v1329
  %2831 = vmatprep.subr.mxu0 0.0
  %2832 = vmatpush1.msra.mxu0 %v1328
  %2833 = vmatprep.subr.mxu0 0.0
  %2834 = vmatpush1.msra.mxu0 %v1327
  %2835 = vmatprep.subr.mxu0 0.0
  %2836 = vmatpush1.msra.mxu0 %v1326
  %2837 = vmatprep.subr.mxu0 0.0
  %2838 = vmatpush1.msra.mxu0 %v1325
  %2839 = vmatprep.subr.mxu0 0.0
  %2840 = vmatpush1.msra.mxu0 %v1324
  %2841 = vmatprep.subr.mxu0 0.0
  %2842 = vmatpush1.msra.mxu0 %v1323
  %2843 = vmatprep.subr.mxu0 0.0
  %2844 = vmatpush1.msra.mxu0 %v1322
  %2845 = vmatprep.subr.mxu0 0.0
  %2846 = vmatpush1.msra.mxu0 %v1321
  %2847 = vmatprep.subr.mxu0 0.0
  %2848 = vmatpush1.msra.mxu0 %v1320
  %2849 = vmatprep.subr.mxu0 0.0
  %2850 = vmatpush1.msra.mxu0 %v1319
  %2851 = vmatprep.subr.mxu0 0.0
  %2852 = vmatpush1.msra.mxu0 %v1318
  %2853 = vmatprep.subr.mxu0 0.0
  %2854 = vmatpush2.msra.mxu0 %v1349
  %2855 = vmatprep.subr.mxu0 0.0
  %2856 = vmatpush2.msra.mxu0 %v1348
  %2857 = vmatprep.subr.mxu0 0.0
  %2858 = vmatpush2.msra.mxu0 %v1347
  %2859 = vmatprep.subr.mxu0 0.0
  %2860 = vmatpush2.msra.mxu0 %v1346
  %2861 = vmatprep.subr.mxu0 0.0
  %2862 = vmatpush2.msra.mxu0 %v1345
  %2863 = vmatprep.subr.mxu0 0.0
  %2864 = vmatpush2.msra.mxu0 %v1344
  %2865 = vmatprep.subr.mxu0 0.0
  %2866 = vmatpush2.msra.mxu0 %v1343
  %2867 = vmatprep.subr.mxu0 0.0
  %2868 = vmatpush2.msra.mxu0 %v1342
  %2869 = vmatprep.subr.mxu0 0.0
  %2870 = vmatpush2.msra.mxu0 %v1341
  %2871 = vmatprep.subr.mxu0 0.0
  %2872 = vmatpush2.msra.mxu0 %v1340
  %2873 = vmatprep.subr.mxu0 0.0
  %2874 = vmatpush2.msra.mxu0 %v1339
  %2875 = vmatprep.subr.mxu0 0.0
  %2876 = vmatpush2.msra.mxu0 %v1338
  %2877 = vmatprep.subr.mxu0 0.0
  %2878 = vmatpush2.msra.mxu0 %v1337
  %2879 = vmatprep.subr.mxu0 0.0
  %2880 = vmatpush2.msra.mxu0 %v1336
  %2881 = vmatprep.subr.mxu0 0.0
  %2882 = vmatpush2.msra.mxu0 %v1335
  %2883 = vmatprep.subr.mxu0 0.0
  %2884 = vmatpush2.msra.mxu0 %v1334
  %2885 = vmatprep.mubr.f32.mxu0 %v23
  %2886 = vmatmul.mubr.f32.gmra.mxu0 %v22
  %v2887 = vpop.f32.mrf.mxu0
  %v2888 = vadd.f32 %v2578, %v2887
  %v2889 = vpop.f32.mrf.mxu0
  %2890 = vmatprep.mubr.f32.mxu0 %v47
  %2891 = vmatmul.mubr.f32.gmra.mxu0 %v46
  %v2892 = vpop.f32.mrf.mxu0
  %v2893 = vadd.f32 %v2583, %v2892
  %v2894 = vpop.f32.mrf.mxu0
  %2895 = vmatprep.mubr.f32.mxu0 %v71
  %2896 = vmatmul.mubr.f32.gmra.mxu0 %v70
  %v2897 = vpop.f32.mrf.mxu0
  %v2898 = vadd.f32 %v2588, %v2897
  %v2899 = vpop.f32.mrf.mxu0
  %2900 = vmatprep.mubr.f32.mxu0 %v95
  %2901 = vmatmul.mubr.f32.gmra.mxu0 %v94
  %v2902 = vpop.f32.mrf.mxu0
  %v2903 = vadd.f32 %v2593, %v2902
  %v2904 = vpop.f32.mrf.mxu0
  %2905 = vmatprep.mubr.f32.mxu0 %v119
  %2906 = vmatmul.mubr.f32.gmra.mxu0 %v118
  %v2907 = vpop.f32.mrf.mxu0
  %v2908 = vadd.f32 %v2598, %v2907
  %v2909 = vpop.f32.mrf.mxu0
  %2910 = vmatprep.mubr.f32.mxu0 %v143
  %2911 = vmatmul.mubr.f32.gmra.mxu0 %v142
  %v2912 = vpop.f32.mrf.mxu0
  %v2913 = vadd.f32 %v2603, %v2912
  %v2914 = vpop.f32.mrf.mxu0
  %2915 = vmatprep.mubr.f32.mxu0 %v167
  %2916 = vmatmul.mubr.f32.gmra.mxu0 %v166
  %v2917 = vpop.f32.mrf.mxu0
  %v2918 = vadd.f32 %v2608, %v2917
  %v2919 = vpop.f32.mrf.mxu0
  %2920 = vmatprep.mubr.f32.mxu0 %v191
  %2921 = vmatmul.mubr.f32.gmra.mxu0 %v190
  %v2922 = vpop.f32.mrf.mxu0
  %v2923 = vadd.f32 %v2613, %v2922
  %v2924 = vpop.f32.mrf.mxu0
  %2925 = vmatprep.mubr.f32.mxu0 %v215
  %2926 = vmatmul.mubr.f32.gmra.mxu0 %v214
  %v2927 = vpop.f32.mrf.mxu0
  %v2928 = vadd.f32 %v2618, %v2927
  %v2929 = vpop.f32.mrf.mxu0
  %2930 = vmatprep.mubr.f32.mxu0 %v239
  %2931 = vmatmul.mubr.f32.gmra.mxu0 %v238
  %v2932 = vpop.f32.mrf.mxu0
  %v2933 = vadd.f32 %v2623, %v2932
  %v2934 = vpop.f32.mrf.mxu0
  %2935 = vmatprep.mubr.f32.mxu0 %v263
  %2936 = vmatmul.mubr.f32.gmra.mxu0 %v262
  %v2937 = vpop.f32.mrf.mxu0
  %v2938 = vadd.f32 %v2628, %v2937
  %v2939 = vpop.f32.mrf.mxu0
  %2940 = vmatprep.mubr.f32.mxu0 %v287
  %2941 = vmatmul.mubr.f32.gmra.mxu0 %v286
  %v2942 = vpop.f32.mrf.mxu0
  %v2943 = vadd.f32 %v2633, %v2942
  %v2944 = vpop.f32.mrf.mxu0
  %2945 = vmatprep.mubr.f32.mxu0 %v311
  %2946 = vmatmul.mubr.f32.gmra.mxu0 %v310
  %v2947 = vpop.f32.mrf.mxu0
  %v2948 = vadd.f32 %v2638, %v2947
  %v2949 = vpop.f32.mrf.mxu0
  %2950 = vmatprep.mubr.f32.mxu0 %v335
  %2951 = vmatmul.mubr.f32.gmra.mxu0 %v334
  %v2952 = vpop.f32.mrf.mxu0
  %v2953 = vadd.f32 %v2643, %v2952
  %v2954 = vpop.f32.mrf.mxu0
  %2955 = vmatprep.mubr.f32.mxu0 %v359
  %2956 = vmatmul.mubr.f32.gmra.mxu0 %v358
  %v2957 = vpop.f32.mrf.mxu0
  %v2958 = vadd.f32 %v2648, %v2957
  %v2959 = vpop.f32.mrf.mxu0
  %2960 = vmatprep.mubr.f32.mxu0 %v383
  %2961 = vmatmul.mubr.f32.gmra.mxu0 %v382
  %v2962 = vpop.f32.mrf.mxu0
  %v2963 = vadd.f32 %v2653, %v2962
  %v2964 = vpop.f32.mrf.mxu0
  %2965 = vmatprep.mubr.f32.mxu0 %v407
  %2966 = vmatmul.mubr.f32.gmra.mxu0 %v406
  %v2967 = vpop.f32.mrf.mxu0
  %v2968 = vadd.f32 %v2658, %v2967
  %v2969 = vpop.f32.mrf.mxu0
  %2970 = vmatprep.mubr.f32.mxu0 %v431
  %2971 = vmatmul.mubr.f32.gmra.mxu0 %v430
  %v2972 = vpop.f32.mrf.mxu0
  %v2973 = vadd.f32 %v2663, %v2972
  %v2974 = vpop.f32.mrf.mxu0
  %2975 = vmatprep.mubr.f32.mxu0 %v455
  %2976 = vmatmul.mubr.f32.gmra.mxu0 %v454
  %v2977 = vpop.f32.mrf.mxu0
  %v2978 = vadd.f32 %v2668, %v2977
  %v2979 = vpop.f32.mrf.mxu0
  %2980 = vmatprep.mubr.f32.mxu0 %v479
  %2981 = vmatmul.mubr.f32.gmra.mxu0 %v478
  %v2982 = vpop.f32.mrf.mxu0
  %v2983 = vadd.f32 %v2673, %v2982
  %v2984 = vpop.f32.mrf.mxu0
  %2985 = vmatprep.mubr.f32.mxu0 %v503
  %2986 = vmatmul.mubr.f32.gmra.mxu0 %v502
  %v2987 = vpop.f32.mrf.mxu0
  %v2988 = vadd.f32 %v2678, %v2987
  %v2989 = vpop.f32.mrf.mxu0
  %2990 = vmatprep.mubr.f32.mxu0 %v527
  %2991 = vmatmul.mubr.f32.gmra.mxu0 %v526
  %v2992 = vpop.f32.mrf.mxu0
  %v2993 = vadd.f32 %v2683, %v2992
  %v2994 = vpop.f32.mrf.mxu0
  %2995 = vmatprep.mubr.f32.mxu0 %v551
  %2996 = vmatmul.mubr.f32.gmra.mxu0 %v550
  %v2997 = vpop.f32.mrf.mxu0
  %v2998 = vadd.f32 %v2688, %v2997
  %v2999 = vpop.f32.mrf.mxu0
  %3000 = vmatprep.mubr.f32.mxu0 %v575
  %3001 = vmatmul.mubr.f32.gmra.mxu0 %v574
  %v3002 = vpop.f32.mrf.mxu0
  %v3003 = vadd.f32 %v2693, %v3002
  %v3004 = vpop.f32.mrf.mxu0
  %3005 = vmatprep.mubr.f32.mxu0 %v599
  %3006 = vmatmul.mubr.f32.gmra.mxu0 %v598
  %v3007 = vpop.f32.mrf.mxu0
  %v3008 = vadd.f32 %v2698, %v3007
  %v3009 = vpop.f32.mrf.mxu0
  %3010 = vmatprep.mubr.f32.mxu0 %v623
  %3011 = vmatmul.mubr.f32.gmra.mxu0 %v622
  %v3012 = vpop.f32.mrf.mxu0
  %v3013 = vadd.f32 %v2703, %v3012
  %v3014 = vpop.f32.mrf.mxu0
  %3015 = vmatprep.mubr.f32.mxu0 %v647
  %3016 = vmatmul.mubr.f32.gmra.mxu0 %v646
  %v3017 = vpop.f32.mrf.mxu0
  %v3018 = vadd.f32 %v2708, %v3017
  %v3019 = vpop.f32.mrf.mxu0
  %3020 = vmatprep.mubr.f32.mxu0 %v671
  %3021 = vmatmul.mubr.f32.gmra.mxu0 %v670
  %v3022 = vpop.f32.mrf.mxu0
  %v3023 = vadd.f32 %v2713, %v3022
  %v3024 = vpop.f32.mrf.mxu0
  %3025 = vmatprep.mubr.f32.mxu0 %v695
  %3026 = vmatmul.mubr.f32.gmra.mxu0 %v694
  %v3027 = vpop.f32.mrf.mxu0
  %v3028 = vadd.f32 %v2718, %v3027
  %v3029 = vpop.f32.mrf.mxu0
  %3030 = vmatprep.mubr.f32.mxu0 %v719
  %3031 = vmatmul.mubr.f32.gmra.mxu0 %v718
  %v3032 = vpop.f32.mrf.mxu0
  %v3033 = vadd.f32 %v2723, %v3032
  %v3034 = vpop.f32.mrf.mxu0
  %3035 = vmatprep.mubr.f32.mxu0 %v743
  %3036 = vmatmul.mubr.f32.gmra.mxu0 %v742
  %v3037 = vpop.f32.mrf.mxu0
  %v3038 = vadd.f32 %v2728, %v3037
  %v3039 = vpop.f32.mrf.mxu0
  %3040 = vmatprep.mubr.f32.mxu0 %v767
  %3041 = vmatmul.mubr.f32.gmra.mxu0 %v766
  %v3042 = vpop.f32.mrf.mxu0
  %v3043 = vadd.f32 %v2733, %v3042
  %v3044 = vpop.f32.mrf.mxu0
  %3045 = vmatprep.mubr.f32.mxu0 %v791
  %3046 = vmatmul.mubr.f32.gmra.mxu0 %v790
  %v3047 = vpop.f32.mrf.mxu0
  %v3048 = vadd.f32 %v2738, %v3047
  %v3049 = vpop.f32.mrf.mxu0
  %3050 = vmatprep.mubr.f32.mxu0 %v815
  %3051 = vmatmul.mubr.f32.gmra.mxu0 %v814
  %v3052 = vpop.f32.mrf.mxu0
  %v3053 = vadd.f32 %v2743, %v3052
  %v3054 = vpop.f32.mrf.mxu0
  %3055 = vmatprep.mubr.f32.mxu0 %v839
  %3056 = vmatmul.mubr.f32.gmra.mxu0 %v838
  %v3057 = vpop.f32.mrf.mxu0
  %v3058 = vadd.f32 %v2748, %v3057
  %v3059 = vpop.f32.mrf.mxu0
  %3060 = vmatprep.mubr.f32.mxu0 %v863
  %3061 = vmatmul.mubr.f32.gmra.mxu0 %v862
  %v3062 = vpop.f32.mrf.mxu0
  %v3063 = vadd.f32 %v2753, %v3062
  %v3064 = vpop.f32.mrf.mxu0
  %3065 = vmatprep.mubr.f32.mxu0 %v887
  %3066 = vmatmul.mubr.f32.gmra.mxu0 %v886
  %v3067 = vpop.f32.mrf.mxu0
  %v3068 = vadd.f32 %v2758, %v3067
  %v3069 = vpop.f32.mrf.mxu0
  %3070 = vmatprep.mubr.f32.mxu0 %v911
  %3071 = vmatmul.mubr.f32.gmra.mxu0 %v910
  %v3072 = vpop.f32.mrf.mxu0
  %v3073 = vadd.f32 %v2763, %v3072
  %v3074 = vpop.f32.mrf.mxu0
  %3075 = vmatprep.mubr.f32.mxu0 %v935
  %3076 = vmatmul.mubr.f32.gmra.mxu0 %v934
  %v3077 = vpop.f32.mrf.mxu0
  %v3078 = vadd.f32 %v2768, %v3077
  %v3079 = vpop.f32.mrf.mxu0
  %3080 = vmatprep.mubr.f32.mxu0 %v959
  %3081 = vmatmul.mubr.f32.gmra.mxu0 %v958
  %v3082 = vpop.f32.mrf.mxu0
  %v3083 = vadd.f32 %v2773, %v3082
  %v3084 = vpop.f32.mrf.mxu0
  %3085 = vmatprep.mubr.f32.mxu0 %v983
  %3086 = vmatmul.mubr.f32.gmra.mxu0 %v982
  %v3087 = vpop.f32.mrf.mxu0
  %v3088 = vadd.f32 %v2778, %v3087
  %v3089 = vpop.f32.mrf.mxu0
  %3090 = vmatprep.mubr.f32.mxu0 %v1007
  %3091 = vmatmul.mubr.f32.gmra.mxu0 %v1006
  %v3092 = vpop.f32.mrf.mxu0
  %v3093 = vadd.f32 %v2783, %v3092
  %v3094 = vpop.f32.mrf.mxu0
  %3095 = vmatprep.mubr.f32.mxu0 %v1031
  %3096 = vmatmul.mubr.f32.gmra.mxu0 %v1030
  %v3097 = vpop.f32.mrf.mxu0
  %v3098 = vadd.f32 %v2788, %v3097
  %v3099 = vpop.f32.mrf.mxu0
  %3100 = vmatprep.mubr.f32.mxu0 %v1055
  %3101 = vmatmul.mubr.f32.gmra.mxu0 %v1054
  %v3102 = vpop.f32.mrf.mxu0
  %v3103 = vadd.f32 %v2793, %v3102
  %v3104 = vpop.f32.mrf.mxu0
  %3105 = vmatprep.mubr.f32.mxu0 %v1079
  %3106 = vmatmul.mubr.f32.gmra.mxu0 %v1078
  %v3107 = vpop.f32.mrf.mxu0
  %v3108 = vadd.f32 %v2798, %v3107
  %v3109 = vpop.f32.mrf.mxu0
  %3110 = vmatprep.mubr.f32.mxu0 %v1103
  %3111 = vmatmul.mubr.f32.gmra.mxu0 %v1102
  %v3112 = vpop.f32.mrf.mxu0
  %v3113 = vadd.f32 %v2803, %v3112
  %v3114 = vpop.f32.mrf.mxu0
  %3115 = vmatprep.mubr.f32.mxu0 %v1127
  %3116 = vmatmul.mubr.f32.gmra.mxu0 %v1126
  %v3117 = vpop.f32.mrf.mxu0
  %v3118 = vadd.f32 %v2808, %v3117
  %v3119 = vpop.f32.mrf.mxu0
  %3120 = vmatprep.mubr.f32.mxu0 %v1151
  %3121 = vmatmul.mubr.f32.gmra.mxu0 %v1150
  %v3122 = vpop.f32.mrf.mxu0
  %v3123 = vadd.f32 %v2813, %v3122
  %v3124 = vpop.f32.mrf.mxu0
  %3125 = vmatprep.mubr.f32.mxu0 %v1175
  %3126 = vmatmul.mubr.f32.gmra.mxu0 %v1174
  %v3127 = vpop.f32.mrf.mxu0
  %v3128 = vadd.f32 %v2818, %v3127
  %v3129 = vpop.f32.mrf.mxu0
  %3130 = vdwg.mxu0
  %3131 = vmatprep.subr.mxu0 0.0
  %3132 = vmatpush1.msra.mxu0 %v1365
  %3133 = vmatprep.subr.mxu0 0.0
  %3134 = vmatpush1.msra.mxu0 %v1364
  %3135 = vmatprep.subr.mxu0 0.0
  %3136 = vmatpush1.msra.mxu0 %v1363
  %3137 = vmatprep.subr.mxu0 0.0
  %3138 = vmatpush1.msra.mxu0 %v1362
  %3139 = vmatprep.subr.mxu0 0.0
  %3140 = vmatpush1.msra.mxu0 %v1361
  %3141 = vmatprep.subr.mxu0 0.0
  %3142 = vmatpush1.msra.mxu0 %v1360
  %3143 = vmatprep.subr.mxu0 0.0
  %3144 = vmatpush1.msra.mxu0 %v1359
  %3145 = vmatprep.subr.mxu0 0.0
  %3146 = vmatpush1.msra.mxu0 %v1358
  %3147 = vmatprep.subr.mxu0 0.0
  %3148 = vmatpush1.msra.mxu0 %v1357
  %3149 = vmatprep.subr.mxu0 0.0
  %3150 = vmatpush1.msra.mxu0 %v1356
  %3151 = vmatprep.subr.mxu0 0.0
  %3152 = vmatpush1.msra.mxu0 %v1355
  %3153 = vmatprep.subr.mxu0 0.0
  %3154 = vmatpush1.msra.mxu0 %v1354
  %3155 = vmatprep.subr.mxu0 0.0
  %3156 = vmatpush1.msra.mxu0 %v1353
  %3157 = vmatprep.subr.mxu0 0.0
  %3158 = vmatpush1.msra.mxu0 %v1352
  %3159 = vmatprep.subr.mxu0 0.0
  %3160 = vmatpush1.msra.mxu0 %v1351
  %3161 = vmatprep.subr.mxu0 0.0
  %3162 = vmatpush1.msra.mxu0 %v1350
  %3163 = vmatprep.subr.mxu0 0.0
  %3164 = vmatpush2.msra.mxu0 %v1381
  %3165 = vmatprep.subr.mxu0 0.0
  %3166 = vmatpush2.msra.mxu0 %v1380
  %3167 = vmatprep.subr.mxu0 0.0
  %3168 = vmatpush2.msra.mxu0 %v1379
  %3169 = vmatprep.subr.mxu0 0.0
  %3170 = vmatpush2.msra.mxu0 %v1378
  %3171 = vmatprep.subr.mxu0 0.0
  %3172 = vmatpush2.msra.mxu0 %v1377
  %3173 = vmatprep.subr.mxu0 0.0
  %3174 = vmatpush2.msra.mxu0 %v1376
  %3175 = vmatprep.subr.mxu0 0.0
  %3176 = vmatpush2.msra.mxu0 %v1375
  %3177 = vmatprep.subr.mxu0 0.0
  %3178 = vmatpush2.msra.mxu0 %v1374
  %3179 = vmatprep.subr.mxu0 0.0
  %3180 = vmatpush2.msra.mxu0 %v1373
  %3181 = vmatprep.subr.mxu0 0.0
  %3182 = vmatpush2.msra.mxu0 %v1372
  %3183 = vmatprep.subr.mxu0 0.0
  %3184 = vmatpush2.msra.mxu0 %v1371
  %3185 = vmatprep.subr.mxu0 0.0
  %3186 = vmatpush2.msra.mxu0 %v1370
  %3187 = vmatprep.subr.mxu0 0.0
  %3188 = vmatpush2.msra.mxu0 %v1369
  %3189 = vmatprep.subr.mxu0 0.0
  %3190 = vmatpush2.msra.mxu0 %v1368
  %3191 = vmatprep.subr.mxu0 0.0
  %3192 = vmatpush2.msra.mxu0 %v1367
  %3193 = vmatprep.subr.mxu0 0.0
  %3194 = vmatpush2.msra.mxu0 %v1366
  %3195 = vmatprep.mubr.f32.mxu0 %v25
  %3196 = vmatmul.mubr.f32.gmra.mxu0 %v24
  %v3197 = vpop.f32.mrf.mxu0
  %v3198 = vadd.f32 %v2888, %v3197
  %v3199 = vpop.f32.mrf.mxu0
  %3200 = vmatprep.mubr.f32.mxu0 %v49
  %3201 = vmatmul.mubr.f32.gmra.mxu0 %v48
  %v3202 = vpop.f32.mrf.mxu0
  %v3203 = vadd.f32 %v2893, %v3202
  %v3204 = vpop.f32.mrf.mxu0
  %3205 = vmatprep.mubr.f32.mxu0 %v73
  %3206 = vmatmul.mubr.f32.gmra.mxu0 %v72
  %v3207 = vpop.f32.mrf.mxu0
  %v3208 = vadd.f32 %v2898, %v3207
  %v3209 = vpop.f32.mrf.mxu0
  %3210 = vmatprep.mubr.f32.mxu0 %v97
  %3211 = vmatmul.mubr.f32.gmra.mxu0 %v96
  %v3212 = vpop.f32.mrf.mxu0
  %v3213 = vadd.f32 %v2903, %v3212
  %v3214 = vpop.f32.mrf.mxu0
  %3215 = vmatprep.mubr.f32.mxu0 %v121
  %3216 = vmatmul.mubr.f32.gmra.mxu0 %v120
  %v3217 = vpop.f32.mrf.mxu0
  %v3218 = vadd.f32 %v2908, %v3217
  %v3219 = vpop.f32.mrf.mxu0
  %3220 = vmatprep.mubr.f32.mxu0 %v145
  %3221 = vmatmul.mubr.f32.gmra.mxu0 %v144
  %v3222 = vpop.f32.mrf.mxu0
  %v3223 = vadd.f32 %v2913, %v3222
  %v3224 = vpop.f32.mrf.mxu0
  %3225 = vmatprep.mubr.f32.mxu0 %v169
  %3226 = vmatmul.mubr.f32.gmra.mxu0 %v168
  %v3227 = vpop.f32.mrf.mxu0
  %v3228 = vadd.f32 %v2918, %v3227
  %v3229 = vpop.f32.mrf.mxu0
  %3230 = vmatprep.mubr.f32.mxu0 %v193
  %3231 = vmatmul.mubr.f32.gmra.mxu0 %v192
  %v3232 = vpop.f32.mrf.mxu0
  %v3233 = vadd.f32 %v2923, %v3232
  %v3234 = vpop.f32.mrf.mxu0
  %3235 = vmatprep.mubr.f32.mxu0 %v217
  %3236 = vmatmul.mubr.f32.gmra.mxu0 %v216
  %v3237 = vpop.f32.mrf.mxu0
  %v3238 = vadd.f32 %v2928, %v3237
  %v3239 = vpop.f32.mrf.mxu0
  %3240 = vmatprep.mubr.f32.mxu0 %v241
  %3241 = vmatmul.mubr.f32.gmra.mxu0 %v240
  %v3242 = vpop.f32.mrf.mxu0
  %v3243 = vadd.f32 %v2933, %v3242
  %v3244 = vpop.f32.mrf.mxu0
  %3245 = vmatprep.mubr.f32.mxu0 %v265
  %3246 = vmatmul.mubr.f32.gmra.mxu0 %v264
  %v3247 = vpop.f32.mrf.mxu0
  %v3248 = vadd.f32 %v2938, %v3247
  %v3249 = vpop.f32.mrf.mxu0
  %3250 = vmatprep.mubr.f32.mxu0 %v289
  %3251 = vmatmul.mubr.f32.gmra.mxu0 %v288
  %v3252 = vpop.f32.mrf.mxu0
  %v3253 = vadd.f32 %v2943, %v3252
  %v3254 = vpop.f32.mrf.mxu0
  %3255 = vmatprep.mubr.f32.mxu0 %v313
  %3256 = vmatmul.mubr.f32.gmra.mxu0 %v312
  %v3257 = vpop.f32.mrf.mxu0
  %v3258 = vadd.f32 %v2948, %v3257
  %v3259 = vpop.f32.mrf.mxu0
  %3260 = vmatprep.mubr.f32.mxu0 %v337
  %3261 = vmatmul.mubr.f32.gmra.mxu0 %v336
  %v3262 = vpop.f32.mrf.mxu0
  %v3263 = vadd.f32 %v2953, %v3262
  %v3264 = vpop.f32.mrf.mxu0
  %3265 = vmatprep.mubr.f32.mxu0 %v361
  %3266 = vmatmul.mubr.f32.gmra.mxu0 %v360
  %v3267 = vpop.f32.mrf.mxu0
  %v3268 = vadd.f32 %v2958, %v3267
  %v3269 = vpop.f32.mrf.mxu0
  %3270 = vmatprep.mubr.f32.mxu0 %v385
  %3271 = vmatmul.mubr.f32.gmra.mxu0 %v384
  %v3272 = vpop.f32.mrf.mxu0
  %v3273 = vadd.f32 %v2963, %v3272
  %v3274 = vpop.f32.mrf.mxu0
  %3275 = vmatprep.mubr.f32.mxu0 %v409
  %3276 = vmatmul.mubr.f32.gmra.mxu0 %v408
  %v3277 = vpop.f32.mrf.mxu0
  %v3278 = vadd.f32 %v2968, %v3277
  %v3279 = vpop.f32.mrf.mxu0
  %3280 = vmatprep.mubr.f32.mxu0 %v433
  %3281 = vmatmul.mubr.f32.gmra.mxu0 %v432
  %v3282 = vpop.f32.mrf.mxu0
  %v3283 = vadd.f32 %v2973, %v3282
  %v3284 = vpop.f32.mrf.mxu0
  %3285 = vmatprep.mubr.f32.mxu0 %v457
  %3286 = vmatmul.mubr.f32.gmra.mxu0 %v456
  %v3287 = vpop.f32.mrf.mxu0
  %v3288 = vadd.f32 %v2978, %v3287
  %v3289 = vpop.f32.mrf.mxu0
  %3290 = vmatprep.mubr.f32.mxu0 %v481
  %3291 = vmatmul.mubr.f32.gmra.mxu0 %v480
  %v3292 = vpop.f32.mrf.mxu0
  %v3293 = vadd.f32 %v2983, %v3292
  %v3294 = vpop.f32.mrf.mxu0
  %3295 = vmatprep.mubr.f32.mxu0 %v505
  %3296 = vmatmul.mubr.f32.gmra.mxu0 %v504
  %v3297 = vpop.f32.mrf.mxu0
  %v3298 = vadd.f32 %v2988, %v3297
  %v3299 = vpop.f32.mrf.mxu0
  %3300 = vmatprep.mubr.f32.mxu0 %v529
  %3301 = vmatmul.mubr.f32.gmra.mxu0 %v528
  %v3302 = vpop.f32.mrf.mxu0
  %v3303 = vadd.f32 %v2993, %v3302
  %v3304 = vpop.f32.mrf.mxu0
  %3305 = vmatprep.mubr.f32.mxu0 %v553
  %3306 = vmatmul.mubr.f32.gmra.mxu0 %v552
  %v3307 = vpop.f32.mrf.mxu0
  %v3308 = vadd.f32 %v2998, %v3307
  %v3309 = vpop.f32.mrf.mxu0
  %3310 = vmatprep.mubr.f32.mxu0 %v577
  %3311 = vmatmul.mubr.f32.gmra.mxu0 %v576
  %v3312 = vpop.f32.mrf.mxu0
  %v3313 = vadd.f32 %v3003, %v3312
  %v3314 = vpop.f32.mrf.mxu0
  %3315 = vmatprep.mubr.f32.mxu0 %v601
  %3316 = vmatmul.mubr.f32.gmra.mxu0 %v600
  %v3317 = vpop.f32.mrf.mxu0
  %v3318 = vadd.f32 %v3008, %v3317
  %v3319 = vpop.f32.mrf.mxu0
  %3320 = vmatprep.mubr.f32.mxu0 %v625
  %3321 = vmatmul.mubr.f32.gmra.mxu0 %v624
  %v3322 = vpop.f32.mrf.mxu0
  %v3323 = vadd.f32 %v3013, %v3322
  %v3324 = vpop.f32.mrf.mxu0
  %3325 = vmatprep.mubr.f32.mxu0 %v649
  %3326 = vmatmul.mubr.f32.gmra.mxu0 %v648
  %v3327 = vpop.f32.mrf.mxu0
  %v3328 = vadd.f32 %v3018, %v3327
  %v3329 = vpop.f32.mrf.mxu0
  %3330 = vmatprep.mubr.f32.mxu0 %v673
  %3331 = vmatmul.mubr.f32.gmra.mxu0 %v672
  %v3332 = vpop.f32.mrf.mxu0
  %v3333 = vadd.f32 %v3023, %v3332
  %v3334 = vpop.f32.mrf.mxu0
  %3335 = vmatprep.mubr.f32.mxu0 %v697
  %3336 = vmatmul.mubr.f32.gmra.mxu0 %v696
  %v3337 = vpop.f32.mrf.mxu0
  %v3338 = vadd.f32 %v3028, %v3337
  %v3339 = vpop.f32.mrf.mxu0
  %3340 = vmatprep.mubr.f32.mxu0 %v721
  %3341 = vmatmul.mubr.f32.gmra.mxu0 %v720
  %v3342 = vpop.f32.mrf.mxu0
  %v3343 = vadd.f32 %v3033, %v3342
  %v3344 = vpop.f32.mrf.mxu0
  %3345 = vmatprep.mubr.f32.mxu0 %v745
  %3346 = vmatmul.mubr.f32.gmra.mxu0 %v744
  %v3347 = vpop.f32.mrf.mxu0
  %v3348 = vadd.f32 %v3038, %v3347
  %v3349 = vpop.f32.mrf.mxu0
  %3350 = vmatprep.mubr.f32.mxu0 %v769
  %3351 = vmatmul.mubr.f32.gmra.mxu0 %v768
  %v3352 = vpop.f32.mrf.mxu0
  %v3353 = vadd.f32 %v3043, %v3352
  %v3354 = vpop.f32.mrf.mxu0
  %3355 = vmatprep.mubr.f32.mxu0 %v793
  %3356 = vmatmul.mubr.f32.gmra.mxu0 %v792
  %v3357 = vpop.f32.mrf.mxu0
  %v3358 = vadd.f32 %v3048, %v3357
  %v3359 = vpop.f32.mrf.mxu0
  %3360 = vmatprep.mubr.f32.mxu0 %v817
  %3361 = vmatmul.mubr.f32.gmra.mxu0 %v816
  %v3362 = vpop.f32.mrf.mxu0
  %v3363 = vadd.f32 %v3053, %v3362
  %v3364 = vpop.f32.mrf.mxu0
  %3365 = vmatprep.mubr.f32.mxu0 %v841
  %3366 = vmatmul.mubr.f32.gmra.mxu0 %v840
  %v3367 = vpop.f32.mrf.mxu0
  %v3368 = vadd.f32 %v3058, %v3367
  %v3369 = vpop.f32.mrf.mxu0
  %3370 = vmatprep.mubr.f32.mxu0 %v865
  %3371 = vmatmul.mubr.f32.gmra.mxu0 %v864
  %v3372 = vpop.f32.mrf.mxu0
  %v3373 = vadd.f32 %v3063, %v3372
  %v3374 = vpop.f32.mrf.mxu0
  %3375 = vmatprep.mubr.f32.mxu0 %v889
  %3376 = vmatmul.mubr.f32.gmra.mxu0 %v888
  %v3377 = vpop.f32.mrf.mxu0
  %v3378 = vadd.f32 %v3068, %v3377
  %v3379 = vpop.f32.mrf.mxu0
  %3380 = vmatprep.mubr.f32.mxu0 %v913
  %3381 = vmatmul.mubr.f32.gmra.mxu0 %v912
  %v3382 = vpop.f32.mrf.mxu0
  %v3383 = vadd.f32 %v3073, %v3382
  %v3384 = vpop.f32.mrf.mxu0
  %3385 = vmatprep.mubr.f32.mxu0 %v937
  %3386 = vmatmul.mubr.f32.gmra.mxu0 %v936
  %v3387 = vpop.f32.mrf.mxu0
  %v3388 = vadd.f32 %v3078, %v3387
  %v3389 = vpop.f32.mrf.mxu0
  %3390 = vmatprep.mubr.f32.mxu0 %v961
  %3391 = vmatmul.mubr.f32.gmra.mxu0 %v960
  %v3392 = vpop.f32.mrf.mxu0
  %v3393 = vadd.f32 %v3083, %v3392
  %v3394 = vpop.f32.mrf.mxu0
  %3395 = vmatprep.mubr.f32.mxu0 %v985
  %3396 = vmatmul.mubr.f32.gmra.mxu0 %v984
  %v3397 = vpop.f32.mrf.mxu0
  %v3398 = vadd.f32 %v3088, %v3397
  %v3399 = vpop.f32.mrf.mxu0
  %3400 = vmatprep.mubr.f32.mxu0 %v1009
  %3401 = vmatmul.mubr.f32.gmra.mxu0 %v1008
  %v3402 = vpop.f32.mrf.mxu0
  %v3403 = vadd.f32 %v3093, %v3402
  %v3404 = vpop.f32.mrf.mxu0
  %3405 = vmatprep.mubr.f32.mxu0 %v1033
  %3406 = vmatmul.mubr.f32.gmra.mxu0 %v1032
  %v3407 = vpop.f32.mrf.mxu0
  %v3408 = vadd.f32 %v3098, %v3407
  %v3409 = vpop.f32.mrf.mxu0
  %3410 = vmatprep.mubr.f32.mxu0 %v1057
  %3411 = vmatmul.mubr.f32.gmra.mxu0 %v1056
  %v3412 = vpop.f32.mrf.mxu0
  %v3413 = vadd.f32 %v3103, %v3412
  %v3414 = vpop.f32.mrf.mxu0
  %3415 = vmatprep.mubr.f32.mxu0 %v1081
  %3416 = vmatmul.mubr.f32.gmra.mxu0 %v1080
  %v3417 = vpop.f32.mrf.mxu0
  %v3418 = vadd.f32 %v3108, %v3417
  %v3419 = vpop.f32.mrf.mxu0
  %3420 = vmatprep.mubr.f32.mxu0 %v1105
  %3421 = vmatmul.mubr.f32.gmra.mxu0 %v1104
  %v3422 = vpop.f32.mrf.mxu0
  %v3423 = vadd.f32 %v3113, %v3422
  %v3424 = vpop.f32.mrf.mxu0
  %3425 = vmatprep.mubr.f32.mxu0 %v1129
  %3426 = vmatmul.mubr.f32.gmra.mxu0 %v1128
  %v3427 = vpop.f32.mrf.mxu0
  %v3428 = vadd.f32 %v3118, %v3427
  %v3429 = vpop.f32.mrf.mxu0
  %3430 = vmatprep.mubr.f32.mxu0 %v1153
  %3431 = vmatmul.mubr.f32.gmra.mxu0 %v1152
  %v3432 = vpop.f32.mrf.mxu0
  %v3433 = vadd.f32 %v3123, %v3432
  %v3434 = vpop.f32.mrf.mxu0
  %3435 = vmatprep.mubr.f32.mxu0 %v1177
  %3436 = vmatmul.mubr.f32.gmra.mxu0 %v1176
  %v3437 = vpop.f32.mrf.mxu0
  %v3438 = vadd.f32 %v3128, %v3437
  %v3439 = vpop.f32.mrf.mxu0
  %3440 = vdwg.mxu0
  %3441 = vmatprep.subr.mxu0 0.0
  %3442 = vmatpush1.msra.mxu0 %v1397
  %3443 = vmatprep.subr.mxu0 0.0
  %3444 = vmatpush1.msra.mxu0 %v1396
  %3445 = vmatprep.subr.mxu0 0.0
  %3446 = vmatpush1.msra.mxu0 %v1395
  %3447 = vmatprep.subr.mxu0 0.0
  %3448 = vmatpush1.msra.mxu0 %v1394
  %3449 = vmatprep.subr.mxu0 0.0
  %3450 = vmatpush1.msra.mxu0 %v1393
  %3451 = vmatprep.subr.mxu0 0.0
  %3452 = vmatpush1.msra.mxu0 %v1392
  %3453 = vmatprep.subr.mxu0 0.0
  %3454 = vmatpush1.msra.mxu0 %v1391
  %3455 = vmatprep.subr.mxu0 0.0
  %3456 = vmatpush1.msra.mxu0 %v1390
  %3457 = vmatprep.subr.mxu0 0.0
  %3458 = vmatpush1.msra.mxu0 %v1389
  %3459 = vmatprep.subr.mxu0 0.0
  %3460 = vmatpush1.msra.mxu0 %v1388
  %3461 = vmatprep.subr.mxu0 0.0
  %3462 = vmatpush1.msra.mxu0 %v1387
  %3463 = vmatprep.subr.mxu0 0.0
  %3464 = vmatpush1.msra.mxu0 %v1386
  %3465 = vmatprep.subr.mxu0 0.0
  %3466 = vmatpush1.msra.mxu0 %v1385
  %3467 = vmatprep.subr.mxu0 0.0
  %3468 = vmatpush1.msra.mxu0 %v1384
  %3469 = vmatprep.subr.mxu0 0.0
  %3470 = vmatpush1.msra.mxu0 %v1383
  %3471 = vmatprep.subr.mxu0 0.0
  %3472 = vmatpush1.msra.mxu0 %v1382
  %3473 = vmatprep.subr.mxu0 0.0
  %3474 = vmatpush2.msra.mxu0 %v1413
  %3475 = vmatprep.subr.mxu0 0.0
  %3476 = vmatpush2.msra.mxu0 %v1412
  %3477 = vmatprep.subr.mxu0 0.0
  %3478 = vmatpush2.msra.mxu0 %v1411
  %3479 = vmatprep.subr.mxu0 0.0
  %3480 = vmatpush2.msra.mxu0 %v1410
  %3481 = vmatprep.subr.mxu0 0.0
  %3482 = vmatpush2.msra.mxu0 %v1409
  %3483 = vmatprep.subr.mxu0 0.0
  %3484 = vmatpush2.msra.mxu0 %v1408
  %3485 = vmatprep.subr.mxu0 0.0
  %3486 = vmatpush2.msra.mxu0 %v1407
  %3487 = vmatprep.subr.mxu0 0.0
  %3488 = vmatpush2.msra.mxu0 %v1406
  %3489 = vmatprep.subr.mxu0 0.0
  %3490 = vmatpush2.msra.mxu0 %v1405
  %3491 = vmatprep.subr.mxu0 0.0
  %3492 = vmatpush2.msra.mxu0 %v1404
  %3493 = vmatprep.subr.mxu0 0.0
  %3494 = vmatpush2.msra.mxu0 %v1403
  %3495 = vmatprep.subr.mxu0 0.0
  %3496 = vmatpush2.msra.mxu0 %v1402
  %3497 = vmatprep.subr.mxu0 0.0
  %3498 = vmatpush2.msra.mxu0 %v1401
  %3499 = vmatprep.subr.mxu0 0.0
  %3500 = vmatpush2.msra.mxu0 %v1400
  %3501 = vmatprep.subr.mxu0 0.0
  %3502 = vmatpush2.msra.mxu0 %v1399
  %3503 = vmatprep.subr.mxu0 0.0
  %3504 = vmatpush2.msra.mxu0 %v1398
  %3505 = vmatprep.mubr.f32.mxu0 %v27
  %3506 = vmatmul.mubr.f32.gmra.mxu0 %v26
  %v3507 = vpop.f32.mrf.mxu0
  %v3508 = vadd.f32 %v3198, %v3507
  %v3509 = vpop.f32.mrf.mxu0
  %3510 = vmatprep.mubr.f32.mxu0 %v51
  %3511 = vmatmul.mubr.f32.gmra.mxu0 %v50
  %v3512 = vpop.f32.mrf.mxu0
  %v3513 = vadd.f32 %v3203, %v3512
  %v3514 = vpop.f32.mrf.mxu0
  %3515 = vmatprep.mubr.f32.mxu0 %v75
  %3516 = vmatmul.mubr.f32.gmra.mxu0 %v74
  %v3517 = vpop.f32.mrf.mxu0
  %v3518 = vadd.f32 %v3208, %v3517
  %v3519 = vpop.f32.mrf.mxu0
  %3520 = vmatprep.mubr.f32.mxu0 %v99
  %3521 = vmatmul.mubr.f32.gmra.mxu0 %v98
  %v3522 = vpop.f32.mrf.mxu0
  %v3523 = vadd.f32 %v3213, %v3522
  %v3524 = vpop.f32.mrf.mxu0
  %3525 = vmatprep.mubr.f32.mxu0 %v123
  %3526 = vmatmul.mubr.f32.gmra.mxu0 %v122
  %v3527 = vpop.f32.mrf.mxu0
  %v3528 = vadd.f32 %v3218, %v3527
  %v3529 = vpop.f32.mrf.mxu0
  %3530 = vmatprep.mubr.f32.mxu0 %v147
  %3531 = vmatmul.mubr.f32.gmra.mxu0 %v146
  %v3532 = vpop.f32.mrf.mxu0
  %v3533 = vadd.f32 %v3223, %v3532
  %v3534 = vpop.f32.mrf.mxu0
  %3535 = vmatprep.mubr.f32.mxu0 %v171
  %3536 = vmatmul.mubr.f32.gmra.mxu0 %v170
  %v3537 = vpop.f32.mrf.mxu0
  %v3538 = vadd.f32 %v3228, %v3537
  %v3539 = vpop.f32.mrf.mxu0
  %3540 = vmatprep.mubr.f32.mxu0 %v195
  %3541 = vmatmul.mubr.f32.gmra.mxu0 %v194
  %v3542 = vpop.f32.mrf.mxu0
  %v3543 = vadd.f32 %v3233, %v3542
  %v3544 = vpop.f32.mrf.mxu0
  %3545 = vmatprep.mubr.f32.mxu0 %v219
  %3546 = vmatmul.mubr.f32.gmra.mxu0 %v218
  %v3547 = vpop.f32.mrf.mxu0
  %v3548 = vadd.f32 %v3238, %v3547
  %v3549 = vpop.f32.mrf.mxu0
  %3550 = vmatprep.mubr.f32.mxu0 %v243
  %3551 = vmatmul.mubr.f32.gmra.mxu0 %v242
  %v3552 = vpop.f32.mrf.mxu0
  %v3553 = vadd.f32 %v3243, %v3552
  %v3554 = vpop.f32.mrf.mxu0
  %3555 = vmatprep.mubr.f32.mxu0 %v267
  %3556 = vmatmul.mubr.f32.gmra.mxu0 %v266
  %v3557 = vpop.f32.mrf.mxu0
  %v3558 = vadd.f32 %v3248, %v3557
  %v3559 = vpop.f32.mrf.mxu0
  %3560 = vmatprep.mubr.f32.mxu0 %v291
  %3561 = vmatmul.mubr.f32.gmra.mxu0 %v290
  %v3562 = vpop.f32.mrf.mxu0
  %v3563 = vadd.f32 %v3253, %v3562
  %v3564 = vpop.f32.mrf.mxu0
  %3565 = vmatprep.mubr.f32.mxu0 %v315
  %3566 = vmatmul.mubr.f32.gmra.mxu0 %v314
  %v3567 = vpop.f32.mrf.mxu0
  %v3568 = vadd.f32 %v3258, %v3567
  %v3569 = vpop.f32.mrf.mxu0
  %3570 = vmatprep.mubr.f32.mxu0 %v339
  %3571 = vmatmul.mubr.f32.gmra.mxu0 %v338
  %v3572 = vpop.f32.mrf.mxu0
  %v3573 = vadd.f32 %v3263, %v3572
  %v3574 = vpop.f32.mrf.mxu0
  %3575 = vmatprep.mubr.f32.mxu0 %v363
  %3576 = vmatmul.mubr.f32.gmra.mxu0 %v362
  %v3577 = vpop.f32.mrf.mxu0
  %v3578 = vadd.f32 %v3268, %v3577
  %v3579 = vpop.f32.mrf.mxu0
  %3580 = vmatprep.mubr.f32.mxu0 %v387
  %3581 = vmatmul.mubr.f32.gmra.mxu0 %v386
  %v3582 = vpop.f32.mrf.mxu0
  %v3583 = vadd.f32 %v3273, %v3582
  %v3584 = vpop.f32.mrf.mxu0
  %3585 = vmatprep.mubr.f32.mxu0 %v411
  %3586 = vmatmul.mubr.f32.gmra.mxu0 %v410
  %v3587 = vpop.f32.mrf.mxu0
  %v3588 = vadd.f32 %v3278, %v3587
  %v3589 = vpop.f32.mrf.mxu0
  %3590 = vmatprep.mubr.f32.mxu0 %v435
  %3591 = vmatmul.mubr.f32.gmra.mxu0 %v434
  %v3592 = vpop.f32.mrf.mxu0
  %v3593 = vadd.f32 %v3283, %v3592
  %v3594 = vpop.f32.mrf.mxu0
  %3595 = vmatprep.mubr.f32.mxu0 %v459
  %3596 = vmatmul.mubr.f32.gmra.mxu0 %v458
  %v3597 = vpop.f32.mrf.mxu0
  %v3598 = vadd.f32 %v3288, %v3597
  %v3599 = vpop.f32.mrf.mxu0
  %3600 = vmatprep.mubr.f32.mxu0 %v483
  %3601 = vmatmul.mubr.f32.gmra.mxu0 %v482
  %v3602 = vpop.f32.mrf.mxu0
  %v3603 = vadd.f32 %v3293, %v3602
  %v3604 = vpop.f32.mrf.mxu0
  %3605 = vmatprep.mubr.f32.mxu0 %v507
  %3606 = vmatmul.mubr.f32.gmra.mxu0 %v506
  %v3607 = vpop.f32.mrf.mxu0
  %v3608 = vadd.f32 %v3298, %v3607
  %v3609 = vpop.f32.mrf.mxu0
  %3610 = vmatprep.mubr.f32.mxu0 %v531
  %3611 = vmatmul.mubr.f32.gmra.mxu0 %v530
  %v3612 = vpop.f32.mrf.mxu0
  %v3613 = vadd.f32 %v3303, %v3612
  %v3614 = vpop.f32.mrf.mxu0
  %3615 = vmatprep.mubr.f32.mxu0 %v555
  %3616 = vmatmul.mubr.f32.gmra.mxu0 %v554
  %v3617 = vpop.f32.mrf.mxu0
  %v3618 = vadd.f32 %v3308, %v3617
  %v3619 = vpop.f32.mrf.mxu0
  %3620 = vmatprep.mubr.f32.mxu0 %v579
  %3621 = vmatmul.mubr.f32.gmra.mxu0 %v578
  %v3622 = vpop.f32.mrf.mxu0
  %v3623 = vadd.f32 %v3313, %v3622
  %v3624 = vpop.f32.mrf.mxu0
  %3625 = vmatprep.mubr.f32.mxu0 %v603
  %3626 = vmatmul.mubr.f32.gmra.mxu0 %v602
  %v3627 = vpop.f32.mrf.mxu0
  %v3628 = vadd.f32 %v3318, %v3627
  %v3629 = vpop.f32.mrf.mxu0
  %3630 = vmatprep.mubr.f32.mxu0 %v627
  %3631 = vmatmul.mubr.f32.gmra.mxu0 %v626
  %v3632 = vpop.f32.mrf.mxu0
  %v3633 = vadd.f32 %v3323, %v3632
  %v3634 = vpop.f32.mrf.mxu0
  %3635 = vmatprep.mubr.f32.mxu0 %v651
  %3636 = vmatmul.mubr.f32.gmra.mxu0 %v650
  %v3637 = vpop.f32.mrf.mxu0
  %v3638 = vadd.f32 %v3328, %v3637
  %v3639 = vpop.f32.mrf.mxu0
  %3640 = vmatprep.mubr.f32.mxu0 %v675
  %3641 = vmatmul.mubr.f32.gmra.mxu0 %v674
  %v3642 = vpop.f32.mrf.mxu0
  %v3643 = vadd.f32 %v3333, %v3642
  %v3644 = vpop.f32.mrf.mxu0
  %3645 = vmatprep.mubr.f32.mxu0 %v699
  %3646 = vmatmul.mubr.f32.gmra.mxu0 %v698
  %v3647 = vpop.f32.mrf.mxu0
  %v3648 = vadd.f32 %v3338, %v3647
  %v3649 = vpop.f32.mrf.mxu0
  %3650 = vmatprep.mubr.f32.mxu0 %v723
  %3651 = vmatmul.mubr.f32.gmra.mxu0 %v722
  %v3652 = vpop.f32.mrf.mxu0
  %v3653 = vadd.f32 %v3343, %v3652
  %v3654 = vpop.f32.mrf.mxu0
  %3655 = vmatprep.mubr.f32.mxu0 %v747
  %3656 = vmatmul.mubr.f32.gmra.mxu0 %v746
  %v3657 = vpop.f32.mrf.mxu0
  %v3658 = vadd.f32 %v3348, %v3657
  %v3659 = vpop.f32.mrf.mxu0
  %3660 = vmatprep.mubr.f32.mxu0 %v771
  %3661 = vmatmul.mubr.f32.gmra.mxu0 %v770
  %v3662 = vpop.f32.mrf.mxu0
  %v3663 = vadd.f32 %v3353, %v3662
  %v3664 = vpop.f32.mrf.mxu0
  %3665 = vmatprep.mubr.f32.mxu0 %v795
  %3666 = vmatmul.mubr.f32.gmra.mxu0 %v794
  %v3667 = vpop.f32.mrf.mxu0
  %v3668 = vadd.f32 %v3358, %v3667
  %v3669 = vpop.f32.mrf.mxu0
  %3670 = vmatprep.mubr.f32.mxu0 %v819
  %3671 = vmatmul.mubr.f32.gmra.mxu0 %v818
  %v3672 = vpop.f32.mrf.mxu0
  %v3673 = vadd.f32 %v3363, %v3672
  %v3674 = vpop.f32.mrf.mxu0
  %3675 = vmatprep.mubr.f32.mxu0 %v843
  %3676 = vmatmul.mubr.f32.gmra.mxu0 %v842
  %v3677 = vpop.f32.mrf.mxu0
  %v3678 = vadd.f32 %v3368, %v3677
  %v3679 = vpop.f32.mrf.mxu0
  %3680 = vmatprep.mubr.f32.mxu0 %v867
  %3681 = vmatmul.mubr.f32.gmra.mxu0 %v866
  %v3682 = vpop.f32.mrf.mxu0
  %v3683 = vadd.f32 %v3373, %v3682
  %v3684 = vpop.f32.mrf.mxu0
  %3685 = vmatprep.mubr.f32.mxu0 %v891
  %3686 = vmatmul.mubr.f32.gmra.mxu0 %v890
  %v3687 = vpop.f32.mrf.mxu0
  %v3688 = vadd.f32 %v3378, %v3687
  %v3689 = vpop.f32.mrf.mxu0
  %3690 = vmatprep.mubr.f32.mxu0 %v915
  %3691 = vmatmul.mubr.f32.gmra.mxu0 %v914
  %v3692 = vpop.f32.mrf.mxu0
  %v3693 = vadd.f32 %v3383, %v3692
  %v3694 = vpop.f32.mrf.mxu0
  %3695 = vmatprep.mubr.f32.mxu0 %v939
  %3696 = vmatmul.mubr.f32.gmra.mxu0 %v938
  %v3697 = vpop.f32.mrf.mxu0
  %v3698 = vadd.f32 %v3388, %v3697
  %v3699 = vpop.f32.mrf.mxu0
  %3700 = vmatprep.mubr.f32.mxu0 %v963
  %3701 = vmatmul.mubr.f32.gmra.mxu0 %v962
  %v3702 = vpop.f32.mrf.mxu0
  %v3703 = vadd.f32 %v3393, %v3702
  %v3704 = vpop.f32.mrf.mxu0
  %3705 = vmatprep.mubr.f32.mxu0 %v987
  %3706 = vmatmul.mubr.f32.gmra.mxu0 %v986
  %v3707 = vpop.f32.mrf.mxu0
  %v3708 = vadd.f32 %v3398, %v3707
  %v3709 = vpop.f32.mrf.mxu0
  %3710 = vmatprep.mubr.f32.mxu0 %v1011
  %3711 = vmatmul.mubr.f32.gmra.mxu0 %v1010
  %v3712 = vpop.f32.mrf.mxu0
  %v3713 = vadd.f32 %v3403, %v3712
  %v3714 = vpop.f32.mrf.mxu0
  %3715 = vmatprep.mubr.f32.mxu0 %v1035
  %3716 = vmatmul.mubr.f32.gmra.mxu0 %v1034
  %v3717 = vpop.f32.mrf.mxu0
  %v3718 = vadd.f32 %v3408, %v3717
  %v3719 = vpop.f32.mrf.mxu0
  %3720 = vmatprep.mubr.f32.mxu0 %v1059
  %3721 = vmatmul.mubr.f32.gmra.mxu0 %v1058
  %v3722 = vpop.f32.mrf.mxu0
  %v3723 = vadd.f32 %v3413, %v3722
  %v3724 = vpop.f32.mrf.mxu0
  %3725 = vmatprep.mubr.f32.mxu0 %v1083
  %3726 = vmatmul.mubr.f32.gmra.mxu0 %v1082
  %v3727 = vpop.f32.mrf.mxu0
  %v3728 = vadd.f32 %v3418, %v3727
  %v3729 = vpop.f32.mrf.mxu0
  %3730 = vmatprep.mubr.f32.mxu0 %v1107
  %3731 = vmatmul.mubr.f32.gmra.mxu0 %v1106
  %v3732 = vpop.f32.mrf.mxu0
  %v3733 = vadd.f32 %v3423, %v3732
  %v3734 = vpop.f32.mrf.mxu0
  %3735 = vmatprep.mubr.f32.mxu0 %v1131
  %3736 = vmatmul.mubr.f32.gmra.mxu0 %v1130
  %v3737 = vpop.f32.mrf.mxu0
  %v3738 = vadd.f32 %v3428, %v3737
  %v3739 = vpop.f32.mrf.mxu0
  %3740 = vmatprep.mubr.f32.mxu0 %v1155
  %3741 = vmatmul.mubr.f32.gmra.mxu0 %v1154
  %v3742 = vpop.f32.mrf.mxu0
  %v3743 = vadd.f32 %v3433, %v3742
  %v3744 = vpop.f32.mrf.mxu0
  %3745 = vmatprep.mubr.f32.mxu0 %v1179
  %3746 = vmatmul.mubr.f32.gmra.mxu0 %v1178
  %v3747 = vpop.f32.mrf.mxu0
  %v3748 = vadd.f32 %v3438, %v3747
  %v3749 = vpop.f32.mrf.mxu0
  %3750 = vdwg.mxu0
  %3751 = vmatprep.subr.mxu0 0.0
  %3752 = vmatpush1.msra.mxu0 %v1429
  %3753 = vmatprep.subr.mxu0 0.0
  %3754 = vmatpush1.msra.mxu0 %v1428
  %3755 = vmatprep.subr.mxu0 0.0
  %3756 = vmatpush1.msra.mxu0 %v1427
  %3757 = vmatprep.subr.mxu0 0.0
  %3758 = vmatpush1.msra.mxu0 %v1426
  %3759 = vmatprep.subr.mxu0 0.0
  %3760 = vmatpush1.msra.mxu0 %v1425
  %3761 = vmatprep.subr.mxu0 0.0
  %3762 = vmatpush1.msra.mxu0 %v1424
  %3763 = vmatprep.subr.mxu0 0.0
  %3764 = vmatpush1.msra.mxu0 %v1423
  %3765 = vmatprep.subr.mxu0 0.0
  %3766 = vmatpush1.msra.mxu0 %v1422
  %3767 = vmatprep.subr.mxu0 0.0
  %3768 = vmatpush1.msra.mxu0 %v1421
  %3769 = vmatprep.subr.mxu0 0.0
  %3770 = vmatpush1.msra.mxu0 %v1420
  %3771 = vmatprep.subr.mxu0 0.0
  %3772 = vmatpush1.msra.mxu0 %v1419
  %3773 = vmatprep.subr.mxu0 0.0
  %3774 = vmatpush1.msra.mxu0 %v1418
  %3775 = vmatprep.subr.mxu0 0.0
  %3776 = vmatpush1.msra.mxu0 %v1417
  %3777 = vmatprep.subr.mxu0 0.0
  %3778 = vmatpush1.msra.mxu0 %v1416
  %3779 = vmatprep.subr.mxu0 0.0
  %3780 = vmatpush1.msra.mxu0 %v1415
  %3781 = vmatprep.subr.mxu0 0.0
  %3782 = vmatpush1.msra.mxu0 %v1414
  %3783 = vmatprep.subr.mxu0 0.0
  %3784 = vmatpush2.msra.mxu0 %v1445
  %3785 = vmatprep.subr.mxu0 0.0
  %3786 = vmatpush2.msra.mxu0 %v1444
  %3787 = vmatprep.subr.mxu0 0.0
  %3788 = vmatpush2.msra.mxu0 %v1443
  %3789 = vmatprep.subr.mxu0 0.0
  %3790 = vmatpush2.msra.mxu0 %v1442
  %3791 = vmatprep.subr.mxu0 0.0
  %3792 = vmatpush2.msra.mxu0 %v1441
  %3793 = vmatprep.subr.mxu0 0.0
  %3794 = vmatpush2.msra.mxu0 %v1440
  %3795 = vmatprep.subr.mxu0 0.0
  %3796 = vmatpush2.msra.mxu0 %v1439
  %3797 = vmatprep.subr.mxu0 0.0
  %3798 = vmatpush2.msra.mxu0 %v1438
  %3799 = vmatprep.subr.mxu0 0.0
  %3800 = vmatpush2.msra.mxu0 %v1437
  %3801 = vmatprep.subr.mxu0 0.0
  %3802 = vmatpush2.msra.mxu0 %v1436
  %3803 = vmatprep.subr.mxu0 0.0
  %3804 = vmatpush2.msra.mxu0 %v1435
  %3805 = vmatprep.subr.mxu0 0.0
  %3806 = vmatpush2.msra.mxu0 %v1434
  %3807 = vmatprep.subr.mxu0 0.0
  %3808 = vmatpush2.msra.mxu0 %v1433
  %3809 = vmatprep.subr.mxu0 0.0
  %3810 = vmatpush2.msra.mxu0 %v1432
  %3811 = vmatprep.subr.mxu0 0.0
  %3812 = vmatpush2.msra.mxu0 %v1431
  %3813 = vmatprep.subr.mxu0 0.0
  %3814 = vmatpush2.msra.mxu0 %v1430
  %3815 = vmatprep.mubr.f32.mxu0 %v29
  %3816 = vmatmul.mubr.f32.gmra.mxu0 %v28
  %v3817 = vpop.f32.mrf.mxu0
  %v3818 = vadd.f32 %v3508, %v3817
  %v3819 = vpop.f32.mrf.mxu0
  %3820 = vmatprep.mubr.f32.mxu0 %v53
  %3821 = vmatmul.mubr.f32.gmra.mxu0 %v52
  %v3822 = vpop.f32.mrf.mxu0
  %v3823 = vadd.f32 %v3513, %v3822
  %v3824 = vpop.f32.mrf.mxu0
  %3825 = vmatprep.mubr.f32.mxu0 %v77
  %3826 = vmatmul.mubr.f32.gmra.mxu0 %v76
  %v3827 = vpop.f32.mrf.mxu0
  %v3828 = vadd.f32 %v3518, %v3827
  %v3829 = vpop.f32.mrf.mxu0
  %3830 = vmatprep.mubr.f32.mxu0 %v101
  %3831 = vmatmul.mubr.f32.gmra.mxu0 %v100
  %v3832 = vpop.f32.mrf.mxu0
  %v3833 = vadd.f32 %v3523, %v3832
  %v3834 = vpop.f32.mrf.mxu0
  %3835 = vmatprep.mubr.f32.mxu0 %v125
  %3836 = vmatmul.mubr.f32.gmra.mxu0 %v124
  %v3837 = vpop.f32.mrf.mxu0
  %v3838 = vadd.f32 %v3528, %v3837
  %v3839 = vpop.f32.mrf.mxu0
  %3840 = vmatprep.mubr.f32.mxu0 %v149
  %3841 = vmatmul.mubr.f32.gmra.mxu0 %v148
  %v3842 = vpop.f32.mrf.mxu0
  %v3843 = vadd.f32 %v3533, %v3842
  %v3844 = vpop.f32.mrf.mxu0
  %3845 = vmatprep.mubr.f32.mxu0 %v173
  %3846 = vmatmul.mubr.f32.gmra.mxu0 %v172
  %v3847 = vpop.f32.mrf.mxu0
  %v3848 = vadd.f32 %v3538, %v3847
  %v3849 = vpop.f32.mrf.mxu0
  %3850 = vmatprep.mubr.f32.mxu0 %v197
  %3851 = vmatmul.mubr.f32.gmra.mxu0 %v196
  %v3852 = vpop.f32.mrf.mxu0
  %v3853 = vadd.f32 %v3543, %v3852
  %v3854 = vpop.f32.mrf.mxu0
  %3855 = vmatprep.mubr.f32.mxu0 %v221
  %3856 = vmatmul.mubr.f32.gmra.mxu0 %v220
  %v3857 = vpop.f32.mrf.mxu0
  %v3858 = vadd.f32 %v3548, %v3857
  %v3859 = vpop.f32.mrf.mxu0
  %3860 = vmatprep.mubr.f32.mxu0 %v245
  %3861 = vmatmul.mubr.f32.gmra.mxu0 %v244
  %v3862 = vpop.f32.mrf.mxu0
  %v3863 = vadd.f32 %v3553, %v3862
  %v3864 = vpop.f32.mrf.mxu0
  %3865 = vmatprep.mubr.f32.mxu0 %v269
  %3866 = vmatmul.mubr.f32.gmra.mxu0 %v268
  %v3867 = vpop.f32.mrf.mxu0
  %v3868 = vadd.f32 %v3558, %v3867
  %v3869 = vpop.f32.mrf.mxu0
  %3870 = vmatprep.mubr.f32.mxu0 %v293
  %3871 = vmatmul.mubr.f32.gmra.mxu0 %v292
  %v3872 = vpop.f32.mrf.mxu0
  %v3873 = vadd.f32 %v3563, %v3872
  %v3874 = vpop.f32.mrf.mxu0
  %3875 = vmatprep.mubr.f32.mxu0 %v317
  %3876 = vmatmul.mubr.f32.gmra.mxu0 %v316
  %v3877 = vpop.f32.mrf.mxu0
  %v3878 = vadd.f32 %v3568, %v3877
  %v3879 = vpop.f32.mrf.mxu0
  %3880 = vmatprep.mubr.f32.mxu0 %v341
  %3881 = vmatmul.mubr.f32.gmra.mxu0 %v340
  %v3882 = vpop.f32.mrf.mxu0
  %v3883 = vadd.f32 %v3573, %v3882
  %v3884 = vpop.f32.mrf.mxu0
  %3885 = vmatprep.mubr.f32.mxu0 %v365
  %3886 = vmatmul.mubr.f32.gmra.mxu0 %v364
  %v3887 = vpop.f32.mrf.mxu0
  %v3888 = vadd.f32 %v3578, %v3887
  %v3889 = vpop.f32.mrf.mxu0
  %3890 = vmatprep.mubr.f32.mxu0 %v389
  %3891 = vmatmul.mubr.f32.gmra.mxu0 %v388
  %v3892 = vpop.f32.mrf.mxu0
  %v3893 = vadd.f32 %v3583, %v3892
  %v3894 = vpop.f32.mrf.mxu0
  %3895 = vmatprep.mubr.f32.mxu0 %v413
  %3896 = vmatmul.mubr.f32.gmra.mxu0 %v412
  %v3897 = vpop.f32.mrf.mxu0
  %v3898 = vadd.f32 %v3588, %v3897
  %v3899 = vpop.f32.mrf.mxu0
  %3900 = vmatprep.mubr.f32.mxu0 %v437
  %3901 = vmatmul.mubr.f32.gmra.mxu0 %v436
  %v3902 = vpop.f32.mrf.mxu0
  %v3903 = vadd.f32 %v3593, %v3902
  %v3904 = vpop.f32.mrf.mxu0
  %3905 = vmatprep.mubr.f32.mxu0 %v461
  %3906 = vmatmul.mubr.f32.gmra.mxu0 %v460
  %v3907 = vpop.f32.mrf.mxu0
  %v3908 = vadd.f32 %v3598, %v3907
  %v3909 = vpop.f32.mrf.mxu0
  %3910 = vmatprep.mubr.f32.mxu0 %v485
  %3911 = vmatmul.mubr.f32.gmra.mxu0 %v484
  %v3912 = vpop.f32.mrf.mxu0
  %v3913 = vadd.f32 %v3603, %v3912
  %v3914 = vpop.f32.mrf.mxu0
  %3915 = vmatprep.mubr.f32.mxu0 %v509
  %3916 = vmatmul.mubr.f32.gmra.mxu0 %v508
  %v3917 = vpop.f32.mrf.mxu0
  %v3918 = vadd.f32 %v3608, %v3917
  %v3919 = vpop.f32.mrf.mxu0
  %3920 = vmatprep.mubr.f32.mxu0 %v533
  %3921 = vmatmul.mubr.f32.gmra.mxu0 %v532
  %v3922 = vpop.f32.mrf.mxu0
  %v3923 = vadd.f32 %v3613, %v3922
  %v3924 = vpop.f32.mrf.mxu0
  %3925 = vmatprep.mubr.f32.mxu0 %v557
  %3926 = vmatmul.mubr.f32.gmra.mxu0 %v556
  %v3927 = vpop.f32.mrf.mxu0
  %v3928 = vadd.f32 %v3618, %v3927
  %v3929 = vpop.f32.mrf.mxu0
  %3930 = vmatprep.mubr.f32.mxu0 %v581
  %3931 = vmatmul.mubr.f32.gmra.mxu0 %v580
  %v3932 = vpop.f32.mrf.mxu0
  %v3933 = vadd.f32 %v3623, %v3932
  %v3934 = vpop.f32.mrf.mxu0
  %3935 = vmatprep.mubr.f32.mxu0 %v605
  %3936 = vmatmul.mubr.f32.gmra.mxu0 %v604
  %v3937 = vpop.f32.mrf.mxu0
  %v3938 = vadd.f32 %v3628, %v3937
  %v3939 = vpop.f32.mrf.mxu0
  %3940 = vmatprep.mubr.f32.mxu0 %v629
  %3941 = vmatmul.mubr.f32.gmra.mxu0 %v628
  %v3942 = vpop.f32.mrf.mxu0
  %v3943 = vadd.f32 %v3633, %v3942
  %v3944 = vpop.f32.mrf.mxu0
  %3945 = vmatprep.mubr.f32.mxu0 %v653
  %3946 = vmatmul.mubr.f32.gmra.mxu0 %v652
  %v3947 = vpop.f32.mrf.mxu0
  %v3948 = vadd.f32 %v3638, %v3947
  %v3949 = vpop.f32.mrf.mxu0
  %3950 = vmatprep.mubr.f32.mxu0 %v677
  %3951 = vmatmul.mubr.f32.gmra.mxu0 %v676
  %v3952 = vpop.f32.mrf.mxu0
  %v3953 = vadd.f32 %v3643, %v3952
  %v3954 = vpop.f32.mrf.mxu0
  %3955 = vmatprep.mubr.f32.mxu0 %v701
  %3956 = vmatmul.mubr.f32.gmra.mxu0 %v700
  %v3957 = vpop.f32.mrf.mxu0
  %v3958 = vadd.f32 %v3648, %v3957
  %v3959 = vpop.f32.mrf.mxu0
  %3960 = vmatprep.mubr.f32.mxu0 %v725
  %3961 = vmatmul.mubr.f32.gmra.mxu0 %v724
  %v3962 = vpop.f32.mrf.mxu0
  %v3963 = vadd.f32 %v3653, %v3962
  %v3964 = vpop.f32.mrf.mxu0
  %3965 = vmatprep.mubr.f32.mxu0 %v749
  %3966 = vmatmul.mubr.f32.gmra.mxu0 %v748
  %v3967 = vpop.f32.mrf.mxu0
  %v3968 = vadd.f32 %v3658, %v3967
  %v3969 = vpop.f32.mrf.mxu0
  %3970 = vmatprep.mubr.f32.mxu0 %v773
  %3971 = vmatmul.mubr.f32.gmra.mxu0 %v772
  %v3972 = vpop.f32.mrf.mxu0
  %v3973 = vadd.f32 %v3663, %v3972
  %v3974 = vpop.f32.mrf.mxu0
  %3975 = vmatprep.mubr.f32.mxu0 %v797
  %3976 = vmatmul.mubr.f32.gmra.mxu0 %v796
  %v3977 = vpop.f32.mrf.mxu0
  %v3978 = vadd.f32 %v3668, %v3977
  %v3979 = vpop.f32.mrf.mxu0
  %3980 = vmatprep.mubr.f32.mxu0 %v821
  %3981 = vmatmul.mubr.f32.gmra.mxu0 %v820
  %v3982 = vpop.f32.mrf.mxu0
  %v3983 = vadd.f32 %v3673, %v3982
  %v3984 = vpop.f32.mrf.mxu0
  %3985 = vmatprep.mubr.f32.mxu0 %v845
  %3986 = vmatmul.mubr.f32.gmra.mxu0 %v844
  %v3987 = vpop.f32.mrf.mxu0
  %v3988 = vadd.f32 %v3678, %v3987
  %v3989 = vpop.f32.mrf.mxu0
  %3990 = vmatprep.mubr.f32.mxu0 %v869
  %3991 = vmatmul.mubr.f32.gmra.mxu0 %v868
  %v3992 = vpop.f32.mrf.mxu0
  %v3993 = vadd.f32 %v3683, %v3992
  %v3994 = vpop.f32.mrf.mxu0
  %3995 = vmatprep.mubr.f32.mxu0 %v893
  %3996 = vmatmul.mubr.f32.gmra.mxu0 %v892
  %v3997 = vpop.f32.mrf.mxu0
  %v3998 = vadd.f32 %v3688, %v3997
  %v3999 = vpop.f32.mrf.mxu0
  %4000 = vmatprep.mubr.f32.mxu0 %v917
  %4001 = vmatmul.mubr.f32.gmra.mxu0 %v916
  %v4002 = vpop.f32.mrf.mxu0
  %v4003 = vadd.f32 %v3693, %v4002
  %v4004 = vpop.f32.mrf.mxu0
  %4005 = vmatprep.mubr.f32.mxu0 %v941
  %4006 = vmatmul.mubr.f32.gmra.mxu0 %v940
  %v4007 = vpop.f32.mrf.mxu0
  %v4008 = vadd.f32 %v3698, %v4007
  %v4009 = vpop.f32.mrf.mxu0
  %4010 = vmatprep.mubr.f32.mxu0 %v965
  %4011 = vmatmul.mubr.f32.gmra.mxu0 %v964
  %v4012 = vpop.f32.mrf.mxu0
  %v4013 = vadd.f32 %v3703, %v4012
  %v4014 = vpop.f32.mrf.mxu0
  %4015 = vmatprep.mubr.f32.mxu0 %v989
  %4016 = vmatmul.mubr.f32.gmra.mxu0 %v988
  %v4017 = vpop.f32.mrf.mxu0
  %v4018 = vadd.f32 %v3708, %v4017
  %v4019 = vpop.f32.mrf.mxu0
  %4020 = vmatprep.mubr.f32.mxu0 %v1013
  %4021 = vmatmul.mubr.f32.gmra.mxu0 %v1012
  %v4022 = vpop.f32.mrf.mxu0
  %v4023 = vadd.f32 %v3713, %v4022
  %v4024 = vpop.f32.mrf.mxu0
  %4025 = vmatprep.mubr.f32.mxu0 %v1037
  %4026 = vmatmul.mubr.f32.gmra.mxu0 %v1036
  %v4027 = vpop.f32.mrf.mxu0
  %v4028 = vadd.f32 %v3718, %v4027
  %v4029 = vpop.f32.mrf.mxu0
  %4030 = vmatprep.mubr.f32.mxu0 %v1061
  %4031 = vmatmul.mubr.f32.gmra.mxu0 %v1060
  %v4032 = vpop.f32.mrf.mxu0
  %v4033 = vadd.f32 %v3723, %v4032
  %v4034 = vpop.f32.mrf.mxu0
  %4035 = vmatprep.mubr.f32.mxu0 %v1085
  %4036 = vmatmul.mubr.f32.gmra.mxu0 %v1084
  %v4037 = vpop.f32.mrf.mxu0
  %v4038 = vadd.f32 %v3728, %v4037
  %v4039 = vpop.f32.mrf.mxu0
  %4040 = vmatprep.mubr.f32.mxu0 %v1109
  %4041 = vmatmul.mubr.f32.gmra.mxu0 %v1108
  %v4042 = vpop.f32.mrf.mxu0
  %v4043 = vadd.f32 %v3733, %v4042
  %v4044 = vpop.f32.mrf.mxu0
  %4045 = vmatprep.mubr.f32.mxu0 %v1133
  %4046 = vmatmul.mubr.f32.gmra.mxu0 %v1132
  %v4047 = vpop.f32.mrf.mxu0
  %v4048 = vadd.f32 %v3738, %v4047
  %v4049 = vpop.f32.mrf.mxu0
  %4050 = vmatprep.mubr.f32.mxu0 %v1157
  %4051 = vmatmul.mubr.f32.gmra.mxu0 %v1156
  %v4052 = vpop.f32.mrf.mxu0
  %v4053 = vadd.f32 %v3743, %v4052
  %v4054 = vpop.f32.mrf.mxu0
  %4055 = vmatprep.mubr.f32.mxu0 %v1181
  %4056 = vmatmul.mubr.f32.gmra.mxu0 %v1180
  %v4057 = vpop.f32.mrf.mxu0
  %v4058 = vadd.f32 %v3748, %v4057
  %v4059 = vpop.f32.mrf.mxu0
  %4060 = vdwg.mxu0
  %4061 = vmatprep.subr.mxu0 0.0
  %4062 = vmatpush1.msra.mxu0 %v1461
  %4063 = vmatprep.subr.mxu0 0.0
  %4064 = vmatpush1.msra.mxu0 %v1460
  %4065 = vmatprep.subr.mxu0 0.0
  %4066 = vmatpush1.msra.mxu0 %v1459
  %4067 = vmatprep.subr.mxu0 0.0
  %4068 = vmatpush1.msra.mxu0 %v1458
  %4069 = vmatprep.subr.mxu0 0.0
  %4070 = vmatpush1.msra.mxu0 %v1457
  %4071 = vmatprep.subr.mxu0 0.0
  %4072 = vmatpush1.msra.mxu0 %v1456
  %4073 = vmatprep.subr.mxu0 0.0
  %4074 = vmatpush1.msra.mxu0 %v1455
  %4075 = vmatprep.subr.mxu0 0.0
  %4076 = vmatpush1.msra.mxu0 %v1454
  %4077 = vmatprep.subr.mxu0 0.0
  %4078 = vmatpush1.msra.mxu0 %v1453
  %4079 = vmatprep.subr.mxu0 0.0
  %4080 = vmatpush1.msra.mxu0 %v1452
  %4081 = vmatprep.subr.mxu0 0.0
  %4082 = vmatpush1.msra.mxu0 %v1451
  %4083 = vmatprep.subr.mxu0 0.0
  %4084 = vmatpush1.msra.mxu0 %v1450
  %4085 = vmatprep.subr.mxu0 0.0
  %4086 = vmatpush1.msra.mxu0 %v1449
  %4087 = vmatprep.subr.mxu0 0.0
  %4088 = vmatpush1.msra.mxu0 %v1448
  %4089 = vmatprep.subr.mxu0 0.0
  %4090 = vmatpush1.msra.mxu0 %v1447
  %4091 = vmatprep.subr.mxu0 0.0
  %4092 = vmatpush1.msra.mxu0 %v1446
  %4093 = vmatprep.subr.mxu0 0.0
  %4094 = vmatpush2.msra.mxu0 %v1477
  %4095 = vmatprep.subr.mxu0 0.0
  %4096 = vmatpush2.msra.mxu0 %v1476
  %4097 = vmatprep.subr.mxu0 0.0
  %4098 = vmatpush2.msra.mxu0 %v1475
  %4099 = vmatprep.subr.mxu0 0.0
  %4100 = vmatpush2.msra.mxu0 %v1474
  %4101 = vmatprep.subr.mxu0 0.0
  %4102 = vmatpush2.msra.mxu0 %v1473
  %4103 = vmatprep.subr.mxu0 0.0
  %4104 = vmatpush2.msra.mxu0 %v1472
  %4105 = vmatprep.subr.mxu0 0.0
  %4106 = vmatpush2.msra.mxu0 %v1471
  %4107 = vmatprep.subr.mxu0 0.0
  %4108 = vmatpush2.msra.mxu0 %v1470
  %4109 = vmatprep.subr.mxu0 0.0
  %4110 = vmatpush2.msra.mxu0 %v1469
  %4111 = vmatprep.subr.mxu0 0.0
  %4112 = vmatpush2.msra.mxu0 %v1468
  %4113 = vmatprep.subr.mxu0 0.0
  %4114 = vmatpush2.msra.mxu0 %v1467
  %4115 = vmatprep.subr.mxu0 0.0
  %4116 = vmatpush2.msra.mxu0 %v1466
  %4117 = vmatprep.subr.mxu0 0.0
  %4118 = vmatpush2.msra.mxu0 %v1465
  %4119 = vmatprep.subr.mxu0 0.0
  %4120 = vmatpush2.msra.mxu0 %v1464
  %4121 = vmatprep.subr.mxu0 0.0
  %4122 = vmatpush2.msra.mxu0 %v1463
  %4123 = vmatprep.subr.mxu0 0.0
  %4124 = vmatpush2.msra.mxu0 %v1462
  %4125 = vmatprep.mubr.f32.mxu0 %v31
  %4126 = vmatmul.mubr.f32.gmra.mxu0 %v30
  %v4127 = vpop.f32.mrf.mxu0
  %v4128 = vadd.f32 %v3818, %v4127
  %v4129 = vpop.f32.mrf.mxu0
  %4130 = vmatprep.mubr.f32.mxu0 %v55
  %4131 = vmatmul.mubr.f32.gmra.mxu0 %v54
  %v4132 = vpop.f32.mrf.mxu0
  %v4133 = vadd.f32 %v3823, %v4132
  %v4134 = vpop.f32.mrf.mxu0
  %4135 = vmatprep.mubr.f32.mxu0 %v79
  %4136 = vmatmul.mubr.f32.gmra.mxu0 %v78
  %v4137 = vpop.f32.mrf.mxu0
  %v4138 = vadd.f32 %v3828, %v4137
  %v4139 = vpop.f32.mrf.mxu0
  %4140 = vmatprep.mubr.f32.mxu0 %v103
  %4141 = vmatmul.mubr.f32.gmra.mxu0 %v102
  %v4142 = vpop.f32.mrf.mxu0
  %v4143 = vadd.f32 %v3833, %v4142
  %v4144 = vpop.f32.mrf.mxu0
  %4145 = vmatprep.mubr.f32.mxu0 %v127
  %4146 = vmatmul.mubr.f32.gmra.mxu0 %v126
  %v4147 = vpop.f32.mrf.mxu0
  %v4148 = vadd.f32 %v3838, %v4147
  %v4149 = vpop.f32.mrf.mxu0
  %4150 = vmatprep.mubr.f32.mxu0 %v151
  %4151 = vmatmul.mubr.f32.gmra.mxu0 %v150
  %v4152 = vpop.f32.mrf.mxu0
  %v4153 = vadd.f32 %v3843, %v4152
  %v4154 = vpop.f32.mrf.mxu0
  %4155 = vmatprep.mubr.f32.mxu0 %v175
  %4156 = vmatmul.mubr.f32.gmra.mxu0 %v174
  %v4157 = vpop.f32.mrf.mxu0
  %v4158 = vadd.f32 %v3848, %v4157
  %v4159 = vpop.f32.mrf.mxu0
  %4160 = vmatprep.mubr.f32.mxu0 %v199
  %4161 = vmatmul.mubr.f32.gmra.mxu0 %v198
  %v4162 = vpop.f32.mrf.mxu0
  %v4163 = vadd.f32 %v3853, %v4162
  %v4164 = vpop.f32.mrf.mxu0
  %4165 = vmatprep.mubr.f32.mxu0 %v223
  %4166 = vmatmul.mubr.f32.gmra.mxu0 %v222
  %v4167 = vpop.f32.mrf.mxu0
  %v4168 = vadd.f32 %v3858, %v4167
  %v4169 = vpop.f32.mrf.mxu0
  %4170 = vmatprep.mubr.f32.mxu0 %v247
  %4171 = vmatmul.mubr.f32.gmra.mxu0 %v246
  %v4172 = vpop.f32.mrf.mxu0
  %v4173 = vadd.f32 %v3863, %v4172
  %v4174 = vpop.f32.mrf.mxu0
  %4175 = vmatprep.mubr.f32.mxu0 %v271
  %4176 = vmatmul.mubr.f32.gmra.mxu0 %v270
  %v4177 = vpop.f32.mrf.mxu0
  %v4178 = vadd.f32 %v3868, %v4177
  %v4179 = vpop.f32.mrf.mxu0
  %4180 = vmatprep.mubr.f32.mxu0 %v295
  %4181 = vmatmul.mubr.f32.gmra.mxu0 %v294
  %v4182 = vpop.f32.mrf.mxu0
  %v4183 = vadd.f32 %v3873, %v4182
  %v4184 = vpop.f32.mrf.mxu0
  %4185 = vmatprep.mubr.f32.mxu0 %v319
  %4186 = vmatmul.mubr.f32.gmra.mxu0 %v318
  %v4187 = vpop.f32.mrf.mxu0
  %v4188 = vadd.f32 %v3878, %v4187
  %v4189 = vpop.f32.mrf.mxu0
  %4190 = vmatprep.mubr.f32.mxu0 %v343
  %4191 = vmatmul.mubr.f32.gmra.mxu0 %v342
  %v4192 = vpop.f32.mrf.mxu0
  %v4193 = vadd.f32 %v3883, %v4192
  %v4194 = vpop.f32.mrf.mxu0
  %4195 = vmatprep.mubr.f32.mxu0 %v367
  %4196 = vmatmul.mubr.f32.gmra.mxu0 %v366
  %v4197 = vpop.f32.mrf.mxu0
  %v4198 = vadd.f32 %v3888, %v4197
  %v4199 = vpop.f32.mrf.mxu0
  %4200 = vmatprep.mubr.f32.mxu0 %v391
  %4201 = vmatmul.mubr.f32.gmra.mxu0 %v390
  %v4202 = vpop.f32.mrf.mxu0
  %v4203 = vadd.f32 %v3893, %v4202
  %v4204 = vpop.f32.mrf.mxu0
  %4205 = vmatprep.mubr.f32.mxu0 %v415
  %4206 = vmatmul.mubr.f32.gmra.mxu0 %v414
  %v4207 = vpop.f32.mrf.mxu0
  %v4208 = vadd.f32 %v3898, %v4207
  %v4209 = vpop.f32.mrf.mxu0
  %4210 = vmatprep.mubr.f32.mxu0 %v439
  %4211 = vmatmul.mubr.f32.gmra.mxu0 %v438
  %v4212 = vpop.f32.mrf.mxu0
  %v4213 = vadd.f32 %v3903, %v4212
  %v4214 = vpop.f32.mrf.mxu0
  %4215 = vmatprep.mubr.f32.mxu0 %v463
  %4216 = vmatmul.mubr.f32.gmra.mxu0 %v462
  %v4217 = vpop.f32.mrf.mxu0
  %v4218 = vadd.f32 %v3908, %v4217
  %v4219 = vpop.f32.mrf.mxu0
  %4220 = vmatprep.mubr.f32.mxu0 %v487
  %4221 = vmatmul.mubr.f32.gmra.mxu0 %v486
  %v4222 = vpop.f32.mrf.mxu0
  %v4223 = vadd.f32 %v3913, %v4222
  %v4224 = vpop.f32.mrf.mxu0
  %4225 = vmatprep.mubr.f32.mxu0 %v511
  %4226 = vmatmul.mubr.f32.gmra.mxu0 %v510
  %v4227 = vpop.f32.mrf.mxu0
  %v4228 = vadd.f32 %v3918, %v4227
  %v4229 = vpop.f32.mrf.mxu0
  %4230 = vmatprep.mubr.f32.mxu0 %v535
  %4231 = vmatmul.mubr.f32.gmra.mxu0 %v534
  %v4232 = vpop.f32.mrf.mxu0
  %v4233 = vadd.f32 %v3923, %v4232
  %v4234 = vpop.f32.mrf.mxu0
  %4235 = vmatprep.mubr.f32.mxu0 %v559
  %4236 = vmatmul.mubr.f32.gmra.mxu0 %v558
  %v4237 = vpop.f32.mrf.mxu0
  %v4238 = vadd.f32 %v3928, %v4237
  %v4239 = vpop.f32.mrf.mxu0
  %4240 = vmatprep.mubr.f32.mxu0 %v583
  %4241 = vmatmul.mubr.f32.gmra.mxu0 %v582
  %v4242 = vpop.f32.mrf.mxu0
  %v4243 = vadd.f32 %v3933, %v4242
  %v4244 = vpop.f32.mrf.mxu0
  %4245 = vmatprep.mubr.f32.mxu0 %v607
  %4246 = vmatmul.mubr.f32.gmra.mxu0 %v606
  %v4247 = vpop.f32.mrf.mxu0
  %v4248 = vadd.f32 %v3938, %v4247
  %v4249 = vpop.f32.mrf.mxu0
  %4250 = vmatprep.mubr.f32.mxu0 %v631
  %4251 = vmatmul.mubr.f32.gmra.mxu0 %v630
  %v4252 = vpop.f32.mrf.mxu0
  %v4253 = vadd.f32 %v3943, %v4252
  %v4254 = vpop.f32.mrf.mxu0
  %4255 = vmatprep.mubr.f32.mxu0 %v655
  %4256 = vmatmul.mubr.f32.gmra.mxu0 %v654
  %v4257 = vpop.f32.mrf.mxu0
  %v4258 = vadd.f32 %v3948, %v4257
  %v4259 = vpop.f32.mrf.mxu0
  %4260 = vmatprep.mubr.f32.mxu0 %v679
  %4261 = vmatmul.mubr.f32.gmra.mxu0 %v678
  %v4262 = vpop.f32.mrf.mxu0
  %v4263 = vadd.f32 %v3953, %v4262
  %v4264 = vpop.f32.mrf.mxu0
  %4265 = vmatprep.mubr.f32.mxu0 %v703
  %4266 = vmatmul.mubr.f32.gmra.mxu0 %v702
  %v4267 = vpop.f32.mrf.mxu0
  %v4268 = vadd.f32 %v3958, %v4267
  %v4269 = vpop.f32.mrf.mxu0
  %4270 = vmatprep.mubr.f32.mxu0 %v727
  %4271 = vmatmul.mubr.f32.gmra.mxu0 %v726
  %v4272 = vpop.f32.mrf.mxu0
  %v4273 = vadd.f32 %v3963, %v4272
  %v4274 = vpop.f32.mrf.mxu0
  %4275 = vmatprep.mubr.f32.mxu0 %v751
  %4276 = vmatmul.mubr.f32.gmra.mxu0 %v750
  %v4277 = vpop.f32.mrf.mxu0
  %v4278 = vadd.f32 %v3968, %v4277
  %v4279 = vpop.f32.mrf.mxu0
  %4280 = vmatprep.mubr.f32.mxu0 %v775
  %4281 = vmatmul.mubr.f32.gmra.mxu0 %v774
  %v4282 = vpop.f32.mrf.mxu0
  %v4283 = vadd.f32 %v3973, %v4282
  %v4284 = vpop.f32.mrf.mxu0
  %4285 = vmatprep.mubr.f32.mxu0 %v799
  %4286 = vmatmul.mubr.f32.gmra.mxu0 %v798
  %v4287 = vpop.f32.mrf.mxu0
  %v4288 = vadd.f32 %v3978, %v4287
  %v4289 = vpop.f32.mrf.mxu0
  %4290 = vmatprep.mubr.f32.mxu0 %v823
  %4291 = vmatmul.mubr.f32.gmra.mxu0 %v822
  %v4292 = vpop.f32.mrf.mxu0
  %v4293 = vadd.f32 %v3983, %v4292
  %v4294 = vpop.f32.mrf.mxu0
  %4295 = vmatprep.mubr.f32.mxu0 %v847
  %4296 = vmatmul.mubr.f32.gmra.mxu0 %v846
  %v4297 = vpop.f32.mrf.mxu0
  %v4298 = vadd.f32 %v3988, %v4297
  %v4299 = vpop.f32.mrf.mxu0
  %4300 = vmatprep.mubr.f32.mxu0 %v871
  %4301 = vmatmul.mubr.f32.gmra.mxu0 %v870
  %v4302 = vpop.f32.mrf.mxu0
  %v4303 = vadd.f32 %v3993, %v4302
  %v4304 = vpop.f32.mrf.mxu0
  %4305 = vmatprep.mubr.f32.mxu0 %v895
  %4306 = vmatmul.mubr.f32.gmra.mxu0 %v894
  %v4307 = vpop.f32.mrf.mxu0
  %v4308 = vadd.f32 %v3998, %v4307
  %v4309 = vpop.f32.mrf.mxu0
  %4310 = vmatprep.mubr.f32.mxu0 %v919
  %4311 = vmatmul.mubr.f32.gmra.mxu0 %v918
  %v4312 = vpop.f32.mrf.mxu0
  %v4313 = vadd.f32 %v4003, %v4312
  %v4314 = vpop.f32.mrf.mxu0
  %4315 = vmatprep.mubr.f32.mxu0 %v943
  %4316 = vmatmul.mubr.f32.gmra.mxu0 %v942
  %v4317 = vpop.f32.mrf.mxu0
  %v4318 = vadd.f32 %v4008, %v4317
  %v4319 = vpop.f32.mrf.mxu0
  %4320 = vmatprep.mubr.f32.mxu0 %v967
  %4321 = vmatmul.mubr.f32.gmra.mxu0 %v966
  %v4322 = vpop.f32.mrf.mxu0
  %v4323 = vadd.f32 %v4013, %v4322
  %v4324 = vpop.f32.mrf.mxu0
  %4325 = vmatprep.mubr.f32.mxu0 %v991
  %4326 = vmatmul.mubr.f32.gmra.mxu0 %v990
  %v4327 = vpop.f32.mrf.mxu0
  %v4328 = vadd.f32 %v4018, %v4327
  %v4329 = vpop.f32.mrf.mxu0
  %4330 = vmatprep.mubr.f32.mxu0 %v1015
  %4331 = vmatmul.mubr.f32.gmra.mxu0 %v1014
  %v4332 = vpop.f32.mrf.mxu0
  %v4333 = vadd.f32 %v4023, %v4332
  %v4334 = vpop.f32.mrf.mxu0
  %4335 = vmatprep.mubr.f32.mxu0 %v1039
  %4336 = vmatmul.mubr.f32.gmra.mxu0 %v1038
  %v4337 = vpop.f32.mrf.mxu0
  %v4338 = vadd.f32 %v4028, %v4337
  %v4339 = vpop.f32.mrf.mxu0
  %4340 = vmatprep.mubr.f32.mxu0 %v1063
  %4341 = vmatmul.mubr.f32.gmra.mxu0 %v1062
  %v4342 = vpop.f32.mrf.mxu0
  %v4343 = vadd.f32 %v4033, %v4342
  %v4344 = vpop.f32.mrf.mxu0
  %4345 = vmatprep.mubr.f32.mxu0 %v1087
  %4346 = vmatmul.mubr.f32.gmra.mxu0 %v1086
  %v4347 = vpop.f32.mrf.mxu0
  %v4348 = vadd.f32 %v4038, %v4347
  %v4349 = vpop.f32.mrf.mxu0
  %4350 = vmatprep.mubr.f32.mxu0 %v1111
  %4351 = vmatmul.mubr.f32.gmra.mxu0 %v1110
  %v4352 = vpop.f32.mrf.mxu0
  %v4353 = vadd.f32 %v4043, %v4352
  %v4354 = vpop.f32.mrf.mxu0
  %4355 = vmatprep.mubr.f32.mxu0 %v1135
  %4356 = vmatmul.mubr.f32.gmra.mxu0 %v1134
  %v4357 = vpop.f32.mrf.mxu0
  %v4358 = vadd.f32 %v4048, %v4357
  %v4359 = vpop.f32.mrf.mxu0
  %4360 = vmatprep.mubr.f32.mxu0 %v1159
  %4361 = vmatmul.mubr.f32.gmra.mxu0 %v1158
  %v4362 = vpop.f32.mrf.mxu0
  %v4363 = vadd.f32 %v4053, %v4362
  %v4364 = vpop.f32.mrf.mxu0
  %4365 = vmatprep.mubr.f32.mxu0 %v1183
  %4366 = vmatmul.mubr.f32.gmra.mxu0 %v1182
  %v4367 = vpop.f32.mrf.mxu0
  %v4368 = vadd.f32 %v4058, %v4367
  %v4369 = vpop.f32.mrf.mxu0
  %4370 = vdwg.mxu0
  %4371 = vmatprep.subr.mxu0 0.0
  %4372 = vmatpush1.msra.mxu0 %v1493
  %4373 = vmatprep.subr.mxu0 0.0
  %4374 = vmatpush1.msra.mxu0 %v1492
  %4375 = vmatprep.subr.mxu0 0.0
  %4376 = vmatpush1.msra.mxu0 %v1491
  %4377 = vmatprep.subr.mxu0 0.0
  %4378 = vmatpush1.msra.mxu0 %v1490
  %4379 = vmatprep.subr.mxu0 0.0
  %4380 = vmatpush1.msra.mxu0 %v1489
  %4381 = vmatprep.subr.mxu0 0.0
  %4382 = vmatpush1.msra.mxu0 %v1488
  %4383 = vmatprep.subr.mxu0 0.0
  %4384 = vmatpush1.msra.mxu0 %v1487
  %4385 = vmatprep.subr.mxu0 0.0
  %4386 = vmatpush1.msra.mxu0 %v1486
  %4387 = vmatprep.subr.mxu0 0.0
  %4388 = vmatpush1.msra.mxu0 %v1485
  %4389 = vmatprep.subr.mxu0 0.0
  %4390 = vmatpush1.msra.mxu0 %v1484
  %4391 = vmatprep.subr.mxu0 0.0
  %4392 = vmatpush1.msra.mxu0 %v1483
  %4393 = vmatprep.subr.mxu0 0.0
  %4394 = vmatpush1.msra.mxu0 %v1482
  %4395 = vmatprep.subr.mxu0 0.0
  %4396 = vmatpush1.msra.mxu0 %v1481
  %4397 = vmatprep.subr.mxu0 0.0
  %4398 = vmatpush1.msra.mxu0 %v1480
  %4399 = vmatprep.subr.mxu0 0.0
  %4400 = vmatpush1.msra.mxu0 %v1479
  %4401 = vmatprep.subr.mxu0 0.0
  %4402 = vmatpush1.msra.mxu0 %v1478
  %4403 = vmatprep.subr.mxu0 0.0
  %4404 = vmatpush2.msra.mxu0 %v1509
  %4405 = vmatprep.subr.mxu0 0.0
  %4406 = vmatpush2.msra.mxu0 %v1508
  %4407 = vmatprep.subr.mxu0 0.0
  %4408 = vmatpush2.msra.mxu0 %v1507
  %4409 = vmatprep.subr.mxu0 0.0
  %4410 = vmatpush2.msra.mxu0 %v1506
  %4411 = vmatprep.subr.mxu0 0.0
  %4412 = vmatpush2.msra.mxu0 %v1505
  %4413 = vmatprep.subr.mxu0 0.0
  %4414 = vmatpush2.msra.mxu0 %v1504
  %4415 = vmatprep.subr.mxu0 0.0
  %4416 = vmatpush2.msra.mxu0 %v1503
  %4417 = vmatprep.subr.mxu0 0.0
  %4418 = vmatpush2.msra.mxu0 %v1502
  %4419 = vmatprep.subr.mxu0 0.0
  %4420 = vmatpush2.msra.mxu0 %v1501
  %4421 = vmatprep.subr.mxu0 0.0
  %4422 = vmatpush2.msra.mxu0 %v1500
  %4423 = vmatprep.subr.mxu0 0.0
  %4424 = vmatpush2.msra.mxu0 %v1499
  %4425 = vmatprep.subr.mxu0 0.0
  %4426 = vmatpush2.msra.mxu0 %v1498
  %4427 = vmatprep.subr.mxu0 0.0
  %4428 = vmatpush2.msra.mxu0 %v1497
  %4429 = vmatprep.subr.mxu0 0.0
  %4430 = vmatpush2.msra.mxu0 %v1496
  %4431 = vmatprep.subr.mxu0 0.0
  %4432 = vmatpush2.msra.mxu0 %v1495
  %4433 = vmatprep.subr.mxu0 0.0
  %4434 = vmatpush2.msra.mxu0 %v1494
  %4435 = vmatprep.mubr.f32.mxu0 %v33
  %4436 = vmatmul.mubr.f32.gmra.mxu0 %v32
  %v4437 = vpop.f32.mrf.mxu0
  %v4438 = vadd.f32 %v4128, %v4437
  %v4439 = vpop.f32.mrf.mxu0
  %4440 = vmatprep.mubr.f32.mxu0 %v57
  %4441 = vmatmul.mubr.f32.gmra.mxu0 %v56
  %v4442 = vpop.f32.mrf.mxu0
  %v4443 = vadd.f32 %v4133, %v4442
  %v4444 = vpop.f32.mrf.mxu0
  %4445 = vmatprep.mubr.f32.mxu0 %v81
  %4446 = vmatmul.mubr.f32.gmra.mxu0 %v80
  %v4447 = vpop.f32.mrf.mxu0
  %v4448 = vadd.f32 %v4138, %v4447
  %v4449 = vpop.f32.mrf.mxu0
  %4450 = vmatprep.mubr.f32.mxu0 %v105
  %4451 = vmatmul.mubr.f32.gmra.mxu0 %v104
  %v4452 = vpop.f32.mrf.mxu0
  %v4453 = vadd.f32 %v4143, %v4452
  %v4454 = vpop.f32.mrf.mxu0
  %4455 = vmatprep.mubr.f32.mxu0 %v129
  %4456 = vmatmul.mubr.f32.gmra.mxu0 %v128
  %v4457 = vpop.f32.mrf.mxu0
  %v4458 = vadd.f32 %v4148, %v4457
  %v4459 = vpop.f32.mrf.mxu0
  %4460 = vmatprep.mubr.f32.mxu0 %v153
  %4461 = vmatmul.mubr.f32.gmra.mxu0 %v152
  %v4462 = vpop.f32.mrf.mxu0
  %v4463 = vadd.f32 %v4153, %v4462
  %v4464 = vpop.f32.mrf.mxu0
  %4465 = vmatprep.mubr.f32.mxu0 %v177
  %4466 = vmatmul.mubr.f32.gmra.mxu0 %v176
  %v4467 = vpop.f32.mrf.mxu0
  %v4468 = vadd.f32 %v4158, %v4467
  %v4469 = vpop.f32.mrf.mxu0
  %4470 = vmatprep.mubr.f32.mxu0 %v201
  %4471 = vmatmul.mubr.f32.gmra.mxu0 %v200
  %v4472 = vpop.f32.mrf.mxu0
  %v4473 = vadd.f32 %v4163, %v4472
  %v4474 = vpop.f32.mrf.mxu0
  %4475 = vmatprep.mubr.f32.mxu0 %v225
  %4476 = vmatmul.mubr.f32.gmra.mxu0 %v224
  %v4477 = vpop.f32.mrf.mxu0
  %v4478 = vadd.f32 %v4168, %v4477
  %v4479 = vpop.f32.mrf.mxu0
  %4480 = vmatprep.mubr.f32.mxu0 %v249
  %4481 = vmatmul.mubr.f32.gmra.mxu0 %v248
  %v4482 = vpop.f32.mrf.mxu0
  %v4483 = vadd.f32 %v4173, %v4482
  %v4484 = vpop.f32.mrf.mxu0
  %4485 = vmatprep.mubr.f32.mxu0 %v273
  %4486 = vmatmul.mubr.f32.gmra.mxu0 %v272
  %v4487 = vpop.f32.mrf.mxu0
  %v4488 = vadd.f32 %v4178, %v4487
  %v4489 = vpop.f32.mrf.mxu0
  %4490 = vmatprep.mubr.f32.mxu0 %v297
  %4491 = vmatmul.mubr.f32.gmra.mxu0 %v296
  %v4492 = vpop.f32.mrf.mxu0
  %v4493 = vadd.f32 %v4183, %v4492
  %v4494 = vpop.f32.mrf.mxu0
  %4495 = vmatprep.mubr.f32.mxu0 %v321
  %4496 = vmatmul.mubr.f32.gmra.mxu0 %v320
  %v4497 = vpop.f32.mrf.mxu0
  %v4498 = vadd.f32 %v4188, %v4497
  %v4499 = vpop.f32.mrf.mxu0
  %4500 = vmatprep.mubr.f32.mxu0 %v345
  %4501 = vmatmul.mubr.f32.gmra.mxu0 %v344
  %v4502 = vpop.f32.mrf.mxu0
  %v4503 = vadd.f32 %v4193, %v4502
  %v4504 = vpop.f32.mrf.mxu0
  %4505 = vmatprep.mubr.f32.mxu0 %v369
  %4506 = vmatmul.mubr.f32.gmra.mxu0 %v368
  %v4507 = vpop.f32.mrf.mxu0
  %v4508 = vadd.f32 %v4198, %v4507
  %v4509 = vpop.f32.mrf.mxu0
  %4510 = vmatprep.mubr.f32.mxu0 %v393
  %4511 = vmatmul.mubr.f32.gmra.mxu0 %v392
  %v4512 = vpop.f32.mrf.mxu0
  %v4513 = vadd.f32 %v4203, %v4512
  %v4514 = vpop.f32.mrf.mxu0
  %4515 = vmatprep.mubr.f32.mxu0 %v417
  %4516 = vmatmul.mubr.f32.gmra.mxu0 %v416
  %v4517 = vpop.f32.mrf.mxu0
  %v4518 = vadd.f32 %v4208, %v4517
  %v4519 = vpop.f32.mrf.mxu0
  %4520 = vmatprep.mubr.f32.mxu0 %v441
  %4521 = vmatmul.mubr.f32.gmra.mxu0 %v440
  %v4522 = vpop.f32.mrf.mxu0
  %v4523 = vadd.f32 %v4213, %v4522
  %v4524 = vpop.f32.mrf.mxu0
  %4525 = vmatprep.mubr.f32.mxu0 %v465
  %4526 = vmatmul.mubr.f32.gmra.mxu0 %v464
  %v4527 = vpop.f32.mrf.mxu0
  %v4528 = vadd.f32 %v4218, %v4527
  %v4529 = vpop.f32.mrf.mxu0
  %4530 = vmatprep.mubr.f32.mxu0 %v489
  %4531 = vmatmul.mubr.f32.gmra.mxu0 %v488
  %v4532 = vpop.f32.mrf.mxu0
  %v4533 = vadd.f32 %v4223, %v4532
  %v4534 = vpop.f32.mrf.mxu0
  %4535 = vmatprep.mubr.f32.mxu0 %v513
  %4536 = vmatmul.mubr.f32.gmra.mxu0 %v512
  %v4537 = vpop.f32.mrf.mxu0
  %v4538 = vadd.f32 %v4228, %v4537
  %v4539 = vpop.f32.mrf.mxu0
  %4540 = vmatprep.mubr.f32.mxu0 %v537
  %4541 = vmatmul.mubr.f32.gmra.mxu0 %v536
  %v4542 = vpop.f32.mrf.mxu0
  %v4543 = vadd.f32 %v4233, %v4542
  %v4544 = vpop.f32.mrf.mxu0
  %4545 = vmatprep.mubr.f32.mxu0 %v561
  %4546 = vmatmul.mubr.f32.gmra.mxu0 %v560
  %v4547 = vpop.f32.mrf.mxu0
  %v4548 = vadd.f32 %v4238, %v4547
  %v4549 = vpop.f32.mrf.mxu0
  %4550 = vmatprep.mubr.f32.mxu0 %v585
  %4551 = vmatmul.mubr.f32.gmra.mxu0 %v584
  %v4552 = vpop.f32.mrf.mxu0
  %v4553 = vadd.f32 %v4243, %v4552
  %v4554 = vpop.f32.mrf.mxu0
  %4555 = vmatprep.mubr.f32.mxu0 %v609
  %4556 = vmatmul.mubr.f32.gmra.mxu0 %v608
  %v4557 = vpop.f32.mrf.mxu0
  %v4558 = vadd.f32 %v4248, %v4557
  %v4559 = vpop.f32.mrf.mxu0
  %4560 = vmatprep.mubr.f32.mxu0 %v633
  %4561 = vmatmul.mubr.f32.gmra.mxu0 %v632
  %v4562 = vpop.f32.mrf.mxu0
  %v4563 = vadd.f32 %v4253, %v4562
  %v4564 = vpop.f32.mrf.mxu0
  %4565 = vmatprep.mubr.f32.mxu0 %v657
  %4566 = vmatmul.mubr.f32.gmra.mxu0 %v656
  %v4567 = vpop.f32.mrf.mxu0
  %v4568 = vadd.f32 %v4258, %v4567
  %v4569 = vpop.f32.mrf.mxu0
  %4570 = vmatprep.mubr.f32.mxu0 %v681
  %4571 = vmatmul.mubr.f32.gmra.mxu0 %v680
  %v4572 = vpop.f32.mrf.mxu0
  %v4573 = vadd.f32 %v4263, %v4572
  %v4574 = vpop.f32.mrf.mxu0
  %4575 = vmatprep.mubr.f32.mxu0 %v705
  %4576 = vmatmul.mubr.f32.gmra.mxu0 %v704
  %v4577 = vpop.f32.mrf.mxu0
  %v4578 = vadd.f32 %v4268, %v4577
  %v4579 = vpop.f32.mrf.mxu0
  %4580 = vmatprep.mubr.f32.mxu0 %v729
  %4581 = vmatmul.mubr.f32.gmra.mxu0 %v728
  %v4582 = vpop.f32.mrf.mxu0
  %v4583 = vadd.f32 %v4273, %v4582
  %v4584 = vpop.f32.mrf.mxu0
  %4585 = vmatprep.mubr.f32.mxu0 %v753
  %4586 = vmatmul.mubr.f32.gmra.mxu0 %v752
  %v4587 = vpop.f32.mrf.mxu0
  %v4588 = vadd.f32 %v4278, %v4587
  %v4589 = vpop.f32.mrf.mxu0
  %4590 = vmatprep.mubr.f32.mxu0 %v777
  %4591 = vmatmul.mubr.f32.gmra.mxu0 %v776
  %v4592 = vpop.f32.mrf.mxu0
  %v4593 = vadd.f32 %v4283, %v4592
  %v4594 = vpop.f32.mrf.mxu0
  %4595 = vmatprep.mubr.f32.mxu0 %v801
  %4596 = vmatmul.mubr.f32.gmra.mxu0 %v800
  %v4597 = vpop.f32.mrf.mxu0
  %v4598 = vadd.f32 %v4288, %v4597
  %v4599 = vpop.f32.mrf.mxu0
  %4600 = vmatprep.mubr.f32.mxu0 %v825
  %4601 = vmatmul.mubr.f32.gmra.mxu0 %v824
  %v4602 = vpop.f32.mrf.mxu0
  %v4603 = vadd.f32 %v4293, %v4602
  %v4604 = vpop.f32.mrf.mxu0
  %4605 = vmatprep.mubr.f32.mxu0 %v849
  %4606 = vmatmul.mubr.f32.gmra.mxu0 %v848
  %v4607 = vpop.f32.mrf.mxu0
  %v4608 = vadd.f32 %v4298, %v4607
  %v4609 = vpop.f32.mrf.mxu0
  %4610 = vmatprep.mubr.f32.mxu0 %v873
  %4611 = vmatmul.mubr.f32.gmra.mxu0 %v872
  %v4612 = vpop.f32.mrf.mxu0
  %v4613 = vadd.f32 %v4303, %v4612
  %v4614 = vpop.f32.mrf.mxu0
  %4615 = vmatprep.mubr.f32.mxu0 %v897
  %4616 = vmatmul.mubr.f32.gmra.mxu0 %v896
  %v4617 = vpop.f32.mrf.mxu0
  %v4618 = vadd.f32 %v4308, %v4617
  %v4619 = vpop.f32.mrf.mxu0
  %4620 = vmatprep.mubr.f32.mxu0 %v921
  %4621 = vmatmul.mubr.f32.gmra.mxu0 %v920
  %v4622 = vpop.f32.mrf.mxu0
  %v4623 = vadd.f32 %v4313, %v4622
  %v4624 = vpop.f32.mrf.mxu0
  %4625 = vmatprep.mubr.f32.mxu0 %v945
  %4626 = vmatmul.mubr.f32.gmra.mxu0 %v944
  %v4627 = vpop.f32.mrf.mxu0
  %v4628 = vadd.f32 %v4318, %v4627
  %v4629 = vpop.f32.mrf.mxu0
  %4630 = vmatprep.mubr.f32.mxu0 %v969
  %4631 = vmatmul.mubr.f32.gmra.mxu0 %v968
  %v4632 = vpop.f32.mrf.mxu0
  %v4633 = vadd.f32 %v4323, %v4632
  %v4634 = vpop.f32.mrf.mxu0
  %4635 = vmatprep.mubr.f32.mxu0 %v993
  %4636 = vmatmul.mubr.f32.gmra.mxu0 %v992
  %v4637 = vpop.f32.mrf.mxu0
  %v4638 = vadd.f32 %v4328, %v4637
  %v4639 = vpop.f32.mrf.mxu0
  %4640 = vmatprep.mubr.f32.mxu0 %v1017
  %4641 = vmatmul.mubr.f32.gmra.mxu0 %v1016
  %v4642 = vpop.f32.mrf.mxu0
  %v4643 = vadd.f32 %v4333, %v4642
  %v4644 = vpop.f32.mrf.mxu0
  %4645 = vmatprep.mubr.f32.mxu0 %v1041
  %4646 = vmatmul.mubr.f32.gmra.mxu0 %v1040
  %v4647 = vpop.f32.mrf.mxu0
  %v4648 = vadd.f32 %v4338, %v4647
  %v4649 = vpop.f32.mrf.mxu0
  %4650 = vmatprep.mubr.f32.mxu0 %v1065
  %4651 = vmatmul.mubr.f32.gmra.mxu0 %v1064
  %v4652 = vpop.f32.mrf.mxu0
  %v4653 = vadd.f32 %v4343, %v4652
  %v4654 = vpop.f32.mrf.mxu0
  %4655 = vmatprep.mubr.f32.mxu0 %v1089
  %4656 = vmatmul.mubr.f32.gmra.mxu0 %v1088
  %v4657 = vpop.f32.mrf.mxu0
  %v4658 = vadd.f32 %v4348, %v4657
  %v4659 = vpop.f32.mrf.mxu0
  %4660 = vmatprep.mubr.f32.mxu0 %v1113
  %4661 = vmatmul.mubr.f32.gmra.mxu0 %v1112
  %v4662 = vpop.f32.mrf.mxu0
  %v4663 = vadd.f32 %v4353, %v4662
  %v4664 = vpop.f32.mrf.mxu0
  %4665 = vmatprep.mubr.f32.mxu0 %v1137
  %4666 = vmatmul.mubr.f32.gmra.mxu0 %v1136
  %v4667 = vpop.f32.mrf.mxu0
  %v4668 = vadd.f32 %v4358, %v4667
  %v4669 = vpop.f32.mrf.mxu0
  %4670 = vmatprep.mubr.f32.mxu0 %v1161
  %4671 = vmatmul.mubr.f32.gmra.mxu0 %v1160
  %v4672 = vpop.f32.mrf.mxu0
  %v4673 = vadd.f32 %v4363, %v4672
  %v4674 = vpop.f32.mrf.mxu0
  %4675 = vmatprep.mubr.f32.mxu0 %v1185
  %4676 = vmatmul.mubr.f32.gmra.mxu0 %v1184
  %v4677 = vpop.f32.mrf.mxu0
  %v4678 = vadd.f32 %v4368, %v4677
  %v4679 = vpop.f32.mrf.mxu0
  %4680 = vdwg.mxu0
  %4681 = vmatprep.subr.mxu0 0.0
  %4682 = vmatpush1.msra.mxu0 %v1525
  %4683 = vmatprep.subr.mxu0 0.0
  %4684 = vmatpush1.msra.mxu0 %v1524
  %4685 = vmatprep.subr.mxu0 0.0
  %4686 = vmatpush1.msra.mxu0 %v1523
  %4687 = vmatprep.subr.mxu0 0.0
  %4688 = vmatpush1.msra.mxu0 %v1522
  %4689 = vmatprep.subr.mxu0 0.0
  %4690 = vmatpush1.msra.mxu0 %v1521
  %4691 = vmatprep.subr.mxu0 0.0
  %4692 = vmatpush1.msra.mxu0 %v1520
  %4693 = vmatprep.subr.mxu0 0.0
  %4694 = vmatpush1.msra.mxu0 %v1519
  %4695 = vmatprep.subr.mxu0 0.0
  %4696 = vmatpush1.msra.mxu0 %v1518
  %4697 = vmatprep.subr.mxu0 0.0
  %4698 = vmatpush1.msra.mxu0 %v1517
  %4699 = vmatprep.subr.mxu0 0.0
  %4700 = vmatpush1.msra.mxu0 %v1516
  %4701 = vmatprep.subr.mxu0 0.0
  %4702 = vmatpush1.msra.mxu0 %v1515
  %4703 = vmatprep.subr.mxu0 0.0
  %4704 = vmatpush1.msra.mxu0 %v1514
  %4705 = vmatprep.subr.mxu0 0.0
  %4706 = vmatpush1.msra.mxu0 %v1513
  %4707 = vmatprep.subr.mxu0 0.0
  %4708 = vmatpush1.msra.mxu0 %v1512
  %4709 = vmatprep.subr.mxu0 0.0
  %4710 = vmatpush1.msra.mxu0 %v1511
  %4711 = vmatprep.subr.mxu0 0.0
  %4712 = vmatpush1.msra.mxu0 %v1510
  %4713 = vmatprep.subr.mxu0 0.0
  %4714 = vmatpush2.msra.mxu0 %v1541
  %4715 = vmatprep.subr.mxu0 0.0
  %4716 = vmatpush2.msra.mxu0 %v1540
  %4717 = vmatprep.subr.mxu0 0.0
  %4718 = vmatpush2.msra.mxu0 %v1539
  %4719 = vmatprep.subr.mxu0 0.0
  %4720 = vmatpush2.msra.mxu0 %v1538
  %4721 = vmatprep.subr.mxu0 0.0
  %4722 = vmatpush2.msra.mxu0 %v1537
  %4723 = vmatprep.subr.mxu0 0.0
  %4724 = vmatpush2.msra.mxu0 %v1536
  %4725 = vmatprep.subr.mxu0 0.0
  %4726 = vmatpush2.msra.mxu0 %v1535
  %4727 = vmatprep.subr.mxu0 0.0
  %4728 = vmatpush2.msra.mxu0 %v1534
  %4729 = vmatprep.subr.mxu0 0.0
  %4730 = vmatpush2.msra.mxu0 %v1533
  %4731 = vmatprep.subr.mxu0 0.0
  %4732 = vmatpush2.msra.mxu0 %v1532
  %4733 = vmatprep.subr.mxu0 0.0
  %4734 = vmatpush2.msra.mxu0 %v1531
  %4735 = vmatprep.subr.mxu0 0.0
  %4736 = vmatpush2.msra.mxu0 %v1530
  %4737 = vmatprep.subr.mxu0 0.0
  %4738 = vmatpush2.msra.mxu0 %v1529
  %4739 = vmatprep.subr.mxu0 0.0
  %4740 = vmatpush2.msra.mxu0 %v1528
  %4741 = vmatprep.subr.mxu0 0.0
  %4742 = vmatpush2.msra.mxu0 %v1527
  %4743 = vmatprep.subr.mxu0 0.0
  %4744 = vmatpush2.msra.mxu0 %v1526
  %4745 = vmatprep.mubr.f32.mxu0 %v35
  %4746 = vmatmul.mubr.f32.gmra.mxu0 %v34
  %v4747 = vpop.f32.mrf.mxu0
  %v4748 = vadd.f32 %v4438, %v4747
  %v4749 = vpop.f32.mrf.mxu0
  %4750 = vmatprep.mubr.f32.mxu0 %v59
  %4751 = vmatmul.mubr.f32.gmra.mxu0 %v58
  %v4752 = vpop.f32.mrf.mxu0
  %v4753 = vadd.f32 %v4443, %v4752
  %v4754 = vpop.f32.mrf.mxu0
  %4755 = vmatprep.mubr.f32.mxu0 %v83
  %4756 = vmatmul.mubr.f32.gmra.mxu0 %v82
  %v4757 = vpop.f32.mrf.mxu0
  %v4758 = vadd.f32 %v4448, %v4757
  %v4759 = vpop.f32.mrf.mxu0
  %4760 = vmatprep.mubr.f32.mxu0 %v107
  %4761 = vmatmul.mubr.f32.gmra.mxu0 %v106
  %v4762 = vpop.f32.mrf.mxu0
  %v4763 = vadd.f32 %v4453, %v4762
  %v4764 = vpop.f32.mrf.mxu0
  %4765 = vmatprep.mubr.f32.mxu0 %v131
  %4766 = vmatmul.mubr.f32.gmra.mxu0 %v130
  %v4767 = vpop.f32.mrf.mxu0
  %v4768 = vadd.f32 %v4458, %v4767
  %v4769 = vpop.f32.mrf.mxu0
  %4770 = vmatprep.mubr.f32.mxu0 %v155
  %4771 = vmatmul.mubr.f32.gmra.mxu0 %v154
  %v4772 = vpop.f32.mrf.mxu0
  %v4773 = vadd.f32 %v4463, %v4772
  %v4774 = vpop.f32.mrf.mxu0
  %4775 = vmatprep.mubr.f32.mxu0 %v179
  %4776 = vmatmul.mubr.f32.gmra.mxu0 %v178
  %v4777 = vpop.f32.mrf.mxu0
  %v4778 = vadd.f32 %v4468, %v4777
  %v4779 = vpop.f32.mrf.mxu0
  %4780 = vmatprep.mubr.f32.mxu0 %v203
  %4781 = vmatmul.mubr.f32.gmra.mxu0 %v202
  %v4782 = vpop.f32.mrf.mxu0
  %v4783 = vadd.f32 %v4473, %v4782
  %v4784 = vpop.f32.mrf.mxu0
  %4785 = vmatprep.mubr.f32.mxu0 %v227
  %4786 = vmatmul.mubr.f32.gmra.mxu0 %v226
  %v4787 = vpop.f32.mrf.mxu0
  %v4788 = vadd.f32 %v4478, %v4787
  %v4789 = vpop.f32.mrf.mxu0
  %4790 = vmatprep.mubr.f32.mxu0 %v251
  %4791 = vmatmul.mubr.f32.gmra.mxu0 %v250
  %v4792 = vpop.f32.mrf.mxu0
  %v4793 = vadd.f32 %v4483, %v4792
  %v4794 = vpop.f32.mrf.mxu0
  %4795 = vmatprep.mubr.f32.mxu0 %v275
  %4796 = vmatmul.mubr.f32.gmra.mxu0 %v274
  %v4797 = vpop.f32.mrf.mxu0
  %v4798 = vadd.f32 %v4488, %v4797
  %v4799 = vpop.f32.mrf.mxu0
  %4800 = vmatprep.mubr.f32.mxu0 %v299
  %4801 = vmatmul.mubr.f32.gmra.mxu0 %v298
  %v4802 = vpop.f32.mrf.mxu0
  %v4803 = vadd.f32 %v4493, %v4802
  %v4804 = vpop.f32.mrf.mxu0
  %4805 = vmatprep.mubr.f32.mxu0 %v323
  %4806 = vmatmul.mubr.f32.gmra.mxu0 %v322
  %v4807 = vpop.f32.mrf.mxu0
  %v4808 = vadd.f32 %v4498, %v4807
  %v4809 = vpop.f32.mrf.mxu0
  %4810 = vmatprep.mubr.f32.mxu0 %v347
  %4811 = vmatmul.mubr.f32.gmra.mxu0 %v346
  %v4812 = vpop.f32.mrf.mxu0
  %v4813 = vadd.f32 %v4503, %v4812
  %v4814 = vpop.f32.mrf.mxu0
  %4815 = vmatprep.mubr.f32.mxu0 %v371
  %4816 = vmatmul.mubr.f32.gmra.mxu0 %v370
  %v4817 = vpop.f32.mrf.mxu0
  %v4818 = vadd.f32 %v4508, %v4817
  %v4819 = vpop.f32.mrf.mxu0
  %4820 = vmatprep.mubr.f32.mxu0 %v395
  %4821 = vmatmul.mubr.f32.gmra.mxu0 %v394
  %v4822 = vpop.f32.mrf.mxu0
  %v4823 = vadd.f32 %v4513, %v4822
  %v4824 = vpop.f32.mrf.mxu0
  %4825 = vmatprep.mubr.f32.mxu0 %v419
  %4826 = vmatmul.mubr.f32.gmra.mxu0 %v418
  %v4827 = vpop.f32.mrf.mxu0
  %v4828 = vadd.f32 %v4518, %v4827
  %v4829 = vpop.f32.mrf.mxu0
  %4830 = vmatprep.mubr.f32.mxu0 %v443
  %4831 = vmatmul.mubr.f32.gmra.mxu0 %v442
  %v4832 = vpop.f32.mrf.mxu0
  %v4833 = vadd.f32 %v4523, %v4832
  %v4834 = vpop.f32.mrf.mxu0
  %4835 = vmatprep.mubr.f32.mxu0 %v467
  %4836 = vmatmul.mubr.f32.gmra.mxu0 %v466
  %v4837 = vpop.f32.mrf.mxu0
  %v4838 = vadd.f32 %v4528, %v4837
  %v4839 = vpop.f32.mrf.mxu0
  %4840 = vmatprep.mubr.f32.mxu0 %v491
  %4841 = vmatmul.mubr.f32.gmra.mxu0 %v490
  %v4842 = vpop.f32.mrf.mxu0
  %v4843 = vadd.f32 %v4533, %v4842
  %v4844 = vpop.f32.mrf.mxu0
  %4845 = vmatprep.mubr.f32.mxu0 %v515
  %4846 = vmatmul.mubr.f32.gmra.mxu0 %v514
  %v4847 = vpop.f32.mrf.mxu0
  %v4848 = vadd.f32 %v4538, %v4847
  %v4849 = vpop.f32.mrf.mxu0
  %4850 = vmatprep.mubr.f32.mxu0 %v539
  %4851 = vmatmul.mubr.f32.gmra.mxu0 %v538
  %v4852 = vpop.f32.mrf.mxu0
  %v4853 = vadd.f32 %v4543, %v4852
  %v4854 = vpop.f32.mrf.mxu0
  %4855 = vmatprep.mubr.f32.mxu0 %v563
  %4856 = vmatmul.mubr.f32.gmra.mxu0 %v562
  %v4857 = vpop.f32.mrf.mxu0
  %v4858 = vadd.f32 %v4548, %v4857
  %v4859 = vpop.f32.mrf.mxu0
  %4860 = vmatprep.mubr.f32.mxu0 %v587
  %4861 = vmatmul.mubr.f32.gmra.mxu0 %v586
  %v4862 = vpop.f32.mrf.mxu0
  %v4863 = vadd.f32 %v4553, %v4862
  %v4864 = vpop.f32.mrf.mxu0
  %4865 = vmatprep.mubr.f32.mxu0 %v611
  %4866 = vmatmul.mubr.f32.gmra.mxu0 %v610
  %v4867 = vpop.f32.mrf.mxu0
  %v4868 = vadd.f32 %v4558, %v4867
  %v4869 = vpop.f32.mrf.mxu0
  %4870 = vmatprep.mubr.f32.mxu0 %v635
  %4871 = vmatmul.mubr.f32.gmra.mxu0 %v634
  %v4872 = vpop.f32.mrf.mxu0
  %v4873 = vadd.f32 %v4563, %v4872
  %v4874 = vpop.f32.mrf.mxu0
  %4875 = vmatprep.mubr.f32.mxu0 %v659
  %4876 = vmatmul.mubr.f32.gmra.mxu0 %v658
  %v4877 = vpop.f32.mrf.mxu0
  %v4878 = vadd.f32 %v4568, %v4877
  %v4879 = vpop.f32.mrf.mxu0
  %4880 = vmatprep.mubr.f32.mxu0 %v683
  %4881 = vmatmul.mubr.f32.gmra.mxu0 %v682
  %v4882 = vpop.f32.mrf.mxu0
  %v4883 = vadd.f32 %v4573, %v4882
  %v4884 = vpop.f32.mrf.mxu0
  %4885 = vmatprep.mubr.f32.mxu0 %v707
  %4886 = vmatmul.mubr.f32.gmra.mxu0 %v706
  %v4887 = vpop.f32.mrf.mxu0
  %v4888 = vadd.f32 %v4578, %v4887
  %v4889 = vpop.f32.mrf.mxu0
  %4890 = vmatprep.mubr.f32.mxu0 %v731
  %4891 = vmatmul.mubr.f32.gmra.mxu0 %v730
  %v4892 = vpop.f32.mrf.mxu0
  %v4893 = vadd.f32 %v4583, %v4892
  %v4894 = vpop.f32.mrf.mxu0
  %4895 = vmatprep.mubr.f32.mxu0 %v755
  %4896 = vmatmul.mubr.f32.gmra.mxu0 %v754
  %v4897 = vpop.f32.mrf.mxu0
  %v4898 = vadd.f32 %v4588, %v4897
  %v4899 = vpop.f32.mrf.mxu0
  %4900 = vmatprep.mubr.f32.mxu0 %v779
  %4901 = vmatmul.mubr.f32.gmra.mxu0 %v778
  %v4902 = vpop.f32.mrf.mxu0
  %v4903 = vadd.f32 %v4593, %v4902
  %v4904 = vpop.f32.mrf.mxu0
  %4905 = vmatprep.mubr.f32.mxu0 %v803
  %4906 = vmatmul.mubr.f32.gmra.mxu0 %v802
  %v4907 = vpop.f32.mrf.mxu0
  %v4908 = vadd.f32 %v4598, %v4907
  %v4909 = vpop.f32.mrf.mxu0
  %4910 = vmatprep.mubr.f32.mxu0 %v827
  %4911 = vmatmul.mubr.f32.gmra.mxu0 %v826
  %v4912 = vpop.f32.mrf.mxu0
  %v4913 = vadd.f32 %v4603, %v4912
  %v4914 = vpop.f32.mrf.mxu0
  %4915 = vmatprep.mubr.f32.mxu0 %v851
  %4916 = vmatmul.mubr.f32.gmra.mxu0 %v850
  %v4917 = vpop.f32.mrf.mxu0
  %v4918 = vadd.f32 %v4608, %v4917
  %v4919 = vpop.f32.mrf.mxu0
  %4920 = vmatprep.mubr.f32.mxu0 %v875
  %4921 = vmatmul.mubr.f32.gmra.mxu0 %v874
  %v4922 = vpop.f32.mrf.mxu0
  %v4923 = vadd.f32 %v4613, %v4922
  %v4924 = vpop.f32.mrf.mxu0
  %4925 = vmatprep.mubr.f32.mxu0 %v899
  %4926 = vmatmul.mubr.f32.gmra.mxu0 %v898
  %v4927 = vpop.f32.mrf.mxu0
  %v4928 = vadd.f32 %v4618, %v4927
  %v4929 = vpop.f32.mrf.mxu0
  %4930 = vmatprep.mubr.f32.mxu0 %v923
  %4931 = vmatmul.mubr.f32.gmra.mxu0 %v922
  %v4932 = vpop.f32.mrf.mxu0
  %v4933 = vadd.f32 %v4623, %v4932
  %v4934 = vpop.f32.mrf.mxu0
  %4935 = vmatprep.mubr.f32.mxu0 %v947
  %4936 = vmatmul.mubr.f32.gmra.mxu0 %v946
  %v4937 = vpop.f32.mrf.mxu0
  %v4938 = vadd.f32 %v4628, %v4937
  %v4939 = vpop.f32.mrf.mxu0
  %4940 = vmatprep.mubr.f32.mxu0 %v971
  %4941 = vmatmul.mubr.f32.gmra.mxu0 %v970
  %v4942 = vpop.f32.mrf.mxu0
  %v4943 = vadd.f32 %v4633, %v4942
  %v4944 = vpop.f32.mrf.mxu0
  %4945 = vmatprep.mubr.f32.mxu0 %v995
  %4946 = vmatmul.mubr.f32.gmra.mxu0 %v994
  %v4947 = vpop.f32.mrf.mxu0
  %v4948 = vadd.f32 %v4638, %v4947
  %v4949 = vpop.f32.mrf.mxu0
  %4950 = vmatprep.mubr.f32.mxu0 %v1019
  %4951 = vmatmul.mubr.f32.gmra.mxu0 %v1018
  %v4952 = vpop.f32.mrf.mxu0
  %v4953 = vadd.f32 %v4643, %v4952
  %v4954 = vpop.f32.mrf.mxu0
  %4955 = vmatprep.mubr.f32.mxu0 %v1043
  %4956 = vmatmul.mubr.f32.gmra.mxu0 %v1042
  %v4957 = vpop.f32.mrf.mxu0
  %v4958 = vadd.f32 %v4648, %v4957
  %v4959 = vpop.f32.mrf.mxu0
  %4960 = vmatprep.mubr.f32.mxu0 %v1067
  %4961 = vmatmul.mubr.f32.gmra.mxu0 %v1066
  %v4962 = vpop.f32.mrf.mxu0
  %v4963 = vadd.f32 %v4653, %v4962
  %v4964 = vpop.f32.mrf.mxu0
  %4965 = vmatprep.mubr.f32.mxu0 %v1091
  %4966 = vmatmul.mubr.f32.gmra.mxu0 %v1090
  %v4967 = vpop.f32.mrf.mxu0
  %v4968 = vadd.f32 %v4658, %v4967
  %v4969 = vpop.f32.mrf.mxu0
  %4970 = vmatprep.mubr.f32.mxu0 %v1115
  %4971 = vmatmul.mubr.f32.gmra.mxu0 %v1114
  %v4972 = vpop.f32.mrf.mxu0
  %v4973 = vadd.f32 %v4663, %v4972
  %v4974 = vpop.f32.mrf.mxu0
  %4975 = vmatprep.mubr.f32.mxu0 %v1139
  %4976 = vmatmul.mubr.f32.gmra.mxu0 %v1138
  %v4977 = vpop.f32.mrf.mxu0
  %v4978 = vadd.f32 %v4668, %v4977
  %v4979 = vpop.f32.mrf.mxu0
  %4980 = vmatprep.mubr.f32.mxu0 %v1163
  %4981 = vmatmul.mubr.f32.gmra.mxu0 %v1162
  %v4982 = vpop.f32.mrf.mxu0
  %v4983 = vadd.f32 %v4673, %v4982
  %v4984 = vpop.f32.mrf.mxu0
  %4985 = vmatprep.mubr.f32.mxu0 %v1187
  %4986 = vmatmul.mubr.f32.gmra.mxu0 %v1186
  %v4987 = vpop.f32.mrf.mxu0
  %v4988 = vadd.f32 %v4678, %v4987
  %v4989 = vpop.f32.mrf.mxu0
  %4990 = vdwg.mxu0
  %4991 = vmatprep.subr.mxu0 0.0
  %4992 = vmatpush1.msra.mxu0 %v1557
  %4993 = vmatprep.subr.mxu0 0.0
  %4994 = vmatpush1.msra.mxu0 %v1556
  %4995 = vmatprep.subr.mxu0 0.0
  %4996 = vmatpush1.msra.mxu0 %v1555
  %4997 = vmatprep.subr.mxu0 0.0
  %4998 = vmatpush1.msra.mxu0 %v1554
  %4999 = vmatprep.subr.mxu0 0.0
  %5000 = vmatpush1.msra.mxu0 %v1553
  %5001 = vmatprep.subr.mxu0 0.0
  %5002 = vmatpush1.msra.mxu0 %v1552
  %5003 = vmatprep.subr.mxu0 0.0
  %5004 = vmatpush1.msra.mxu0 %v1551
  %5005 = vmatprep.subr.mxu0 0.0
  %5006 = vmatpush1.msra.mxu0 %v1550
  %5007 = vmatprep.subr.mxu0 0.0
  %5008 = vmatpush1.msra.mxu0 %v1549
  %5009 = vmatprep.subr.mxu0 0.0
  %5010 = vmatpush1.msra.mxu0 %v1548
  %5011 = vmatprep.subr.mxu0 0.0
  %5012 = vmatpush1.msra.mxu0 %v1547
  %5013 = vmatprep.subr.mxu0 0.0
  %5014 = vmatpush1.msra.mxu0 %v1546
  %5015 = vmatprep.subr.mxu0 0.0
  %5016 = vmatpush1.msra.mxu0 %v1545
  %5017 = vmatprep.subr.mxu0 0.0
  %5018 = vmatpush1.msra.mxu0 %v1544
  %5019 = vmatprep.subr.mxu0 0.0
  %5020 = vmatpush1.msra.mxu0 %v1543
  %5021 = vmatprep.subr.mxu0 0.0
  %5022 = vmatpush1.msra.mxu0 %v1542
  %5023 = vmatprep.subr.mxu0 0.0
  %5024 = vmatpush2.msra.mxu0 %v1573
  %5025 = vmatprep.subr.mxu0 0.0
  %5026 = vmatpush2.msra.mxu0 %v1572
  %5027 = vmatprep.subr.mxu0 0.0
  %5028 = vmatpush2.msra.mxu0 %v1571
  %5029 = vmatprep.subr.mxu0 0.0
  %5030 = vmatpush2.msra.mxu0 %v1570
  %5031 = vmatprep.subr.mxu0 0.0
  %5032 = vmatpush2.msra.mxu0 %v1569
  %5033 = vmatprep.subr.mxu0 0.0
  %5034 = vmatpush2.msra.mxu0 %v1568
  %5035 = vmatprep.subr.mxu0 0.0
  %5036 = vmatpush2.msra.mxu0 %v1567
  %5037 = vmatprep.subr.mxu0 0.0
  %5038 = vmatpush2.msra.mxu0 %v1566
  %5039 = vmatprep.subr.mxu0 0.0
  %5040 = vmatpush2.msra.mxu0 %v1565
  %5041 = vmatprep.subr.mxu0 0.0
  %5042 = vmatpush2.msra.mxu0 %v1564
  %5043 = vmatprep.subr.mxu0 0.0
  %5044 = vmatpush2.msra.mxu0 %v1563
  %5045 = vmatprep.subr.mxu0 0.0
  %5046 = vmatpush2.msra.mxu0 %v1562
  %5047 = vmatprep.subr.mxu0 0.0
  %5048 = vmatpush2.msra.mxu0 %v1561
  %5049 = vmatprep.subr.mxu0 0.0
  %5050 = vmatpush2.msra.mxu0 %v1560
  %5051 = vmatprep.subr.mxu0 0.0
  %5052 = vmatpush2.msra.mxu0 %v1559
  %5053 = vmatprep.subr.mxu0 0.0
  %5054 = vmatpush2.msra.mxu0 %v1558
  %5055 = vmatprep.mubr.f32.mxu0 %v37
  %5056 = vmatmul.mubr.f32.gmra.mxu0 %v36
  %v5057 = vpop.f32.mrf.mxu0
  %v5058 = vadd.f32 %v4748, %v5057
  %v5059 = vpop.f32.mrf.mxu0
  %5060 = vmatprep.mubr.f32.mxu0 %v61
  %5061 = vmatmul.mubr.f32.gmra.mxu0 %v60
  %v5062 = vpop.f32.mrf.mxu0
  %v5063 = vadd.f32 %v4753, %v5062
  %v5064 = vpop.f32.mrf.mxu0
  %5065 = vmatprep.mubr.f32.mxu0 %v85
  %5066 = vmatmul.mubr.f32.gmra.mxu0 %v84
  %v5067 = vpop.f32.mrf.mxu0
  %v5068 = vadd.f32 %v4758, %v5067
  %v5069 = vpop.f32.mrf.mxu0
  %5070 = vmatprep.mubr.f32.mxu0 %v109
  %5071 = vmatmul.mubr.f32.gmra.mxu0 %v108
  %v5072 = vpop.f32.mrf.mxu0
  %v5073 = vadd.f32 %v4763, %v5072
  %v5074 = vpop.f32.mrf.mxu0
  %5075 = vmatprep.mubr.f32.mxu0 %v133
  %5076 = vmatmul.mubr.f32.gmra.mxu0 %v132
  %v5077 = vpop.f32.mrf.mxu0
  %v5078 = vadd.f32 %v4768, %v5077
  %v5079 = vpop.f32.mrf.mxu0
  %5080 = vmatprep.mubr.f32.mxu0 %v157
  %5081 = vmatmul.mubr.f32.gmra.mxu0 %v156
  %v5082 = vpop.f32.mrf.mxu0
  %v5083 = vadd.f32 %v4773, %v5082
  %v5084 = vpop.f32.mrf.mxu0
  %5085 = vmatprep.mubr.f32.mxu0 %v181
  %5086 = vmatmul.mubr.f32.gmra.mxu0 %v180
  %v5087 = vpop.f32.mrf.mxu0
  %v5088 = vadd.f32 %v4778, %v5087
  %v5089 = vpop.f32.mrf.mxu0
  %5090 = vmatprep.mubr.f32.mxu0 %v205
  %5091 = vmatmul.mubr.f32.gmra.mxu0 %v204
  %v5092 = vpop.f32.mrf.mxu0
  %v5093 = vadd.f32 %v4783, %v5092
  %v5094 = vpop.f32.mrf.mxu0
  %5095 = vmatprep.mubr.f32.mxu0 %v229
  %5096 = vmatmul.mubr.f32.gmra.mxu0 %v228
  %v5097 = vpop.f32.mrf.mxu0
  %v5098 = vadd.f32 %v4788, %v5097
  %v5099 = vpop.f32.mrf.mxu0
  %5100 = vmatprep.mubr.f32.mxu0 %v253
  %5101 = vmatmul.mubr.f32.gmra.mxu0 %v252
  %v5102 = vpop.f32.mrf.mxu0
  %v5103 = vadd.f32 %v4793, %v5102
  %v5104 = vpop.f32.mrf.mxu0
  %5105 = vmatprep.mubr.f32.mxu0 %v277
  %5106 = vmatmul.mubr.f32.gmra.mxu0 %v276
  %v5107 = vpop.f32.mrf.mxu0
  %v5108 = vadd.f32 %v4798, %v5107
  %v5109 = vpop.f32.mrf.mxu0
  %5110 = vmatprep.mubr.f32.mxu0 %v301
  %5111 = vmatmul.mubr.f32.gmra.mxu0 %v300
  %v5112 = vpop.f32.mrf.mxu0
  %v5113 = vadd.f32 %v4803, %v5112
  %v5114 = vpop.f32.mrf.mxu0
  %5115 = vmatprep.mubr.f32.mxu0 %v325
  %5116 = vmatmul.mubr.f32.gmra.mxu0 %v324
  %v5117 = vpop.f32.mrf.mxu0
  %v5118 = vadd.f32 %v4808, %v5117
  %v5119 = vpop.f32.mrf.mxu0
  %5120 = vmatprep.mubr.f32.mxu0 %v349
  %5121 = vmatmul.mubr.f32.gmra.mxu0 %v348
  %v5122 = vpop.f32.mrf.mxu0
  %v5123 = vadd.f32 %v4813, %v5122
  %v5124 = vpop.f32.mrf.mxu0
  %5125 = vmatprep.mubr.f32.mxu0 %v373
  %5126 = vmatmul.mubr.f32.gmra.mxu0 %v372
  %v5127 = vpop.f32.mrf.mxu0
  %v5128 = vadd.f32 %v4818, %v5127
  %v5129 = vpop.f32.mrf.mxu0
  %5130 = vmatprep.mubr.f32.mxu0 %v397
  %5131 = vmatmul.mubr.f32.gmra.mxu0 %v396
  %v5132 = vpop.f32.mrf.mxu0
  %v5133 = vadd.f32 %v4823, %v5132
  %v5134 = vpop.f32.mrf.mxu0
  %5135 = vmatprep.mubr.f32.mxu0 %v421
  %5136 = vmatmul.mubr.f32.gmra.mxu0 %v420
  %v5137 = vpop.f32.mrf.mxu0
  %v5138 = vadd.f32 %v4828, %v5137
  %v5139 = vpop.f32.mrf.mxu0
  %5140 = vmatprep.mubr.f32.mxu0 %v445
  %5141 = vmatmul.mubr.f32.gmra.mxu0 %v444
  %v5142 = vpop.f32.mrf.mxu0
  %v5143 = vadd.f32 %v4833, %v5142
  %v5144 = vpop.f32.mrf.mxu0
  %5145 = vmatprep.mubr.f32.mxu0 %v469
  %5146 = vmatmul.mubr.f32.gmra.mxu0 %v468
  %v5147 = vpop.f32.mrf.mxu0
  %v5148 = vadd.f32 %v4838, %v5147
  %v5149 = vpop.f32.mrf.mxu0
  %5150 = vmatprep.mubr.f32.mxu0 %v493
  %5151 = vmatmul.mubr.f32.gmra.mxu0 %v492
  %v5152 = vpop.f32.mrf.mxu0
  %v5153 = vadd.f32 %v4843, %v5152
  %v5154 = vpop.f32.mrf.mxu0
  %5155 = vmatprep.mubr.f32.mxu0 %v517
  %5156 = vmatmul.mubr.f32.gmra.mxu0 %v516
  %v5157 = vpop.f32.mrf.mxu0
  %v5158 = vadd.f32 %v4848, %v5157
  %v5159 = vpop.f32.mrf.mxu0
  %5160 = vmatprep.mubr.f32.mxu0 %v541
  %5161 = vmatmul.mubr.f32.gmra.mxu0 %v540
  %v5162 = vpop.f32.mrf.mxu0
  %v5163 = vadd.f32 %v4853, %v5162
  %v5164 = vpop.f32.mrf.mxu0
  %5165 = vmatprep.mubr.f32.mxu0 %v565
  %5166 = vmatmul.mubr.f32.gmra.mxu0 %v564
  %v5167 = vpop.f32.mrf.mxu0
  %v5168 = vadd.f32 %v4858, %v5167
  %v5169 = vpop.f32.mrf.mxu0
  %5170 = vmatprep.mubr.f32.mxu0 %v589
  %5171 = vmatmul.mubr.f32.gmra.mxu0 %v588
  %v5172 = vpop.f32.mrf.mxu0
  %v5173 = vadd.f32 %v4863, %v5172
  %v5174 = vpop.f32.mrf.mxu0
  %5175 = vmatprep.mubr.f32.mxu0 %v613
  %5176 = vmatmul.mubr.f32.gmra.mxu0 %v612
  %v5177 = vpop.f32.mrf.mxu0
  %v5178 = vadd.f32 %v4868, %v5177
  %v5179 = vpop.f32.mrf.mxu0
  %5180 = vmatprep.mubr.f32.mxu0 %v637
  %5181 = vmatmul.mubr.f32.gmra.mxu0 %v636
  %v5182 = vpop.f32.mrf.mxu0
  %v5183 = vadd.f32 %v4873, %v5182
  %v5184 = vpop.f32.mrf.mxu0
  %5185 = vmatprep.mubr.f32.mxu0 %v661
  %5186 = vmatmul.mubr.f32.gmra.mxu0 %v660
  %v5187 = vpop.f32.mrf.mxu0
  %v5188 = vadd.f32 %v4878, %v5187
  %v5189 = vpop.f32.mrf.mxu0
  %5190 = vmatprep.mubr.f32.mxu0 %v685
  %5191 = vmatmul.mubr.f32.gmra.mxu0 %v684
  %v5192 = vpop.f32.mrf.mxu0
  %v5193 = vadd.f32 %v4883, %v5192
  %v5194 = vpop.f32.mrf.mxu0
  %5195 = vmatprep.mubr.f32.mxu0 %v709
  %5196 = vmatmul.mubr.f32.gmra.mxu0 %v708
  %v5197 = vpop.f32.mrf.mxu0
  %v5198 = vadd.f32 %v4888, %v5197
  %v5199 = vpop.f32.mrf.mxu0
  %5200 = vmatprep.mubr.f32.mxu0 %v733
  %5201 = vmatmul.mubr.f32.gmra.mxu0 %v732
  %v5202 = vpop.f32.mrf.mxu0
  %v5203 = vadd.f32 %v4893, %v5202
  %v5204 = vpop.f32.mrf.mxu0
  %5205 = vmatprep.mubr.f32.mxu0 %v757
  %5206 = vmatmul.mubr.f32.gmra.mxu0 %v756
  %v5207 = vpop.f32.mrf.mxu0
  %v5208 = vadd.f32 %v4898, %v5207
  %v5209 = vpop.f32.mrf.mxu0
  %5210 = vmatprep.mubr.f32.mxu0 %v781
  %5211 = vmatmul.mubr.f32.gmra.mxu0 %v780
  %v5212 = vpop.f32.mrf.mxu0
  %v5213 = vadd.f32 %v4903, %v5212
  %v5214 = vpop.f32.mrf.mxu0
  %5215 = vmatprep.mubr.f32.mxu0 %v805
  %5216 = vmatmul.mubr.f32.gmra.mxu0 %v804
  %v5217 = vpop.f32.mrf.mxu0
  %v5218 = vadd.f32 %v4908, %v5217
  %v5219 = vpop.f32.mrf.mxu0
  %5220 = vmatprep.mubr.f32.mxu0 %v829
  %5221 = vmatmul.mubr.f32.gmra.mxu0 %v828
  %v5222 = vpop.f32.mrf.mxu0
  %v5223 = vadd.f32 %v4913, %v5222
  %v5224 = vpop.f32.mrf.mxu0
  %5225 = vmatprep.mubr.f32.mxu0 %v853
  %5226 = vmatmul.mubr.f32.gmra.mxu0 %v852
  %v5227 = vpop.f32.mrf.mxu0
  %v5228 = vadd.f32 %v4918, %v5227
  %v5229 = vpop.f32.mrf.mxu0
  %5230 = vmatprep.mubr.f32.mxu0 %v877
  %5231 = vmatmul.mubr.f32.gmra.mxu0 %v876
  %v5232 = vpop.f32.mrf.mxu0
  %v5233 = vadd.f32 %v4923, %v5232
  %v5234 = vpop.f32.mrf.mxu0
  %5235 = vmatprep.mubr.f32.mxu0 %v901
  %5236 = vmatmul.mubr.f32.gmra.mxu0 %v900
  %v5237 = vpop.f32.mrf.mxu0
  %v5238 = vadd.f32 %v4928, %v5237
  %v5239 = vpop.f32.mrf.mxu0
  %5240 = vmatprep.mubr.f32.mxu0 %v925
  %5241 = vmatmul.mubr.f32.gmra.mxu0 %v924
  %v5242 = vpop.f32.mrf.mxu0
  %v5243 = vadd.f32 %v4933, %v5242
  %v5244 = vpop.f32.mrf.mxu0
  %5245 = vmatprep.mubr.f32.mxu0 %v949
  %5246 = vmatmul.mubr.f32.gmra.mxu0 %v948
  %v5247 = vpop.f32.mrf.mxu0
  %v5248 = vadd.f32 %v4938, %v5247
  %v5249 = vpop.f32.mrf.mxu0
  %5250 = vmatprep.mubr.f32.mxu0 %v973
  %5251 = vmatmul.mubr.f32.gmra.mxu0 %v972
  %v5252 = vpop.f32.mrf.mxu0
  %v5253 = vadd.f32 %v4943, %v5252
  %v5254 = vpop.f32.mrf.mxu0
  %5255 = vmatprep.mubr.f32.mxu0 %v997
  %5256 = vmatmul.mubr.f32.gmra.mxu0 %v996
  %v5257 = vpop.f32.mrf.mxu0
  %v5258 = vadd.f32 %v4948, %v5257
  %v5259 = vpop.f32.mrf.mxu0
  %5260 = vmatprep.mubr.f32.mxu0 %v1021
  %5261 = vmatmul.mubr.f32.gmra.mxu0 %v1020
  %v5262 = vpop.f32.mrf.mxu0
  %v5263 = vadd.f32 %v4953, %v5262
  %v5264 = vpop.f32.mrf.mxu0
  %5265 = vmatprep.mubr.f32.mxu0 %v1045
  %5266 = vmatmul.mubr.f32.gmra.mxu0 %v1044
  %v5267 = vpop.f32.mrf.mxu0
  %v5268 = vadd.f32 %v4958, %v5267
  %v5269 = vpop.f32.mrf.mxu0
  %5270 = vmatprep.mubr.f32.mxu0 %v1069
  %5271 = vmatmul.mubr.f32.gmra.mxu0 %v1068
  %v5272 = vpop.f32.mrf.mxu0
  %v5273 = vadd.f32 %v4963, %v5272
  %v5274 = vpop.f32.mrf.mxu0
  %5275 = vmatprep.mubr.f32.mxu0 %v1093
  %5276 = vmatmul.mubr.f32.gmra.mxu0 %v1092
  %v5277 = vpop.f32.mrf.mxu0
  %v5278 = vadd.f32 %v4968, %v5277
  %v5279 = vpop.f32.mrf.mxu0
  %5280 = vmatprep.mubr.f32.mxu0 %v1117
  %5281 = vmatmul.mubr.f32.gmra.mxu0 %v1116
  %v5282 = vpop.f32.mrf.mxu0
  %v5283 = vadd.f32 %v4973, %v5282
  %v5284 = vpop.f32.mrf.mxu0
  %5285 = vmatprep.mubr.f32.mxu0 %v1141
  %5286 = vmatmul.mubr.f32.gmra.mxu0 %v1140
  %v5287 = vpop.f32.mrf.mxu0
  %v5288 = vadd.f32 %v4978, %v5287
  %v5289 = vpop.f32.mrf.mxu0
  %5290 = vmatprep.mubr.f32.mxu0 %v1165
  %5291 = vmatmul.mubr.f32.gmra.mxu0 %v1164
  %v5292 = vpop.f32.mrf.mxu0
  %v5293 = vadd.f32 %v4983, %v5292
  %v5294 = vpop.f32.mrf.mxu0
  %5295 = vmatprep.mubr.f32.mxu0 %v1189
  %5296 = vmatmul.mubr.f32.gmra.mxu0 %v1188
  %v5297 = vpop.f32.mrf.mxu0
  %v5298 = vadd.f32 %v4988, %v5297
  %v5299 = vpop.f32.mrf.mxu0
  %5300 = vdwg.mxu0
  %v5301 = vmax.f32 %v5058, 0.0
  %v5302 = vmax.f32 %v5063, 0.0
  %v5303 = vmax.f32 %v5068, 0.0
  %v5304 = vmax.f32 %v5073, 0.0
  %v5305 = vmax.f32 %v5078, 0.0
  %v5306 = vmax.f32 %v5083, 0.0
  %v5307 = vmax.f32 %v5088, 0.0
  %v5308 = vmax.f32 %v5093, 0.0
  %v5309 = vmax.f32 %v5098, 0.0
  %v5310 = vmax.f32 %v5103, 0.0
  %v5311 = vmax.f32 %v5108, 0.0
  %v5312 = vmax.f32 %v5113, 0.0
  %v5313 = vmax.f32 %v5118, 0.0
  %v5314 = vmax.f32 %v5123, 0.0
  %v5315 = vmax.f32 %v5128, 0.0
  %v5316 = vmax.f32 %v5133, 0.0
  %v5317 = vmax.f32 %v5138, 0.0
  %v5318 = vmax.f32 %v5143, 0.0
  %v5319 = vmax.f32 %v5148, 0.0
  %v5320 = vmax.f32 %v5153, 0.0
  %v5321 = vmax.f32 %v5158, 0.0
  %v5322 = vmax.f32 %v5163, 0.0
  %v5323 = vmax.f32 %v5168, 0.0
  %v5324 = vmax.f32 %v5173, 0.0
  %v5325 = vmax.f32 %v5178, 0.0
  %v5326 = vmax.f32 %v5183, 0.0
  %v5327 = vmax.f32 %v5188, 0.0
  %v5328 = vmax.f32 %v5193, 0.0
  %v5329 = vmax.f32 %v5198, 0.0
  %v5330 = vmax.f32 %v5203, 0.0
  %v5331 = vmax.f32 %v5208, 0.0
  %v5332 = vmax.f32 %v5213, 0.0
  %v5333 = vmax.f32 %v5218, 0.0
  %v5334 = vmax.f32 %v5223, 0.0
  %v5335 = vmax.f32 %v5228, 0.0
  %v5336 = vmax.f32 %v5233, 0.0
  %v5337 = vmax.f32 %v5238, 0.0
  %v5338 = vmax.f32 %v5243, 0.0
  %v5339 = vmax.f32 %v5248, 0.0
  %v5340 = vmax.f32 %v5253, 0.0
  %v5341 = vmax.f32 %v5258, 0.0
  %v5342 = vmax.f32 %v5263, 0.0
  %v5343 = vmax.f32 %v5268, 0.0
  %v5344 = vmax.f32 %v5273, 0.0
  %v5345 = vmax.f32 %v5278, 0.0
  %v5346 = vmax.f32 %v5283, 0.0
  %v5347 = vmax.f32 %v5288, 0.0
  %v5348 = vmax.f32 %v5293, 0.0
  %v5349 = vmax.f32 %v5298, 0.0
  %vm5350 = vcmask 523264
  %5351 = vst.msk [vmem:[%s3] sm:$0xff] %vm5350, %v5301
  %5352 = vst.msk [vmem:[%s3 + $0x8] sm:$0xff] %vm5350, %v5302
  %5353 = vst.msk [vmem:[%s3 + $0x10] sm:$0xff] %vm5350, %v5303
  %5354 = vst.msk [vmem:[%s3 + $0x18] sm:$0xff] %vm5350, %v5304
  %5355 = vst.msk [vmem:[%s3 + $0x20] sm:$0xff] %vm5350, %v5305
  %5356 = vst.msk [vmem:[%s3 + $0x28] sm:$0xff] %vm5350, %v5306
  %5357 = vst.msk [vmem:[%s3 + $0x30] sm:$0xff] %vm5350, %v5307
  %5358 = vst.msk [vmem:[%s3 + $0x38] sm:$0xff] %vm5350, %v5308
  %5359 = vst.msk [vmem:[%s3 + $0x40] sm:$0xff] %vm5350, %v5309
  %5360 = vst.msk [vmem:[%s3 + $0x48] sm:$0xff] %vm5350, %v5310
  %5361 = vst.msk [vmem:[%s3 + $0x50] sm:$0xff] %vm5350, %v5311
  %5362 = vst.msk [vmem:[%s3 + $0x58] sm:$0xff] %vm5350, %v5312
  %5363 = vst.msk [vmem:[%s3 + $0x60] sm:$0xff] %vm5350, %v5313
  %5364 = vst.msk [vmem:[%s3 + $0x68] sm:$0xff] %vm5350, %v5314
  %5365 = vst.msk [vmem:[%s3 + $0x70] sm:$0xff] %vm5350, %v5315
  %5366 = vst.msk [vmem:[%s3 + $0x78] sm:$0xff] %vm5350, %v5316
  %5367 = vst.msk [vmem:[%s3 + $0x80] sm:$0xff] %vm5350, %v5317
  %5368 = vst.msk [vmem:[%s3 + $0x88] sm:$0xff] %vm5350, %v5318
  %5369 = vst.msk [vmem:[%s3 + $0x90] sm:$0xff] %vm5350, %v5319
  %5370 = vst.msk [vmem:[%s3 + $0x98] sm:$0xff] %vm5350, %v5320
  %5371 = vst.msk [vmem:[%s3 + $0xa0] sm:$0xff] %vm5350, %v5321
  %5372 = vst.msk [vmem:[%s3 + $0xa8] sm:$0xff] %vm5350, %v5322
  %5373 = vst.msk [vmem:[%s3 + $0xb0] sm:$0xff] %vm5350, %v5323
  %5374 = vst.msk [vmem:[%s3 + $0xb8] sm:$0xff] %vm5350, %v5324
  %5375 = vst.msk [vmem:[%s3 + $0xc0] sm:$0xff] %vm5350, %v5325
  %5376 = vst.msk [vmem:[%s3 + $0xc8] sm:$0xff] %vm5350, %v5326
  %5377 = vst.msk [vmem:[%s3 + $0xd0] sm:$0xff] %vm5350, %v5327
  %5378 = vst.msk [vmem:[%s3 + $0xd8] sm:$0xff] %vm5350, %v5328
  %5379 = vst.msk [vmem:[%s3 + $0xe0] sm:$0xff] %vm5350, %v5329
  %5380 = vst.msk [vmem:[%s3 + $0xe8] sm:$0xff] %vm5350, %v5330
  %5381 = vst.msk [vmem:[%s3 + $0xf0] sm:$0xff] %vm5350, %v5331
  %5382 = vst.msk [vmem:[%s3 + $0xf8] sm:$0xff] %vm5350, %v5332
  %5383 = vst.msk [vmem:[%s3 + $0x100] sm:$0xff] %vm5350, %v5333
  %5384 = vst.msk [vmem:[%s3 + $0x108] sm:$0xff] %vm5350, %v5334
  %5385 = vst.msk [vmem:[%s3 + $0x110] sm:$0xff] %vm5350, %v5335
  %5386 = vst.msk [vmem:[%s3 + $0x118] sm:$0xff] %vm5350, %v5336
  %5387 = vst.msk [vmem:[%s3 + $0x120] sm:$0xff] %vm5350, %v5337
  %5388 = vst.msk [vmem:[%s3 + $0x128] sm:$0xff] %vm5350, %v5338
  %5389 = vst.msk [vmem:[%s3 + $0x130] sm:$0xff] %vm5350, %v5339
  %5390 = vst.msk [vmem:[%s3 + $0x138] sm:$0xff] %vm5350, %v5340
  %5391 = vst.msk [vmem:[%s3 + $0x140] sm:$0xff] %vm5350, %v5341
  %5392 = vst.msk [vmem:[%s3 + $0x148] sm:$0xff] %vm5350, %v5342
  %5393 = vst.msk [vmem:[%s3 + $0x150] sm:$0xff] %vm5350, %v5343
  %5394 = vst.msk [vmem:[%s3 + $0x158] sm:$0xff] %vm5350, %v5344
  %5395 = vst.msk [vmem:[%s3 + $0x160] sm:$0xff] %vm5350, %v5345
  %5396 = vst.msk [vmem:[%s3 + $0x168] sm:$0xff] %vm5350, %v5346
  %5397 = vst.msk [vmem:[%s3 + $0x170] sm:$0xff] %vm5350, %v5347
  %5398 = vst.msk [vmem:[%s3 + $0x178] sm:$0xff] %vm5350, %v5348
  %5399 = vst.msk [vmem:[%s3 + $0x180] sm:$0xff] %vm5350, %v5349
  // Predicated region
  $region14: #{clip_vision_forward.2} parent=0 // pred_check
    _
  $region15: #{clip_vision_forward.2} parent=0 // pred_check_branch
    %5401 = sbr.rel (0) target = $region17
  $region16: #{clip_vision_forward.2} parent=0 // pred_region
    _
  $region17: #{clip_vision_forward.2} parent=0 // pred_fallthru
    _
  // Predicated region
  $region18: #{clip_vision_forward.2} parent=0 // pred_check
    _
  $region19: #{clip_vision_forward.2} parent=0 // pred_check_branch
    %5403 = sbr.rel (0) target = $region21
  $region20: #{clip_vision_forward.2} parent=0 // pred_region
    _
  $region21: #{clip_vision_forward.2} parent=0 // pred_fallthru
    _

</llo_original>
